<compile_context>
chip_gen: v6e
topology: v6e:2x2x1
jax: 0.10.0
libtpu: 0.0.40
codegen_flags: <defaults>
</compile_context>

<pallas_src>
import numpy as np
import jax
import jax.numpy as jnp
from jax.experimental import pallas as pl
from jax.experimental.pallas import tpu as pltpu

# ----------------------- small synthetic config -----------------------
IMG_SIZE   = 16        # configs.model_conf['mfcc_size']
PATCH      = 4         # configs.model_conf['h']
IMG_CH     = 3         # configs.model_conf['img_channel']
D          = 32        # configs.model_conf['d']
NUM_HEADS  = (2, 4)    # per stage
NUM_BLOCKS = (1, 1)    # per stage
WIN_SIZE   = 7         # clamped per stage to min(in_res) (as in the PyTorch code)
MLP_RATIO  = 4.0
NUM_LABELS = 10
EPS        = 1e-5      # nn.LayerNorm default
# all dropout / drop_path rates are 0.0 -> identity at inference


# ----------------------- static stage configuration -----------------------

def make_stage_configs():
    cfgs = []
    res = (IMG_SIZE // PATCH, IMG_SIZE // PATCH)
    dim = D
    for i in range(len(NUM_BLOCKS)):
        ws, shift = WIN_SIZE, WIN_SIZE // 2
        if min(res) <= ws:
            ws, shift = min(res), 0              # PyTorch HST_Block clamps the same way
        # The fused kernel processes one image per grid step and assumes exactly
        # one window per image with no shift; both are guaranteed by this config.
        # TODO(synk): general multi-window / shifted-window (roll + attn_mask)
        # layout is not implemented (unreachable for win_size >= min(in_res)).
        assert shift == 0 and ws == res[0] == res[1], (
            "general multi-window / shifted-window layout not implemented")
        cfgs.append(dict(res=res, ws=ws, heads=NUM_HEADS[i], dim=dim,
                         num_blocks=NUM_BLOCKS[i],
                         has_merge=(i < len(NUM_BLOCKS) - 1)))
        dim *= 2
        res = (res[0] // 2, res[1] // 2)
    return cfgs


STAGE_CFG = make_stage_configs()


# ============================ in-kernel helpers ============================

def _bf16(x):
    return x.astype(jnp.bfloat16)


def _layer_norm(x, g, b):
    """LayerNorm over the last dim, f32 math (matches nn.LayerNorm, biased var)."""
    mean = jnp.mean(x, axis=-1, keepdims=True)
    var = jnp.mean(jnp.square(x - mean), axis=-1, keepdims=True)
    return (x - mean) * jax.lax.rsqrt(var + EPS) * g + b


def _erf(x):
    # Abramowitz & Stegun 7.1.26 rational approximation, |err| <= 1.5e-7.
    # exp + approx-reciprocal land on the EUP slot; the rest is VPU mul/add.
    p = 0.3275911
    a1, a2, a3, a4, a5 = (0.254829592, -0.284496736, 1.421413741,
                          -1.453152027, 1.061405429)
    sign = jnp.where(x >= 0.0, 1.0, -1.0)
    ax = jnp.abs(x)
    t = pl.reciprocal(1.0 + p * ax, approx=True)
    poly = t * (a1 + t * (a2 + t * (a3 + t * (a4 + t * a5))))
    return sign * (1.0 - poly * jnp.exp(-ax * ax))


def _gelu_exact(x):
    # nn.GELU() default (erf form), f32.
    return 0.5 * x * (1.0 + _erf(x * 0.7071067811865476))


def _attention(t, heads, wqkv_ref, bqkv_ref, wproj_ref, bproj_ref, bias_ref, a):
    """LWMSA for ONE window (== one image per grid step): no cross-window mask."""
    N, C = t.shape
    dh = C // heads
    # Single QKV matmul; 1/sqrt(dh) is already folded into the Q columns.
    qkv = jnp.dot(_bf16(t), wqkv_ref[a],
                  preferred_element_type=jnp.float32) + bqkv_ref[a]
    qkv = _bf16(qkv)                                     # one cast for all heads
    q = jnp.stack([qkv[:, h * dh:(h + 1) * dh] for h in range(heads)])
    k = jnp.stack([qkv[:, C + h * dh:C + (h + 1) * dh] for h in range(heads)])
    v = jnp.stack([qkv[:, 2 * C + h * dh:2 * C + (h + 1) * dh] for h in range(heads)])
    # Head-batched QK^T / softmax / PV.
    s = jnp.einsum('hqd,hkd->hqk', q, k, preferred_element_type=jnp.float32)
    s = s + bias_ref[a]                                  # [heads, N, N] rel-pos bias
    s = s - jnp.max(s, axis=-1, keepdims=True)
    p = jnp.exp(s)
    p = p * pl.reciprocal(jnp.sum(p, axis=-1, keepdims=True), approx=True)
    o = jnp.einsum('hqk,hkd->hqd', _bf16(p), v, preferred_element_type=jnp.float32)
    # Lane-concat head outputs -> single K=C output projection (no per-head K=16
    # matmuls, no VPU accumulate adds).
    o_cat = jnp.concatenate([o[h] for h in range(heads)], axis=-1)
    return jnp.dot(_bf16(o_cat), wproj_ref[a],
                   preferred_element_type=jnp.float32) + bproj_ref[a]


def _mlp(t, w1_ref, b1_ref, w2_ref, b2_ref, a):
    h1 = jnp.dot(_bf16(t), w1_ref[a],
                 preferred_element_type=jnp.float32) + b1_ref[a]
    h1 = _gelu_exact(h1)                                 # exact erf GELU, f32
    return jnp.dot(_bf16(h1), w2_ref[a],
                   preferred_element_type=jnp.float32) + b2_ref[a]


def _hst_block(x, heads, lng, lnb, wqkv, bqkv, wproj, bproj, bias, w1, b1, w2, b2):
    """HST_Block: 2x [LN -> W-MSA -> +res -> LN -> MLP -> +res]."""
    x = x + _attention(_layer_norm(x, lng[0], lnb[0]), heads,
                       wqkv, bqkv, wproj, bproj, bias, 0)
    x = x + _mlp(_layer_norm(x, lng[1], lnb[1]), w1, b1, w2, b2, 0)
    # shift_size == 0 in this config -> second attention is a plain W-MSA too.
    x = x + _attention(_layer_norm(x, lng[2], lnb[2]), heads,
                       wqkv, bqkv, wproj, bproj, bias, 1)
    x = x + _mlp(_layer_norm(x, lng[3], lnb[3]), w1, b1, w2, b2, 1)
    return x


def _patch_merge(x, H, W, g_ref, b_ref, w_ref):
    """2x2 neighborhood gather (static row slices) + LN + bias-free reduction matmul."""
    rows = []
    for i in range(H // 2):
        for j in range(W // 2):
            def r(hh, ww):
                idx = hh * W + ww
                return x[idx:idx + 1, :]
            rows.append(jnp.concatenate(
                [r(2 * i, 2 * j), r(2 * i + 1, 2 * j),
                 r(2 * i, 2 * j + 1), r(2 * i + 1, 2 * j + 1)], axis=-1))
    xc = jnp.concatenate(rows, axis=0)                   # [(H/2)*(W/2), 4C]
    xn = _layer_norm(xc, g_ref[...], b_ref[...])
    return jnp.dot(_bf16(xn), w_ref[...], preferred_element_type=jnp.float32)


# ============================ fused forward kernel ============================

def _hst_forward_kernel(x_ref, *refs):
    """One grid step == one image: patch-embed -> stages -> pooled head logits."""
    o_ref = refs[-1]
    it = iter(refs[:-1])
    nxt = lambda: next(it)

    # --- PatchPartition projection + bias + LayerNorm ---
    pw, pb, pg, pbb = nxt(), nxt(), nxt(), nxt()
    x = jnp.dot(_bf16(x_ref[0]), pw[...],
                preferred_element_type=jnp.float32) + pb[...]
    x = _layer_norm(x, pg[...], pbb[...])                # [L0, D] f32, stays in VMEM
    # dropout(p=0) / drop_path(0) -> identity everywhere.

    # --- HST stages (blocks + optional patch-merge), all resident in VMEM ---
    for cfg in STAGE_CFG:
        for _ in range(cfg["num_blocks"]):
            lng, lnb = nxt(), nxt()
            wqkv, bqkv, wproj, bproj, bias = nxt(), nxt(), nxt(), nxt(), nxt()
            w1, b1, w2, b2 = nxt(), nxt(), nxt(), nxt()
            x = _hst_block(x, cfg["heads"], lng, lnb, wqkv, bqkv, wproj, bproj,
                           bias, w1, b1, w2, b2)
        if cfg["has_merge"]:
            mg, mb, mw = nxt(), nxt(), nxt()
            H, W = cfg["res"]
            x = _patch_merge(x, H, W, mg, mb, mw)

    # --- final LayerNorm + token mean-pool (AdaptiveAvgPool1d) + classifier ---
    fg, fb, hw, hb = nxt(), nxt(), nxt(), nxt()
    xn = _layer_norm(x, fg[...], fb[...])
    pooled = jnp.mean(xn, axis=0, keepdims=True)         # [1, C]
    logits = jnp.dot(_bf16(pooled), hw[...],
                     preferred_element_type=jnp.float32) + hb[...]
    o_ref[0] = logits.astype(o_ref.dtype)


# ============================ pallas_call wrapper ============================

def _flat_params(params):
    flat = [params["patch_w"], params["patch_b"],
            params["patch_ln_g"], params["patch_ln_b"]]
    for stage_p in params["stages"]:
        for blk in stage_p["blocks"]:
            flat += [blk["ln_g"], blk["ln_b"], blk["wqkv"], blk["bqkv"],
                     blk["wproj"], blk["bproj"], blk["rel_bias"],
                     blk["w1"], blk["b1"], blk["w2"], blk["b2"]]
        if stage_p["merge"] is not None:
            m = stage_p["merge"]
            flat += [m["ln_g"], m["ln_b"], m["w"]]
    flat += [params["final_ln_g"], params["final_ln_b"],
             params["head_w"], params["head_b"]]
    return flat


@jax.jit
def hst_forward(x, params):
    B, Cin, H, W = x.shape
    hp, wp = H // PATCH, W // PATCH
    # PatchPartition: stride-PATCH Conv2d == per-patch flatten (c, kh, kw) + matmul.
    patches = x.reshape(B, Cin, hp, PATCH, wp, PATCH).transpose(0, 2, 4, 1, 3, 5)
    patches = patches.reshape(B, hp * wp, Cin * PATCH * PATCH)

    flat = _flat_params(params)
    L0, PD = patches.shape[1], patches.shape[2]

    # Per-image block of patches; all weights are whole-array, grid-invariant
    # blocks (constant index_map -> fetched once, re-used across grid steps).
    in_specs = [pl.BlockSpec((1, L0, PD), lambda b: (b, 0, 0))]
    for p in flat:
        in_specs.append(pl.BlockSpec(p.shape, lambda b, n=p.ndim: (0,) * n))

    # Everything (weights + activations) is << 1 MiB, so no BlockSpec tiling or
    # vmem_limit_bytes needed even on v7x's 64 MiB VMEM.
    # TODO(synk): add activation tiling if B / L / dim grow beyond VMEM.
    out = pl.pallas_call(
        _hst_forward_kernel,
        grid=(B,),
        in_specs=in_specs,
        out_specs=pl.BlockSpec((1, 1, NUM_LABELS), lambda b: (b, 0, 0)),
        out_shape=jax.ShapeDtypeStruct((B, 1, NUM_LABELS), jnp.float32),
        compiler_params=pltpu.CompilerParams(
            dimension_semantics=("parallel",)),   # v7x: one image per TensorCore
    )(patches, *flat)
    return out.reshape(B, NUM_LABELS)


# ============================ parameter init ============================

def make_rel_pos_index(ws):
    coords = np.stack(np.meshgrid(np.arange(ws), np.arange(ws), indexing="ij"))
    flat = coords.reshape(2, -1)
    rel = (flat[:, :, None] - flat[:, None, :]).transpose(1, 2, 0).astype(np.int64)
    rel[..., 0] += ws - 1
    rel[..., 1] += ws - 1
    rel[..., 0] *= 2 * ws - 1
    return rel.sum(-1)                               # [N, N]


def init_params(key):
    key_iter = iter(jax.random.split(key, 512))

    def tn(shape, std=0.02):
        return (std * jax.random.truncated_normal(next(key_iter), -2.0, 2.0, shape)
                ).astype(jnp.float32)

    def qkv_pair_bf16(dim, heads):
        # 1/sqrt(dh) folded into the Q columns (and into the Q bias, which is
        # zero-initialized here), so the kernel never multiplies by scale.
        scale = float(dim // heads) ** -0.5

        def one():
            w = tn((dim, 3 * dim))
            return w.at[:, :dim].multiply(scale)

        return jnp.stack([one(), one()]).astype(jnp.bfloat16)

    def stack2_bf16(make):
        return jnp.stack([make(), make()]).astype(jnp.bfloat16)

    def rel_bias_pair(heads, ws):
        N = ws * ws
        idx = make_rel_pos_index(ws).reshape(-1)

        def one():
            table = np.asarray(tn(((2 * ws - 1) * (2 * ws - 1), heads)))
            rb = table[idx].reshape(N, N, heads).transpose(2, 0, 1)
            return jnp.asarray(rb, jnp.float32)

        return jnp.stack([one(), one()])             # [2, heads, N, N] (attn1, attn2)

    params = {
        "patch_w": tn((IMG_CH * PATCH * PATCH, D)).astype(jnp.bfloat16),
        "patch_b": jnp.zeros((1, D), jnp.float32),
        "patch_ln_g": jnp.ones((1, D), jnp.float32),
        "patch_ln_b": jnp.zeros((1, D), jnp.float32),
    }

    stages = []
    for cfg in STAGE_CFG:
        dim, heads, ws = cfg["dim"], cfg["heads"], cfg["ws"]
        mlp_dim = int(dim * MLP_RATIO)
        blocks = []
        for _ in range(cfg["num_blocks"]):
            blocks.append({
                "ln_g": jnp.ones((4, 1, dim), jnp.float32),
                "ln_b": jnp.zeros((4, 1, dim), jnp.float32),
                "wqkv": qkv_pair_bf16(dim, heads),
                "bqkv": jnp.zeros((2, 1, 3 * dim), jnp.float32),
                "wproj": stack2_bf16(lambda: tn((dim, dim))),
                "bproj": jnp.zeros((2, 1, dim), jnp.float32),
                "rel_bias": rel_bias_pair(heads, ws),
                "w1": stack2_bf16(lambda: tn((dim, mlp_dim))),
                "b1": jnp.zeros((2, 1, mlp_dim), jnp.float32),
                "w2": stack2_bf16(lambda: tn((mlp_dim, dim))),
                "b2": jnp.zeros((2, 1, dim), jnp.float32),
            })
        merge = None
        if cfg["has_merge"]:
            merge = {"ln_g": jnp.ones((1, 4 * dim), jnp.float32),
                     "ln_b": jnp.zeros((1, 4 * dim), jnp.float32),
                     "w": tn((4 * dim, 2 * dim)).astype(jnp.bfloat16)}
        stages.append({"blocks": blocks, "merge": merge})
    params["stages"] = stages

    feat_dim = STAGE_CFG[-1]["dim"]
    params["final_ln_g"] = jnp.ones((1, feat_dim), jnp.float32)
    params["final_ln_b"] = jnp.zeros((1, feat_dim), jnp.float32)
    params["head_w"] = tn((feat_dim, NUM_LABELS)).astype(jnp.bfloat16)
    params["head_b"] = jnp.zeros((1, NUM_LABELS), jnp.float32)
    return params


# ============================ main ============================

if __name__ == "__main__":
    key = jax.random.PRNGKey(0)
    pkey, xkey = jax.random.split(key)
    params = init_params(pkey)
    x = jax.random.normal(xkey, (2, IMG_CH, IMG_SIZE, IMG_SIZE), jnp.float32)

    logits = hst_forward(x, params)
    logits = jax.block_until_ready(logits)

    assert logits.shape == (2, NUM_LABELS), logits.shape
    assert bool(jnp.all(jnp.isfinite(logits)))
    print("KERNEL_OK")
</pallas_src>

<mosaic_0001>
module attributes {stable_mosaic.version = 11 : i64} {
  func.func @_hst_forward_kernel(%arg0: i32, %arg1: memref<1x16x48xf32, #tpu.memory_space<vmem>>, %arg2: memref<48x32xbf16, #tpu.memory_space<vmem>>, %arg3: memref<1x32xf32, #tpu.memory_space<vmem>>, %arg4: memref<1x32xf32, #tpu.memory_space<vmem>>, %arg5: memref<1x32xf32, #tpu.memory_space<vmem>>, %arg6: memref<4x1x32xf32, #tpu.memory_space<vmem>>, %arg7: memref<4x1x32xf32, #tpu.memory_space<vmem>>, %arg8: memref<2x32x96xbf16, #tpu.memory_space<vmem>>, %arg9: memref<2x1x96xf32, #tpu.memory_space<vmem>>, %arg10: memref<2x32x32xbf16, #tpu.memory_space<vmem>>, %arg11: memref<2x1x32xf32, #tpu.memory_space<vmem>>, %arg12: memref<2x2x16x16xf32, #tpu.memory_space<vmem>>, %arg13: memref<2x32x128xbf16, #tpu.memory_space<vmem>>, %arg14: memref<2x1x128xf32, #tpu.memory_space<vmem>>, %arg15: memref<2x128x32xbf16, #tpu.memory_space<vmem>>, %arg16: memref<2x1x32xf32, #tpu.memory_space<vmem>>, %arg17: memref<1x128xf32, #tpu.memory_space<vmem>>, %arg18: memref<1x128xf32, #tpu.memory_space<vmem>>, %arg19: memref<128x64xbf16, #tpu.memory_space<vmem>>, %arg20: memref<4x1x64xf32, #tpu.memory_space<vmem>>, %arg21: memref<4x1x64xf32, #tpu.memory_space<vmem>>, %arg22: memref<2x64x192xbf16, #tpu.memory_space<vmem>>, %arg23: memref<2x1x192xf32, #tpu.memory_space<vmem>>, %arg24: memref<2x64x64xbf16, #tpu.memory_space<vmem>>, %arg25: memref<2x1x64xf32, #tpu.memory_space<vmem>>, %arg26: memref<2x4x4x4xf32, #tpu.memory_space<vmem>>, %arg27: memref<2x64x256xbf16, #tpu.memory_space<vmem>>, %arg28: memref<2x1x256xf32, #tpu.memory_space<vmem>>, %arg29: memref<2x256x64xbf16, #tpu.memory_space<vmem>>, %arg30: memref<2x1x64xf32, #tpu.memory_space<vmem>>, %arg31: memref<1x64xf32, #tpu.memory_space<vmem>>, %arg32: memref<1x64xf32, #tpu.memory_space<vmem>>, %arg33: memref<64x10xbf16, #tpu.memory_space<vmem>>, %arg34: memref<1x10xf32, #tpu.memory_space<vmem>>, %arg35: memref<1x1x10xf32, #tpu.memory_space<vmem>>) attributes {dimension_semantics = [#tpu.dimension_semantics<parallel>], iteration_bounds = array<i64: 2>, scalar_prefetch = 0 : i64, scratch_operands = 0 : i64, tpu.core_type = #tpu.core_type<tc>, window_params = [{transform_indices = @transform_0, window_bounds = array<i64: 1, 16, 48>}, {pipeline_mode = #tpu.pipeline_mode<synchronous>, transform_indices = @transform_1, window_bounds = array<i64: 48, 32>}, {pipeline_mode = #tpu.pipeline_mode<synchronous>, transform_indices = @transform_2, window_bounds = array<i64: 1, 32>}, {pipeline_mode = #tpu.pipeline_mode<synchronous>, transform_indices = @transform_3, window_bounds = array<i64: 1, 32>}, {pipeline_mode = #tpu.pipeline_mode<synchronous>, transform_indices = @transform_4, window_bounds = array<i64: 1, 32>}, {pipeline_mode = #tpu.pipeline_mode<synchronous>, transform_indices = @transform_5, window_bounds = array<i64: 4, 1, 32>}, {pipeline_mode = #tpu.pipeline_mode<synchronous>, transform_indices = @transform_6, window_bounds = array<i64: 4, 1, 32>}, {pipeline_mode = #tpu.pipeline_mode<synchronous>, transform_indices = @transform_7, window_bounds = array<i64: 2, 32, 96>}, {pipeline_mode = #tpu.pipeline_mode<synchronous>, transform_indices = @transform_8, window_bounds = array<i64: 2, 1, 96>}, {pipeline_mode = #tpu.pipeline_mode<synchronous>, transform_indices = @transform_9, window_bounds = array<i64: 2, 32, 32>}, {pipeline_mode = #tpu.pipeline_mode<synchronous>, transform_indices = @transform_10, window_bounds = array<i64: 2, 1, 32>}, {pipeline_mode = #tpu.pipeline_mode<synchronous>, transform_indices = @transform_11, window_bounds = array<i64: 2, 2, 16, 16>}, {pipeline_mode = #tpu.pipeline_mode<synchronous>, transform_indices = @transform_12, window_bounds = array<i64: 2, 32, 128>}, {pipeline_mode = #tpu.pipeline_mode<synchronous>, transform_indices = @transform_13, window_bounds = array<i64: 2, 1, 128>}, {pipeline_mode = #tpu.pipeline_mode<synchronous>, transform_indices = @transform_14, window_bounds = array<i64: 2, 128, 32>}, {pipeline_mode = #tpu.pipeline_mode<synchronous>, transform_indices = @transform_15, window_bounds = array<i64: 2, 1, 32>}, {pipeline_mode = #tpu.pipeline_mode<synchronous>, transform_indices = @transform_16, window_bounds = array<i64: 1, 128>}, {pipeline_mode = #tpu.pipeline_mode<synchronous>, transform_indices = @transform_17, window_bounds = array<i64: 1, 128>}, {pipeline_mode = #tpu.pipeline_mode<synchronous>, transform_indices = @transform_18, window_bounds = array<i64: 128, 64>}, {pipeline_mode = #tpu.pipeline_mode<synchronous>, transform_indices = @transform_19, window_bounds = array<i64: 4, 1, 64>}, {pipeline_mode = #tpu.pipeline_mode<synchronous>, transform_indices = @transform_20, window_bounds = array<i64: 4, 1, 64>}, {pipeline_mode = #tpu.pipeline_mode<synchronous>, transform_indices = @transform_21, window_bounds = array<i64: 2, 64, 192>}, {pipeline_mode = #tpu.pipeline_mode<synchronous>, transform_indices = @transform_22, window_bounds = array<i64: 2, 1, 192>}, {pipeline_mode = #tpu.pipeline_mode<synchronous>, transform_indices = @transform_23, window_bounds = array<i64: 2, 64, 64>}, {pipeline_mode = #tpu.pipeline_mode<synchronous>, transform_indices = @transform_24, window_bounds = array<i64: 2, 1, 64>}, {pipeline_mode = #tpu.pipeline_mode<synchronous>, transform_indices = @transform_25, window_bounds = array<i64: 2, 4, 4, 4>}, {pipeline_mode = #tpu.pipeline_mode<synchronous>, transform_indices = @transform_26, window_bounds = array<i64: 2, 64, 256>}, {pipeline_mode = #tpu.pipeline_mode<synchronous>, transform_indices = @transform_27, window_bounds = array<i64: 2, 1, 256>}, {pipeline_mode = #tpu.pipeline_mode<synchronous>, transform_indices = @transform_28, window_bounds = array<i64: 2, 256, 64>}, {pipeline_mode = #tpu.pipeline_mode<synchronous>, transform_indices = @transform_29, window_bounds = array<i64: 2, 1, 64>}, {pipeline_mode = #tpu.pipeline_mode<synchronous>, transform_indices = @transform_30, window_bounds = array<i64: 1, 64>}, {pipeline_mode = #tpu.pipeline_mode<synchronous>, transform_indices = @transform_31, window_bounds = array<i64: 1, 64>}, {pipeline_mode = #tpu.pipeline_mode<synchronous>, transform_indices = @transform_32, window_bounds = array<i64: 64, 10>}, {pipeline_mode = #tpu.pipeline_mode<synchronous>, transform_indices = @transform_33, window_bounds = array<i64: 1, 10>}, {transform_indices = @transform_34, window_bounds = array<i64: 1, 1, 10>}]} {
    %c0 = arith.constant 0 : index
    %c0_0 = arith.constant 0 : index
    %c0_1 = arith.constant 0 : index
    %0 = vector.load %arg1[%c0, %c0_0, %c0_1] : memref<1x16x48xf32, #tpu.memory_space<vmem>>, vector<1x16x48xf32>
    %1 = vector.shape_cast %0 : vector<1x16x48xf32> to vector<16x48xf32>
    %2 = arith.truncf %1 : vector<16x48xf32> to vector<16x48xbf16>
    %c0_2 = arith.constant 0 : index
    %c0_3 = arith.constant 0 : index
    %3 = vector.load %arg2[%c0_2, %c0_3] : memref<48x32xbf16, #tpu.memory_space<vmem>>, vector<48x32xbf16>
    %cst = arith.constant dense<0.000000e+00> : vector<16x32xf32>
    %4 = tpu.matmul %2, %3, %cst {dimension_numbers = #tpu.dot_dimension_numbers<[1], [0], [0], [1], [0, 0, 1, 1], [], []>} : vector<16x48xbf16>, vector<48x32xbf16>, vector<16x32xf32> -> vector<16x32xf32>
    %c0_4 = arith.constant 0 : index
    %c0_5 = arith.constant 0 : index
    %5 = vector.load %arg3[%c0_4, %c0_5] : memref<1x32xf32, #tpu.memory_space<vmem>>, vector<1x32xf32>
    %6 = vector.broadcast %5 : vector<1x32xf32> to vector<16x32xf32>
    %7 = arith.addf %4, %6 : vector<16x32xf32>
    %c0_6 = arith.constant 0 : index
    %c0_7 = arith.constant 0 : index
    %8 = vector.load %arg4[%c0_6, %c0_7] : memref<1x32xf32, #tpu.memory_space<vmem>>, vector<1x32xf32>
    %c0_8 = arith.constant 0 : index
    %c0_9 = arith.constant 0 : index
    %9 = vector.load %arg5[%c0_8, %c0_9] : memref<1x32xf32, #tpu.memory_space<vmem>>, vector<1x32xf32>
    %cst_10 = arith.constant dense<0.000000e+00> : vector<16xf32>
    %10 = vector.multi_reduction <add>, %7, %cst_10 [1] : vector<16x32xf32> to vector<16xf32>
    %11 = vector.shape_cast %10 : vector<16xf32> to vector<16x1xf32>
    %cst_11 = arith.constant 3.200000e+01 : f32
    %12 = vector.broadcast %cst_11 : f32 to vector<16x1xf32>
    %13 = arith.divf %11, %12 : vector<16x1xf32>
    %14 = vector.broadcast %13 : vector<16x1xf32> to vector<16x32xf32>
    %15 = arith.subf %7, %14 : vector<16x32xf32>
    %16 = arith.mulf %15, %15 : vector<16x32xf32>
    %cst_12 = arith.constant dense<0.000000e+00> : vector<16xf32>
    %17 = vector.multi_reduction <add>, %16, %cst_12 [1] : vector<16x32xf32> to vector<16xf32>
    %18 = vector.shape_cast %17 : vector<16xf32> to vector<16x1xf32>
    %cst_13 = arith.constant 3.200000e+01 : f32
    %19 = vector.broadcast %cst_13 : f32 to vector<16x1xf32>
    %20 = arith.divf %18, %19 : vector<16x1xf32>
    %21 = vector.broadcast %13 : vector<16x1xf32> to vector<16x32xf32>
    %22 = arith.subf %7, %21 : vector<16x32xf32>
    %cst_14 = arith.constant 9.99999974E-6 : f32
    %23 = vector.broadcast %cst_14 : f32 to vector<16x1xf32>
    %24 = arith.addf %20, %23 : vector<16x1xf32>
    %25 = math.rsqrt %24 : vector<16x1xf32>
    %26 = vector.broadcast %25 : vector<16x1xf32> to vector<16x32xf32>
    %27 = arith.mulf %22, %26 : vector<16x32xf32>
    %28 = vector.broadcast %8 : vector<1x32xf32> to vector<16x32xf32>
    %29 = arith.mulf %27, %28 : vector<16x32xf32>
    %30 = vector.broadcast %9 : vector<1x32xf32> to vector<16x32xf32>
    %31 = arith.addf %29, %30 : vector<16x32xf32>
    %c0_15 = arith.constant 0 : index
    %c0_16 = arith.constant 0 : index
    %c0_17 = arith.constant 0 : index
    %32 = vector.load %arg6[%c0_15, %c0_16, %c0_17] : memref<4x1x32xf32, #tpu.memory_space<vmem>>, vector<1x1x32xf32>
    %33 = vector.shape_cast %32 : vector<1x1x32xf32> to vector<1x32xf32>
    %c0_18 = arith.constant 0 : index
    %c0_19 = arith.constant 0 : index
    %c0_20 = arith.constant 0 : index
    %34 = vector.load %arg7[%c0_18, %c0_19, %c0_20] : memref<4x1x32xf32, #tpu.memory_space<vmem>>, vector<1x1x32xf32>
    %35 = vector.shape_cast %34 : vector<1x1x32xf32> to vector<1x32xf32>
    %cst_21 = arith.constant dense<0.000000e+00> : vector<16xf32>
    %36 = vector.multi_reduction <add>, %31, %cst_21 [1] : vector<16x32xf32> to vector<16xf32>
    %37 = vector.shape_cast %36 : vector<16xf32> to vector<16x1xf32>
    %cst_22 = arith.constant 3.200000e+01 : f32
    %38 = vector.broadcast %cst_22 : f32 to vector<16x1xf32>
    %39 = arith.divf %37, %38 : vector<16x1xf32>
    %40 = vector.broadcast %39 : vector<16x1xf32> to vector<16x32xf32>
    %41 = arith.subf %31, %40 : vector<16x32xf32>
    %42 = arith.mulf %41, %41 : vector<16x32xf32>
    %cst_23 = arith.constant dense<0.000000e+00> : vector<16xf32>
    %43 = vector.multi_reduction <add>, %42, %cst_23 [1] : vector<16x32xf32> to vector<16xf32>
    %44 = vector.shape_cast %43 : vector<16xf32> to vector<16x1xf32>
    %cst_24 = arith.constant 3.200000e+01 : f32
    %45 = vector.broadcast %cst_24 : f32 to vector<16x1xf32>
    %46 = arith.divf %44, %45 : vector<16x1xf32>
    %47 = vector.broadcast %39 : vector<16x1xf32> to vector<16x32xf32>
    %48 = arith.subf %31, %47 : vector<16x32xf32>
    %cst_25 = arith.constant 9.99999974E-6 : f32
    %49 = vector.broadcast %cst_25 : f32 to vector<16x1xf32>
    %50 = arith.addf %46, %49 : vector<16x1xf32>
    %51 = math.rsqrt %50 : vector<16x1xf32>
    %52 = vector.broadcast %51 : vector<16x1xf32> to vector<16x32xf32>
    %53 = arith.mulf %48, %52 : vector<16x32xf32>
    %54 = vector.broadcast %33 : vector<1x32xf32> to vector<16x32xf32>
    %55 = arith.mulf %53, %54 : vector<16x32xf32>
    %56 = vector.broadcast %35 : vector<1x32xf32> to vector<16x32xf32>
    %57 = arith.addf %55, %56 : vector<16x32xf32>
    %58 = arith.truncf %57 : vector<16x32xf32> to vector<16x32xbf16>
    %c0_26 = arith.constant 0 : index
    %c0_27 = arith.constant 0 : index
    %c0_28 = arith.constant 0 : index
    %59 = vector.load %arg8[%c0_26, %c0_27, %c0_28] : memref<2x32x96xbf16, #tpu.memory_space<vmem>>, vector<1x32x96xbf16>
    %60 = vector.shape_cast %59 : vector<1x32x96xbf16> to vector<32x96xbf16>
    %cst_29 = arith.constant dense<0.000000e+00> : vector<16x96xf32>
    %61 = tpu.matmul %58, %60, %cst_29 {dimension_numbers = #tpu.dot_dimension_numbers<[1], [0], [0], [1], [0, 0, 1, 1], [], []>} : vector<16x32xbf16>, vector<32x96xbf16>, vector<16x96xf32> -> vector<16x96xf32>
    %c0_30 = arith.constant 0 : index
    %c0_31 = arith.constant 0 : index
    %c0_32 = arith.constant 0 : index
    %62 = vector.load %arg9[%c0_30, %c0_31, %c0_32] : memref<2x1x96xf32, #tpu.memory_space<vmem>>, vector<1x1x96xf32>
    %63 = vector.shape_cast %62 : vector<1x1x96xf32> to vector<1x96xf32>
    %64 = vector.broadcast %63 : vector<1x96xf32> to vector<16x96xf32>
    %65 = arith.addf %61, %64 : vector<16x96xf32>
    %66 = arith.truncf %65 : vector<16x96xf32> to vector<16x96xbf16>
    %67 = vector.extract_strided_slice %66 {offsets = [0, 0], sizes = [16, 16], strides = [1, 1]} : vector<16x96xbf16> to vector<16x16xbf16>
    %68 = vector.extract_strided_slice %66 {offsets = [0, 16], sizes = [16, 16], strides = [1, 1]} : vector<16x96xbf16> to vector<16x16xbf16>
    %69 = vector.shape_cast %67 : vector<16x16xbf16> to vector<1x16x16xbf16>
    %70 = vector.shape_cast %68 : vector<16x16xbf16> to vector<1x16x16xbf16>
    %71 = tpu.concatenate %69, %70 in 0 : vector<1x16x16xbf16>, vector<1x16x16xbf16> -> vector<2x16x16xbf16>
    %72 = vector.extract_strided_slice %66 {offsets = [0, 32], sizes = [16, 16], strides = [1, 1]} : vector<16x96xbf16> to vector<16x16xbf16>
    %73 = vector.extract_strided_slice %66 {offsets = [0, 48], sizes = [16, 16], strides = [1, 1]} : vector<16x96xbf16> to vector<16x16xbf16>
    %74 = vector.shape_cast %72 : vector<16x16xbf16> to vector<1x16x16xbf16>
    %75 = vector.shape_cast %73 : vector<16x16xbf16> to vector<1x16x16xbf16>
    %76 = tpu.concatenate %74, %75 in 0 : vector<1x16x16xbf16>, vector<1x16x16xbf16> -> vector<2x16x16xbf16>
    %77 = vector.extract_strided_slice %66 {offsets = [0, 64], sizes = [16, 16], strides = [1, 1]} : vector<16x96xbf16> to vector<16x16xbf16>
    %78 = vector.extract_strided_slice %66 {offsets = [0, 80], sizes = [16, 16], strides = [1, 1]} : vector<16x96xbf16> to vector<16x16xbf16>
    %79 = vector.shape_cast %77 : vector<16x16xbf16> to vector<1x16x16xbf16>
    %80 = vector.shape_cast %78 : vector<16x16xbf16> to vector<1x16x16xbf16>
    %81 = tpu.concatenate %79, %80 in 0 : vector<1x16x16xbf16>, vector<1x16x16xbf16> -> vector<2x16x16xbf16>
    "tpu.trace_start"() <{level = 10 : i32, message = "hqd,hkd->hqk"}> : () -> ()
    %cst_33 = arith.constant dense<0.000000e+00> : vector<2x16x16xf32>
    %82 = tpu.matmul %71, %76, %cst_33 {dimension_numbers = #tpu.dot_dimension_numbers<[2], [2], [1], [1], [0, 0, 0, 1, 1, 1], [0], [0]>} : vector<2x16x16xbf16>, vector<2x16x16xbf16>, vector<2x16x16xf32> -> vector<2x16x16xf32>
    "tpu.trace_stop"() : () -> ()
    %c0_34 = arith.constant 0 : index
    %c0_35 = arith.constant 0 : index
    %c0_36 = arith.constant 0 : index
    %c0_37 = arith.constant 0 : index
    %83 = vector.load %arg12[%c0_34, %c0_35, %c0_36, %c0_37] : memref<2x2x16x16xf32, #tpu.memory_space<vmem>>, vector<1x2x16x16xf32>
    %84 = vector.shape_cast %83 : vector<1x2x16x16xf32> to vector<2x16x16xf32>
    %85 = arith.addf %82, %84 : vector<2x16x16xf32>
    %cst_38 = arith.constant dense<0xFF800000> : vector<2x16xf32>
    %86 = vector.multi_reduction <maximumf>, %85, %cst_38 [2] : vector<2x16x16xf32> to vector<2x16xf32>
    %87 = vector.shape_cast %86 : vector<2x16xf32> to vector<2x16x1xf32>
    %88 = vector.broadcast %87 : vector<2x16x1xf32> to vector<2x16x16xf32>
    %89 = arith.subf %85, %88 : vector<2x16x16xf32>
    %90 = math.exp %89 : vector<2x16x16xf32>
    %cst_39 = arith.constant dense<0.000000e+00> : vector<2x16xf32>
    %91 = vector.multi_reduction <add>, %90, %cst_39 [2] : vector<2x16x16xf32> to vector<2x16xf32>
    %92 = vector.shape_cast %91 : vector<2x16xf32> to vector<2x16x1xf32>
    %93 = tpu.reciprocal %92 {approx = true} : vector<2x16x1xf32> -> vector<2x16x1xf32>
    %94 = vector.broadcast %93 : vector<2x16x1xf32> to vector<2x16x16xf32>
    %95 = arith.mulf %90, %94 : vector<2x16x16xf32>
    %96 = arith.truncf %95 : vector<2x16x16xf32> to vector<2x16x16xbf16>
    "tpu.trace_start"() <{level = 10 : i32, message = "hqk,hkd->hqd"}> : () -> ()
    %cst_40 = arith.constant dense<0.000000e+00> : vector<2x16x16xf32>
    %97 = tpu.matmul %96, %81, %cst_40 {dimension_numbers = #tpu.dot_dimension_numbers<[2], [1], [1], [2], [0, 0, 0, 1, 1, 2], [0], [0]>} : vector<2x16x16xbf16>, vector<2x16x16xbf16>, vector<2x16x16xf32> -> vector<2x16x16xf32>
    "tpu.trace_stop"() : () -> ()
    %98 = vector.extract_strided_slice %97 {offsets = [0, 0, 0], sizes = [1, 16, 16], strides = [1, 1, 1]} : vector<2x16x16xf32> to vector<1x16x16xf32>
    %99 = vector.shape_cast %98 : vector<1x16x16xf32> to vector<16x16xf32>
    %100 = vector.extract_strided_slice %97 {offsets = [1, 0, 0], sizes = [1, 16, 16], strides = [1, 1, 1]} : vector<2x16x16xf32> to vector<1x16x16xf32>
    %101 = vector.shape_cast %100 : vector<1x16x16xf32> to vector<16x16xf32>
    %102 = tpu.concatenate %99, %101 in 1 : vector<16x16xf32>, vector<16x16xf32> -> vector<16x32xf32>
    %103 = arith.truncf %102 : vector<16x32xf32> to vector<16x32xbf16>
    %c0_41 = arith.constant 0 : index
    %c0_42 = arith.constant 0 : index
    %c0_43 = arith.constant 0 : index
    %104 = vector.load %arg10[%c0_41, %c0_42, %c0_43] : memref<2x32x32xbf16, #tpu.memory_space<vmem>>, vector<1x32x32xbf16>
    %105 = vector.shape_cast %104 : vector<1x32x32xbf16> to vector<32x32xbf16>
    %cst_44 = arith.constant dense<0.000000e+00> : vector<16x32xf32>
    %106 = tpu.matmul %103, %105, %cst_44 {dimension_numbers = #tpu.dot_dimension_numbers<[1], [0], [0], [1], [0, 0, 1, 1], [], []>} : vector<16x32xbf16>, vector<32x32xbf16>, vector<16x32xf32> -> vector<16x32xf32>
    %c0_45 = arith.constant 0 : index
    %c0_46 = arith.constant 0 : index
    %c0_47 = arith.constant 0 : index
    %107 = vector.load %arg11[%c0_45, %c0_46, %c0_47] : memref<2x1x32xf32, #tpu.memory_space<vmem>>, vector<1x1x32xf32>
    %108 = vector.shape_cast %107 : vector<1x1x32xf32> to vector<1x32xf32>
    %109 = vector.broadcast %108 : vector<1x32xf32> to vector<16x32xf32>
    %110 = arith.addf %106, %109 : vector<16x32xf32>
    %111 = arith.addf %31, %110 : vector<16x32xf32>
    %c1 = arith.constant 1 : index
    %c0_48 = arith.constant 0 : index
    %c0_49 = arith.constant 0 : index
    %112 = vector.load %arg6[%c1, %c0_48, %c0_49] : memref<4x1x32xf32, #tpu.memory_space<vmem>>, vector<1x1x32xf32>
    %113 = vector.shape_cast %112 : vector<1x1x32xf32> to vector<1x32xf32>
    %c1_50 = arith.constant 1 : index
    %c0_51 = arith.constant 0 : index
    %c0_52 = arith.constant 0 : index
    %114 = vector.load %arg7[%c1_50, %c0_51, %c0_52] : memref<4x1x32xf32, #tpu.memory_space<vmem>>, vector<1x1x32xf32>
    %115 = vector.shape_cast %114 : vector<1x1x32xf32> to vector<1x32xf32>
    %cst_53 = arith.constant dense<0.000000e+00> : vector<16xf32>
    %116 = vector.multi_reduction <add>, %111, %cst_53 [1] : vector<16x32xf32> to vector<16xf32>
    %117 = vector.shape_cast %116 : vector<16xf32> to vector<16x1xf32>
    %cst_54 = arith.constant 3.200000e+01 : f32
    %118 = vector.broadcast %cst_54 : f32 to vector<16x1xf32>
    %119 = arith.divf %117, %118 : vector<16x1xf32>
    %120 = vector.broadcast %119 : vector<16x1xf32> to vector<16x32xf32>
    %121 = arith.subf %111, %120 : vector<16x32xf32>
    %122 = arith.mulf %121, %121 : vector<16x32xf32>
    %cst_55 = arith.constant dense<0.000000e+00> : vector<16xf32>
    %123 = vector.multi_reduction <add>, %122, %cst_55 [1] : vector<16x32xf32> to vector<16xf32>
    %124 = vector.shape_cast %123 : vector<16xf32> to vector<16x1xf32>
    %cst_56 = arith.constant 3.200000e+01 : f32
    %125 = vector.broadcast %cst_56 : f32 to vector<16x1xf32>
    %126 = arith.divf %124, %125 : vector<16x1xf32>
    %127 = vector.broadcast %119 : vector<16x1xf32> to vector<16x32xf32>
    %128 = arith.subf %111, %127 : vector<16x32xf32>
    %cst_57 = arith.constant 9.99999974E-6 : f32
    %129 = vector.broadcast %cst_57 : f32 to vector<16x1xf32>
    %130 = arith.addf %126, %129 : vector<16x1xf32>
    %131 = math.rsqrt %130 : vector<16x1xf32>
    %132 = vector.broadcast %131 : vector<16x1xf32> to vector<16x32xf32>
    %133 = arith.mulf %128, %132 : vector<16x32xf32>
    %134 = vector.broadcast %113 : vector<1x32xf32> to vector<16x32xf32>
    %135 = arith.mulf %133, %134 : vector<16x32xf32>
    %136 = vector.broadcast %115 : vector<1x32xf32> to vector<16x32xf32>
    %137 = arith.addf %135, %136 : vector<16x32xf32>
    %138 = arith.truncf %137 : vector<16x32xf32> to vector<16x32xbf16>
    %c0_58 = arith.constant 0 : index
    %c0_59 = arith.constant 0 : index
    %c0_60 = arith.constant 0 : index
    %139 = vector.load %arg13[%c0_58, %c0_59, %c0_60] : memref<2x32x128xbf16, #tpu.memory_space<vmem>>, vector<1x32x128xbf16>
    %140 = vector.shape_cast %139 : vector<1x32x128xbf16> to vector<32x128xbf16>
    %cst_61 = arith.constant dense<0.000000e+00> : vector<16x128xf32>
    %141 = tpu.matmul %138, %140, %cst_61 {dimension_numbers = #tpu.dot_dimension_numbers<[1], [0], [0], [1], [0, 0, 1, 1], [], []>} : vector<16x32xbf16>, vector<32x128xbf16>, vector<16x128xf32> -> vector<16x128xf32>
    %c0_62 = arith.constant 0 : index
    %c0_63 = arith.constant 0 : index
    %c0_64 = arith.constant 0 : index
    %142 = vector.load %arg14[%c0_62, %c0_63, %c0_64] : memref<2x1x128xf32, #tpu.memory_space<vmem>>, vector<1x1x128xf32>
    %143 = vector.shape_cast %142 : vector<1x1x128xf32> to vector<1x128xf32>
    %144 = vector.broadcast %143 : vector<1x128xf32> to vector<16x128xf32>
    %145 = arith.addf %141, %144 : vector<16x128xf32>
    %cst_65 = arith.constant 5.000000e-01 : f32
    %146 = vector.broadcast %cst_65 : f32 to vector<16x128xf32>
    %147 = arith.mulf %146, %145 : vector<16x128xf32>
    %cst_66 = arith.constant 0.707106769 : f32
    %148 = vector.broadcast %cst_66 : f32 to vector<16x128xf32>
    %149 = arith.mulf %145, %148 : vector<16x128xf32>
    %cst_67 = arith.constant 0.000000e+00 : f32
    %150 = vector.broadcast %cst_67 : f32 to vector<16x128xf32>
    %151 = arith.cmpf oge, %149, %150 : vector<16x128xf32>
    %cst_68 = arith.constant 1.000000e+00 : f32
    %cst_69 = arith.constant -1.000000e+00 : f32
    %152 = vector.broadcast %cst_68 : f32 to vector<16x128xf32>
    %153 = vector.broadcast %cst_69 : f32 to vector<16x128xf32>
    %154 = arith.select %151, %152, %153 : vector<16x128xi1>, vector<16x128xf32>
    %155 = math.absf %149 : vector<16x128xf32>
    %cst_70 = arith.constant 0.327591091 : f32
    %156 = vector.broadcast %cst_70 : f32 to vector<16x128xf32>
    %157 = arith.mulf %156, %155 : vector<16x128xf32>
    %cst_71 = arith.constant 1.000000e+00 : f32
    %158 = vector.broadcast %cst_71 : f32 to vector<16x128xf32>
    %159 = arith.addf %158, %157 : vector<16x128xf32>
    %160 = tpu.reciprocal %159 {approx = true} : vector<16x128xf32> -> vector<16x128xf32>
    %cst_72 = arith.constant 1.06140542 : f32
    %161 = vector.broadcast %cst_72 : f32 to vector<16x128xf32>
    %162 = arith.mulf %160, %161 : vector<16x128xf32>
    %cst_73 = arith.constant -1.45315206 : f32
    %163 = vector.broadcast %cst_73 : f32 to vector<16x128xf32>
    %164 = arith.addf %163, %162 : vector<16x128xf32>
    %165 = arith.mulf %160, %164 : vector<16x128xf32>
    %cst_74 = arith.constant 1.42141378 : f32
    %166 = vector.broadcast %cst_74 : f32 to vector<16x128xf32>
    %167 = arith.addf %166, %165 : vector<16x128xf32>
    %168 = arith.mulf %160, %167 : vector<16x128xf32>
    %cst_75 = arith.constant -0.284496725 : f32
    %169 = vector.broadcast %cst_75 : f32 to vector<16x128xf32>
    %170 = arith.addf %169, %168 : vector<16x128xf32>
    %171 = arith.mulf %160, %170 : vector<16x128xf32>
    %cst_76 = arith.constant 0.254829586 : f32
    %172 = vector.broadcast %cst_76 : f32 to vector<16x128xf32>
    %173 = arith.addf %172, %171 : vector<16x128xf32>
    %174 = arith.mulf %160, %173 : vector<16x128xf32>
    %cst_77 = arith.constant 0.000000e+00 : f32
    %175 = vector.broadcast %cst_77 : f32 to vector<16x128xf32>
    %176 = arith.subf %175, %155 : vector<16x128xf32>
    %177 = arith.mulf %176, %155 : vector<16x128xf32>
    %178 = math.exp %177 : vector<16x128xf32>
    %179 = arith.mulf %174, %178 : vector<16x128xf32>
    %cst_78 = arith.constant 1.000000e+00 : f32
    %180 = vector.broadcast %cst_78 : f32 to vector<16x128xf32>
    %181 = arith.subf %180, %179 : vector<16x128xf32>
    %182 = arith.mulf %154, %181 : vector<16x128xf32>
    %cst_79 = arith.constant 1.000000e+00 : f32
    %183 = vector.broadcast %cst_79 : f32 to vector<16x128xf32>
    %184 = arith.addf %183, %182 : vector<16x128xf32>
    %185 = arith.mulf %147, %184 : vector<16x128xf32>
    %186 = arith.truncf %185 : vector<16x128xf32> to vector<16x128xbf16>
    %c0_80 = arith.constant 0 : index
    %c0_81 = arith.constant 0 : index
    %c0_82 = arith.constant 0 : index
    %187 = vector.load %arg15[%c0_80, %c0_81, %c0_82] : memref<2x128x32xbf16, #tpu.memory_space<vmem>>, vector<1x128x32xbf16>
    %188 = vector.shape_cast %187 : vector<1x128x32xbf16> to vector<128x32xbf16>
    %cst_83 = arith.constant dense<0.000000e+00> : vector<16x32xf32>
    %189 = tpu.matmul %186, %188, %cst_83 {dimension_numbers = #tpu.dot_dimension_numbers<[1], [0], [0], [1], [0, 0, 1, 1], [], []>} : vector<16x128xbf16>, vector<128x32xbf16>, vector<16x32xf32> -> vector<16x32xf32>
    %c0_84 = arith.constant 0 : index
    %c0_85 = arith.constant 0 : index
    %c0_86 = arith.constant 0 : index
    %190 = vector.load %arg16[%c0_84, %c0_85, %c0_86] : memref<2x1x32xf32, #tpu.memory_space<vmem>>, vector<1x1x32xf32>
    %191 = vector.shape_cast %190 : vector<1x1x32xf32> to vector<1x32xf32>
    %192 = vector.broadcast %191 : vector<1x32xf32> to vector<16x32xf32>
    %193 = arith.addf %189, %192 : vector<16x32xf32>
    %194 = arith.addf %111, %193 : vector<16x32xf32>
    %c2 = arith.constant 2 : index
    %c0_87 = arith.constant 0 : index
    %c0_88 = arith.constant 0 : index
    %195 = vector.load %arg6[%c2, %c0_87, %c0_88] : memref<4x1x32xf32, #tpu.memory_space<vmem>>, vector<1x1x32xf32>
    %196 = vector.shape_cast %195 : vector<1x1x32xf32> to vector<1x32xf32>
    %c2_89 = arith.constant 2 : index
    %c0_90 = arith.constant 0 : index
    %c0_91 = arith.constant 0 : index
    %197 = vector.load %arg7[%c2_89, %c0_90, %c0_91] : memref<4x1x32xf32, #tpu.memory_space<vmem>>, vector<1x1x32xf32>
    %198 = vector.shape_cast %197 : vector<1x1x32xf32> to vector<1x32xf32>
    %cst_92 = arith.constant dense<0.000000e+00> : vector<16xf32>
    %199 = vector.multi_reduction <add>, %194, %cst_92 [1] : vector<16x32xf32> to vector<16xf32>
    %200 = vector.shape_cast %199 : vector<16xf32> to vector<16x1xf32>
    %cst_93 = arith.constant 3.200000e+01 : f32
    %201 = vector.broadcast %cst_93 : f32 to vector<16x1xf32>
    %202 = arith.divf %200, %201 : vector<16x1xf32>
    %203 = vector.broadcast %202 : vector<16x1xf32> to vector<16x32xf32>
    %204 = arith.subf %194, %203 : vector<16x32xf32>
    %205 = arith.mulf %204, %204 : vector<16x32xf32>
    %cst_94 = arith.constant dense<0.000000e+00> : vector<16xf32>
    %206 = vector.multi_reduction <add>, %205, %cst_94 [1] : vector<16x32xf32> to vector<16xf32>
    %207 = vector.shape_cast %206 : vector<16xf32> to vector<16x1xf32>
    %cst_95 = arith.constant 3.200000e+01 : f32
    %208 = vector.broadcast %cst_95 : f32 to vector<16x1xf32>
    %209 = arith.divf %207, %208 : vector<16x1xf32>
    %210 = vector.broadcast %202 : vector<16x1xf32> to vector<16x32xf32>
    %211 = arith.subf %194, %210 : vector<16x32xf32>
    %cst_96 = arith.constant 9.99999974E-6 : f32
    %212 = vector.broadcast %cst_96 : f32 to vector<16x1xf32>
    %213 = arith.addf %209, %212 : vector<16x1xf32>
    %214 = math.rsqrt %213 : vector<16x1xf32>
    %215 = vector.broadcast %214 : vector<16x1xf32> to vector<16x32xf32>
    %216 = arith.mulf %211, %215 : vector<16x32xf32>
    %217 = vector.broadcast %196 : vector<1x32xf32> to vector<16x32xf32>
    %218 = arith.mulf %216, %217 : vector<16x32xf32>
    %219 = vector.broadcast %198 : vector<1x32xf32> to vector<16x32xf32>
    %220 = arith.addf %218, %219 : vector<16x32xf32>
    %221 = arith.truncf %220 : vector<16x32xf32> to vector<16x32xbf16>
    %c1_97 = arith.constant 1 : index
    %c0_98 = arith.constant 0 : index
    %c0_99 = arith.constant 0 : index
    %222 = vector.load %arg8[%c1_97, %c0_98, %c0_99] : memref<2x32x96xbf16, #tpu.memory_space<vmem>>, vector<1x32x96xbf16>
    %223 = vector.shape_cast %222 : vector<1x32x96xbf16> to vector<32x96xbf16>
    %cst_100 = arith.constant dense<0.000000e+00> : vector<16x96xf32>
    %224 = tpu.matmul %221, %223, %cst_100 {dimension_numbers = #tpu.dot_dimension_numbers<[1], [0], [0], [1], [0, 0, 1, 1], [], []>} : vector<16x32xbf16>, vector<32x96xbf16>, vector<16x96xf32> -> vector<16x96xf32>
    %c1_101 = arith.constant 1 : index
    %c0_102 = arith.constant 0 : index
    %c0_103 = arith.constant 0 : index
    %225 = vector.load %arg9[%c1_101, %c0_102, %c0_103] : memref<2x1x96xf32, #tpu.memory_space<vmem>>, vector<1x1x96xf32>
    %226 = vector.shape_cast %225 : vector<1x1x96xf32> to vector<1x96xf32>
    %227 = vector.broadcast %226 : vector<1x96xf32> to vector<16x96xf32>
    %228 = arith.addf %224, %227 : vector<16x96xf32>
    %229 = arith.truncf %228 : vector<16x96xf32> to vector<16x96xbf16>
    %230 = vector.extract_strided_slice %229 {offsets = [0, 0], sizes = [16, 16], strides = [1, 1]} : vector<16x96xbf16> to vector<16x16xbf16>
    %231 = vector.extract_strided_slice %229 {offsets = [0, 16], sizes = [16, 16], strides = [1, 1]} : vector<16x96xbf16> to vector<16x16xbf16>
    %232 = vector.shape_cast %230 : vector<16x16xbf16> to vector<1x16x16xbf16>
    %233 = vector.shape_cast %231 : vector<16x16xbf16> to vector<1x16x16xbf16>
    %234 = tpu.concatenate %232, %233 in 0 : vector<1x16x16xbf16>, vector<1x16x16xbf16> -> vector<2x16x16xbf16>
    %235 = vector.extract_strided_slice %229 {offsets = [0, 32], sizes = [16, 16], strides = [1, 1]} : vector<16x96xbf16> to vector<16x16xbf16>
    %236 = vector.extract_strided_slice %229 {offsets = [0, 48], sizes = [16, 16], strides = [1, 1]} : vector<16x96xbf16> to vector<16x16xbf16>
    %237 = vector.shape_cast %235 : vector<16x16xbf16> to vector<1x16x16xbf16>
    %238 = vector.shape_cast %236 : vector<16x16xbf16> to vector<1x16x16xbf16>
    %239 = tpu.concatenate %237, %238 in 0 : vector<1x16x16xbf16>, vector<1x16x16xbf16> -> vector<2x16x16xbf16>
    %240 = vector.extract_strided_slice %229 {offsets = [0, 64], sizes = [16, 16], strides = [1, 1]} : vector<16x96xbf16> to vector<16x16xbf16>
    %241 = vector.extract_strided_slice %229 {offsets = [0, 80], sizes = [16, 16], strides = [1, 1]} : vector<16x96xbf16> to vector<16x16xbf16>
    %242 = vector.shape_cast %240 : vector<16x16xbf16> to vector<1x16x16xbf16>
    %243 = vector.shape_cast %241 : vector<16x16xbf16> to vector<1x16x16xbf16>
    %244 = tpu.concatenate %242, %243 in 0 : vector<1x16x16xbf16>, vector<1x16x16xbf16> -> vector<2x16x16xbf16>
    "tpu.trace_start"() <{level = 10 : i32, message = "hqd,hkd->hqk"}> : () -> ()
    %cst_104 = arith.constant dense<0.000000e+00> : vector<2x16x16xf32>
    %245 = tpu.matmul %234, %239, %cst_104 {dimension_numbers = #tpu.dot_dimension_numbers<[2], [2], [1], [1], [0, 0, 0, 1, 1, 1], [0], [0]>} : vector<2x16x16xbf16>, vector<2x16x16xbf16>, vector<2x16x16xf32> -> vector<2x16x16xf32>
    "tpu.trace_stop"() : () -> ()
    %c1_105 = arith.constant 1 : index
    %c0_106 = arith.constant 0 : index
    %c0_107 = arith.constant 0 : index
    %c0_108 = arith.constant 0 : index
    %246 = vector.load %arg12[%c1_105, %c0_106, %c0_107, %c0_108] : memref<2x2x16x16xf32, #tpu.memory_space<vmem>>, vector<1x2x16x16xf32>
    %247 = vector.shape_cast %246 : vector<1x2x16x16xf32> to vector<2x16x16xf32>
    %248 = arith.addf %245, %247 : vector<2x16x16xf32>
    %cst_109 = arith.constant dense<0xFF800000> : vector<2x16xf32>
    %249 = vector.multi_reduction <maximumf>, %248, %cst_109 [2] : vector<2x16x16xf32> to vector<2x16xf32>
    %250 = vector.shape_cast %249 : vector<2x16xf32> to vector<2x16x1xf32>
    %251 = vector.broadcast %250 : vector<2x16x1xf32> to vector<2x16x16xf32>
    %252 = arith.subf %248, %251 : vector<2x16x16xf32>
    %253 = math.exp %252 : vector<2x16x16xf32>
    %cst_110 = arith.constant dense<0.000000e+00> : vector<2x16xf32>
    %254 = vector.multi_reduction <add>, %253, %cst_110 [2] : vector<2x16x16xf32> to vector<2x16xf32>
    %255 = vector.shape_cast %254 : vector<2x16xf32> to vector<2x16x1xf32>
    %256 = tpu.reciprocal %255 {approx = true} : vector<2x16x1xf32> -> vector<2x16x1xf32>
    %257 = vector.broadcast %256 : vector<2x16x1xf32> to vector<2x16x16xf32>
    %258 = arith.mulf %253, %257 : vector<2x16x16xf32>
    %259 = arith.truncf %258 : vector<2x16x16xf32> to vector<2x16x16xbf16>
    "tpu.trace_start"() <{level = 10 : i32, message = "hqk,hkd->hqd"}> : () -> ()
    %cst_111 = arith.constant dense<0.000000e+00> : vector<2x16x16xf32>
    %260 = tpu.matmul %259, %244, %cst_111 {dimension_numbers = #tpu.dot_dimension_numbers<[2], [1], [1], [2], [0, 0, 0, 1, 1, 2], [0], [0]>} : vector<2x16x16xbf16>, vector<2x16x16xbf16>, vector<2x16x16xf32> -> vector<2x16x16xf32>
    "tpu.trace_stop"() : () -> ()
    %261 = vector.extract_strided_slice %260 {offsets = [0, 0, 0], sizes = [1, 16, 16], strides = [1, 1, 1]} : vector<2x16x16xf32> to vector<1x16x16xf32>
    %262 = vector.shape_cast %261 : vector<1x16x16xf32> to vector<16x16xf32>
    %263 = vector.extract_strided_slice %260 {offsets = [1, 0, 0], sizes = [1, 16, 16], strides = [1, 1, 1]} : vector<2x16x16xf32> to vector<1x16x16xf32>
    %264 = vector.shape_cast %263 : vector<1x16x16xf32> to vector<16x16xf32>
    %265 = tpu.concatenate %262, %264 in 1 : vector<16x16xf32>, vector<16x16xf32> -> vector<16x32xf32>
    %266 = arith.truncf %265 : vector<16x32xf32> to vector<16x32xbf16>
    %c1_112 = arith.constant 1 : index
    %c0_113 = arith.constant 0 : index
    %c0_114 = arith.constant 0 : index
    %267 = vector.load %arg10[%c1_112, %c0_113, %c0_114] : memref<2x32x32xbf16, #tpu.memory_space<vmem>>, vector<1x32x32xbf16>
    %268 = vector.shape_cast %267 : vector<1x32x32xbf16> to vector<32x32xbf16>
    %cst_115 = arith.constant dense<0.000000e+00> : vector<16x32xf32>
    %269 = tpu.matmul %266, %268, %cst_115 {dimension_numbers = #tpu.dot_dimension_numbers<[1], [0], [0], [1], [0, 0, 1, 1], [], []>} : vector<16x32xbf16>, vector<32x32xbf16>, vector<16x32xf32> -> vector<16x32xf32>
    %c1_116 = arith.constant 1 : index
    %c0_117 = arith.constant 0 : index
    %c0_118 = arith.constant 0 : index
    %270 = vector.load %arg11[%c1_116, %c0_117, %c0_118] : memref<2x1x32xf32, #tpu.memory_space<vmem>>, vector<1x1x32xf32>
    %271 = vector.shape_cast %270 : vector<1x1x32xf32> to vector<1x32xf32>
    %272 = vector.broadcast %271 : vector<1x32xf32> to vector<16x32xf32>
    %273 = arith.addf %269, %272 : vector<16x32xf32>
    %274 = arith.addf %194, %273 : vector<16x32xf32>
    %c3 = arith.constant 3 : index
    %c0_119 = arith.constant 0 : index
    %c0_120 = arith.constant 0 : index
    %275 = vector.load %arg6[%c3, %c0_119, %c0_120] : memref<4x1x32xf32, #tpu.memory_space<vmem>>, vector<1x1x32xf32>
    %276 = vector.shape_cast %275 : vector<1x1x32xf32> to vector<1x32xf32>
    %c3_121 = arith.constant 3 : index
    %c0_122 = arith.constant 0 : index
    %c0_123 = arith.constant 0 : index
    %277 = vector.load %arg7[%c3_121, %c0_122, %c0_123] : memref<4x1x32xf32, #tpu.memory_space<vmem>>, vector<1x1x32xf32>
    %278 = vector.shape_cast %277 : vector<1x1x32xf32> to vector<1x32xf32>
    %cst_124 = arith.constant dense<0.000000e+00> : vector<16xf32>
    %279 = vector.multi_reduction <add>, %274, %cst_124 [1] : vector<16x32xf32> to vector<16xf32>
    %280 = vector.shape_cast %279 : vector<16xf32> to vector<16x1xf32>
    %cst_125 = arith.constant 3.200000e+01 : f32
    %281 = vector.broadcast %cst_125 : f32 to vector<16x1xf32>
    %282 = arith.divf %280, %281 : vector<16x1xf32>
    %283 = vector.broadcast %282 : vector<16x1xf32> to vector<16x32xf32>
    %284 = arith.subf %274, %283 : vector<16x32xf32>
    %285 = arith.mulf %284, %284 : vector<16x32xf32>
    %cst_126 = arith.constant dense<0.000000e+00> : vector<16xf32>
    %286 = vector.multi_reduction <add>, %285, %cst_126 [1] : vector<16x32xf32> to vector<16xf32>
    %287 = vector.shape_cast %286 : vector<16xf32> to vector<16x1xf32>
    %cst_127 = arith.constant 3.200000e+01 : f32
    %288 = vector.broadcast %cst_127 : f32 to vector<16x1xf32>
    %289 = arith.divf %287, %288 : vector<16x1xf32>
    %290 = vector.broadcast %282 : vector<16x1xf32> to vector<16x32xf32>
    %291 = arith.subf %274, %290 : vector<16x32xf32>
    %cst_128 = arith.constant 9.99999974E-6 : f32
    %292 = vector.broadcast %cst_128 : f32 to vector<16x1xf32>
    %293 = arith.addf %289, %292 : vector<16x1xf32>
    %294 = math.rsqrt %293 : vector<16x1xf32>
    %295 = vector.broadcast %294 : vector<16x1xf32> to vector<16x32xf32>
    %296 = arith.mulf %291, %295 : vector<16x32xf32>
    %297 = vector.broadcast %276 : vector<1x32xf32> to vector<16x32xf32>
    %298 = arith.mulf %296, %297 : vector<16x32xf32>
    %299 = vector.broadcast %278 : vector<1x32xf32> to vector<16x32xf32>
    %300 = arith.addf %298, %299 : vector<16x32xf32>
    %301 = arith.truncf %300 : vector<16x32xf32> to vector<16x32xbf16>
    %c1_129 = arith.constant 1 : index
    %c0_130 = arith.constant 0 : index
    %c0_131 = arith.constant 0 : index
    %302 = vector.load %arg13[%c1_129, %c0_130, %c0_131] : memref<2x32x128xbf16, #tpu.memory_space<vmem>>, vector<1x32x128xbf16>
    %303 = vector.shape_cast %302 : vector<1x32x128xbf16> to vector<32x128xbf16>
    %cst_132 = arith.constant dense<0.000000e+00> : vector<16x128xf32>
    %304 = tpu.matmul %301, %303, %cst_132 {dimension_numbers = #tpu.dot_dimension_numbers<[1], [0], [0], [1], [0, 0, 1, 1], [], []>} : vector<16x32xbf16>, vector<32x128xbf16>, vector<16x128xf32> -> vector<16x128xf32>
    %c1_133 = arith.constant 1 : index
    %c0_134 = arith.constant 0 : index
    %c0_135 = arith.constant 0 : index
    %305 = vector.load %arg14[%c1_133, %c0_134, %c0_135] : memref<2x1x128xf32, #tpu.memory_space<vmem>>, vector<1x1x128xf32>
    %306 = vector.shape_cast %305 : vector<1x1x128xf32> to vector<1x128xf32>
    %307 = vector.broadcast %306 : vector<1x128xf32> to vector<16x128xf32>
    %308 = arith.addf %304, %307 : vector<16x128xf32>
    %cst_136 = arith.constant 5.000000e-01 : f32
    %309 = vector.broadcast %cst_136 : f32 to vector<16x128xf32>
    %310 = arith.mulf %309, %308 : vector<16x128xf32>
    %cst_137 = arith.constant 0.707106769 : f32
    %311 = vector.broadcast %cst_137 : f32 to vector<16x128xf32>
    %312 = arith.mulf %308, %311 : vector<16x128xf32>
    %cst_138 = arith.constant 0.000000e+00 : f32
    %313 = vector.broadcast %cst_138 : f32 to vector<16x128xf32>
    %314 = arith.cmpf oge, %312, %313 : vector<16x128xf32>
    %cst_139 = arith.constant 1.000000e+00 : f32
    %cst_140 = arith.constant -1.000000e+00 : f32
    %315 = vector.broadcast %cst_139 : f32 to vector<16x128xf32>
    %316 = vector.broadcast %cst_140 : f32 to vector<16x128xf32>
    %317 = arith.select %314, %315, %316 : vector<16x128xi1>, vector<16x128xf32>
    %318 = math.absf %312 : vector<16x128xf32>
    %cst_141 = arith.constant 0.327591091 : f32
    %319 = vector.broadcast %cst_141 : f32 to vector<16x128xf32>
    %320 = arith.mulf %319, %318 : vector<16x128xf32>
    %cst_142 = arith.constant 1.000000e+00 : f32
    %321 = vector.broadcast %cst_142 : f32 to vector<16x128xf32>
    %322 = arith.addf %321, %320 : vector<16x128xf32>
    %323 = tpu.reciprocal %322 {approx = true} : vector<16x128xf32> -> vector<16x128xf32>
    %cst_143 = arith.constant 1.06140542 : f32
    %324 = vector.broadcast %cst_143 : f32 to vector<16x128xf32>
    %325 = arith.mulf %323, %324 : vector<16x128xf32>
    %cst_144 = arith.constant -1.45315206 : f32
    %326 = vector.broadcast %cst_144 : f32 to vector<16x128xf32>
    %327 = arith.addf %326, %325 : vector<16x128xf32>
    %328 = arith.mulf %323, %327 : vector<16x128xf32>
    %cst_145 = arith.constant 1.42141378 : f32
    %329 = vector.broadcast %cst_145 : f32 to vector<16x128xf32>
    %330 = arith.addf %329, %328 : vector<16x128xf32>
    %331 = arith.mulf %323, %330 : vector<16x128xf32>
    %cst_146 = arith.constant -0.284496725 : f32
    %332 = vector.broadcast %cst_146 : f32 to vector<16x128xf32>
    %333 = arith.addf %332, %331 : vector<16x128xf32>
    %334 = arith.mulf %323, %333 : vector<16x128xf32>
    %cst_147 = arith.constant 0.254829586 : f32
    %335 = vector.broadcast %cst_147 : f32 to vector<16x128xf32>
    %336 = arith.addf %335, %334 : vector<16x128xf32>
    %337 = arith.mulf %323, %336 : vector<16x128xf32>
    %cst_148 = arith.constant 0.000000e+00 : f32
    %338 = vector.broadcast %cst_148 : f32 to vector<16x128xf32>
    %339 = arith.subf %338, %318 : vector<16x128xf32>
    %340 = arith.mulf %339, %318 : vector<16x128xf32>
    %341 = math.exp %340 : vector<16x128xf32>
    %342 = arith.mulf %337, %341 : vector<16x128xf32>
    %cst_149 = arith.constant 1.000000e+00 : f32
    %343 = vector.broadcast %cst_149 : f32 to vector<16x128xf32>
    %344 = arith.subf %343, %342 : vector<16x128xf32>
    %345 = arith.mulf %317, %344 : vector<16x128xf32>
    %cst_150 = arith.constant 1.000000e+00 : f32
    %346 = vector.broadcast %cst_150 : f32 to vector<16x128xf32>
    %347 = arith.addf %346, %345 : vector<16x128xf32>
    %348 = arith.mulf %310, %347 : vector<16x128xf32>
    %349 = arith.truncf %348 : vector<16x128xf32> to vector<16x128xbf16>
    %c1_151 = arith.constant 1 : index
    %c0_152 = arith.constant 0 : index
    %c0_153 = arith.constant 0 : index
    %350 = vector.load %arg15[%c1_151, %c0_152, %c0_153] : memref<2x128x32xbf16, #tpu.memory_space<vmem>>, vector<1x128x32xbf16>
    %351 = vector.shape_cast %350 : vector<1x128x32xbf16> to vector<128x32xbf16>
    %cst_154 = arith.constant dense<0.000000e+00> : vector<16x32xf32>
    %352 = tpu.matmul %349, %351, %cst_154 {dimension_numbers = #tpu.dot_dimension_numbers<[1], [0], [0], [1], [0, 0, 1, 1], [], []>} : vector<16x128xbf16>, vector<128x32xbf16>, vector<16x32xf32> -> vector<16x32xf32>
    %c1_155 = arith.constant 1 : index
    %c0_156 = arith.constant 0 : index
    %c0_157 = arith.constant 0 : index
    %353 = vector.load %arg16[%c1_155, %c0_156, %c0_157] : memref<2x1x32xf32, #tpu.memory_space<vmem>>, vector<1x1x32xf32>
    %354 = vector.shape_cast %353 : vector<1x1x32xf32> to vector<1x32xf32>
    %355 = vector.broadcast %354 : vector<1x32xf32> to vector<16x32xf32>
    %356 = arith.addf %352, %355 : vector<16x32xf32>
    %357 = arith.addf %274, %356 : vector<16x32xf32>
    %358 = vector.extract_strided_slice %357 {offsets = [0, 0], sizes = [1, 32], strides = [1, 1]} : vector<16x32xf32> to vector<1x32xf32>
    %359 = vector.extract_strided_slice %357 {offsets = [4, 0], sizes = [1, 32], strides = [1, 1]} : vector<16x32xf32> to vector<1x32xf32>
    %360 = vector.extract_strided_slice %357 {offsets = [1, 0], sizes = [1, 32], strides = [1, 1]} : vector<16x32xf32> to vector<1x32xf32>
    %361 = vector.extract_strided_slice %357 {offsets = [5, 0], sizes = [1, 32], strides = [1, 1]} : vector<16x32xf32> to vector<1x32xf32>
    %362 = tpu.concatenate %358, %359, %360, %361 in 1 : vector<1x32xf32>, vector<1x32xf32>, vector<1x32xf32>, vector<1x32xf32> -> vector<1x128xf32>
    %363 = vector.extract_strided_slice %357 {offsets = [2, 0], sizes = [1, 32], strides = [1, 1]} : vector<16x32xf32> to vector<1x32xf32>
    %364 = vector.extract_strided_slice %357 {offsets = [6, 0], sizes = [1, 32], strides = [1, 1]} : vector<16x32xf32> to vector<1x32xf32>
    %365 = vector.extract_strided_slice %357 {offsets = [3, 0], sizes = [1, 32], strides = [1, 1]} : vector<16x32xf32> to vector<1x32xf32>
    %366 = vector.extract_strided_slice %357 {offsets = [7, 0], sizes = [1, 32], strides = [1, 1]} : vector<16x32xf32> to vector<1x32xf32>
    %367 = tpu.concatenate %363, %364, %365, %366 in 1 : vector<1x32xf32>, vector<1x32xf32>, vector<1x32xf32>, vector<1x32xf32> -> vector<1x128xf32>
    %368 = vector.extract_strided_slice %357 {offsets = [8, 0], sizes = [1, 32], strides = [1, 1]} : vector<16x32xf32> to vector<1x32xf32>
    %369 = vector.extract_strided_slice %357 {offsets = [12, 0], sizes = [1, 32], strides = [1, 1]} : vector<16x32xf32> to vector<1x32xf32>
    %370 = vector.extract_strided_slice %357 {offsets = [9, 0], sizes = [1, 32], strides = [1, 1]} : vector<16x32xf32> to vector<1x32xf32>
    %371 = vector.extract_strided_slice %357 {offsets = [13, 0], sizes = [1, 32], strides = [1, 1]} : vector<16x32xf32> to vector<1x32xf32>
    %372 = tpu.concatenate %368, %369, %370, %371 in 1 : vector<1x32xf32>, vector<1x32xf32>, vector<1x32xf32>, vector<1x32xf32> -> vector<1x128xf32>
    %373 = vector.extract_strided_slice %357 {offsets = [10, 0], sizes = [1, 32], strides = [1, 1]} : vector<16x32xf32> to vector<1x32xf32>
    %374 = vector.extract_strided_slice %357 {offsets = [14, 0], sizes = [1, 32], strides = [1, 1]} : vector<16x32xf32> to vector<1x32xf32>
    %375 = vector.extract_strided_slice %357 {offsets = [11, 0], sizes = [1, 32], strides = [1, 1]} : vector<16x32xf32> to vector<1x32xf32>
    %376 = vector.extract_strided_slice %357 {offsets = [15, 0], sizes = [1, 32], strides = [1, 1]} : vector<16x32xf32> to vector<1x32xf32>
    %377 = tpu.concatenate %373, %374, %375, %376 in 1 : vector<1x32xf32>, vector<1x32xf32>, vector<1x32xf32>, vector<1x32xf32> -> vector<1x128xf32>
    %378 = tpu.concatenate %362, %367, %372, %377 in 0 : vector<1x128xf32>, vector<1x128xf32>, vector<1x128xf32>, vector<1x128xf32> -> vector<4x128xf32>
    %c0_158 = arith.constant 0 : index
    %c0_159 = arith.constant 0 : index
    %379 = vector.load %arg17[%c0_158, %c0_159] : memref<1x128xf32, #tpu.memory_space<vmem>>, vector<1x128xf32>
    %c0_160 = arith.constant 0 : index
    %c0_161 = arith.constant 0 : index
    %380 = vector.load %arg18[%c0_160, %c0_161] : memref<1x128xf32, #tpu.memory_space<vmem>>, vector<1x128xf32>
    %cst_162 = arith.constant dense<0.000000e+00> : vector<4xf32>
    %381 = vector.multi_reduction <add>, %378, %cst_162 [1] : vector<4x128xf32> to vector<4xf32>
    %382 = vector.shape_cast %381 : vector<4xf32> to vector<4x1xf32>
    %cst_163 = arith.constant 1.280000e+02 : f32
    %383 = vector.broadcast %cst_163 : f32 to vector<4x1xf32>
    %384 = arith.divf %382, %383 : vector<4x1xf32>
    %385 = vector.broadcast %384 : vector<4x1xf32> to vector<4x128xf32>
    %386 = arith.subf %378, %385 : vector<4x128xf32>
    %387 = arith.mulf %386, %386 : vector<4x128xf32>
    %cst_164 = arith.constant dense<0.000000e+00> : vector<4xf32>
    %388 = vector.multi_reduction <add>, %387, %cst_164 [1] : vector<4x128xf32> to vector<4xf32>
    %389 = vector.shape_cast %388 : vector<4xf32> to vector<4x1xf32>
    %cst_165 = arith.constant 1.280000e+02 : f32
    %390 = vector.broadcast %cst_165 : f32 to vector<4x1xf32>
    %391 = arith.divf %389, %390 : vector<4x1xf32>
    %392 = vector.broadcast %384 : vector<4x1xf32> to vector<4x128xf32>
    %393 = arith.subf %378, %392 : vector<4x128xf32>
    %cst_166 = arith.constant 9.99999974E-6 : f32
    %394 = vector.broadcast %cst_166 : f32 to vector<4x1xf32>
    %395 = arith.addf %391, %394 : vector<4x1xf32>
    %396 = math.rsqrt %395 : vector<4x1xf32>
    %397 = vector.broadcast %396 : vector<4x1xf32> to vector<4x128xf32>
    %398 = arith.mulf %393, %397 : vector<4x128xf32>
    %399 = vector.broadcast %379 : vector<1x128xf32> to vector<4x128xf32>
    %400 = arith.mulf %398, %399 : vector<4x128xf32>
    %401 = vector.broadcast %380 : vector<1x128xf32> to vector<4x128xf32>
    %402 = arith.addf %400, %401 : vector<4x128xf32>
    %403 = arith.truncf %402 : vector<4x128xf32> to vector<4x128xbf16>
    %c0_167 = arith.constant 0 : index
    %c0_168 = arith.constant 0 : index
    %404 = vector.load %arg19[%c0_167, %c0_168] : memref<128x64xbf16, #tpu.memory_space<vmem>>, vector<128x64xbf16>
    %cst_169 = arith.constant dense<0.000000e+00> : vector<4x64xf32>
    %405 = tpu.matmul %403, %404, %cst_169 {dimension_numbers = #tpu.dot_dimension_numbers<[1], [0], [0], [1], [0, 0, 1, 1], [], []>} : vector<4x128xbf16>, vector<128x64xbf16>, vector<4x64xf32> -> vector<4x64xf32>
    %c0_170 = arith.constant 0 : index
    %c0_171 = arith.constant 0 : index
    %c0_172 = arith.constant 0 : index
    %406 = vector.load %arg20[%c0_170, %c0_171, %c0_172] : memref<4x1x64xf32, #tpu.memory_space<vmem>>, vector<1x1x64xf32>
    %407 = vector.shape_cast %406 : vector<1x1x64xf32> to vector<1x64xf32>
    %c0_173 = arith.constant 0 : index
    %c0_174 = arith.constant 0 : index
    %c0_175 = arith.constant 0 : index
    %408 = vector.load %arg21[%c0_173, %c0_174, %c0_175] : memref<4x1x64xf32, #tpu.memory_space<vmem>>, vector<1x1x64xf32>
    %409 = vector.shape_cast %408 : vector<1x1x64xf32> to vector<1x64xf32>
    %cst_176 = arith.constant dense<0.000000e+00> : vector<4xf32>
    %410 = vector.multi_reduction <add>, %405, %cst_176 [1] : vector<4x64xf32> to vector<4xf32>
    %411 = vector.shape_cast %410 : vector<4xf32> to vector<4x1xf32>
    %cst_177 = arith.constant 6.400000e+01 : f32
    %412 = vector.broadcast %cst_177 : f32 to vector<4x1xf32>
    %413 = arith.divf %411, %412 : vector<4x1xf32>
    %414 = vector.broadcast %413 : vector<4x1xf32> to vector<4x64xf32>
    %415 = arith.subf %405, %414 : vector<4x64xf32>
    %416 = arith.mulf %415, %415 : vector<4x64xf32>
    %cst_178 = arith.constant dense<0.000000e+00> : vector<4xf32>
    %417 = vector.multi_reduction <add>, %416, %cst_178 [1] : vector<4x64xf32> to vector<4xf32>
    %418 = vector.shape_cast %417 : vector<4xf32> to vector<4x1xf32>
    %cst_179 = arith.constant 6.400000e+01 : f32
    %419 = vector.broadcast %cst_179 : f32 to vector<4x1xf32>
    %420 = arith.divf %418, %419 : vector<4x1xf32>
    %421 = vector.broadcast %413 : vector<4x1xf32> to vector<4x64xf32>
    %422 = arith.subf %405, %421 : vector<4x64xf32>
    %cst_180 = arith.constant 9.99999974E-6 : f32
    %423 = vector.broadcast %cst_180 : f32 to vector<4x1xf32>
    %424 = arith.addf %420, %423 : vector<4x1xf32>
    %425 = math.rsqrt %424 : vector<4x1xf32>
    %426 = vector.broadcast %425 : vector<4x1xf32> to vector<4x64xf32>
    %427 = arith.mulf %422, %426 : vector<4x64xf32>
    %428 = vector.broadcast %407 : vector<1x64xf32> to vector<4x64xf32>
    %429 = arith.mulf %427, %428 : vector<4x64xf32>
    %430 = vector.broadcast %409 : vector<1x64xf32> to vector<4x64xf32>
    %431 = arith.addf %429, %430 : vector<4x64xf32>
    %432 = arith.truncf %431 : vector<4x64xf32> to vector<4x64xbf16>
    %c0_181 = arith.constant 0 : index
    %c0_182 = arith.constant 0 : index
    %c0_183 = arith.constant 0 : index
    %433 = vector.load %arg22[%c0_181, %c0_182, %c0_183] : memref<2x64x192xbf16, #tpu.memory_space<vmem>>, vector<1x64x192xbf16>
    %434 = vector.shape_cast %433 : vector<1x64x192xbf16> to vector<64x192xbf16>
    %cst_184 = arith.constant dense<0.000000e+00> : vector<4x192xf32>
    %435 = tpu.matmul %432, %434, %cst_184 {dimension_numbers = #tpu.dot_dimension_numbers<[1], [0], [0], [1], [0, 0, 1, 1], [], []>} : vector<4x64xbf16>, vector<64x192xbf16>, vector<4x192xf32> -> vector<4x192xf32>
    %c0_185 = arith.constant 0 : index
    %c0_186 = arith.constant 0 : index
    %c0_187 = arith.constant 0 : index
    %436 = vector.load %arg23[%c0_185, %c0_186, %c0_187] : memref<2x1x192xf32, #tpu.memory_space<vmem>>, vector<1x1x192xf32>
    %437 = vector.shape_cast %436 : vector<1x1x192xf32> to vector<1x192xf32>
    %438 = vector.broadcast %437 : vector<1x192xf32> to vector<4x192xf32>
    %439 = arith.addf %435, %438 : vector<4x192xf32>
    %440 = arith.truncf %439 : vector<4x192xf32> to vector<4x192xbf16>
    %441 = vector.extract_strided_slice %440 {offsets = [0, 0], sizes = [4, 16], strides = [1, 1]} : vector<4x192xbf16> to vector<4x16xbf16>
    %442 = vector.extract_strided_slice %440 {offsets = [0, 16], sizes = [4, 16], strides = [1, 1]} : vector<4x192xbf16> to vector<4x16xbf16>
    %443 = vector.extract_strided_slice %440 {offsets = [0, 32], sizes = [4, 16], strides = [1, 1]} : vector<4x192xbf16> to vector<4x16xbf16>
    %444 = vector.extract_strided_slice %440 {offsets = [0, 48], sizes = [4, 16], strides = [1, 1]} : vector<4x192xbf16> to vector<4x16xbf16>
    %445 = vector.shape_cast %441 : vector<4x16xbf16> to vector<1x4x16xbf16>
    %446 = vector.shape_cast %442 : vector<4x16xbf16> to vector<1x4x16xbf16>
    %447 = vector.shape_cast %443 : vector<4x16xbf16> to vector<1x4x16xbf16>
    %448 = vector.shape_cast %444 : vector<4x16xbf16> to vector<1x4x16xbf16>
    %449 = tpu.concatenate %445, %446, %447, %448 in 0 : vector<1x4x16xbf16>, vector<1x4x16xbf16>, vector<1x4x16xbf16>, vector<1x4x16xbf16> -> vector<4x4x16xbf16>
    %450 = vector.extract_strided_slice %440 {offsets = [0, 64], sizes = [4, 16], strides = [1, 1]} : vector<4x192xbf16> to vector<4x16xbf16>
    %451 = vector.extract_strided_slice %440 {offsets = [0, 80], sizes = [4, 16], strides = [1, 1]} : vector<4x192xbf16> to vector<4x16xbf16>
    %452 = vector.extract_strided_slice %440 {offsets = [0, 96], sizes = [4, 16], strides = [1, 1]} : vector<4x192xbf16> to vector<4x16xbf16>
    %453 = vector.extract_strided_slice %440 {offsets = [0, 112], sizes = [4, 16], strides = [1, 1]} : vector<4x192xbf16> to vector<4x16xbf16>
    %454 = vector.shape_cast %450 : vector<4x16xbf16> to vector<1x4x16xbf16>
    %455 = vector.shape_cast %451 : vector<4x16xbf16> to vector<1x4x16xbf16>
    %456 = vector.shape_cast %452 : vector<4x16xbf16> to vector<1x4x16xbf16>
    %457 = vector.shape_cast %453 : vector<4x16xbf16> to vector<1x4x16xbf16>
    %458 = tpu.concatenate %454, %455, %456, %457 in 0 : vector<1x4x16xbf16>, vector<1x4x16xbf16>, vector<1x4x16xbf16>, vector<1x4x16xbf16> -> vector<4x4x16xbf16>
    %459 = vector.extract_strided_slice %440 {offsets = [0, 128], sizes = [4, 16], strides = [1, 1]} : vector<4x192xbf16> to vector<4x16xbf16>
    %460 = vector.extract_strided_slice %440 {offsets = [0, 144], sizes = [4, 16], strides = [1, 1]} : vector<4x192xbf16> to vector<4x16xbf16>
    %461 = vector.extract_strided_slice %440 {offsets = [0, 160], sizes = [4, 16], strides = [1, 1]} : vector<4x192xbf16> to vector<4x16xbf16>
    %462 = vector.extract_strided_slice %440 {offsets = [0, 176], sizes = [4, 16], strides = [1, 1]} : vector<4x192xbf16> to vector<4x16xbf16>
    %463 = vector.shape_cast %459 : vector<4x16xbf16> to vector<1x4x16xbf16>
    %464 = vector.shape_cast %460 : vector<4x16xbf16> to vector<1x4x16xbf16>
    %465 = vector.shape_cast %461 : vector<4x16xbf16> to vector<1x4x16xbf16>
    %466 = vector.shape_cast %462 : vector<4x16xbf16> to vector<1x4x16xbf16>
    %467 = tpu.concatenate %463, %464, %465, %466 in 0 : vector<1x4x16xbf16>, vector<1x4x16xbf16>, vector<1x4x16xbf16>, vector<1x4x16xbf16> -> vector<4x4x16xbf16>
    "tpu.trace_start"() <{level = 10 : i32, message = "hqd,hkd->hqk"}> : () -> ()
    %cst_188 = arith.constant dense<0.000000e+00> : vector<4x4x4xf32>
    %468 = tpu.matmul %449, %458, %cst_188 {dimension_numbers = #tpu.dot_dimension_numbers<[2], [2], [1], [1], [0, 0, 0, 1, 1, 1], [0], [0]>} : vector<4x4x16xbf16>, vector<4x4x16xbf16>, vector<4x4x4xf32> -> vector<4x4x4xf32>
    "tpu.trace_stop"() : () -> ()
    %c0_189 = arith.constant 0 : index
    %c0_190 = arith.constant 0 : index
    %c0_191 = arith.constant 0 : index
    %c0_192 = arith.constant 0 : index
    %469 = vector.load %arg26[%c0_189, %c0_190, %c0_191, %c0_192] : memref<2x4x4x4xf32, #tpu.memory_space<vmem>>, vector<1x4x4x4xf32>
    %470 = vector.shape_cast %469 : vector<1x4x4x4xf32> to vector<4x4x4xf32>
    %471 = arith.addf %468, %470 : vector<4x4x4xf32>
    %cst_193 = arith.constant dense<0xFF800000> : vector<4x4xf32>
    %472 = vector.multi_reduction <maximumf>, %471, %cst_193 [2] : vector<4x4x4xf32> to vector<4x4xf32>
    %473 = vector.shape_cast %472 : vector<4x4xf32> to vector<4x4x1xf32>
    %474 = vector.broadcast %473 : vector<4x4x1xf32> to vector<4x4x4xf32>
    %475 = arith.subf %471, %474 : vector<4x4x4xf32>
    %476 = math.exp %475 : vector<4x4x4xf32>
    %cst_194 = arith.constant dense<0.000000e+00> : vector<4x4xf32>
    %477 = vector.multi_reduction <add>, %476, %cst_194 [2] : vector<4x4x4xf32> to vector<4x4xf32>
    %478 = vector.shape_cast %477 : vector<4x4xf32> to vector<4x4x1xf32>
    %479 = tpu.reciprocal %478 {approx = true} : vector<4x4x1xf32> -> vector<4x4x1xf32>
    %480 = vector.broadcast %479 : vector<4x4x1xf32> to vector<4x4x4xf32>
    %481 = arith.mulf %476, %480 : vector<4x4x4xf32>
    %482 = arith.truncf %481 : vector<4x4x4xf32> to vector<4x4x4xbf16>
    "tpu.trace_start"() <{level = 10 : i32, message = "hqk,hkd->hqd"}> : () -> ()
    %cst_195 = arith.constant dense<0.000000e+00> : vector<4x4x16xf32>
    %483 = tpu.matmul %482, %467, %cst_195 {dimension_numbers = #tpu.dot_dimension_numbers<[2], [1], [1], [2], [0, 0, 0, 1, 1, 2], [0], [0]>} : vector<4x4x4xbf16>, vector<4x4x16xbf16>, vector<4x4x16xf32> -> vector<4x4x16xf32>
    "tpu.trace_stop"() : () -> ()
    %484 = vector.extract_strided_slice %483 {offsets = [0, 0, 0], sizes = [1, 4, 16], strides = [1, 1, 1]} : vector<4x4x16xf32> to vector<1x4x16xf32>
    %485 = vector.shape_cast %484 : vector<1x4x16xf32> to vector<4x16xf32>
    %486 = vector.extract_strided_slice %483 {offsets = [1, 0, 0], sizes = [1, 4, 16], strides = [1, 1, 1]} : vector<4x4x16xf32> to vector<1x4x16xf32>
    %487 = vector.shape_cast %486 : vector<1x4x16xf32> to vector<4x16xf32>
    %488 = vector.extract_strided_slice %483 {offsets = [2, 0, 0], sizes = [1, 4, 16], strides = [1, 1, 1]} : vector<4x4x16xf32> to vector<1x4x16xf32>
    %489 = vector.shape_cast %488 : vector<1x4x16xf32> to vector<4x16xf32>
    %490 = vector.extract_strided_slice %483 {offsets = [3, 0, 0], sizes = [1, 4, 16], strides = [1, 1, 1]} : vector<4x4x16xf32> to vector<1x4x16xf32>
    %491 = vector.shape_cast %490 : vector<1x4x16xf32> to vector<4x16xf32>
    %492 = tpu.concatenate %485, %487, %489, %491 in 1 : vector<4x16xf32>, vector<4x16xf32>, vector<4x16xf32>, vector<4x16xf32> -> vector<4x64xf32>
    %493 = arith.truncf %492 : vector<4x64xf32> to vector<4x64xbf16>
    %c0_196 = arith.constant 0 : index
    %c0_197 = arith.constant 0 : index
    %c0_198 = arith.constant 0 : index
    %494 = vector.load %arg24[%c0_196, %c0_197, %c0_198] : memref<2x64x64xbf16, #tpu.memory_space<vmem>>, vector<1x64x64xbf16>
    %495 = vector.shape_cast %494 : vector<1x64x64xbf16> to vector<64x64xbf16>
    %cst_199 = arith.constant dense<0.000000e+00> : vector<4x64xf32>
    %496 = tpu.matmul %493, %495, %cst_199 {dimension_numbers = #tpu.dot_dimension_numbers<[1], [0], [0], [1], [0, 0, 1, 1], [], []>} : vector<4x64xbf16>, vector<64x64xbf16>, vector<4x64xf32> -> vector<4x64xf32>
    %c0_200 = arith.constant 0 : index
    %c0_201 = arith.constant 0 : index
    %c0_202 = arith.constant 0 : index
    %497 = vector.load %arg25[%c0_200, %c0_201, %c0_202] : memref<2x1x64xf32, #tpu.memory_space<vmem>>, vector<1x1x64xf32>
    %498 = vector.shape_cast %497 : vector<1x1x64xf32> to vector<1x64xf32>
    %499 = vector.broadcast %498 : vector<1x64xf32> to vector<4x64xf32>
    %500 = arith.addf %496, %499 : vector<4x64xf32>
    %501 = arith.addf %405, %500 : vector<4x64xf32>
    %c1_203 = arith.constant 1 : index
    %c0_204 = arith.constant 0 : index
    %c0_205 = arith.constant 0 : index
    %502 = vector.load %arg20[%c1_203, %c0_204, %c0_205] : memref<4x1x64xf32, #tpu.memory_space<vmem>>, vector<1x1x64xf32>
    %503 = vector.shape_cast %502 : vector<1x1x64xf32> to vector<1x64xf32>
    %c1_206 = arith.constant 1 : index
    %c0_207 = arith.constant 0 : index
    %c0_208 = arith.constant 0 : index
    %504 = vector.load %arg21[%c1_206, %c0_207, %c0_208] : memref<4x1x64xf32, #tpu.memory_space<vmem>>, vector<1x1x64xf32>
    %505 = vector.shape_cast %504 : vector<1x1x64xf32> to vector<1x64xf32>
    %cst_209 = arith.constant dense<0.000000e+00> : vector<4xf32>
    %506 = vector.multi_reduction <add>, %501, %cst_209 [1] : vector<4x64xf32> to vector<4xf32>
    %507 = vector.shape_cast %506 : vector<4xf32> to vector<4x1xf32>
    %cst_210 = arith.constant 6.400000e+01 : f32
    %508 = vector.broadcast %cst_210 : f32 to vector<4x1xf32>
    %509 = arith.divf %507, %508 : vector<4x1xf32>
    %510 = vector.broadcast %509 : vector<4x1xf32> to vector<4x64xf32>
    %511 = arith.subf %501, %510 : vector<4x64xf32>
    %512 = arith.mulf %511, %511 : vector<4x64xf32>
    %cst_211 = arith.constant dense<0.000000e+00> : vector<4xf32>
    %513 = vector.multi_reduction <add>, %512, %cst_211 [1] : vector<4x64xf32> to vector<4xf32>
    %514 = vector.shape_cast %513 : vector<4xf32> to vector<4x1xf32>
    %cst_212 = arith.constant 6.400000e+01 : f32
    %515 = vector.broadcast %cst_212 : f32 to vector<4x1xf32>
    %516 = arith.divf %514, %515 : vector<4x1xf32>
    %517 = vector.broadcast %509 : vector<4x1xf32> to vector<4x64xf32>
    %518 = arith.subf %501, %517 : vector<4x64xf32>
    %cst_213 = arith.constant 9.99999974E-6 : f32
    %519 = vector.broadcast %cst_213 : f32 to vector<4x1xf32>
    %520 = arith.addf %516, %519 : vector<4x1xf32>
    %521 = math.rsqrt %520 : vector<4x1xf32>
    %522 = vector.broadcast %521 : vector<4x1xf32> to vector<4x64xf32>
    %523 = arith.mulf %518, %522 : vector<4x64xf32>
    %524 = vector.broadcast %503 : vector<1x64xf32> to vector<4x64xf32>
    %525 = arith.mulf %523, %524 : vector<4x64xf32>
    %526 = vector.broadcast %505 : vector<1x64xf32> to vector<4x64xf32>
    %527 = arith.addf %525, %526 : vector<4x64xf32>
    %528 = arith.truncf %527 : vector<4x64xf32> to vector<4x64xbf16>
    %c0_214 = arith.constant 0 : index
    %c0_215 = arith.constant 0 : index
    %c0_216 = arith.constant 0 : index
    %529 = vector.load %arg27[%c0_214, %c0_215, %c0_216] : memref<2x64x256xbf16, #tpu.memory_space<vmem>>, vector<1x64x256xbf16>
    %530 = vector.shape_cast %529 : vector<1x64x256xbf16> to vector<64x256xbf16>
    %cst_217 = arith.constant dense<0.000000e+00> : vector<4x256xf32>
    %531 = tpu.matmul %528, %530, %cst_217 {dimension_numbers = #tpu.dot_dimension_numbers<[1], [0], [0], [1], [0, 0, 1, 1], [], []>} : vector<4x64xbf16>, vector<64x256xbf16>, vector<4x256xf32> -> vector<4x256xf32>
    %c0_218 = arith.constant 0 : index
    %c0_219 = arith.constant 0 : index
    %c0_220 = arith.constant 0 : index
    %532 = vector.load %arg28[%c0_218, %c0_219, %c0_220] : memref<2x1x256xf32, #tpu.memory_space<vmem>>, vector<1x1x256xf32>
    %533 = vector.shape_cast %532 : vector<1x1x256xf32> to vector<1x256xf32>
    %534 = vector.broadcast %533 : vector<1x256xf32> to vector<4x256xf32>
    %535 = arith.addf %531, %534 : vector<4x256xf32>
    %cst_221 = arith.constant 5.000000e-01 : f32
    %536 = vector.broadcast %cst_221 : f32 to vector<4x256xf32>
    %537 = arith.mulf %536, %535 : vector<4x256xf32>
    %cst_222 = arith.constant 0.707106769 : f32
    %538 = vector.broadcast %cst_222 : f32 to vector<4x256xf32>
    %539 = arith.mulf %535, %538 : vector<4x256xf32>
    %cst_223 = arith.constant 0.000000e+00 : f32
    %540 = vector.broadcast %cst_223 : f32 to vector<4x256xf32>
    %541 = arith.cmpf oge, %539, %540 : vector<4x256xf32>
    %cst_224 = arith.constant 1.000000e+00 : f32
    %cst_225 = arith.constant -1.000000e+00 : f32
    %542 = vector.broadcast %cst_224 : f32 to vector<4x256xf32>
    %543 = vector.broadcast %cst_225 : f32 to vector<4x256xf32>
    %544 = arith.select %541, %542, %543 : vector<4x256xi1>, vector<4x256xf32>
    %545 = math.absf %539 : vector<4x256xf32>
    %cst_226 = arith.constant 0.327591091 : f32
    %546 = vector.broadcast %cst_226 : f32 to vector<4x256xf32>
    %547 = arith.mulf %546, %545 : vector<4x256xf32>
    %cst_227 = arith.constant 1.000000e+00 : f32
    %548 = vector.broadcast %cst_227 : f32 to vector<4x256xf32>
    %549 = arith.addf %548, %547 : vector<4x256xf32>
    %550 = tpu.reciprocal %549 {approx = true} : vector<4x256xf32> -> vector<4x256xf32>
    %cst_228 = arith.constant 1.06140542 : f32
    %551 = vector.broadcast %cst_228 : f32 to vector<4x256xf32>
    %552 = arith.mulf %550, %551 : vector<4x256xf32>
    %cst_229 = arith.constant -1.45315206 : f32
    %553 = vector.broadcast %cst_229 : f32 to vector<4x256xf32>
    %554 = arith.addf %553, %552 : vector<4x256xf32>
    %555 = arith.mulf %550, %554 : vector<4x256xf32>
    %cst_230 = arith.constant 1.42141378 : f32
    %556 = vector.broadcast %cst_230 : f32 to vector<4x256xf32>
    %557 = arith.addf %556, %555 : vector<4x256xf32>
    %558 = arith.mulf %550, %557 : vector<4x256xf32>
    %cst_231 = arith.constant -0.284496725 : f32
    %559 = vector.broadcast %cst_231 : f32 to vector<4x256xf32>
    %560 = arith.addf %559, %558 : vector<4x256xf32>
    %561 = arith.mulf %550, %560 : vector<4x256xf32>
    %cst_232 = arith.constant 0.254829586 : f32
    %562 = vector.broadcast %cst_232 : f32 to vector<4x256xf32>
    %563 = arith.addf %562, %561 : vector<4x256xf32>
    %564 = arith.mulf %550, %563 : vector<4x256xf32>
    %cst_233 = arith.constant 0.000000e+00 : f32
    %565 = vector.broadcast %cst_233 : f32 to vector<4x256xf32>
    %566 = arith.subf %565, %545 : vector<4x256xf32>
    %567 = arith.mulf %566, %545 : vector<4x256xf32>
    %568 = math.exp %567 : vector<4x256xf32>
    %569 = arith.mulf %564, %568 : vector<4x256xf32>
    %cst_234 = arith.constant 1.000000e+00 : f32
    %570 = vector.broadcast %cst_234 : f32 to vector<4x256xf32>
    %571 = arith.subf %570, %569 : vector<4x256xf32>
    %572 = arith.mulf %544, %571 : vector<4x256xf32>
    %cst_235 = arith.constant 1.000000e+00 : f32
    %573 = vector.broadcast %cst_235 : f32 to vector<4x256xf32>
    %574 = arith.addf %573, %572 : vector<4x256xf32>
    %575 = arith.mulf %537, %574 : vector<4x256xf32>
    %576 = arith.truncf %575 : vector<4x256xf32> to vector<4x256xbf16>
    %c0_236 = arith.constant 0 : index
    %c0_237 = arith.constant 0 : index
    %c0_238 = arith.constant 0 : index
    %577 = vector.load %arg29[%c0_236, %c0_237, %c0_238] : memref<2x256x64xbf16, #tpu.memory_space<vmem>>, vector<1x256x64xbf16>
    %578 = vector.shape_cast %577 : vector<1x256x64xbf16> to vector<256x64xbf16>
    %cst_239 = arith.constant dense<0.000000e+00> : vector<4x64xf32>
    %579 = tpu.matmul %576, %578, %cst_239 {dimension_numbers = #tpu.dot_dimension_numbers<[1], [0], [0], [1], [0, 0, 1, 1], [], []>} : vector<4x256xbf16>, vector<256x64xbf16>, vector<4x64xf32> -> vector<4x64xf32>
    %c0_240 = arith.constant 0 : index
    %c0_241 = arith.constant 0 : index
    %c0_242 = arith.constant 0 : index
    %580 = vector.load %arg30[%c0_240, %c0_241, %c0_242] : memref<2x1x64xf32, #tpu.memory_space<vmem>>, vector<1x1x64xf32>
    %581 = vector.shape_cast %580 : vector<1x1x64xf32> to vector<1x64xf32>
    %582 = vector.broadcast %581 : vector<1x64xf32> to vector<4x64xf32>
    %583 = arith.addf %579, %582 : vector<4x64xf32>
    %584 = arith.addf %501, %583 : vector<4x64xf32>
    %c2_243 = arith.constant 2 : index
    %c0_244 = arith.constant 0 : index
    %c0_245 = arith.constant 0 : index
    %585 = vector.load %arg20[%c2_243, %c0_244, %c0_245] : memref<4x1x64xf32, #tpu.memory_space<vmem>>, vector<1x1x64xf32>
    %586 = vector.shape_cast %585 : vector<1x1x64xf32> to vector<1x64xf32>
    %c2_246 = arith.constant 2 : index
    %c0_247 = arith.constant 0 : index
    %c0_248 = arith.constant 0 : index
    %587 = vector.load %arg21[%c2_246, %c0_247, %c0_248] : memref<4x1x64xf32, #tpu.memory_space<vmem>>, vector<1x1x64xf32>
    %588 = vector.shape_cast %587 : vector<1x1x64xf32> to vector<1x64xf32>
    %cst_249 = arith.constant dense<0.000000e+00> : vector<4xf32>
    %589 = vector.multi_reduction <add>, %584, %cst_249 [1] : vector<4x64xf32> to vector<4xf32>
    %590 = vector.shape_cast %589 : vector<4xf32> to vector<4x1xf32>
    %cst_250 = arith.constant 6.400000e+01 : f32
    %591 = vector.broadcast %cst_250 : f32 to vector<4x1xf32>
    %592 = arith.divf %590, %591 : vector<4x1xf32>
    %593 = vector.broadcast %592 : vector<4x1xf32> to vector<4x64xf32>
    %594 = arith.subf %584, %593 : vector<4x64xf32>
    %595 = arith.mulf %594, %594 : vector<4x64xf32>
    %cst_251 = arith.constant dense<0.000000e+00> : vector<4xf32>
    %596 = vector.multi_reduction <add>, %595, %cst_251 [1] : vector<4x64xf32> to vector<4xf32>
    %597 = vector.shape_cast %596 : vector<4xf32> to vector<4x1xf32>
    %cst_252 = arith.constant 6.400000e+01 : f32
    %598 = vector.broadcast %cst_252 : f32 to vector<4x1xf32>
    %599 = arith.divf %597, %598 : vector<4x1xf32>
    %600 = vector.broadcast %592 : vector<4x1xf32> to vector<4x64xf32>
    %601 = arith.subf %584, %600 : vector<4x64xf32>
    %cst_253 = arith.constant 9.99999974E-6 : f32
    %602 = vector.broadcast %cst_253 : f32 to vector<4x1xf32>
    %603 = arith.addf %599, %602 : vector<4x1xf32>
    %604 = math.rsqrt %603 : vector<4x1xf32>
    %605 = vector.broadcast %604 : vector<4x1xf32> to vector<4x64xf32>
    %606 = arith.mulf %601, %605 : vector<4x64xf32>
    %607 = vector.broadcast %586 : vector<1x64xf32> to vector<4x64xf32>
    %608 = arith.mulf %606, %607 : vector<4x64xf32>
    %609 = vector.broadcast %588 : vector<1x64xf32> to vector<4x64xf32>
    %610 = arith.addf %608, %609 : vector<4x64xf32>
    %611 = arith.truncf %610 : vector<4x64xf32> to vector<4x64xbf16>
    %c1_254 = arith.constant 1 : index
    %c0_255 = arith.constant 0 : index
    %c0_256 = arith.constant 0 : index
    %612 = vector.load %arg22[%c1_254, %c0_255, %c0_256] : memref<2x64x192xbf16, #tpu.memory_space<vmem>>, vector<1x64x192xbf16>
    %613 = vector.shape_cast %612 : vector<1x64x192xbf16> to vector<64x192xbf16>
    %cst_257 = arith.constant dense<0.000000e+00> : vector<4x192xf32>
    %614 = tpu.matmul %611, %613, %cst_257 {dimension_numbers = #tpu.dot_dimension_numbers<[1], [0], [0], [1], [0, 0, 1, 1], [], []>} : vector<4x64xbf16>, vector<64x192xbf16>, vector<4x192xf32> -> vector<4x192xf32>
    %c1_258 = arith.constant 1 : index
    %c0_259 = arith.constant 0 : index
    %c0_260 = arith.constant 0 : index
    %615 = vector.load %arg23[%c1_258, %c0_259, %c0_260] : memref<2x1x192xf32, #tpu.memory_space<vmem>>, vector<1x1x192xf32>
    %616 = vector.shape_cast %615 : vector<1x1x192xf32> to vector<1x192xf32>
    %617 = vector.broadcast %616 : vector<1x192xf32> to vector<4x192xf32>
    %618 = arith.addf %614, %617 : vector<4x192xf32>
    %619 = arith.truncf %618 : vector<4x192xf32> to vector<4x192xbf16>
    %620 = vector.extract_strided_slice %619 {offsets = [0, 0], sizes = [4, 16], strides = [1, 1]} : vector<4x192xbf16> to vector<4x16xbf16>
    %621 = vector.extract_strided_slice %619 {offsets = [0, 16], sizes = [4, 16], strides = [1, 1]} : vector<4x192xbf16> to vector<4x16xbf16>
    %622 = vector.extract_strided_slice %619 {offsets = [0, 32], sizes = [4, 16], strides = [1, 1]} : vector<4x192xbf16> to vector<4x16xbf16>
    %623 = vector.extract_strided_slice %619 {offsets = [0, 48], sizes = [4, 16], strides = [1, 1]} : vector<4x192xbf16> to vector<4x16xbf16>
    %624 = vector.shape_cast %620 : vector<4x16xbf16> to vector<1x4x16xbf16>
    %625 = vector.shape_cast %621 : vector<4x16xbf16> to vector<1x4x16xbf16>
    %626 = vector.shape_cast %622 : vector<4x16xbf16> to vector<1x4x16xbf16>
    %627 = vector.shape_cast %623 : vector<4x16xbf16> to vector<1x4x16xbf16>
    %628 = tpu.concatenate %624, %625, %626, %627 in 0 : vector<1x4x16xbf16>, vector<1x4x16xbf16>, vector<1x4x16xbf16>, vector<1x4x16xbf16> -> vector<4x4x16xbf16>
    %629 = vector.extract_strided_slice %619 {offsets = [0, 64], sizes = [4, 16], strides = [1, 1]} : vector<4x192xbf16> to vector<4x16xbf16>
    %630 = vector.extract_strided_slice %619 {offsets = [0, 80], sizes = [4, 16], strides = [1, 1]} : vector<4x192xbf16> to vector<4x16xbf16>
    %631 = vector.extract_strided_slice %619 {offsets = [0, 96], sizes = [4, 16], strides = [1, 1]} : vector<4x192xbf16> to vector<4x16xbf16>
    %632 = vector.extract_strided_slice %619 {offsets = [0, 112], sizes = [4, 16], strides = [1, 1]} : vector<4x192xbf16> to vector<4x16xbf16>
    %633 = vector.shape_cast %629 : vector<4x16xbf16> to vector<1x4x16xbf16>
    %634 = vector.shape_cast %630 : vector<4x16xbf16> to vector<1x4x16xbf16>
    %635 = vector.shape_cast %631 : vector<4x16xbf16> to vector<1x4x16xbf16>
    %636 = vector.shape_cast %632 : vector<4x16xbf16> to vector<1x4x16xbf16>
    %637 = tpu.concatenate %633, %634, %635, %636 in 0 : vector<1x4x16xbf16>, vector<1x4x16xbf16>, vector<1x4x16xbf16>, vector<1x4x16xbf16> -> vector<4x4x16xbf16>
    %638 = vector.extract_strided_slice %619 {offsets = [0, 128], sizes = [4, 16], strides = [1, 1]} : vector<4x192xbf16> to vector<4x16xbf16>
    %639 = vector.extract_strided_slice %619 {offsets = [0, 144], sizes = [4, 16], strides = [1, 1]} : vector<4x192xbf16> to vector<4x16xbf16>
    %640 = vector.extract_strided_slice %619 {offsets = [0, 160], sizes = [4, 16], strides = [1, 1]} : vector<4x192xbf16> to vector<4x16xbf16>
    %641 = vector.extract_strided_slice %619 {offsets = [0, 176], sizes = [4, 16], strides = [1, 1]} : vector<4x192xbf16> to vector<4x16xbf16>
    %642 = vector.shape_cast %638 : vector<4x16xbf16> to vector<1x4x16xbf16>
    %643 = vector.shape_cast %639 : vector<4x16xbf16> to vector<1x4x16xbf16>
    %644 = vector.shape_cast %640 : vector<4x16xbf16> to vector<1x4x16xbf16>
    %645 = vector.shape_cast %641 : vector<4x16xbf16> to vector<1x4x16xbf16>
    %646 = tpu.concatenate %642, %643, %644, %645 in 0 : vector<1x4x16xbf16>, vector<1x4x16xbf16>, vector<1x4x16xbf16>, vector<1x4x16xbf16> -> vector<4x4x16xbf16>
    "tpu.trace_start"() <{level = 10 : i32, message = "hqd,hkd->hqk"}> : () -> ()
    %cst_261 = arith.constant dense<0.000000e+00> : vector<4x4x4xf32>
    %647 = tpu.matmul %628, %637, %cst_261 {dimension_numbers = #tpu.dot_dimension_numbers<[2], [2], [1], [1], [0, 0, 0, 1, 1, 1], [0], [0]>} : vector<4x4x16xbf16>, vector<4x4x16xbf16>, vector<4x4x4xf32> -> vector<4x4x4xf32>
    "tpu.trace_stop"() : () -> ()
    %c1_262 = arith.constant 1 : index
    %c0_263 = arith.constant 0 : index
    %c0_264 = arith.constant 0 : index
    %c0_265 = arith.constant 0 : index
    %648 = vector.load %arg26[%c1_262, %c0_263, %c0_264, %c0_265] : memref<2x4x4x4xf32, #tpu.memory_space<vmem>>, vector<1x4x4x4xf32>
    %649 = vector.shape_cast %648 : vector<1x4x4x4xf32> to vector<4x4x4xf32>
    %650 = arith.addf %647, %649 : vector<4x4x4xf32>
    %cst_266 = arith.constant dense<0xFF800000> : vector<4x4xf32>
    %651 = vector.multi_reduction <maximumf>, %650, %cst_266 [2] : vector<4x4x4xf32> to vector<4x4xf32>
    %652 = vector.shape_cast %651 : vector<4x4xf32> to vector<4x4x1xf32>
    %653 = vector.broadcast %652 : vector<4x4x1xf32> to vector<4x4x4xf32>
    %654 = arith.subf %650, %653 : vector<4x4x4xf32>
    %655 = math.exp %654 : vector<4x4x4xf32>
    %cst_267 = arith.constant dense<0.000000e+00> : vector<4x4xf32>
    %656 = vector.multi_reduction <add>, %655, %cst_267 [2] : vector<4x4x4xf32> to vector<4x4xf32>
    %657 = vector.shape_cast %656 : vector<4x4xf32> to vector<4x4x1xf32>
    %658 = tpu.reciprocal %657 {approx = true} : vector<4x4x1xf32> -> vector<4x4x1xf32>
    %659 = vector.broadcast %658 : vector<4x4x1xf32> to vector<4x4x4xf32>
    %660 = arith.mulf %655, %659 : vector<4x4x4xf32>
    %661 = arith.truncf %660 : vector<4x4x4xf32> to vector<4x4x4xbf16>
    "tpu.trace_start"() <{level = 10 : i32, message = "hqk,hkd->hqd"}> : () -> ()
    %cst_268 = arith.constant dense<0.000000e+00> : vector<4x4x16xf32>
    %662 = tpu.matmul %661, %646, %cst_268 {dimension_numbers = #tpu.dot_dimension_numbers<[2], [1], [1], [2], [0, 0, 0, 1, 1, 2], [0], [0]>} : vector<4x4x4xbf16>, vector<4x4x16xbf16>, vector<4x4x16xf32> -> vector<4x4x16xf32>
    "tpu.trace_stop"() : () -> ()
    %663 = vector.extract_strided_slice %662 {offsets = [0, 0, 0], sizes = [1, 4, 16], strides = [1, 1, 1]} : vector<4x4x16xf32> to vector<1x4x16xf32>
    %664 = vector.shape_cast %663 : vector<1x4x16xf32> to vector<4x16xf32>
    %665 = vector.extract_strided_slice %662 {offsets = [1, 0, 0], sizes = [1, 4, 16], strides = [1, 1, 1]} : vector<4x4x16xf32> to vector<1x4x16xf32>
    %666 = vector.shape_cast %665 : vector<1x4x16xf32> to vector<4x16xf32>
    %667 = vector.extract_strided_slice %662 {offsets = [2, 0, 0], sizes = [1, 4, 16], strides = [1, 1, 1]} : vector<4x4x16xf32> to vector<1x4x16xf32>
    %668 = vector.shape_cast %667 : vector<1x4x16xf32> to vector<4x16xf32>
    %669 = vector.extract_strided_slice %662 {offsets = [3, 0, 0], sizes = [1, 4, 16], strides = [1, 1, 1]} : vector<4x4x16xf32> to vector<1x4x16xf32>
    %670 = vector.shape_cast %669 : vector<1x4x16xf32> to vector<4x16xf32>
    %671 = tpu.concatenate %664, %666, %668, %670 in 1 : vector<4x16xf32>, vector<4x16xf32>, vector<4x16xf32>, vector<4x16xf32> -> vector<4x64xf32>
    %672 = arith.truncf %671 : vector<4x64xf32> to vector<4x64xbf16>
    %c1_269 = arith.constant 1 : index
    %c0_270 = arith.constant 0 : index
    %c0_271 = arith.constant 0 : index
    %673 = vector.load %arg24[%c1_269, %c0_270, %c0_271] : memref<2x64x64xbf16, #tpu.memory_space<vmem>>, vector<1x64x64xbf16>
    %674 = vector.shape_cast %673 : vector<1x64x64xbf16> to vector<64x64xbf16>
    %cst_272 = arith.constant dense<0.000000e+00> : vector<4x64xf32>
    %675 = tpu.matmul %672, %674, %cst_272 {dimension_numbers = #tpu.dot_dimension_numbers<[1], [0], [0], [1], [0, 0, 1, 1], [], []>} : vector<4x64xbf16>, vector<64x64xbf16>, vector<4x64xf32> -> vector<4x64xf32>
    %c1_273 = arith.constant 1 : index
    %c0_274 = arith.constant 0 : index
    %c0_275 = arith.constant 0 : index
    %676 = vector.load %arg25[%c1_273, %c0_274, %c0_275] : memref<2x1x64xf32, #tpu.memory_space<vmem>>, vector<1x1x64xf32>
    %677 = vector.shape_cast %676 : vector<1x1x64xf32> to vector<1x64xf32>
    %678 = vector.broadcast %677 : vector<1x64xf32> to vector<4x64xf32>
    %679 = arith.addf %675, %678 : vector<4x64xf32>
    %680 = arith.addf %584, %679 : vector<4x64xf32>
    %c3_276 = arith.constant 3 : index
    %c0_277 = arith.constant 0 : index
    %c0_278 = arith.constant 0 : index
    %681 = vector.load %arg20[%c3_276, %c0_277, %c0_278] : memref<4x1x64xf32, #tpu.memory_space<vmem>>, vector<1x1x64xf32>
    %682 = vector.shape_cast %681 : vector<1x1x64xf32> to vector<1x64xf32>
    %c3_279 = arith.constant 3 : index
    %c0_280 = arith.constant 0 : index
    %c0_281 = arith.constant 0 : index
    %683 = vector.load %arg21[%c3_279, %c0_280, %c0_281] : memref<4x1x64xf32, #tpu.memory_space<vmem>>, vector<1x1x64xf32>
    %684 = vector.shape_cast %683 : vector<1x1x64xf32> to vector<1x64xf32>
    %cst_282 = arith.constant dense<0.000000e+00> : vector<4xf32>
    %685 = vector.multi_reduction <add>, %680, %cst_282 [1] : vector<4x64xf32> to vector<4xf32>
    %686 = vector.shape_cast %685 : vector<4xf32> to vector<4x1xf32>
    %cst_283 = arith.constant 6.400000e+01 : f32
    %687 = vector.broadcast %cst_283 : f32 to vector<4x1xf32>
    %688 = arith.divf %686, %687 : vector<4x1xf32>
    %689 = vector.broadcast %688 : vector<4x1xf32> to vector<4x64xf32>
    %690 = arith.subf %680, %689 : vector<4x64xf32>
    %691 = arith.mulf %690, %690 : vector<4x64xf32>
    %cst_284 = arith.constant dense<0.000000e+00> : vector<4xf32>
    %692 = vector.multi_reduction <add>, %691, %cst_284 [1] : vector<4x64xf32> to vector<4xf32>
    %693 = vector.shape_cast %692 : vector<4xf32> to vector<4x1xf32>
    %cst_285 = arith.constant 6.400000e+01 : f32
    %694 = vector.broadcast %cst_285 : f32 to vector<4x1xf32>
    %695 = arith.divf %693, %694 : vector<4x1xf32>
    %696 = vector.broadcast %688 : vector<4x1xf32> to vector<4x64xf32>
    %697 = arith.subf %680, %696 : vector<4x64xf32>
    %cst_286 = arith.constant 9.99999974E-6 : f32
    %698 = vector.broadcast %cst_286 : f32 to vector<4x1xf32>
    %699 = arith.addf %695, %698 : vector<4x1xf32>
    %700 = math.rsqrt %699 : vector<4x1xf32>
    %701 = vector.broadcast %700 : vector<4x1xf32> to vector<4x64xf32>
    %702 = arith.mulf %697, %701 : vector<4x64xf32>
    %703 = vector.broadcast %682 : vector<1x64xf32> to vector<4x64xf32>
    %704 = arith.mulf %702, %703 : vector<4x64xf32>
    %705 = vector.broadcast %684 : vector<1x64xf32> to vector<4x64xf32>
    %706 = arith.addf %704, %705 : vector<4x64xf32>
    %707 = arith.truncf %706 : vector<4x64xf32> to vector<4x64xbf16>
    %c1_287 = arith.constant 1 : index
    %c0_288 = arith.constant 0 : index
    %c0_289 = arith.constant 0 : index
    %708 = vector.load %arg27[%c1_287, %c0_288, %c0_289] : memref<2x64x256xbf16, #tpu.memory_space<vmem>>, vector<1x64x256xbf16>
    %709 = vector.shape_cast %708 : vector<1x64x256xbf16> to vector<64x256xbf16>
    %cst_290 = arith.constant dense<0.000000e+00> : vector<4x256xf32>
    %710 = tpu.matmul %707, %709, %cst_290 {dimension_numbers = #tpu.dot_dimension_numbers<[1], [0], [0], [1], [0, 0, 1, 1], [], []>} : vector<4x64xbf16>, vector<64x256xbf16>, vector<4x256xf32> -> vector<4x256xf32>
    %c1_291 = arith.constant 1 : index
    %c0_292 = arith.constant 0 : index
    %c0_293 = arith.constant 0 : index
    %711 = vector.load %arg28[%c1_291, %c0_292, %c0_293] : memref<2x1x256xf32, #tpu.memory_space<vmem>>, vector<1x1x256xf32>
    %712 = vector.shape_cast %711 : vector<1x1x256xf32> to vector<1x256xf32>
    %713 = vector.broadcast %712 : vector<1x256xf32> to vector<4x256xf32>
    %714 = arith.addf %710, %713 : vector<4x256xf32>
    %cst_294 = arith.constant 5.000000e-01 : f32
    %715 = vector.broadcast %cst_294 : f32 to vector<4x256xf32>
    %716 = arith.mulf %715, %714 : vector<4x256xf32>
    %cst_295 = arith.constant 0.707106769 : f32
    %717 = vector.broadcast %cst_295 : f32 to vector<4x256xf32>
    %718 = arith.mulf %714, %717 : vector<4x256xf32>
    %cst_296 = arith.constant 0.000000e+00 : f32
    %719 = vector.broadcast %cst_296 : f32 to vector<4x256xf32>
    %720 = arith.cmpf oge, %718, %719 : vector<4x256xf32>
    %cst_297 = arith.constant 1.000000e+00 : f32
    %cst_298 = arith.constant -1.000000e+00 : f32
    %721 = vector.broadcast %cst_297 : f32 to vector<4x256xf32>
    %722 = vector.broadcast %cst_298 : f32 to vector<4x256xf32>
    %723 = arith.select %720, %721, %722 : vector<4x256xi1>, vector<4x256xf32>
    %724 = math.absf %718 : vector<4x256xf32>
    %cst_299 = arith.constant 0.327591091 : f32
    %725 = vector.broadcast %cst_299 : f32 to vector<4x256xf32>
    %726 = arith.mulf %725, %724 : vector<4x256xf32>
    %cst_300 = arith.constant 1.000000e+00 : f32
    %727 = vector.broadcast %cst_300 : f32 to vector<4x256xf32>
    %728 = arith.addf %727, %726 : vector<4x256xf32>
    %729 = tpu.reciprocal %728 {approx = true} : vector<4x256xf32> -> vector<4x256xf32>
    %cst_301 = arith.constant 1.06140542 : f32
    %730 = vector.broadcast %cst_301 : f32 to vector<4x256xf32>
    %731 = arith.mulf %729, %730 : vector<4x256xf32>
    %cst_302 = arith.constant -1.45315206 : f32
    %732 = vector.broadcast %cst_302 : f32 to vector<4x256xf32>
    %733 = arith.addf %732, %731 : vector<4x256xf32>
    %734 = arith.mulf %729, %733 : vector<4x256xf32>
    %cst_303 = arith.constant 1.42141378 : f32
    %735 = vector.broadcast %cst_303 : f32 to vector<4x256xf32>
    %736 = arith.addf %735, %734 : vector<4x256xf32>
    %737 = arith.mulf %729, %736 : vector<4x256xf32>
    %cst_304 = arith.constant -0.284496725 : f32
    %738 = vector.broadcast %cst_304 : f32 to vector<4x256xf32>
    %739 = arith.addf %738, %737 : vector<4x256xf32>
    %740 = arith.mulf %729, %739 : vector<4x256xf32>
    %cst_305 = arith.constant 0.254829586 : f32
    %741 = vector.broadcast %cst_305 : f32 to vector<4x256xf32>
    %742 = arith.addf %741, %740 : vector<4x256xf32>
    %743 = arith.mulf %729, %742 : vector<4x256xf32>
    %cst_306 = arith.constant 0.000000e+00 : f32
    %744 = vector.broadcast %cst_306 : f32 to vector<4x256xf32>
    %745 = arith.subf %744, %724 : vector<4x256xf32>
    %746 = arith.mulf %745, %724 : vector<4x256xf32>
    %747 = math.exp %746 : vector<4x256xf32>
    %748 = arith.mulf %743, %747 : vector<4x256xf32>
    %cst_307 = arith.constant 1.000000e+00 : f32
    %749 = vector.broadcast %cst_307 : f32 to vector<4x256xf32>
    %750 = arith.subf %749, %748 : vector<4x256xf32>
    %751 = arith.mulf %723, %750 : vector<4x256xf32>
    %cst_308 = arith.constant 1.000000e+00 : f32
    %752 = vector.broadcast %cst_308 : f32 to vector<4x256xf32>
    %753 = arith.addf %752, %751 : vector<4x256xf32>
    %754 = arith.mulf %716, %753 : vector<4x256xf32>
    %755 = arith.truncf %754 : vector<4x256xf32> to vector<4x256xbf16>
    %c1_309 = arith.constant 1 : index
    %c0_310 = arith.constant 0 : index
    %c0_311 = arith.constant 0 : index
    %756 = vector.load %arg29[%c1_309, %c0_310, %c0_311] : memref<2x256x64xbf16, #tpu.memory_space<vmem>>, vector<1x256x64xbf16>
    %757 = vector.shape_cast %756 : vector<1x256x64xbf16> to vector<256x64xbf16>
    %cst_312 = arith.constant dense<0.000000e+00> : vector<4x64xf32>
    %758 = tpu.matmul %755, %757, %cst_312 {dimension_numbers = #tpu.dot_dimension_numbers<[1], [0], [0], [1], [0, 0, 1, 1], [], []>} : vector<4x256xbf16>, vector<256x64xbf16>, vector<4x64xf32> -> vector<4x64xf32>
    %c1_313 = arith.constant 1 : index
    %c0_314 = arith.constant 0 : index
    %c0_315 = arith.constant 0 : index
    %759 = vector.load %arg30[%c1_313, %c0_314, %c0_315] : memref<2x1x64xf32, #tpu.memory_space<vmem>>, vector<1x1x64xf32>
    %760 = vector.shape_cast %759 : vector<1x1x64xf32> to vector<1x64xf32>
    %761 = vector.broadcast %760 : vector<1x64xf32> to vector<4x64xf32>
    %762 = arith.addf %758, %761 : vector<4x64xf32>
    %763 = arith.addf %680, %762 : vector<4x64xf32>
    %c0_316 = arith.constant 0 : index
    %c0_317 = arith.constant 0 : index
    %764 = vector.load %arg31[%c0_316, %c0_317] : memref<1x64xf32, #tpu.memory_space<vmem>>, vector<1x64xf32>
    %c0_318 = arith.constant 0 : index
    %c0_319 = arith.constant 0 : index
    %765 = vector.load %arg32[%c0_318, %c0_319] : memref<1x64xf32, #tpu.memory_space<vmem>>, vector<1x64xf32>
    %cst_320 = arith.constant dense<0.000000e+00> : vector<4xf32>
    %766 = vector.multi_reduction <add>, %763, %cst_320 [1] : vector<4x64xf32> to vector<4xf32>
    %767 = vector.shape_cast %766 : vector<4xf32> to vector<4x1xf32>
    %cst_321 = arith.constant 6.400000e+01 : f32
    %768 = vector.broadcast %cst_321 : f32 to vector<4x1xf32>
    %769 = arith.divf %767, %768 : vector<4x1xf32>
    %770 = vector.broadcast %769 : vector<4x1xf32> to vector<4x64xf32>
    %771 = arith.subf %763, %770 : vector<4x64xf32>
    %772 = arith.mulf %771, %771 : vector<4x64xf32>
    %cst_322 = arith.constant dense<0.000000e+00> : vector<4xf32>
    %773 = vector.multi_reduction <add>, %772, %cst_322 [1] : vector<4x64xf32> to vector<4xf32>
    %774 = vector.shape_cast %773 : vector<4xf32> to vector<4x1xf32>
    %cst_323 = arith.constant 6.400000e+01 : f32
    %775 = vector.broadcast %cst_323 : f32 to vector<4x1xf32>
    %776 = arith.divf %774, %775 : vector<4x1xf32>
    %777 = vector.broadcast %769 : vector<4x1xf32> to vector<4x64xf32>
    %778 = arith.subf %763, %777 : vector<4x64xf32>
    %cst_324 = arith.constant 9.99999974E-6 : f32
    %779 = vector.broadcast %cst_324 : f32 to vector<4x1xf32>
    %780 = arith.addf %776, %779 : vector<4x1xf32>
    %781 = math.rsqrt %780 : vector<4x1xf32>
    %782 = vector.broadcast %781 : vector<4x1xf32> to vector<4x64xf32>
    %783 = arith.mulf %778, %782 : vector<4x64xf32>
    %784 = vector.broadcast %764 : vector<1x64xf32> to vector<4x64xf32>
    %785 = arith.mulf %783, %784 : vector<4x64xf32>
    %786 = vector.broadcast %765 : vector<1x64xf32> to vector<4x64xf32>
    %787 = arith.addf %785, %786 : vector<4x64xf32>
    %cst_325 = arith.constant dense<0.000000e+00> : vector<64xf32>
    %788 = vector.multi_reduction <add>, %787, %cst_325 [0] : vector<4x64xf32> to vector<64xf32>
    %789 = vector.shape_cast %788 : vector<64xf32> to vector<1x64xf32>
    %cst_326 = arith.constant 4.000000e+00 : f32
    %790 = vector.broadcast %cst_326 : f32 to vector<1x64xf32>
    %791 = arith.divf %789, %790 : vector<1x64xf32>
    %792 = arith.truncf %791 : vector<1x64xf32> to vector<1x64xbf16>
    %c0_327 = arith.constant 0 : index
    %c0_328 = arith.constant 0 : index
    %793 = vector.load %arg33[%c0_327, %c0_328] : memref<64x10xbf16, #tpu.memory_space<vmem>>, vector<64x10xbf16>
    %cst_329 = arith.constant dense<0.000000e+00> : vector<1x10xf32>
    %794 = tpu.matmul %792, %793, %cst_329 {dimension_numbers = #tpu.dot_dimension_numbers<[1], [0], [0], [1], [0, 0, 1, 1], [], []>} : vector<1x64xbf16>, vector<64x10xbf16>, vector<1x10xf32> -> vector<1x10xf32>
    %c0_330 = arith.constant 0 : index
    %c0_331 = arith.constant 0 : index
    %795 = vector.load %arg34[%c0_330, %c0_331] : memref<1x10xf32, #tpu.memory_space<vmem>>, vector<1x10xf32>
    %796 = arith.addf %794, %795 : vector<1x10xf32>
    %c0_332 = arith.constant 0 : index
    %c0_333 = arith.constant 0 : index
    %c0_334 = arith.constant 0 : index
    %797 = vector.load %arg35[%c0_332, %c0_333, %c0_334] : memref<1x1x10xf32, #tpu.memory_space<vmem>>, vector<1x1x10xf32>
    %798 = vector.shape_cast %797 : vector<1x1x10xf32> to vector<1x10xf32>
    %799 = vector.shape_cast %796 : vector<1x10xf32> to vector<1x1x10xf32>
    tpu.vector_store %arg35[%c0_332, %c0_333, %c0_334], %799 {strides = array<i32>} : memref<1x1x10xf32, #tpu.memory_space<vmem>>, vector<1x1x10xf32>,
    return
  }
  func.func @transform_0(%arg0: i32) -> (i32, i32, i32) {
    %c0_i32 = arith.constant 0 : i32
    %c0_i32_0 = arith.constant 0 : i32
    %c0_i32_1 = arith.constant 0 : i32
    return %arg0, %c0_i32, %c0_i32_0 : i32, i32, i32
  }
  func.func @transform_1(%arg0: i32) -> (i32, i32) {
    %c0_i32 = arith.constant 0 : i32
    %c0_i32_0 = arith.constant 0 : i32
    %c0_i32_1 = arith.constant 0 : i32
    return %c0_i32, %c0_i32_0 : i32, i32
  }
  func.func @transform_2(%arg0: i32) -> (i32, i32) {
    %c0_i32 = arith.constant 0 : i32
    %c0_i32_0 = arith.constant 0 : i32
    %c0_i32_1 = arith.constant 0 : i32
    return %c0_i32, %c0_i32_0 : i32, i32
  }
  func.func @transform_3(%arg0: i32) -> (i32, i32) {
    %c0_i32 = arith.constant 0 : i32
    %c0_i32_0 = arith.constant 0 : i32
    %c0_i32_1 = arith.constant 0 : i32
    return %c0_i32, %c0_i32_0 : i32, i32
  }
  func.func @transform_4(%arg0: i32) -> (i32, i32) {
    %c0_i32 = arith.constant 0 : i32
    %c0_i32_0 = arith.constant 0 : i32
    %c0_i32_1 = arith.constant 0 : i32
    return %c0_i32, %c0_i32_0 : i32, i32
  }
  func.func @transform_5(%arg0: i32) -> (i32, i32, i32) {
    %c0_i32 = arith.constant 0 : i32
    %c0_i32_0 = arith.constant 0 : i32
    %c0_i32_1 = arith.constant 0 : i32
    %c0_i32_2 = arith.constant 0 : i32
    return %c0_i32, %c0_i32_0, %c0_i32_1 : i32, i32, i32
  }
  func.func @transform_6(%arg0: i32) -> (i32, i32, i32) {
    %c0_i32 = arith.constant 0 : i32
    %c0_i32_0 = arith.constant 0 : i32
    %c0_i32_1 = arith.constant 0 : i32
    %c0_i32_2 = arith.constant 0 : i32
    return %c0_i32, %c0_i32_0, %c0_i32_1 : i32, i32, i32
  }
  func.func @transform_7(%arg0: i32) -> (i32, i32, i32) {
    %c0_i32 = arith.constant 0 : i32
    %c0_i32_0 = arith.constant 0 : i32
    %c0_i32_1 = arith.constant 0 : i32
    %c0_i32_2 = arith.constant 0 : i32
    return %c0_i32, %c0_i32_0, %c0_i32_1 : i32, i32, i32
  }
  func.func @transform_8(%arg0: i32) -> (i32, i32, i32) {
    %c0_i32 = arith.constant 0 : i32
    %c0_i32_0 = arith.constant 0 : i32
    %c0_i32_1 = arith.constant 0 : i32
    %c0_i32_2 = arith.constant 0 : i32
    return %c0_i32, %c0_i32_0, %c0_i32_1 : i32, i32, i32
  }
  func.func @transform_9(%arg0: i32) -> (i32, i32, i32) {
    %c0_i32 = arith.constant 0 : i32
    %c0_i32_0 = arith.constant 0 : i32
    %c0_i32_1 = arith.constant 0 : i32
    %c0_i32_2 = arith.constant 0 : i32
    return %c0_i32, %c0_i32_0, %c0_i32_1 : i32, i32, i32
  }
  func.func @transform_10(%arg0: i32) -> (i32, i32, i32) {
    %c0_i32 = arith.constant 0 : i32
    %c0_i32_0 = arith.constant 0 : i32
    %c0_i32_1 = arith.constant 0 : i32
    %c0_i32_2 = arith.constant 0 : i32
    return %c0_i32, %c0_i32_0, %c0_i32_1 : i32, i32, i32
  }
  func.func @transform_11(%arg0: i32) -> (i32, i32, i32, i32) {
    %c0_i32 = arith.constant 0 : i32
    %c0_i32_0 = arith.constant 0 : i32
    %c0_i32_1 = arith.constant 0 : i32
    %c0_i32_2 = arith.constant 0 : i32
    %c0_i32_3 = arith.constant 0 : i32
    return %c0_i32, %c0_i32_0, %c0_i32_1, %c0_i32_2 : i32, i32, i32, i32
  }
  func.func @transform_12(%arg0: i32) -> (i32, i32, i32) {
    %c0_i32 = arith.constant 0 : i32
    %c0_i32_0 = arith.constant 0 : i32
    %c0_i32_1 = arith.constant 0 : i32
    %c0_i32_2 = arith.constant 0 : i32
    return %c0_i32, %c0_i32_0, %c0_i32_1 : i32, i32, i32
  }
  func.func @transform_13(%arg0: i32) -> (i32, i32, i32) {
    %c0_i32 = arith.constant 0 : i32
    %c0_i32_0 = arith.constant 0 : i32
    %c0_i32_1 = arith.constant 0 : i32
    %c0_i32_2 = arith.constant 0 : i32
    return %c0_i32, %c0_i32_0, %c0_i32_1 : i32, i32, i32
  }
  func.func @transform_14(%arg0: i32) -> (i32, i32, i32) {
    %c0_i32 = arith.constant 0 : i32
    %c0_i32_0 = arith.constant 0 : i32
    %c0_i32_1 = arith.constant 0 : i32
    %c0_i32_2 = arith.constant 0 : i32
    return %c0_i32, %c0_i32_0, %c0_i32_1 : i32, i32, i32
  }
  func.func @transform_15(%arg0: i32) -> (i32, i32, i32) {
    %c0_i32 = arith.constant 0 : i32
    %c0_i32_0 = arith.constant 0 : i32
    %c0_i32_1 = arith.constant 0 : i32
    %c0_i32_2 = arith.constant 0 : i32
    return %c0_i32, %c0_i32_0, %c0_i32_1 : i32, i32, i32
  }
  func.func @transform_16(%arg0: i32) -> (i32, i32) {
    %c0_i32 = arith.constant 0 : i32
    %c0_i32_0 = arith.constant 0 : i32
    %c0_i32_1 = arith.constant 0 : i32
    return %c0_i32, %c0_i32_0 : i32, i32
  }
  func.func @transform_17(%arg0: i32) -> (i32, i32) {
    %c0_i32 = arith.constant 0 : i32
    %c0_i32_0 = arith.constant 0 : i32
    %c0_i32_1 = arith.constant 0 : i32
    return %c0_i32, %c0_i32_0 : i32, i32
  }
  func.func @transform_18(%arg0: i32) -> (i32, i32) {
    %c0_i32 = arith.constant 0 : i32
    %c0_i32_0 = arith.constant 0 : i32
    %c0_i32_1 = arith.constant 0 : i32
    return %c0_i32, %c0_i32_0 : i32, i32
  }
  func.func @transform_19(%arg0: i32) -> (i32, i32, i32) {
    %c0_i32 = arith.constant 0 : i32
    %c0_i32_0 = arith.constant 0 : i32
    %c0_i32_1 = arith.constant 0 : i32
    %c0_i32_2 = arith.constant 0 : i32
    return %c0_i32, %c0_i32_0, %c0_i32_1 : i32, i32, i32
  }
  func.func @transform_20(%arg0: i32) -> (i32, i32, i32) {
    %c0_i32 = arith.constant 0 : i32
    %c0_i32_0 = arith.constant 0 : i32
    %c0_i32_1 = arith.constant 0 : i32
    %c0_i32_2 = arith.constant 0 : i32
    return %c0_i32, %c0_i32_0, %c0_i32_1 : i32, i32, i32
  }
  func.func @transform_21(%arg0: i32) -> (i32, i32, i32) {
    %c0_i32 = arith.constant 0 : i32
    %c0_i32_0 = arith.constant 0 : i32
    %c0_i32_1 = arith.constant 0 : i32
    %c0_i32_2 = arith.constant 0 : i32
    return %c0_i32, %c0_i32_0, %c0_i32_1 : i32, i32, i32
  }
  func.func @transform_22(%arg0: i32) -> (i32, i32, i32) {
    %c0_i32 = arith.constant 0 : i32
    %c0_i32_0 = arith.constant 0 : i32
    %c0_i32_1 = arith.constant 0 : i32
    %c0_i32_2 = arith.constant 0 : i32
    return %c0_i32, %c0_i32_0, %c0_i32_1 : i32, i32, i32
  }
  func.func @transform_23(%arg0: i32) -> (i32, i32, i32) {
    %c0_i32 = arith.constant 0 : i32
    %c0_i32_0 = arith.constant 0 : i32
    %c0_i32_1 = arith.constant 0 : i32
    %c0_i32_2 = arith.constant 0 : i32
    return %c0_i32, %c0_i32_0, %c0_i32_1 : i32, i32, i32
  }
  func.func @transform_24(%arg0: i32) -> (i32, i32, i32) {
    %c0_i32 = arith.constant 0 : i32
    %c0_i32_0 = arith.constant 0 : i32
    %c0_i32_1 = arith.constant 0 : i32
    %c0_i32_2 = arith.constant 0 : i32
    return %c0_i32, %c0_i32_0, %c0_i32_1 : i32, i32, i32
  }
  func.func @transform_25(%arg0: i32) -> (i32, i32, i32, i32) {
    %c0_i32 = arith.constant 0 : i32
    %c0_i32_0 = arith.constant 0 : i32
    %c0_i32_1 = arith.constant 0 : i32
    %c0_i32_2 = arith.constant 0 : i32
    %c0_i32_3 = arith.constant 0 : i32
    return %c0_i32, %c0_i32_0, %c0_i32_1, %c0_i32_2 : i32, i32, i32, i32
  }
  func.func @transform_26(%arg0: i32) -> (i32, i32, i32) {
    %c0_i32 = arith.constant 0 : i32
    %c0_i32_0 = arith.constant 0 : i32
    %c0_i32_1 = arith.constant 0 : i32
    %c0_i32_2 = arith.constant 0 : i32
    return %c0_i32, %c0_i32_0, %c0_i32_1 : i32, i32, i32
  }
  func.func @transform_27(%arg0: i32) -> (i32, i32, i32) {
    %c0_i32 = arith.constant 0 : i32
    %c0_i32_0 = arith.constant 0 : i32
    %c0_i32_1 = arith.constant 0 : i32
    %c0_i32_2 = arith.constant 0 : i32
    return %c0_i32, %c0_i32_0, %c0_i32_1 : i32, i32, i32
  }
  func.func @transform_28(%arg0: i32) -> (i32, i32, i32) {
    %c0_i32 = arith.constant 0 : i32
    %c0_i32_0 = arith.constant 0 : i32
    %c0_i32_1 = arith.constant 0 : i32
    %c0_i32_2 = arith.constant 0 : i32
    return %c0_i32, %c0_i32_0, %c0_i32_1 : i32, i32, i32
  }
  func.func @transform_29(%arg0: i32) -> (i32, i32, i32) {
    %c0_i32 = arith.constant 0 : i32
    %c0_i32_0 = arith.constant 0 : i32
    %c0_i32_1 = arith.constant 0 : i32
    %c0_i32_2 = arith.constant 0 : i32
    return %c0_i32, %c0_i32_0, %c0_i32_1 : i32, i32, i32
  }
  func.func @transform_30(%arg0: i32) -> (i32, i32) {
    %c0_i32 = arith.constant 0 : i32
    %c0_i32_0 = arith.constant 0 : i32
    %c0_i32_1 = arith.constant 0 : i32
    return %c0_i32, %c0_i32_0 : i32, i32
  }
  func.func @transform_31(%arg0: i32) -> (i32, i32) {
    %c0_i32 = arith.constant 0 : i32
    %c0_i32_0 = arith.constant 0 : i32
    %c0_i32_1 = arith.constant 0 : i32
    return %c0_i32, %c0_i32_0 : i32, i32
  }
  func.func @transform_32(%arg0: i32) -> (i32, i32) {
    %c0_i32 = arith.constant 0 : i32
    %c0_i32_0 = arith.constant 0 : i32
    %c0_i32_1 = arith.constant 0 : i32
    return %c0_i32, %c0_i32_0 : i32, i32
  }
  func.func @transform_33(%arg0: i32) -> (i32, i32) {
    %c0_i32 = arith.constant 0 : i32
    %c0_i32_0 = arith.constant 0 : i32
    %c0_i32_1 = arith.constant 0 : i32
    return %c0_i32, %c0_i32_0 : i32, i32
  }
  func.func @transform_34(%arg0: i32) -> (i32, i32, i32) {
    %c0_i32 = arith.constant 0 : i32
    %c0_i32_0 = arith.constant 0 : i32
    %c0_i32_1 = arith.constant 0 : i32
    return %arg0, %c0_i32, %c0_i32_0 : i32, i32, i32
  }
}

</mosaic_0001>

<llo_original>
// kernel: hst_forward.1
$region0: #{hst_forward.1}
  #allocation0 [shape = 'u32[]', space=smem, size = 0x4, offset = 0x4, fixed_abs, tag = 'smem constant byte address 0x4 - core index']
  #allocation1 [shape = 'u32[144,128]{1,0:T(1,128)}', space=vmem, size = 0x12000, scoped, tag = 'internal scratch']
  %s0 = inlined_call_operand.smem [shape: u32[35], index: -1, kind: input, shape index: {}]
  %s1 = sld [smem:[%s0]]
  %s2 = scalar_lea.smem %s0, 1
  %s3 = sld [smem:[%s2]]
  %s4 = scalar_lea.smem %s0, 2
  %s5 = sld [smem:[%s4]]
  %s6 = scalar_lea.smem %s0, 3
  %s7 = sld [smem:[%s6]]
  %s8 = scalar_lea.smem %s0, 4
  %s9 = sld [smem:[%s8]]
  %s10 = scalar_lea.smem %s0, 5
  %s11 = sld [smem:[%s10]]
  %s12 = scalar_lea.smem %s0, 6
  %s13 = sld [smem:[%s12]]
  %s14 = scalar_lea.smem %s0, 7
  %s15 = sld [smem:[%s14]]
  %s16 = scalar_lea.smem %s0, 8
  %s17 = sld [smem:[%s16]]
  %s18 = scalar_lea.smem %s0, 9
  %s19 = sld [smem:[%s18]]
  %s20 = scalar_lea.smem %s0, 10
  %s21 = sld [smem:[%s20]]
  %s22 = scalar_lea.smem %s0, 11
  %s23 = sld [smem:[%s22]]
  %s24 = scalar_lea.smem %s0, 12
  %s25 = sld [smem:[%s24]]
  %s26 = scalar_lea.smem %s0, 13
  %s27 = sld [smem:[%s26]]
  %s28 = scalar_lea.smem %s0, 14
  %s29 = sld [smem:[%s28]]
  %s30 = scalar_lea.smem %s0, 15
  %s31 = sld [smem:[%s30]]
  %s32 = scalar_lea.smem %s0, 16
  %s33 = sld [smem:[%s32]]
  %s34 = scalar_lea.smem %s0, 17
  %s35 = sld [smem:[%s34]]
  %s36 = scalar_lea.smem %s0, 18
  %s37 = sld [smem:[%s36]]
  %s38 = scalar_lea.smem %s0, 19
  %s39 = sld [smem:[%s38]]
  %s40 = scalar_lea.smem %s0, 20
  %s41 = sld [smem:[%s40]]
  %s42 = scalar_lea.smem %s0, 21
  %s43 = sld [smem:[%s42]]
  %s44 = scalar_lea.smem %s0, 22
  %s45 = sld [smem:[%s44]]
  %s46 = scalar_lea.smem %s0, 23
  %s47 = sld [smem:[%s46]]
  %s48 = scalar_lea.smem %s0, 24
  %s49 = sld [smem:[%s48]]
  %s50 = scalar_lea.smem %s0, 25
  %s51 = sld [smem:[%s50]]
  %s52 = scalar_lea.smem %s0, 26
  %s53 = sld [smem:[%s52]]
  %s54 = scalar_lea.smem %s0, 27
  %s55 = sld [smem:[%s54]]
  %s56 = scalar_lea.smem %s0, 28
  %s57 = sld [smem:[%s56]]
  %s58 = scalar_lea.smem %s0, 29
  %s59 = sld [smem:[%s58]]
  %s60 = scalar_lea.smem %s0, 30
  %s61 = sld [smem:[%s60]]
  %s62 = scalar_lea.smem %s0, 31
  %s63 = sld [smem:[%s62]]
  %s64 = scalar_lea.smem %s0, 32
  %s65 = sld [smem:[%s64]]
  %s66 = scalar_lea.smem %s0, 33
  %s67 = sld [smem:[%s66]]
  %s68 = scalar_lea.smem %s0, 34
  %s69 = sld [smem:[%s68]]
  %s70 = sld [smem:[#allocation0]]
  $region169: #{hst_forward.1} parent=0
    _
  %s72 = ssub.s32 1, %s70
  %s73 = scalar_select 0, %s72, %s70
  $region1: #{hst_forward.1} parent=0
    #allocation2 [shape = 'u8[1024]{0}', space=vmem, size = 0x400, scoped, tag = 'output window, operand 0']
    #allocation3 [shape = 's32[2]{0}', space=sflag, size = 0x8, scoped, tag = 'scoped memory for hst_forward.1']
    %74 = vsyncpa [#allocation3], 0
    %s75 = scalar_lea.sflag [#allocation3], 1
    %76 = vsyncpa %s75, 0
    loop: start=0, step=1, limit=4
    $region2: #{hst_forward.1} parent=1 // loop_pre_header
      _
    $region3: #{hst_forward.1} parent=1 // loop_header
      %s78 = sphi 0, %s82
      %p79 = scmp.ge.s32.totalorder %s78, 4
      %s88 = sphi 0, %s90
      %s91 = sphi 0, %s88
      %s92 = sphi 0, %s91
      %s108 = sphi 0, %s92
      %s112 = sphi 0, %s112
      %s114 = sphi 0, %s112
      %s115 = sphi 0, %s114
      %s129 = sphi 0, %s115
      %s133 = sphi 0, %s133
      %s135 = sphi 0, %s133
      %s136 = sphi 0, %s135
      %s150 = sphi 0, %s136
      %s154 = sphi 0, %s154
      %s156 = sphi 0, %s154
      %s157 = sphi 0, %s156
      %s171 = sphi 0, %s157
      %s175 = sphi 0, %s175
      %s177 = sphi 0, %s175
      %s178 = sphi 0, %s177
      %s192 = sphi 0, %s178
      %s196 = sphi 0, %s196
      %s198 = sphi 0, %s196
      %s199 = sphi 0, %s198
      %s213 = sphi 0, %s199
      %s217 = sphi 0, %s217
      %s219 = sphi 0, %s217
      %s220 = sphi 0, %s219
      %s234 = sphi 0, %s220
      %s238 = sphi 0, %s238
      %s240 = sphi 0, %s238
      %s241 = sphi 0, %s240
      %s255 = sphi 0, %s241
      %s259 = sphi 0, %s259
      %s261 = sphi 0, %s259
      %s262 = sphi 0, %s261
      %s276 = sphi 0, %s262
      %s280 = sphi 0, %s280
      %s282 = sphi 0, %s280
      %s283 = sphi 0, %s282
      %s297 = sphi 0, %s283
      %s301 = sphi 0, %s301
      %s303 = sphi 0, %s301
      %s304 = sphi 0, %s303
      %s318 = sphi 0, %s304
      %s322 = sphi 0, %s322
      %s324 = sphi 0, %s322
      %s325 = sphi 0, %s324
      %s339 = sphi 0, %s325
      %s343 = sphi 0, %s343
      %s345 = sphi 0, %s343
      %s346 = sphi 0, %s345
      %s360 = sphi 0, %s346
      %s364 = sphi 0, %s364
      %s366 = sphi 0, %s364
      %s367 = sphi 0, %s366
      %s381 = sphi 0, %s367
      %s385 = sphi 0, %s385
      %s387 = sphi 0, %s385
      %s388 = sphi 0, %s387
      %s402 = sphi 0, %s388
      %s406 = sphi 0, %s406
      %s408 = sphi 0, %s406
      %s409 = sphi 0, %s408
      %s423 = sphi 0, %s409
      %s427 = sphi 0, %s427
      %s429 = sphi 0, %s427
      %s430 = sphi 0, %s429
      %s444 = sphi 0, %s430
      %s448 = sphi 0, %s448
      %s450 = sphi 0, %s448
      %s451 = sphi 0, %s450
      %s465 = sphi 0, %s451
      %s469 = sphi 0, %s469
      %s471 = sphi 0, %s469
      %s472 = sphi 0, %s471
      %s486 = sphi 0, %s472
      %s490 = sphi 0, %s490
      %s492 = sphi 0, %s490
      %s493 = sphi 0, %s492
      %s507 = sphi 0, %s493
      %s511 = sphi 0, %s511
      %s513 = sphi 0, %s511
      %s514 = sphi 0, %s513
      %s528 = sphi 0, %s514
      %s532 = sphi 0, %s532
      %s534 = sphi 0, %s532
      %s535 = sphi 0, %s534
      %s549 = sphi 0, %s535
      %s553 = sphi 0, %s553
      %s555 = sphi 0, %s553
      %s556 = sphi 0, %s555
      %s570 = sphi 0, %s556
      %s574 = sphi 0, %s574
      %s576 = sphi 0, %s574
      %s577 = sphi 0, %s576
      %s591 = sphi 0, %s577
      %s595 = sphi 0, %s595
      %s597 = sphi 0, %s595
      %s598 = sphi 0, %s597
      %s612 = sphi 0, %s598
      %s616 = sphi 0, %s616
      %s618 = sphi 0, %s616
      %s619 = sphi 0, %s618
      %s633 = sphi 0, %s619
      %s637 = sphi 0, %s637
      %s639 = sphi 0, %s637
      %s640 = sphi 0, %s639
      %s654 = sphi 0, %s640
      %s658 = sphi 0, %s658
      %s660 = sphi 0, %s658
      %s661 = sphi 0, %s660
      %s675 = sphi 0, %s661
      %s679 = sphi 0, %s679
      %s681 = sphi 0, %s679
      %s682 = sphi 0, %s681
      %s696 = sphi 0, %s682
      %s700 = sphi 0, %s700
      %s702 = sphi 0, %s700
      %s703 = sphi 0, %s702
      %s717 = sphi 0, %s703
      %s721 = sphi 0, %s721
      %s723 = sphi 0, %s721
      %s724 = sphi 0, %s723
      %s738 = sphi 0, %s724
      %s742 = sphi 0, %s742
      %s744 = sphi 0, %s742
      %s745 = sphi 0, %s744
      %s759 = sphi 0, %s745
      %s763 = sphi 0, %s763
      %s765 = sphi 0, %s763
      %s766 = sphi 0, %s765
      %s780 = sphi 0, %s766
      %s784 = sphi 0, %s784
      %s786 = sphi 0, %s784
      %s787 = sphi 0, %s786
      %s801 = sphi 0, %s787
      %s807 = sphi 0, %s809
      %s810 = sphi 0, %s807
      %s811 = sphi 0, %s810
      %s827 = sphi 0, %s811
    $region4: #{hst_forward.1} parent=1 // loop_header_branch
      %81 = sbr.rel (%p79) target = $region8
    $region5: #{hst_forward.1} parent=1 // loop_body
      %s83 = ssub.s32 %s78, 1
      %s84 = ssub.s32 %s78, 2
      %s85 = sadd.s32 %s78, 1
      %s86 = ssub.s32 %s78, %s85
      %p87 = scmp.eq.s32.totalorder %s86, 0
      %s89 = sadd.s32 %s88, 1
      %s90 = scalar_select %p87, %s88, %s89
      %p93 = pneg %p87
      %p94 = scmp.eq.s32.totalorder %s78, 1
      %p95 = por %p93, %p94
      %p96 = scmp.ne.s32.totalorder %s88, %s91
      %p97 = scmp.eq.s32.totalorder %s78, 0
      %p98 = por %p96, %p97
      %p99 = scmp.ne.s32.totalorder %s88, %s91
      %p100 = scmp.eq.s32.totalorder %s83, 1
      %p101 = por %p99, %p100
      %p102 = scmp.ne.s32.totalorder %s91, %s92
      %p103 = scmp.eq.s32.totalorder %s83, 0
      %p104 = por %p102, %p103
      %p105 = scmp.ne.s32.totalorder %s91, %s92
      %p106 = scmp.eq.s32.totalorder %s84, 1
      %p107 = por %p105, %p106
      %p109 = scmp.ne.s32.totalorder %s92, %s108
      %p110 = scmp.eq.s32.totalorder %s84, 0
      %p111 = por %p109, %p110
      %s113 = sadd.s32 %s112, 1
      %p116 = scmp.eq.s32.totalorder %s78, 1
      %p117 = scmp.ne.s32.totalorder %s112, %s114
      %p118 = scmp.eq.s32.totalorder %s78, 0
      %p119 = por %p117, %p118
      %p120 = scmp.ne.s32.totalorder %s112, %s114
      %p121 = scmp.eq.s32.totalorder %s83, 1
      %p122 = por %p120, %p121
      %p123 = scmp.ne.s32.totalorder %s114, %s115
      %p124 = scmp.eq.s32.totalorder %s83, 0
      %p125 = por %p123, %p124
      %p126 = scmp.ne.s32.totalorder %s114, %s115
      %p127 = scmp.eq.s32.totalorder %s84, 1
      %p128 = por %p126, %p127
      %p130 = scmp.ne.s32.totalorder %s115, %s129
      %p131 = scmp.eq.s32.totalorder %s84, 0
      %p132 = por %p130, %p131
      %s134 = sadd.s32 %s133, 1
      %p137 = scmp.eq.s32.totalorder %s78, 1
      %p138 = scmp.ne.s32.totalorder %s133, %s135
      %p139 = scmp.eq.s32.totalorder %s78, 0
      %p140 = por %p138, %p139
      %p141 = scmp.ne.s32.totalorder %s133, %s135
      %p142 = scmp.eq.s32.totalorder %s83, 1
      %p143 = por %p141, %p142
      %p144 = scmp.ne.s32.totalorder %s135, %s136
      %p145 = scmp.eq.s32.totalorder %s83, 0
      %p146 = por %p144, %p145
      %p147 = scmp.ne.s32.totalorder %s135, %s136
      %p148 = scmp.eq.s32.totalorder %s84, 1
      %p149 = por %p147, %p148
      %p151 = scmp.ne.s32.totalorder %s136, %s150
      %p152 = scmp.eq.s32.totalorder %s84, 0
      %p153 = por %p151, %p152
      %s155 = sadd.s32 %s154, 1
      %p158 = scmp.eq.s32.totalorder %s78, 1
      %p159 = scmp.ne.s32.totalorder %s154, %s156
      %p160 = scmp.eq.s32.totalorder %s78, 0
      %p161 = por %p159, %p160
      %p162 = scmp.ne.s32.totalorder %s154, %s156
      %p163 = scmp.eq.s32.totalorder %s83, 1
      %p164 = por %p162, %p163
      %p165 = scmp.ne.s32.totalorder %s156, %s157
      %p166 = scmp.eq.s32.totalorder %s83, 0
      %p167 = por %p165, %p166
      %p168 = scmp.ne.s32.totalorder %s156, %s157
      %p169 = scmp.eq.s32.totalorder %s84, 1
      %p170 = por %p168, %p169
      %p172 = scmp.ne.s32.totalorder %s157, %s171
      %p173 = scmp.eq.s32.totalorder %s84, 0
      %p174 = por %p172, %p173
      %s176 = sadd.s32 %s175, 1
      %p179 = scmp.eq.s32.totalorder %s78, 1
      %p180 = scmp.ne.s32.totalorder %s175, %s177
      %p181 = scmp.eq.s32.totalorder %s78, 0
      %p182 = por %p180, %p181
      %p183 = scmp.ne.s32.totalorder %s175, %s177
      %p184 = scmp.eq.s32.totalorder %s83, 1
      %p185 = por %p183, %p184
      %p186 = scmp.ne.s32.totalorder %s177, %s178
      %p187 = scmp.eq.s32.totalorder %s83, 0
      %p188 = por %p186, %p187
      %p189 = scmp.ne.s32.totalorder %s177, %s178
      %p190 = scmp.eq.s32.totalorder %s84, 1
      %p191 = por %p189, %p190
      %p193 = scmp.ne.s32.totalorder %s178, %s192
      %p194 = scmp.eq.s32.totalorder %s84, 0
      %p195 = por %p193, %p194
      %s197 = sadd.s32 %s196, 1
      %p200 = scmp.eq.s32.totalorder %s78, 1
      %p201 = scmp.ne.s32.totalorder %s196, %s198
      %p202 = scmp.eq.s32.totalorder %s78, 0
      %p203 = por %p201, %p202
      %p204 = scmp.ne.s32.totalorder %s196, %s198
      %p205 = scmp.eq.s32.totalorder %s83, 1
      %p206 = por %p204, %p205
      %p207 = scmp.ne.s32.totalorder %s198, %s199
      %p208 = scmp.eq.s32.totalorder %s83, 0
      %p209 = por %p207, %p208
      %p210 = scmp.ne.s32.totalorder %s198, %s199
      %p211 = scmp.eq.s32.totalorder %s84, 1
      %p212 = por %p210, %p211
      %p214 = scmp.ne.s32.totalorder %s199, %s213
      %p215 = scmp.eq.s32.totalorder %s84, 0
      %p216 = por %p214, %p215
      %s218 = sadd.s32 %s217, 1
      %p221 = scmp.eq.s32.totalorder %s78, 1
      %p222 = scmp.ne.s32.totalorder %s217, %s219
      %p223 = scmp.eq.s32.totalorder %s78, 0
      %p224 = por %p222, %p223
      %p225 = scmp.ne.s32.totalorder %s217, %s219
      %p226 = scmp.eq.s32.totalorder %s83, 1
      %p227 = por %p225, %p226
      %p228 = scmp.ne.s32.totalorder %s219, %s220
      %p229 = scmp.eq.s32.totalorder %s83, 0
      %p230 = por %p228, %p229
      %p231 = scmp.ne.s32.totalorder %s219, %s220
      %p232 = scmp.eq.s32.totalorder %s84, 1
      %p233 = por %p231, %p232
      %p235 = scmp.ne.s32.totalorder %s220, %s234
      %p236 = scmp.eq.s32.totalorder %s84, 0
      %p237 = por %p235, %p236
      %s239 = sadd.s32 %s238, 1
      %p242 = scmp.eq.s32.totalorder %s78, 1
      %p243 = scmp.ne.s32.totalorder %s238, %s240
      %p244 = scmp.eq.s32.totalorder %s78, 0
      %p245 = por %p243, %p244
      %p246 = scmp.ne.s32.totalorder %s238, %s240
      %p247 = scmp.eq.s32.totalorder %s83, 1
      %p248 = por %p246, %p247
      %p249 = scmp.ne.s32.totalorder %s240, %s241
      %p250 = scmp.eq.s32.totalorder %s83, 0
      %p251 = por %p249, %p250
      %p252 = scmp.ne.s32.totalorder %s240, %s241
      %p253 = scmp.eq.s32.totalorder %s84, 1
      %p254 = por %p252, %p253
      %p256 = scmp.ne.s32.totalorder %s241, %s255
      %p257 = scmp.eq.s32.totalorder %s84, 0
      %p258 = por %p256, %p257
      %s260 = sadd.s32 %s259, 1
      %p263 = scmp.eq.s32.totalorder %s78, 1
      %p264 = scmp.ne.s32.totalorder %s259, %s261
      %p265 = scmp.eq.s32.totalorder %s78, 0
      %p266 = por %p264, %p265
      %p267 = scmp.ne.s32.totalorder %s259, %s261
      %p268 = scmp.eq.s32.totalorder %s83, 1
      %p269 = por %p267, %p268
      %p270 = scmp.ne.s32.totalorder %s261, %s262
      %p271 = scmp.eq.s32.totalorder %s83, 0
      %p272 = por %p270, %p271
      %p273 = scmp.ne.s32.totalorder %s261, %s262
      %p274 = scmp.eq.s32.totalorder %s84, 1
      %p275 = por %p273, %p274
      %p277 = scmp.ne.s32.totalorder %s262, %s276
      %p278 = scmp.eq.s32.totalorder %s84, 0
      %p279 = por %p277, %p278
      %s281 = sadd.s32 %s280, 1
      %p284 = scmp.eq.s32.totalorder %s78, 1
      %p285 = scmp.ne.s32.totalorder %s280, %s282
      %p286 = scmp.eq.s32.totalorder %s78, 0
      %p287 = por %p285, %p286
      %p288 = scmp.ne.s32.totalorder %s280, %s282
      %p289 = scmp.eq.s32.totalorder %s83, 1
      %p290 = por %p288, %p289
      %p291 = scmp.ne.s32.totalorder %s282, %s283
      %p292 = scmp.eq.s32.totalorder %s83, 0
      %p293 = por %p291, %p292
      %p294 = scmp.ne.s32.totalorder %s282, %s283
      %p295 = scmp.eq.s32.totalorder %s84, 1
      %p296 = por %p294, %p295
      %p298 = scmp.ne.s32.totalorder %s283, %s297
      %p299 = scmp.eq.s32.totalorder %s84, 0
      %p300 = por %p298, %p299
      %s302 = sadd.s32 %s301, 1
      %p305 = scmp.eq.s32.totalorder %s78, 1
      %p306 = scmp.ne.s32.totalorder %s301, %s303
      %p307 = scmp.eq.s32.totalorder %s78, 0
      %p308 = por %p306, %p307
      %p309 = scmp.ne.s32.totalorder %s301, %s303
      %p310 = scmp.eq.s32.totalorder %s83, 1
      %p311 = por %p309, %p310
      %p312 = scmp.ne.s32.totalorder %s303, %s304
      %p313 = scmp.eq.s32.totalorder %s83, 0
      %p314 = por %p312, %p313
      %p315 = scmp.ne.s32.totalorder %s303, %s304
      %p316 = scmp.eq.s32.totalorder %s84, 1
      %p317 = por %p315, %p316
      %p319 = scmp.ne.s32.totalorder %s304, %s318
      %p320 = scmp.eq.s32.totalorder %s84, 0
      %p321 = por %p319, %p320
      %s323 = sadd.s32 %s322, 1
      %p326 = scmp.eq.s32.totalorder %s78, 1
      %p327 = scmp.ne.s32.totalorder %s322, %s324
      %p328 = scmp.eq.s32.totalorder %s78, 0
      %p329 = por %p327, %p328
      %p330 = scmp.ne.s32.totalorder %s322, %s324
      %p331 = scmp.eq.s32.totalorder %s83, 1
      %p332 = por %p330, %p331
      %p333 = scmp.ne.s32.totalorder %s324, %s325
      %p334 = scmp.eq.s32.totalorder %s83, 0
      %p335 = por %p333, %p334
      %p336 = scmp.ne.s32.totalorder %s324, %s325
      %p337 = scmp.eq.s32.totalorder %s84, 1
      %p338 = por %p336, %p337
      %p340 = scmp.ne.s32.totalorder %s325, %s339
      %p341 = scmp.eq.s32.totalorder %s84, 0
      %p342 = por %p340, %p341
      %s344 = sadd.s32 %s343, 1
      %p347 = scmp.eq.s32.totalorder %s78, 1
      %p348 = scmp.ne.s32.totalorder %s343, %s345
      %p349 = scmp.eq.s32.totalorder %s78, 0
      %p350 = por %p348, %p349
      %p351 = scmp.ne.s32.totalorder %s343, %s345
      %p352 = scmp.eq.s32.totalorder %s83, 1
      %p353 = por %p351, %p352
      %p354 = scmp.ne.s32.totalorder %s345, %s346
      %p355 = scmp.eq.s32.totalorder %s83, 0
      %p356 = por %p354, %p355
      %p357 = scmp.ne.s32.totalorder %s345, %s346
      %p358 = scmp.eq.s32.totalorder %s84, 1
      %p359 = por %p357, %p358
      %p361 = scmp.ne.s32.totalorder %s346, %s360
      %p362 = scmp.eq.s32.totalorder %s84, 0
      %p363 = por %p361, %p362
      %s365 = sadd.s32 %s364, 1
      %p368 = scmp.eq.s32.totalorder %s78, 1
      %p369 = scmp.ne.s32.totalorder %s364, %s366
      %p370 = scmp.eq.s32.totalorder %s78, 0
      %p371 = por %p369, %p370
      %p372 = scmp.ne.s32.totalorder %s364, %s366
      %p373 = scmp.eq.s32.totalorder %s83, 1
      %p374 = por %p372, %p373
      %p375 = scmp.ne.s32.totalorder %s366, %s367
      %p376 = scmp.eq.s32.totalorder %s83, 0
      %p377 = por %p375, %p376
      %p378 = scmp.ne.s32.totalorder %s366, %s367
      %p379 = scmp.eq.s32.totalorder %s84, 1
      %p380 = por %p378, %p379
      %p382 = scmp.ne.s32.totalorder %s367, %s381
      %p383 = scmp.eq.s32.totalorder %s84, 0
      %p384 = por %p382, %p383
      %s386 = sadd.s32 %s385, 1
      %p389 = scmp.eq.s32.totalorder %s78, 1
      %p390 = scmp.ne.s32.totalorder %s385, %s387
      %p391 = scmp.eq.s32.totalorder %s78, 0
      %p392 = por %p390, %p391
      %p393 = scmp.ne.s32.totalorder %s385, %s387
      %p394 = scmp.eq.s32.totalorder %s83, 1
      %p395 = por %p393, %p394
      %p396 = scmp.ne.s32.totalorder %s387, %s388
      %p397 = scmp.eq.s32.totalorder %s83, 0
      %p398 = por %p396, %p397
      %p399 = scmp.ne.s32.totalorder %s387, %s388
      %p400 = scmp.eq.s32.totalorder %s84, 1
      %p401 = por %p399, %p400
      %p403 = scmp.ne.s32.totalorder %s388, %s402
      %p404 = scmp.eq.s32.totalorder %s84, 0
      %p405 = por %p403, %p404
      %s407 = sadd.s32 %s406, 1
      %p410 = scmp.eq.s32.totalorder %s78, 1
      %p411 = scmp.ne.s32.totalorder %s406, %s408
      %p412 = scmp.eq.s32.totalorder %s78, 0
      %p413 = por %p411, %p412
      %p414 = scmp.ne.s32.totalorder %s406, %s408
      %p415 = scmp.eq.s32.totalorder %s83, 1
      %p416 = por %p414, %p415
      %p417 = scmp.ne.s32.totalorder %s408, %s409
      %p418 = scmp.eq.s32.totalorder %s83, 0
      %p419 = por %p417, %p418
      %p420 = scmp.ne.s32.totalorder %s408, %s409
      %p421 = scmp.eq.s32.totalorder %s84, 1
      %p422 = por %p420, %p421
      %p424 = scmp.ne.s32.totalorder %s409, %s423
      %p425 = scmp.eq.s32.totalorder %s84, 0
      %p426 = por %p424, %p425
      %s428 = sadd.s32 %s427, 1
      %p431 = scmp.eq.s32.totalorder %s78, 1
      %p432 = scmp.ne.s32.totalorder %s427, %s429
      %p433 = scmp.eq.s32.totalorder %s78, 0
      %p434 = por %p432, %p433
      %p435 = scmp.ne.s32.totalorder %s427, %s429
      %p436 = scmp.eq.s32.totalorder %s83, 1
      %p437 = por %p435, %p436
      %p438 = scmp.ne.s32.totalorder %s429, %s430
      %p439 = scmp.eq.s32.totalorder %s83, 0
      %p440 = por %p438, %p439
      %p441 = scmp.ne.s32.totalorder %s429, %s430
      %p442 = scmp.eq.s32.totalorder %s84, 1
      %p443 = por %p441, %p442
      %p445 = scmp.ne.s32.totalorder %s430, %s444
      %p446 = scmp.eq.s32.totalorder %s84, 0
      %p447 = por %p445, %p446
      %s449 = sadd.s32 %s448, 1
      %p452 = scmp.eq.s32.totalorder %s78, 1
      %p453 = scmp.ne.s32.totalorder %s448, %s450
      %p454 = scmp.eq.s32.totalorder %s78, 0
      %p455 = por %p453, %p454
      %p456 = scmp.ne.s32.totalorder %s448, %s450
      %p457 = scmp.eq.s32.totalorder %s83, 1
      %p458 = por %p456, %p457
      %p459 = scmp.ne.s32.totalorder %s450, %s451
      %p460 = scmp.eq.s32.totalorder %s83, 0
      %p461 = por %p459, %p460
      %p462 = scmp.ne.s32.totalorder %s450, %s451
      %p463 = scmp.eq.s32.totalorder %s84, 1
      %p464 = por %p462, %p463
      %p466 = scmp.ne.s32.totalorder %s451, %s465
      %p467 = scmp.eq.s32.totalorder %s84, 0
      %p468 = por %p466, %p467
      %s470 = sadd.s32 %s469, 1
      %p473 = scmp.eq.s32.totalorder %s78, 1
      %p474 = scmp.ne.s32.totalorder %s469, %s471
      %p475 = scmp.eq.s32.totalorder %s78, 0
      %p476 = por %p474, %p475
      %p477 = scmp.ne.s32.totalorder %s469, %s471
      %p478 = scmp.eq.s32.totalorder %s83, 1
      %p479 = por %p477, %p478
      %p480 = scmp.ne.s32.totalorder %s471, %s472
      %p481 = scmp.eq.s32.totalorder %s83, 0
      %p482 = por %p480, %p481
      %p483 = scmp.ne.s32.totalorder %s471, %s472
      %p484 = scmp.eq.s32.totalorder %s84, 1
      %p485 = por %p483, %p484
      %p487 = scmp.ne.s32.totalorder %s472, %s486
      %p488 = scmp.eq.s32.totalorder %s84, 0
      %p489 = por %p487, %p488
      %s491 = sadd.s32 %s490, 1
      %p494 = scmp.eq.s32.totalorder %s78, 1
      %p495 = scmp.ne.s32.totalorder %s490, %s492
      %p496 = scmp.eq.s32.totalorder %s78, 0
      %p497 = por %p495, %p496
      %p498 = scmp.ne.s32.totalorder %s490, %s492
      %p499 = scmp.eq.s32.totalorder %s83, 1
      %p500 = por %p498, %p499
      %p501 = scmp.ne.s32.totalorder %s492, %s493
      %p502 = scmp.eq.s32.totalorder %s83, 0
      %p503 = por %p501, %p502
      %p504 = scmp.ne.s32.totalorder %s492, %s493
      %p505 = scmp.eq.s32.totalorder %s84, 1
      %p506 = por %p504, %p505
      %p508 = scmp.ne.s32.totalorder %s493, %s507
      %p509 = scmp.eq.s32.totalorder %s84, 0
      %p510 = por %p508, %p509
      %s512 = sadd.s32 %s511, 1
      %p515 = scmp.eq.s32.totalorder %s78, 1
      %p516 = scmp.ne.s32.totalorder %s511, %s513
      %p517 = scmp.eq.s32.totalorder %s78, 0
      %p518 = por %p516, %p517
      %p519 = scmp.ne.s32.totalorder %s511, %s513
      %p520 = scmp.eq.s32.totalorder %s83, 1
      %p521 = por %p519, %p520
      %p522 = scmp.ne.s32.totalorder %s513, %s514
      %p523 = scmp.eq.s32.totalorder %s83, 0
      %p524 = por %p522, %p523
      %p525 = scmp.ne.s32.totalorder %s513, %s514
      %p526 = scmp.eq.s32.totalorder %s84, 1
      %p527 = por %p525, %p526
      %p529 = scmp.ne.s32.totalorder %s514, %s528
      %p530 = scmp.eq.s32.totalorder %s84, 0
      %p531 = por %p529, %p530
      %s533 = sadd.s32 %s532, 1
      %p536 = scmp.eq.s32.totalorder %s78, 1
      %p537 = scmp.ne.s32.totalorder %s532, %s534
      %p538 = scmp.eq.s32.totalorder %s78, 0
      %p539 = por %p537, %p538
      %p540 = scmp.ne.s32.totalorder %s532, %s534
      %p541 = scmp.eq.s32.totalorder %s83, 1
      %p542 = por %p540, %p541
      %p543 = scmp.ne.s32.totalorder %s534, %s535
      %p544 = scmp.eq.s32.totalorder %s83, 0
      %p545 = por %p543, %p544
      %p546 = scmp.ne.s32.totalorder %s534, %s535
      %p547 = scmp.eq.s32.totalorder %s84, 1
      %p548 = por %p546, %p547
      %p550 = scmp.ne.s32.totalorder %s535, %s549
      %p551 = scmp.eq.s32.totalorder %s84, 0
      %p552 = por %p550, %p551
      %s554 = sadd.s32 %s553, 1
      %p557 = scmp.eq.s32.totalorder %s78, 1
      %p558 = scmp.ne.s32.totalorder %s553, %s555
      %p559 = scmp.eq.s32.totalorder %s78, 0
      %p560 = por %p558, %p559
      %p561 = scmp.ne.s32.totalorder %s553, %s555
      %p562 = scmp.eq.s32.totalorder %s83, 1
      %p563 = por %p561, %p562
      %p564 = scmp.ne.s32.totalorder %s555, %s556
      %p565 = scmp.eq.s32.totalorder %s83, 0
      %p566 = por %p564, %p565
      %p567 = scmp.ne.s32.totalorder %s555, %s556
      %p568 = scmp.eq.s32.totalorder %s84, 1
      %p569 = por %p567, %p568
      %p571 = scmp.ne.s32.totalorder %s556, %s570
      %p572 = scmp.eq.s32.totalorder %s84, 0
      %p573 = por %p571, %p572
      %s575 = sadd.s32 %s574, 1
      %p578 = scmp.eq.s32.totalorder %s78, 1
      %p579 = scmp.ne.s32.totalorder %s574, %s576
      %p580 = scmp.eq.s32.totalorder %s78, 0
      %p581 = por %p579, %p580
      %p582 = scmp.ne.s32.totalorder %s574, %s576
      %p583 = scmp.eq.s32.totalorder %s83, 1
      %p584 = por %p582, %p583
      %p585 = scmp.ne.s32.totalorder %s576, %s577
      %p586 = scmp.eq.s32.totalorder %s83, 0
      %p587 = por %p585, %p586
      %p588 = scmp.ne.s32.totalorder %s576, %s577
      %p589 = scmp.eq.s32.totalorder %s84, 1
      %p590 = por %p588, %p589
      %p592 = scmp.ne.s32.totalorder %s577, %s591
      %p593 = scmp.eq.s32.totalorder %s84, 0
      %p594 = por %p592, %p593
      %s596 = sadd.s32 %s595, 1
      %p599 = scmp.eq.s32.totalorder %s78, 1
      %p600 = scmp.ne.s32.totalorder %s595, %s597
      %p601 = scmp.eq.s32.totalorder %s78, 0
      %p602 = por %p600, %p601
      %p603 = scmp.ne.s32.totalorder %s595, %s597
      %p604 = scmp.eq.s32.totalorder %s83, 1
      %p605 = por %p603, %p604
      %p606 = scmp.ne.s32.totalorder %s597, %s598
      %p607 = scmp.eq.s32.totalorder %s83, 0
      %p608 = por %p606, %p607
      %p609 = scmp.ne.s32.totalorder %s597, %s598
      %p610 = scmp.eq.s32.totalorder %s84, 1
      %p611 = por %p609, %p610
      %p613 = scmp.ne.s32.totalorder %s598, %s612
      %p614 = scmp.eq.s32.totalorder %s84, 0
      %p615 = por %p613, %p614
      %s617 = sadd.s32 %s616, 1
      %p620 = scmp.eq.s32.totalorder %s78, 1
      %p621 = scmp.ne.s32.totalorder %s616, %s618
      %p622 = scmp.eq.s32.totalorder %s78, 0
      %p623 = por %p621, %p622
      %p624 = scmp.ne.s32.totalorder %s616, %s618
      %p625 = scmp.eq.s32.totalorder %s83, 1
      %p626 = por %p624, %p625
      %p627 = scmp.ne.s32.totalorder %s618, %s619
      %p628 = scmp.eq.s32.totalorder %s83, 0
      %p629 = por %p627, %p628
      %p630 = scmp.ne.s32.totalorder %s618, %s619
      %p631 = scmp.eq.s32.totalorder %s84, 1
      %p632 = por %p630, %p631
      %p634 = scmp.ne.s32.totalorder %s619, %s633
      %p635 = scmp.eq.s32.totalorder %s84, 0
      %p636 = por %p634, %p635
      %s638 = sadd.s32 %s637, 1
      %p641 = scmp.eq.s32.totalorder %s78, 1
      %p642 = scmp.ne.s32.totalorder %s637, %s639
      %p643 = scmp.eq.s32.totalorder %s78, 0
      %p644 = por %p642, %p643
      %p645 = scmp.ne.s32.totalorder %s637, %s639
      %p646 = scmp.eq.s32.totalorder %s83, 1
      %p647 = por %p645, %p646
      %p648 = scmp.ne.s32.totalorder %s639, %s640
      %p649 = scmp.eq.s32.totalorder %s83, 0
      %p650 = por %p648, %p649
      %p651 = scmp.ne.s32.totalorder %s639, %s640
      %p652 = scmp.eq.s32.totalorder %s84, 1
      %p653 = por %p651, %p652
      %p655 = scmp.ne.s32.totalorder %s640, %s654
      %p656 = scmp.eq.s32.totalorder %s84, 0
      %p657 = por %p655, %p656
      %s659 = sadd.s32 %s658, 1
      %p662 = scmp.eq.s32.totalorder %s78, 1
      %p663 = scmp.ne.s32.totalorder %s658, %s660
      %p664 = scmp.eq.s32.totalorder %s78, 0
      %p665 = por %p663, %p664
      %p666 = scmp.ne.s32.totalorder %s658, %s660
      %p667 = scmp.eq.s32.totalorder %s83, 1
      %p668 = por %p666, %p667
      %p669 = scmp.ne.s32.totalorder %s660, %s661
      %p670 = scmp.eq.s32.totalorder %s83, 0
      %p671 = por %p669, %p670
      %p672 = scmp.ne.s32.totalorder %s660, %s661
      %p673 = scmp.eq.s32.totalorder %s84, 1
      %p674 = por %p672, %p673
      %p676 = scmp.ne.s32.totalorder %s661, %s675
      %p677 = scmp.eq.s32.totalorder %s84, 0
      %p678 = por %p676, %p677
      %s680 = sadd.s32 %s679, 1
      %p683 = scmp.eq.s32.totalorder %s78, 1
      %p684 = scmp.ne.s32.totalorder %s679, %s681
      %p685 = scmp.eq.s32.totalorder %s78, 0
      %p686 = por %p684, %p685
      %p687 = scmp.ne.s32.totalorder %s679, %s681
      %p688 = scmp.eq.s32.totalorder %s83, 1
      %p689 = por %p687, %p688
      %p690 = scmp.ne.s32.totalorder %s681, %s682
      %p691 = scmp.eq.s32.totalorder %s83, 0
      %p692 = por %p690, %p691
      %p693 = scmp.ne.s32.totalorder %s681, %s682
      %p694 = scmp.eq.s32.totalorder %s84, 1
      %p695 = por %p693, %p694
      %p697 = scmp.ne.s32.totalorder %s682, %s696
      %p698 = scmp.eq.s32.totalorder %s84, 0
      %p699 = por %p697, %p698
      %s701 = sadd.s32 %s700, 1
      %p704 = scmp.eq.s32.totalorder %s78, 1
      %p705 = scmp.ne.s32.totalorder %s700, %s702
      %p706 = scmp.eq.s32.totalorder %s78, 0
      %p707 = por %p705, %p706
      %p708 = scmp.ne.s32.totalorder %s700, %s702
      %p709 = scmp.eq.s32.totalorder %s83, 1
      %p710 = por %p708, %p709
      %p711 = scmp.ne.s32.totalorder %s702, %s703
      %p712 = scmp.eq.s32.totalorder %s83, 0
      %p713 = por %p711, %p712
      %p714 = scmp.ne.s32.totalorder %s702, %s703
      %p715 = scmp.eq.s32.totalorder %s84, 1
      %p716 = por %p714, %p715
      %p718 = scmp.ne.s32.totalorder %s703, %s717
      %p719 = scmp.eq.s32.totalorder %s84, 0
      %p720 = por %p718, %p719
      %s722 = sadd.s32 %s721, 1
      %p725 = scmp.eq.s32.totalorder %s78, 1
      %p726 = scmp.ne.s32.totalorder %s721, %s723
      %p727 = scmp.eq.s32.totalorder %s78, 0
      %p728 = por %p726, %p727
      %p729 = scmp.ne.s32.totalorder %s721, %s723
      %p730 = scmp.eq.s32.totalorder %s83, 1
      %p731 = por %p729, %p730
      %p732 = scmp.ne.s32.totalorder %s723, %s724
      %p733 = scmp.eq.s32.totalorder %s83, 0
      %p734 = por %p732, %p733
      %p735 = scmp.ne.s32.totalorder %s723, %s724
      %p736 = scmp.eq.s32.totalorder %s84, 1
      %p737 = por %p735, %p736
      %p739 = scmp.ne.s32.totalorder %s724, %s738
      %p740 = scmp.eq.s32.totalorder %s84, 0
      %p741 = por %p739, %p740
      %s743 = sadd.s32 %s742, 1
      %p746 = scmp.eq.s32.totalorder %s78, 1
      %p747 = scmp.ne.s32.totalorder %s742, %s744
      %p748 = scmp.eq.s32.totalorder %s78, 0
      %p749 = por %p747, %p748
      %p750 = scmp.ne.s32.totalorder %s742, %s744
      %p751 = scmp.eq.s32.totalorder %s83, 1
      %p752 = por %p750, %p751
      %p753 = scmp.ne.s32.totalorder %s744, %s745
      %p754 = scmp.eq.s32.totalorder %s83, 0
      %p755 = por %p753, %p754
      %p756 = scmp.ne.s32.totalorder %s744, %s745
      %p757 = scmp.eq.s32.totalorder %s84, 1
      %p758 = por %p756, %p757
      %p760 = scmp.ne.s32.totalorder %s745, %s759
      %p761 = scmp.eq.s32.totalorder %s84, 0
      %p762 = por %p760, %p761
      %s764 = sadd.s32 %s763, 1
      %p767 = scmp.eq.s32.totalorder %s78, 1
      %p768 = scmp.ne.s32.totalorder %s763, %s765
      %p769 = scmp.eq.s32.totalorder %s78, 0
      %p770 = por %p768, %p769
      %p771 = scmp.ne.s32.totalorder %s763, %s765
      %p772 = scmp.eq.s32.totalorder %s83, 1
      %p773 = por %p771, %p772
      %p774 = scmp.ne.s32.totalorder %s765, %s766
      %p775 = scmp.eq.s32.totalorder %s83, 0
      %p776 = por %p774, %p775
      %p777 = scmp.ne.s32.totalorder %s765, %s766
      %p778 = scmp.eq.s32.totalorder %s84, 1
      %p779 = por %p777, %p778
      %p781 = scmp.ne.s32.totalorder %s766, %s780
      %p782 = scmp.eq.s32.totalorder %s84, 0
      %p783 = por %p781, %p782
      %s785 = sadd.s32 %s784, 1
      %p788 = scmp.eq.s32.totalorder %s78, 1
      %p789 = scmp.ne.s32.totalorder %s784, %s786
      %p790 = scmp.eq.s32.totalorder %s78, 0
      %p791 = por %p789, %p790
      %p792 = scmp.ne.s32.totalorder %s784, %s786
      %p793 = scmp.eq.s32.totalorder %s83, 1
      %p794 = por %p792, %p793
      %p795 = scmp.ne.s32.totalorder %s786, %s787
      %p796 = scmp.eq.s32.totalorder %s83, 0
      %p797 = por %p795, %p796
      %p798 = scmp.ne.s32.totalorder %s786, %s787
      %p799 = scmp.eq.s32.totalorder %s84, 1
      %p800 = por %p798, %p799
      %p802 = scmp.ne.s32.totalorder %s787, %s801
      %p803 = scmp.eq.s32.totalorder %s84, 0
      %p804 = por %p802, %p803
      %s805 = ssub.s32 %s78, %s85
      %p806 = scmp.eq.s32.totalorder %s805, 0
      %s808 = sadd.s32 %s807, 1
      %s809 = scalar_select %p806, %s807, %s808
      %p812 = pneg %p806
      %p813 = scmp.eq.s32.totalorder %s78, 1
      %p814 = por %p812, %p813
      %p815 = scmp.ne.s32.totalorder %s807, %s810
      %p816 = scmp.eq.s32.totalorder %s78, 0
      %p817 = por %p815, %p816
      %p818 = scmp.ne.s32.totalorder %s807, %s810
      %p819 = scmp.eq.s32.totalorder %s83, 1
      %p820 = por %p818, %p819
      %p821 = scmp.ne.s32.totalorder %s810, %s811
      %p822 = scmp.eq.s32.totalorder %s83, 0
      %p823 = por %p821, %p822
      %p824 = scmp.ne.s32.totalorder %s810, %s811
      %p825 = scmp.eq.s32.totalorder %s84, 1
      %p826 = por %p824, %p825
      %p828 = scmp.ne.s32.totalorder %s811, %s827
      %p829 = scmp.eq.s32.totalorder %s84, 0
      %p830 = por %p828, %p829
      %p831 = scmp.le.s32.totalorder 1, %s78
      %p832 = scmp.lt.s32.totalorder %s78, 3
      %p833 = pnand %p831, %p832
      %p834 = pneg %p833
      // Predicated region
      $region9: #{hst_forward.1} parent=5 // pred_check
        _
      $region10: #{hst_forward.1} parent=5 // pred_check_branch
        %836 = sbr.rel (%p833) target = $region12
      $region11: #{hst_forward.1} parent=5 // pred_region
        %s837 = ssub.s32 %s78, 1
        // Predicated region
        $region13: #{hst_forward.1} parent=11 // pred_check
          %p838 = pneg %p125
        $region14: #{hst_forward.1} parent=11 // pred_check_branch
          %840 = sbr.rel (%p838) target = $region16
        $region15: #{hst_forward.1} parent=11 // pred_region
          _
        $region16: #{hst_forward.1} parent=11 // pred_fallthru
          _
        // Predicated region
        $region17: #{hst_forward.1} parent=11 // pred_check
          %p841 = pneg %p146
        $region18: #{hst_forward.1} parent=11 // pred_check_branch
          %843 = sbr.rel (%p841) target = $region20
        $region19: #{hst_forward.1} parent=11 // pred_region
          _
        $region20: #{hst_forward.1} parent=11 // pred_fallthru
          _
        // Predicated region
        $region21: #{hst_forward.1} parent=11 // pred_check
          %p844 = pneg %p167
        $region22: #{hst_forward.1} parent=11 // pred_check_branch
          %846 = sbr.rel (%p844) target = $region24
        $region23: #{hst_forward.1} parent=11 // pred_region
          _
        $region24: #{hst_forward.1} parent=11 // pred_fallthru
          _
        // Predicated region
        $region25: #{hst_forward.1} parent=11 // pred_check
          %p847 = pneg %p188
        $region26: #{hst_forward.1} parent=11 // pred_check_branch
          %849 = sbr.rel (%p847) target = $region28
        $region27: #{hst_forward.1} parent=11 // pred_region
          _
        $region28: #{hst_forward.1} parent=11 // pred_fallthru
          _
        // Predicated region
        $region29: #{hst_forward.1} parent=11 // pred_check
          %p850 = pneg %p209
        $region30: #{hst_forward.1} parent=11 // pred_check_branch
          %852 = sbr.rel (%p850) target = $region32
        $region31: #{hst_forward.1} parent=11 // pred_region
          _
        $region32: #{hst_forward.1} parent=11 // pred_fallthru
          _
        // Predicated region
        $region33: #{hst_forward.1} parent=11 // pred_check
          %p853 = pneg %p230
        $region34: #{hst_forward.1} parent=11 // pred_check_branch
          %855 = sbr.rel (%p853) target = $region36
        $region35: #{hst_forward.1} parent=11 // pred_region
          _
        $region36: #{hst_forward.1} parent=11 // pred_fallthru
          _
        // Predicated region
        $region37: #{hst_forward.1} parent=11 // pred_check
          %p856 = pneg %p251
        $region38: #{hst_forward.1} parent=11 // pred_check_branch
          %858 = sbr.rel (%p856) target = $region40
        $region39: #{hst_forward.1} parent=11 // pred_region
          _
        $region40: #{hst_forward.1} parent=11 // pred_fallthru
          _
        // Predicated region
        $region41: #{hst_forward.1} parent=11 // pred_check
          %p859 = pneg %p272
        $region42: #{hst_forward.1} parent=11 // pred_check_branch
          %861 = sbr.rel (%p859) target = $region44
        $region43: #{hst_forward.1} parent=11 // pred_region
          _
        $region44: #{hst_forward.1} parent=11 // pred_fallthru
          _
        // Predicated region
        $region45: #{hst_forward.1} parent=11 // pred_check
          %p862 = pneg %p293
        $region46: #{hst_forward.1} parent=11 // pred_check_branch
          %864 = sbr.rel (%p862) target = $region48
        $region47: #{hst_forward.1} parent=11 // pred_region
          _
        $region48: #{hst_forward.1} parent=11 // pred_fallthru
          _
        // Predicated region
        $region49: #{hst_forward.1} parent=11 // pred_check
          %p865 = pneg %p314
        $region50: #{hst_forward.1} parent=11 // pred_check_branch
          %867 = sbr.rel (%p865) target = $region52
        $region51: #{hst_forward.1} parent=11 // pred_region
          _
        $region52: #{hst_forward.1} parent=11 // pred_fallthru
          _
        // Predicated region
        $region53: #{hst_forward.1} parent=11 // pred_check
          %p868 = pneg %p335
        $region54: #{hst_forward.1} parent=11 // pred_check_branch
          %870 = sbr.rel (%p868) target = $region56
        $region55: #{hst_forward.1} parent=11 // pred_region
          _
        $region56: #{hst_forward.1} parent=11 // pred_fallthru
          _
        // Predicated region
        $region57: #{hst_forward.1} parent=11 // pred_check
          %p871 = pneg %p356
        $region58: #{hst_forward.1} parent=11 // pred_check_branch
          %873 = sbr.rel (%p871) target = $region60
        $region59: #{hst_forward.1} parent=11 // pred_region
          _
        $region60: #{hst_forward.1} parent=11 // pred_fallthru
          _
        // Predicated region
        $region61: #{hst_forward.1} parent=11 // pred_check
          %p874 = pneg %p377
        $region62: #{hst_forward.1} parent=11 // pred_check_branch
          %876 = sbr.rel (%p874) target = $region64
        $region63: #{hst_forward.1} parent=11 // pred_region
          _
        $region64: #{hst_forward.1} parent=11 // pred_fallthru
          _
        // Predicated region
        $region65: #{hst_forward.1} parent=11 // pred_check
          %p877 = pneg %p398
        $region66: #{hst_forward.1} parent=11 // pred_check_branch
          %879 = sbr.rel (%p877) target = $region68
        $region67: #{hst_forward.1} parent=11 // pred_region
          _
        $region68: #{hst_forward.1} parent=11 // pred_fallthru
          _
        // Predicated region
        $region69: #{hst_forward.1} parent=11 // pred_check
          %p880 = pneg %p419
        $region70: #{hst_forward.1} parent=11 // pred_check_branch
          %882 = sbr.rel (%p880) target = $region72
        $region71: #{hst_forward.1} parent=11 // pred_region
          _
        $region72: #{hst_forward.1} parent=11 // pred_fallthru
          _
        // Predicated region
        $region73: #{hst_forward.1} parent=11 // pred_check
          %p883 = pneg %p440
        $region74: #{hst_forward.1} parent=11 // pred_check_branch
          %885 = sbr.rel (%p883) target = $region76
        $region75: #{hst_forward.1} parent=11 // pred_region
          _
        $region76: #{hst_forward.1} parent=11 // pred_fallthru
          _
        // Predicated region
        $region77: #{hst_forward.1} parent=11 // pred_check
          %p886 = pneg %p461
        $region78: #{hst_forward.1} parent=11 // pred_check_branch
          %888 = sbr.rel (%p886) target = $region80
        $region79: #{hst_forward.1} parent=11 // pred_region
          _
        $region80: #{hst_forward.1} parent=11 // pred_fallthru
          _
        // Predicated region
        $region81: #{hst_forward.1} parent=11 // pred_check
          %p889 = pneg %p482
        $region82: #{hst_forward.1} parent=11 // pred_check_branch
          %891 = sbr.rel (%p889) target = $region84
        $region83: #{hst_forward.1} parent=11 // pred_region
          _
        $region84: #{hst_forward.1} parent=11 // pred_fallthru
          _
        // Predicated region
        $region85: #{hst_forward.1} parent=11 // pred_check
          %p892 = pneg %p503
        $region86: #{hst_forward.1} parent=11 // pred_check_branch
          %894 = sbr.rel (%p892) target = $region88
        $region87: #{hst_forward.1} parent=11 // pred_region
          _
        $region88: #{hst_forward.1} parent=11 // pred_fallthru
          _
        // Predicated region
        $region89: #{hst_forward.1} parent=11 // pred_check
          %p895 = pneg %p524
        $region90: #{hst_forward.1} parent=11 // pred_check_branch
          %897 = sbr.rel (%p895) target = $region92
        $region91: #{hst_forward.1} parent=11 // pred_region
          _
        $region92: #{hst_forward.1} parent=11 // pred_fallthru
          _
        // Predicated region
        $region93: #{hst_forward.1} parent=11 // pred_check
          %p898 = pneg %p545
        $region94: #{hst_forward.1} parent=11 // pred_check_branch
          %900 = sbr.rel (%p898) target = $region96
        $region95: #{hst_forward.1} parent=11 // pred_region
          _
        $region96: #{hst_forward.1} parent=11 // pred_fallthru
          _
        // Predicated region
        $region97: #{hst_forward.1} parent=11 // pred_check
          %p901 = pneg %p566
        $region98: #{hst_forward.1} parent=11 // pred_check_branch
          %903 = sbr.rel (%p901) target = $region100
        $region99: #{hst_forward.1} parent=11 // pred_region
          _
        $region100: #{hst_forward.1} parent=11 // pred_fallthru
          _
        // Predicated region
        $region101: #{hst_forward.1} parent=11 // pred_check
          %p904 = pneg %p587
        $region102: #{hst_forward.1} parent=11 // pred_check_branch
          %906 = sbr.rel (%p904) target = $region104
        $region103: #{hst_forward.1} parent=11 // pred_region
          _
        $region104: #{hst_forward.1} parent=11 // pred_fallthru
          _
        // Predicated region
        $region105: #{hst_forward.1} parent=11 // pred_check
          %p907 = pneg %p608
        $region106: #{hst_forward.1} parent=11 // pred_check_branch
          %909 = sbr.rel (%p907) target = $region108
        $region107: #{hst_forward.1} parent=11 // pred_region
          _
        $region108: #{hst_forward.1} parent=11 // pred_fallthru
          _
        // Predicated region
        $region109: #{hst_forward.1} parent=11 // pred_check
          %p910 = pneg %p629
        $region110: #{hst_forward.1} parent=11 // pred_check_branch
          %912 = sbr.rel (%p910) target = $region112
        $region111: #{hst_forward.1} parent=11 // pred_region
          _
        $region112: #{hst_forward.1} parent=11 // pred_fallthru
          _
        // Predicated region
        $region113: #{hst_forward.1} parent=11 // pred_check
          %p913 = pneg %p650
        $region114: #{hst_forward.1} parent=11 // pred_check_branch
          %915 = sbr.rel (%p913) target = $region116
        $region115: #{hst_forward.1} parent=11 // pred_region
          _
        $region116: #{hst_forward.1} parent=11 // pred_fallthru
          _
        // Predicated region
        $region117: #{hst_forward.1} parent=11 // pred_check
          %p916 = pneg %p671
        $region118: #{hst_forward.1} parent=11 // pred_check_branch
          %918 = sbr.rel (%p916) target = $region120
        $region119: #{hst_forward.1} parent=11 // pred_region
          _
        $region120: #{hst_forward.1} parent=11 // pred_fallthru
          _
        // Predicated region
        $region121: #{hst_forward.1} parent=11 // pred_check
          %p919 = pneg %p692
        $region122: #{hst_forward.1} parent=11 // pred_check_branch
          %921 = sbr.rel (%p919) target = $region124
        $region123: #{hst_forward.1} parent=11 // pred_region
          _
        $region124: #{hst_forward.1} parent=11 // pred_fallthru
          _
        // Predicated region
        $region125: #{hst_forward.1} parent=11 // pred_check
          %p922 = pneg %p713
        $region126: #{hst_forward.1} parent=11 // pred_check_branch
          %924 = sbr.rel (%p922) target = $region128
        $region127: #{hst_forward.1} parent=11 // pred_region
          _
        $region128: #{hst_forward.1} parent=11 // pred_fallthru
          _
        // Predicated region
        $region129: #{hst_forward.1} parent=11 // pred_check
          %p925 = pneg %p734
        $region130: #{hst_forward.1} parent=11 // pred_check_branch
          %927 = sbr.rel (%p925) target = $region132
        $region131: #{hst_forward.1} parent=11 // pred_region
          _
        $region132: #{hst_forward.1} parent=11 // pred_fallthru
          _
        // Predicated region
        $region133: #{hst_forward.1} parent=11 // pred_check
          %p928 = pneg %p755
        $region134: #{hst_forward.1} parent=11 // pred_check_branch
          %930 = sbr.rel (%p928) target = $region136
        $region135: #{hst_forward.1} parent=11 // pred_region
          _
        $region136: #{hst_forward.1} parent=11 // pred_fallthru
          _
        // Predicated region
        $region137: #{hst_forward.1} parent=11 // pred_check
          %p931 = pneg %p776
        $region138: #{hst_forward.1} parent=11 // pred_check_branch
          %933 = sbr.rel (%p931) target = $region140
        $region139: #{hst_forward.1} parent=11 // pred_region
          _
        $region140: #{hst_forward.1} parent=11 // pred_fallthru
          _
        // Predicated region
        $region141: #{hst_forward.1} parent=11 // pred_check
          %p934 = pneg %p797
        $region142: #{hst_forward.1} parent=11 // pred_check_branch
          %936 = sbr.rel (%p934) target = $region144
        $region143: #{hst_forward.1} parent=11 // pred_region
          _
        $region144: #{hst_forward.1} parent=11 // pred_fallthru
          _
      $region12: #{hst_forward.1} parent=5 // pred_fallthru
        _
      %p937 = scmp.lt.s32.totalorder %s78, 2
      // Predicated region
      $region145: #{hst_forward.1} parent=5 // pred_check
        %p938 = pneg %p937
      $region146: #{hst_forward.1} parent=5 // pred_check_branch
        %940 = sbr.rel (%p938) target = $region148
      $region147: #{hst_forward.1} parent=5 // pred_region
        // Predicated region
        $region149: #{hst_forward.1} parent=147 // pred_check
          %p941 = pneg %p98
        $region150: #{hst_forward.1} parent=147 // pred_check_branch
          %943 = sbr.rel (%p941) target = $region152
        $region151: #{hst_forward.1} parent=147 // pred_region
          %p944 = scmp.lt.s32.totalorder %s78, 1
          %s945 = scalar_select %p944, %s78, 1
          %s946 = smul.addr %s945, 2
          %s947 = smul.addr %s946, 8
          %s948 = scalar_lea.vmem %s1, %s947
        $region152: #{hst_forward.1} parent=147 // pred_fallthru
          _
      $region148: #{hst_forward.1} parent=5 // pred_fallthru
        _
      %p949 = scmp.le.s32.totalorder 1, %s78
      %p950 = scmp.lt.s32.totalorder %s78, 3
      %p951 = pnand %p949, %p950
      %p952 = pneg %p951
      // Predicated region
      $region153: #{hst_forward.1} parent=5 // pred_check
        _
      $region154: #{hst_forward.1} parent=5 // pred_check_branch
        %954 = sbr.rel (%p951) target = $region156
      $region155: #{hst_forward.1} parent=5 // pred_region
        %s955 = ssub.s32 %s78, 1
        %p956 = scmp.lt.s32.totalorder %s83, 1
        %s957 = scalar_select %p956, %s83, 1
        %s958 = smul.addr %s957, 2
        %s959 = smul.addr %s958, 8
        %s960 = scalar_lea.vmem %s1, %s959
        %p961 = pneg %p104
        %p962 = pneg %p101
        %p963 = pneg %p125
        %p964 = pneg %p122
        %p965 = pneg %p146
        %p966 = pneg %p143
        %p967 = pneg %p167
        %p968 = pneg %p164
        %p969 = pneg %p188
        %p970 = pneg %p185
        %p971 = pneg %p209
        %p972 = pneg %p206
        %p973 = pneg %p230
        %p974 = pneg %p227
        %p975 = pneg %p251
        %p976 = pneg %p248
        %p977 = pneg %p272
        %p978 = pneg %p269
        %p979 = pneg %p293
        %p980 = pneg %p290
        %p981 = pneg %p314
        %p982 = pneg %p311
        %p983 = pneg %p335
        %p984 = pneg %p332
        %p985 = pneg %p356
        %p986 = pneg %p353
        %p987 = pneg %p377
        %p988 = pneg %p374
        %p989 = pneg %p398
        %p990 = pneg %p395
        %p991 = pneg %p419
        %p992 = pneg %p416
        %p993 = pneg %p440
        %p994 = pneg %p437
        %p995 = pneg %p461
        %p996 = pneg %p458
        %p997 = pneg %p482
        %p998 = pneg %p479
        %p999 = pneg %p503
        %p1000 = pneg %p500
        %p1001 = pneg %p524
        %p1002 = pneg %p521
        %p1003 = pneg %p545
        %p1004 = pneg %p542
        %p1005 = pneg %p566
        %p1006 = pneg %p563
        %p1007 = pneg %p587
        %p1008 = pneg %p584
        %p1009 = pneg %p608
        %p1010 = pneg %p605
        %p1011 = pneg %p629
        %p1012 = pneg %p626
        %p1013 = pneg %p650
        %p1014 = pneg %p647
        %p1015 = pneg %p671
        %p1016 = pneg %p668
        %p1017 = pneg %p692
        %p1018 = pneg %p689
        %p1019 = pneg %p713
        %p1020 = pneg %p710
        %p1021 = pneg %p734
        %p1022 = pneg %p731
        %p1023 = pneg %p755
        %p1024 = pneg %p752
        %p1025 = pneg %p776
        %p1026 = pneg %p773
        %p1027 = pneg %p797
        %p1028 = pneg %p794
        %p1029 = pneg %p823
        %p1030 = pneg %p820
        %s1031 = sand.u32 %s810, 1
        %s1032 = scalar_lea.sflag [#allocation3], %s1031
        %s1033 = sand.u32 %s810, 1
        %s1034 = scalar_lea.vmem [#allocation2], %s1033
        %p1035 = scmp.lt.s32.totalorder %s83, 1
        %s1036 = scalar_select %p1035, %s83, 1
        %s1037 = smul.addr %s1036, 2
        %s1038 = smul.addr %s1037, 8
        %s1039 = scalar_lea.vmem %s1, %s1038
        %v1041 = vld [vmem:[%s1039] sm:$0xff]
        %v1042 = vld [vmem:[%s1039 + $0x8] sm:$0xff]
        %v1043 = vpack.c.bf16 %v1042, %v1041
        %v1044 = vld [vmem:[%s3] sm:$0xf]
        %v1045 = vld [vmem:[%s3 + $0x4] sm:$0xf]
        %v1046 = vld [vmem:[%s3 + $0x8] sm:$0xf]
        %v1047 = vld [vmem:[%s3 + $0xc] sm:$0xf]
        %v1048 = vld [vmem:[%s3 + $0x10] sm:$0xf]
        %v1049 = vld [vmem:[%s3 + $0x14] sm:$0xf]
        %v1050 = vld [vmem:[%s5] sm:$0x1]
        %v1052 = vlaneseq
        %v1053 = vshrl.u32 %v1052, 7
        %v1054 = vsub.s32 0, %v1053
        %v1055 = vrot.slane %v1050, %v1054
        %v1063 = vunpack.c.l.b16 %v1044
        %v1064 = vunpack.c.l.b16 %v1045
        %v1065 = vunpack.c.l.b16 %v1046
        %v1066 = vunpack.c.l.b16 %v1047
        %v1067 = vunpack.c.l.b16 %v1048
        %v1068 = vunpack.c.l.b16 %v1049
        %v1069 = vpack.c.b16 %v1064, %v1063
        %v1070 = vpack.c.b16 %v1066, %v1065
        %v1071 = vpack.c.b16 %v1068, %v1067
        %vm1075 = vcmask 392192
        %v1077 = vsel %vm1075, %v1043, 0
        %1079 = vmatprep.subr.bf16.mxu0 0
        %1080 = vmatpush1.bf16.msra.mxu0 0
        %1081 = vmatprep.subr.bf16.mxu0 0
        %1082 = vmatpush1.bf16.msra.mxu0 0
        %1083 = vmatprep.subr.bf16.mxu0 0
        %1084 = vmatpush1.bf16.msra.mxu0 0
        %1085 = vmatprep.subr.bf16.mxu0 0
        %1086 = vmatpush1.bf16.msra.mxu0 0
        %1087 = vmatprep.subr.bf16.mxu0 0
        %1088 = vmatpush1.bf16.msra.mxu0 0
        %1089 = vmatprep.subr.bf16.mxu0 0
        %1090 = vmatpush1.bf16.msra.mxu0 %v1071
        %1091 = vmatprep.subr.bf16.mxu0 0
        %1092 = vmatpush1.bf16.msra.mxu0 %v1070
        %1093 = vmatprep.subr.bf16.mxu0 0
        %1094 = vmatpush1.bf16.msra.mxu0 %v1069
        %1095 = vmatprep.subr.bf16.mxu0 0
        %1096 = vmatpush2.bf16.msra.mxu0 0
        %1097 = vmatprep.subr.bf16.mxu0 0
        %1098 = vmatpush2.bf16.msra.mxu0 0
        %1099 = vmatprep.subr.bf16.mxu0 0
        %1100 = vmatpush2.bf16.msra.mxu0 0
        %1101 = vmatprep.subr.bf16.mxu0 0
        %1102 = vmatpush2.bf16.msra.mxu0 0
        %1103 = vmatprep.subr.bf16.mxu0 0
        %1104 = vmatpush2.bf16.msra.mxu0 0
        %1105 = vmatprep.subr.bf16.mxu0 0
        %1106 = vmatpush2.bf16.msra.mxu0 0
        %1107 = vmatprep.subr.bf16.mxu0 0
        %1108 = vmatpush2.bf16.msra.mxu0 0
        %1109 = vmatprep.subr.bf16.mxu0 0
        %1110 = vmatpush2.bf16.msra.mxu0 0
        %1111 = vmatprep.mubr.bf16.mxu0 0
        %1112 = vmatmul.mubr.bf16.gmra.mxu0 %v1077
        %v1113 = vpop.f32.mrf.mxu0
        %v1114 = vadd.f32 %v1055, %v1113
        %v1115 = vpop.f32.mrf.mxu0
        %v1116 = vpop.f32.mrf.mxu0
        %v1117 = vadd.f32 %v1055, %v1116
        %v1118 = vpop.f32.mrf.mxu0
        %1119 = vdwg.mxu0
        %v1120 = vld [vmem:[%s7] sm:$0x1]
        %v1121 = vld [vmem:[%s9] sm:$0x1]
        %vm1122 = vcmask 261120
        %v1123 = vsel %vm1122, %v1114, 0.0
        %1124 = vadd.xlane.f32.xlu0 %v1123
        %v1125 = vpop.xlane.xlu0 %1124
        %v1126 = vsel %vm1122, %v1117, 0.0
        %1127 = vadd.xlane.f32.xlu0 %v1126
        %v1128 = vpop.xlane.xlu0 %1127
        %v1129 = vrcp.pop 32.0
        %v1130 = vmul.f32 %v1125, %v1129
        %v1131 = vmul.f32 %v1128, %v1129
        %v1132 = vsub.f32 %v1114, %v1130
        %v1133 = vsub.f32 %v1117, %v1131
        %v1134 = vmul.f32 %v1132, %v1132
        %v1135 = vmul.f32 %v1133, %v1133
        %v1136 = vsel %vm1122, %v1134, 0.0
        %1137 = vadd.xlane.f32.xlu0 %v1136
        %v1138 = vpop.xlane.xlu0 %1137
        %v1139 = vsel %vm1122, %v1135, 0.0
        %1140 = vadd.xlane.f32.xlu0 %v1139
        %v1141 = vpop.xlane.xlu0 %1140
        %v1142 = vmul.f32 %v1138, %v1129
        %v1143 = vmul.f32 %v1141, %v1129
        %v1144 = vadd.f32 %v1142, 1e-05
        %v1145 = vadd.f32 %v1143, 1e-05
        %v1146 = vrsqrt.pop %v1144
        %v1147 = vrsqrt.pop %v1145
        %v1148 = vmul.f32 %v1132, %v1146
        %v1149 = vmul.f32 %v1133, %v1147
        %v1151 = vlaneseq
        %v1152 = vshrl.u32 %v1151, 7
        %v1153 = vsub.s32 0, %v1152
        %v1154 = vrot.slane %v1120, %v1153
        %v1156 = vmul.f32 %v1148, %v1154
        %v1157 = vmul.f32 %v1149, %v1154
        %v1159 = vlaneseq
        %v1160 = vshrl.u32 %v1159, 7
        %v1161 = vsub.s32 0, %v1160
        %v1162 = vrot.slane %v1121, %v1161
        %v1164 = vadd.f32 %v1156, %v1162
        %v1165 = vadd.f32 %v1157, %v1162
        %v1166 = vld [vmem:[%s11] sm:$0x1]
        %v1167 = vld [vmem:[%s13] sm:$0x1]
        %v1168 = vsel %vm1122, %v1164, 0.0
        %1169 = vadd.xlane.f32.xlu0 %v1168
        %v1170 = vpop.xlane.xlu0 %1169
        %v1171 = vsel %vm1122, %v1165, 0.0
        %1172 = vadd.xlane.f32.xlu0 %v1171
        %v1173 = vpop.xlane.xlu0 %1172
        %v1174 = vmul.f32 %v1170, %v1129
        %v1175 = vmul.f32 %v1173, %v1129
        %v1176 = vsub.f32 %v1164, %v1174
        %v1177 = vsub.f32 %v1165, %v1175
        %v1178 = vmul.f32 %v1176, %v1176
        %v1179 = vmul.f32 %v1177, %v1177
        %v1180 = vsel %vm1122, %v1178, 0.0
        %1181 = vadd.xlane.f32.xlu0 %v1180
        %v1182 = vpop.xlane.xlu0 %1181
        %v1183 = vsel %vm1122, %v1179, 0.0
        %1184 = vadd.xlane.f32.xlu0 %v1183
        %v1185 = vpop.xlane.xlu0 %1184
        %v1186 = vmul.f32 %v1182, %v1129
        %v1187 = vmul.f32 %v1185, %v1129
        %v1188 = vadd.f32 %v1186, 1e-05
        %v1189 = vadd.f32 %v1187, 1e-05
        %v1190 = vrsqrt.pop %v1188
        %v1191 = vrsqrt.pop %v1189
        %v1192 = vmul.f32 %v1176, %v1190
        %v1193 = vmul.f32 %v1177, %v1191
        %v1195 = vlaneseq
        %v1196 = vshrl.u32 %v1195, 7
        %v1197 = vsub.s32 0, %v1196
        %v1198 = vrot.slane %v1166, %v1197
        %v1200 = vmul.f32 %v1192, %v1198
        %v1201 = vmul.f32 %v1193, %v1198
        %v1203 = vlaneseq
        %v1204 = vshrl.u32 %v1203, 7
        %v1205 = vsub.s32 0, %v1204
        %v1206 = vrot.slane %v1167, %v1205
        %v1208 = vadd.f32 %v1200, %v1206
        %v1209 = vadd.f32 %v1201, %v1206
        %v1210 = vpack.c.bf16 %v1209, %v1208
        %v1211 = vld [vmem:[%s15] sm:$0xf]
        %v1212 = vld [vmem:[%s15 + $0x4] sm:$0xf]
        %v1213 = vld [vmem:[%s15 + $0x8] sm:$0xf]
        %v1214 = vld [vmem:[%s15 + $0xc] sm:$0xf]
        %v1215 = vld [vmem:[%s17] sm:$0x1]
        %v1217 = vlaneseq
        %v1218 = vshrl.u32 %v1217, 7
        %v1219 = vsub.s32 0, %v1218
        %v1220 = vrot.slane %v1215, %v1219
        %v1226 = vunpack.c.l.b16 %v1211
        %v1227 = vunpack.c.l.b16 %v1212
        %v1228 = vunpack.c.l.b16 %v1213
        %v1229 = vunpack.c.l.b16 %v1214
        %v1230 = vpack.c.b16 %v1227, %v1226
        %v1231 = vpack.c.b16 %v1229, %v1228
        %v1235 = vsel %vm1122, %v1210, 0
        %1237 = vmatprep.subr.bf16.mxu0 0
        %1238 = vmatpush1.bf16.msra.mxu0 0
        %1239 = vmatprep.subr.bf16.mxu0 0
        %1240 = vmatpush1.bf16.msra.mxu0 0
        %1241 = vmatprep.subr.bf16.mxu0 0
        %1242 = vmatpush1.bf16.msra.mxu0 0
        %1243 = vmatprep.subr.bf16.mxu0 0
        %1244 = vmatpush1.bf16.msra.mxu0 0
        %1245 = vmatprep.subr.bf16.mxu0 0
        %1246 = vmatpush1.bf16.msra.mxu0 0
        %1247 = vmatprep.subr.bf16.mxu0 0
        %1248 = vmatpush1.bf16.msra.mxu0 0
        %1249 = vmatprep.subr.bf16.mxu0 0
        %1250 = vmatpush1.bf16.msra.mxu0 %v1231
        %1251 = vmatprep.subr.bf16.mxu0 0
        %1252 = vmatpush1.bf16.msra.mxu0 %v1230
        %1253 = vmatprep.subr.bf16.mxu0 0
        %1254 = vmatpush2.bf16.msra.mxu0 0
        %1255 = vmatprep.subr.bf16.mxu0 0
        %1256 = vmatpush2.bf16.msra.mxu0 0
        %1257 = vmatprep.subr.bf16.mxu0 0
        %1258 = vmatpush2.bf16.msra.mxu0 0
        %1259 = vmatprep.subr.bf16.mxu0 0
        %1260 = vmatpush2.bf16.msra.mxu0 0
        %1261 = vmatprep.subr.bf16.mxu0 0
        %1262 = vmatpush2.bf16.msra.mxu0 0
        %1263 = vmatprep.subr.bf16.mxu0 0
        %1264 = vmatpush2.bf16.msra.mxu0 0
        %1265 = vmatprep.subr.bf16.mxu0 0
        %1266 = vmatpush2.bf16.msra.mxu0 0
        %1267 = vmatprep.subr.bf16.mxu0 0
        %1268 = vmatpush2.bf16.msra.mxu0 0
        %1269 = vmatprep.mubr.bf16.mxu0 0
        %1270 = vmatmul.mubr.bf16.gmra.mxu0 %v1235
        %v1271 = vpop.f32.mrf.mxu0
        %v1272 = vadd.f32 %v1220, %v1271
        %v1273 = vpop.f32.mrf.mxu0
        %v1274 = vpop.f32.mrf.mxu0
        %v1275 = vadd.f32 %v1220, %v1274
        %v1276 = vpop.f32.mrf.mxu0
        %1277 = vdwg.mxu0
        %v1278 = vpack.c.bf16 %v1275, %v1272
        %1280 = vrot.lane.b32.xlu0 %v1278, 112
        %v1281 = vpop.permute.xlu0 %1280
        %v1282 = vld [vmem:[%s23] sm:$0xff]
        %v1283 = vld [vmem:[%s23 + $0x8] sm:$0xff]
        %v1284 = vld [vmem:[%s23 + $0x10] sm:$0xff]
        %v1285 = vld [vmem:[%s23 + $0x18] sm:$0xff]
        %1286 = vrot.lane.b32.xlu0 %v1278, 96
        %v1287 = vpop.permute.xlu0 %1286
        %vm1288 = vcmask 130048
        %v1290 = vsel %vm1288, %v1278, 0
        %v1293 = vsel %vm1288, %v1287, 0
        %1295 = vmatprep.subr.bf16.mxu0 0
        %1296 = vmatpush1.bf16.xpose.msra.mxu0 0
        %1297 = vmatprep.subr.bf16.mxu0 0
        %1298 = vmatpush1.bf16.xpose.msra.mxu0 0
        %1299 = vmatprep.subr.bf16.mxu0 0
        %1300 = vmatpush1.bf16.xpose.msra.mxu0 0
        %1301 = vmatprep.subr.bf16.mxu0 0
        %1302 = vmatpush1.bf16.xpose.msra.mxu0 0
        %1303 = vmatprep.subr.bf16.mxu0 0
        %1304 = vmatpush1.bf16.xpose.msra.mxu0 0
        %1305 = vmatprep.subr.bf16.mxu0 0
        %1306 = vmatpush1.bf16.xpose.msra.mxu0 0
        %1307 = vmatprep.subr.bf16.mxu0 0
        %1308 = vmatpush1.bf16.xpose.msra.mxu0 0
        %1309 = vmatprep.subr.bf16.mxu0 0
        %1310 = vmatpush1.bf16.xpose.msra.mxu0 %v1293
        %1311 = vmatprep.subr.bf16.mxu0 0
        %1312 = vmatpush2.bf16.xpose.msra.mxu0 0
        %1313 = vmatprep.subr.bf16.mxu0 0
        %1314 = vmatpush2.bf16.xpose.msra.mxu0 0
        %1315 = vmatprep.subr.bf16.mxu0 0
        %1316 = vmatpush2.bf16.xpose.msra.mxu0 0
        %1317 = vmatprep.subr.bf16.mxu0 0
        %1318 = vmatpush2.bf16.xpose.msra.mxu0 0
        %1319 = vmatprep.subr.bf16.mxu0 0
        %1320 = vmatpush2.bf16.xpose.msra.mxu0 0
        %1321 = vmatprep.subr.bf16.mxu0 0
        %1322 = vmatpush2.bf16.xpose.msra.mxu0 0
        %1323 = vmatprep.subr.bf16.mxu0 0
        %1324 = vmatpush2.bf16.xpose.msra.mxu0 0
        %1325 = vmatprep.subr.bf16.mxu0 0
        %1326 = vmatpush2.bf16.xpose.msra.mxu0 0
        %1327 = vmatprep.mubr.bf16.mxu0 0
        %1328 = vmatmul.mubr.bf16.gmra.mxu0 %v1290
        %v1329 = vpop.f32.mrf.mxu0
        %v1330 = vadd.f32 %v1282, %v1329
        %v1331 = vpop.f32.mrf.mxu0
        %v1332 = vpop.f32.mrf.mxu0
        %v1333 = vadd.f32 %v1283, %v1332
        %v1334 = vpop.f32.mrf.mxu0
        %1335 = vdwg.mxu0
        %1336 = vrot.lane.b32.xlu0 %v1281, 96
        %v1337 = vpop.permute.xlu0 %1336
        %v1339 = vsel %vm1288, %v1281, 0
        %v1342 = vsel %vm1288, %v1337, 0
        %1344 = vmatprep.subr.bf16.mxu0 0
        %1345 = vmatpush1.bf16.xpose.msra.mxu0 0
        %1346 = vmatprep.subr.bf16.mxu0 0
        %1347 = vmatpush1.bf16.xpose.msra.mxu0 0
        %1348 = vmatprep.subr.bf16.mxu0 0
        %1349 = vmatpush1.bf16.xpose.msra.mxu0 0
        %1350 = vmatprep.subr.bf16.mxu0 0
        %1351 = vmatpush1.bf16.xpose.msra.mxu0 0
        %1352 = vmatprep.subr.bf16.mxu0 0
        %1353 = vmatpush1.bf16.xpose.msra.mxu0 0
        %1354 = vmatprep.subr.bf16.mxu0 0
        %1355 = vmatpush1.bf16.xpose.msra.mxu0 0
        %1356 = vmatprep.subr.bf16.mxu0 0
        %1357 = vmatpush1.bf16.xpose.msra.mxu0 0
        %1358 = vmatprep.subr.bf16.mxu0 0
        %1359 = vmatpush1.bf16.xpose.msra.mxu0 %v1342
        %1360 = vmatprep.subr.bf16.mxu0 0
        %1361 = vmatpush2.bf16.xpose.msra.mxu0 0
        %1362 = vmatprep.subr.bf16.mxu0 0
        %1363 = vmatpush2.bf16.xpose.msra.mxu0 0
        %1364 = vmatprep.subr.bf16.mxu0 0
        %1365 = vmatpush2.bf16.xpose.msra.mxu0 0
        %1366 = vmatprep.subr.bf16.mxu0 0
        %1367 = vmatpush2.bf16.xpose.msra.mxu0 0
        %1368 = vmatprep.subr.bf16.mxu0 0
        %1369 = vmatpush2.bf16.xpose.msra.mxu0 0
        %1370 = vmatprep.subr.bf16.mxu0 0
        %1371 = vmatpush2.bf16.xpose.msra.mxu0 0
        %1372 = vmatprep.subr.bf16.mxu0 0
        %1373 = vmatpush2.bf16.xpose.msra.mxu0 0
        %1374 = vmatprep.subr.bf16.mxu0 0
        %1375 = vmatpush2.bf16.xpose.msra.mxu0 0
        %1376 = vmatprep.mubr.bf16.mxu0 0
        %1377 = vmatmul.mubr.bf16.gmra.mxu0 %v1339
        %v1378 = vpop.f32.mrf.mxu0
        %v1379 = vadd.f32 %v1284, %v1378
        %v1380 = vpop.f32.mrf.mxu0
        %v1381 = vpop.f32.mrf.mxu0
        %v1382 = vadd.f32 %v1285, %v1381
        %v1383 = vpop.f32.mrf.mxu0
        %1384 = vdwg.mxu0
        %v1385 = vsel %vm1288, %v1330, -inf
        %1386 = vmax.xlane.f32.xlu0 %v1385
        %v1387 = vpop.xlane.xlu0 %1386
        %v1388 = vsel %vm1288, %v1333, -inf
        %1389 = vmax.xlane.f32.xlu0 %v1388
        %v1390 = vpop.xlane.xlu0 %1389
        %v1391 = vsel %vm1288, %v1379, -inf
        %1392 = vmax.xlane.f32.xlu0 %v1391
        %v1393 = vpop.xlane.xlu0 %1392
        %v1394 = vsel %vm1288, %v1382, -inf
        %1395 = vmax.xlane.f32.xlu0 %v1394
        %v1396 = vpop.xlane.xlu0 %1395
        %v1397 = vsub.f32 %v1330, %v1387
        %v1398 = vsub.f32 %v1333, %v1390
        %v1399 = vsub.f32 %v1379, %v1393
        %v1400 = vsub.f32 %v1382, %v1396
        %v1401 = vmul.f32 %v1397, 1.442695
        %v1402 = vpow.pop %v1401
        %v1403 = vmul.f32 %v1398, 1.442695
        %v1404 = vpow.pop %v1403
        %v1405 = vmul.f32 %v1399, 1.442695
        %v1406 = vpow.pop %v1405
        %v1407 = vmul.f32 %v1400, 1.442695
        %v1408 = vpow.pop %v1407
        %v1409 = vsel %vm1288, %v1402, 0.0
        %1410 = vadd.xlane.f32.xlu0 %v1409
        %v1411 = vpop.xlane.xlu0 %1410
        %v1412 = vsel %vm1288, %v1404, 0.0
        %1413 = vadd.xlane.f32.xlu0 %v1412
        %v1414 = vpop.xlane.xlu0 %1413
        %v1415 = vsel %vm1288, %v1406, 0.0
        %1416 = vadd.xlane.f32.xlu0 %v1415
        %v1417 = vpop.xlane.xlu0 %1416
        %v1418 = vsel %vm1288, %v1408, 0.0
        %1419 = vadd.xlane.f32.xlu0 %v1418
        %v1420 = vpop.xlane.xlu0 %1419
        %v1421 = vrcp.pop %v1411
        %v1422 = vrcp.pop %v1414
        %v1423 = vrcp.pop %v1417
        %v1424 = vrcp.pop %v1420
        %v1425 = vmul.f32 %v1402, %v1421
        %v1426 = vmul.f32 %v1404, %v1422
        %v1427 = vmul.f32 %v1406, %v1423
        %v1428 = vmul.f32 %v1408, %v1424
        %v1429 = vpack.c.bf16 %v1426, %v1425
        %v1430 = vpack.c.bf16 %v1428, %v1427
        %1431 = vrot.lane.b32.xlu0 %v1278, 64
        %v1432 = vpop.permute.xlu0 %1431
        %v1435 = vsel %vm1288, %v1429, 0
        %1437 = vmatprep.subr.bf16.mxu0 0
        %1438 = vmatpush1.bf16.msra.mxu0 0
        %1439 = vmatprep.subr.bf16.mxu0 0
        %1440 = vmatpush1.bf16.msra.mxu0 0
        %1441 = vmatprep.subr.bf16.mxu0 0
        %1442 = vmatpush1.bf16.msra.mxu0 0
        %1443 = vmatprep.subr.bf16.mxu0 0
        %1444 = vmatpush1.bf16.msra.mxu0 0
        %1445 = vmatprep.subr.bf16.mxu0 0
        %1446 = vmatpush1.bf16.msra.mxu0 0
        %1447 = vmatprep.subr.bf16.mxu0 0
        %1448 = vmatpush1.bf16.msra.mxu0 0
        %1449 = vmatprep.subr.bf16.mxu0 0
        %1450 = vmatpush1.bf16.msra.mxu0 0
        %1451 = vmatprep.subr.bf16.mxu0 0
        %1452 = vmatpush1.bf16.msra.mxu0 %v1432
        %1453 = vmatprep.subr.bf16.mxu0 0
        %1454 = vmatpush2.bf16.msra.mxu0 0
        %1455 = vmatprep.subr.bf16.mxu0 0
        %1456 = vmatpush2.bf16.msra.mxu0 0
        %1457 = vmatprep.subr.bf16.mxu0 0
        %1458 = vmatpush2.bf16.msra.mxu0 0
        %1459 = vmatprep.subr.bf16.mxu0 0
        %1460 = vmatpush2.bf16.msra.mxu0 0
        %1461 = vmatprep.subr.bf16.mxu0 0
        %1462 = vmatpush2.bf16.msra.mxu0 0
        %1463 = vmatprep.subr.bf16.mxu0 0
        %1464 = vmatpush2.bf16.msra.mxu0 0
        %1465 = vmatprep.subr.bf16.mxu0 0
        %1466 = vmatpush2.bf16.msra.mxu0 0
        %1467 = vmatprep.subr.bf16.mxu0 0
        %1468 = vmatpush2.bf16.msra.mxu0 0
        %1469 = vmatprep.mubr.bf16.mxu0 0
        %1470 = vmatmul.mubr.bf16.gmra.mxu0 %v1435
        %v1471 = vpop.f32.mrf.mxu0
        %v1472 = vadd.f32 0.0, %v1471
        %v1473 = vpop.f32.mrf.mxu0
        %v1474 = vpop.f32.mrf.mxu0
        %v1475 = vadd.f32 0.0, %v1474
        %v1476 = vpop.f32.mrf.mxu0
        %1477 = vdwg.mxu0
        %1478 = vrot.lane.b32.xlu0 %v1281, 64
        %v1479 = vpop.permute.xlu0 %1478
        %v1482 = vsel %vm1288, %v1430, 0
        %1484 = vmatprep.subr.bf16.mxu0 0
        %1485 = vmatpush1.bf16.msra.mxu0 0
        %1486 = vmatprep.subr.bf16.mxu0 0
        %1487 = vmatpush1.bf16.msra.mxu0 0
        %1488 = vmatprep.subr.bf16.mxu0 0
        %1489 = vmatpush1.bf16.msra.mxu0 0
        %1490 = vmatprep.subr.bf16.mxu0 0
        %1491 = vmatpush1.bf16.msra.mxu0 0
        %1492 = vmatprep.subr.bf16.mxu0 0
        %1493 = vmatpush1.bf16.msra.mxu0 0
        %1494 = vmatprep.subr.bf16.mxu0 0
        %1495 = vmatpush1.bf16.msra.mxu0 0
        %1496 = vmatprep.subr.bf16.mxu0 0
        %1497 = vmatpush1.bf16.msra.mxu0 0
        %1498 = vmatprep.subr.bf16.mxu0 0
        %1499 = vmatpush1.bf16.msra.mxu0 %v1479
        %1500 = vmatprep.subr.bf16.mxu0 0
        %1501 = vmatpush2.bf16.msra.mxu0 0
        %1502 = vmatprep.subr.bf16.mxu0 0
        %1503 = vmatpush2.bf16.msra.mxu0 0
        %1504 = vmatprep.subr.bf16.mxu0 0
        %1505 = vmatpush2.bf16.msra.mxu0 0
        %1506 = vmatprep.subr.bf16.mxu0 0
        %1507 = vmatpush2.bf16.msra.mxu0 0
        %1508 = vmatprep.subr.bf16.mxu0 0
        %1509 = vmatpush2.bf16.msra.mxu0 0
        %1510 = vmatprep.subr.bf16.mxu0 0
        %1511 = vmatpush2.bf16.msra.mxu0 0
        %1512 = vmatprep.subr.bf16.mxu0 0
        %1513 = vmatpush2.bf16.msra.mxu0 0
        %1514 = vmatprep.subr.bf16.mxu0 0
        %1515 = vmatpush2.bf16.msra.mxu0 0
        %1516 = vmatprep.mubr.bf16.mxu0 0
        %1517 = vmatmul.mubr.bf16.gmra.mxu0 %v1482
        %v1518 = vpop.f32.mrf.mxu0
        %v1519 = vadd.f32 0.0, %v1518
        %v1520 = vpop.f32.mrf.mxu0
        %v1521 = vpop.f32.mrf.mxu0
        %v1522 = vadd.f32 0.0, %v1521
        %v1523 = vpop.f32.mrf.mxu0
        %1524 = vdwg.mxu0
        %1527 = vrot.lane.b32.xlu0 %v1519, 16
        %v1528 = vpop.permute.xlu0 %1527
        %1529 = vrot.lane.b32.xlu0 %v1522, 16
        %v1530 = vpop.permute.xlu0 %1529
        %v1533 = vsel %vm1288, %v1472, %v1528
        %v1534 = vsel %vm1288, %v1475, %v1530
        %v1535 = vpack.c.bf16 %v1534, %v1533
        %v1536 = vld [vmem:[%s19] sm:$0xf]
        %v1537 = vld [vmem:[%s19 + $0x4] sm:$0xf]
        %v1538 = vld [vmem:[%s19 + $0x8] sm:$0xf]
        %v1539 = vld [vmem:[%s19 + $0xc] sm:$0xf]
        %v1540 = vld [vmem:[%s21] sm:$0x1]
        %v1542 = vlaneseq
        %v1543 = vshrl.u32 %v1542, 7
        %v1544 = vsub.s32 0, %v1543
        %v1545 = vrot.slane %v1540, %v1544
        %v1551 = vunpack.c.l.b16 %v1536
        %v1552 = vunpack.c.l.b16 %v1537
        %v1553 = vunpack.c.l.b16 %v1538
        %v1554 = vunpack.c.l.b16 %v1539
        %v1555 = vpack.c.b16 %v1552, %v1551
        %v1556 = vpack.c.b16 %v1554, %v1553
        %v1560 = vsel %vm1122, %v1535, 0
        %1562 = vmatprep.subr.bf16.mxu0 0
        %1563 = vmatpush1.bf16.msra.mxu0 0
        %1564 = vmatprep.subr.bf16.mxu0 0
        %1565 = vmatpush1.bf16.msra.mxu0 0
        %1566 = vmatprep.subr.bf16.mxu0 0
        %1567 = vmatpush1.bf16.msra.mxu0 0
        %1568 = vmatprep.subr.bf16.mxu0 0
        %1569 = vmatpush1.bf16.msra.mxu0 0
        %1570 = vmatprep.subr.bf16.mxu0 0
        %1571 = vmatpush1.bf16.msra.mxu0 0
        %1572 = vmatprep.subr.bf16.mxu0 0
        %1573 = vmatpush1.bf16.msra.mxu0 0
        %1574 = vmatprep.subr.bf16.mxu0 0
        %1575 = vmatpush1.bf16.msra.mxu0 %v1556
        %1576 = vmatprep.subr.bf16.mxu0 0
        %1577 = vmatpush1.bf16.msra.mxu0 %v1555
        %1578 = vmatprep.subr.bf16.mxu0 0
        %1579 = vmatpush2.bf16.msra.mxu0 0
        %1580 = vmatprep.subr.bf16.mxu0 0
        %1581 = vmatpush2.bf16.msra.mxu0 0
        %1582 = vmatprep.subr.bf16.mxu0 0
        %1583 = vmatpush2.bf16.msra.mxu0 0
        %1584 = vmatprep.subr.bf16.mxu0 0
        %1585 = vmatpush2.bf16.msra.mxu0 0
        %1586 = vmatprep.subr.bf16.mxu0 0
        %1587 = vmatpush2.bf16.msra.mxu0 0
        %1588 = vmatprep.subr.bf16.mxu0 0
        %1589 = vmatpush2.bf16.msra.mxu0 0
        %1590 = vmatprep.subr.bf16.mxu0 0
        %1591 = vmatpush2.bf16.msra.mxu0 0
        %1592 = vmatprep.subr.bf16.mxu0 0
        %1593 = vmatpush2.bf16.msra.mxu0 0
        %1594 = vmatprep.mubr.bf16.mxu0 0
        %1595 = vmatmul.mubr.bf16.gmra.mxu0 %v1560
        %v1596 = vpop.f32.mrf.mxu0
        %v1597 = vadd.f32 %v1545, %v1596
        %v1598 = vpop.f32.mrf.mxu0
        %v1599 = vpop.f32.mrf.mxu0
        %v1600 = vadd.f32 %v1545, %v1599
        %v1601 = vpop.f32.mrf.mxu0
        %1602 = vdwg.mxu0
        %v1603 = vadd.f32 %v1164, %v1597
        %v1604 = vadd.f32 %v1165, %v1600
        %s1605 = scalar_lea.vmem %s11, 1
        %v1606 = vld [vmem:[%s1605] sm:$0x1]
        %s1607 = scalar_lea.vmem %s13, 1
        %v1608 = vld [vmem:[%s1607] sm:$0x1]
        %v1609 = vsel %vm1122, %v1603, 0.0
        %1610 = vadd.xlane.f32.xlu0 %v1609
        %v1611 = vpop.xlane.xlu0 %1610
        %v1612 = vsel %vm1122, %v1604, 0.0
        %1613 = vadd.xlane.f32.xlu0 %v1612
        %v1614 = vpop.xlane.xlu0 %1613
        %v1615 = vmul.f32 %v1611, %v1129
        %v1616 = vmul.f32 %v1614, %v1129
        %v1617 = vsub.f32 %v1603, %v1615
        %v1618 = vsub.f32 %v1604, %v1616
        %v1619 = vmul.f32 %v1617, %v1617
        %v1620 = vmul.f32 %v1618, %v1618
        %v1621 = vsel %vm1122, %v1619, 0.0
        %1622 = vadd.xlane.f32.xlu0 %v1621
        %v1623 = vpop.xlane.xlu0 %1622
        %v1624 = vsel %vm1122, %v1620, 0.0
        %1625 = vadd.xlane.f32.xlu0 %v1624
        %v1626 = vpop.xlane.xlu0 %1625
        %v1627 = vmul.f32 %v1623, %v1129
        %v1628 = vmul.f32 %v1626, %v1129
        %v1629 = vadd.f32 %v1627, 1e-05
        %v1630 = vadd.f32 %v1628, 1e-05
        %v1631 = vrsqrt.pop %v1629
        %v1632 = vrsqrt.pop %v1630
        %v1633 = vmul.f32 %v1617, %v1631
        %v1634 = vmul.f32 %v1618, %v1632
        %v1636 = vlaneseq
        %v1637 = vshrl.u32 %v1636, 7
        %v1638 = vsub.s32 0, %v1637
        %v1639 = vrot.slane %v1606, %v1638
        %v1641 = vmul.f32 %v1633, %v1639
        %v1642 = vmul.f32 %v1634, %v1639
        %v1644 = vlaneseq
        %v1645 = vshrl.u32 %v1644, 7
        %v1646 = vsub.s32 0, %v1645
        %v1647 = vrot.slane %v1608, %v1646
        %v1649 = vadd.f32 %v1641, %v1647
        %v1650 = vadd.f32 %v1642, %v1647
        %v1651 = vpack.c.bf16 %v1650, %v1649
        %v1652 = vld [vmem:[%s25] sm:$0xf]
        %v1653 = vld [vmem:[%s25 + $0x4] sm:$0xf]
        %v1654 = vld [vmem:[%s25 + $0x8] sm:$0xf]
        %v1655 = vld [vmem:[%s25 + $0xc] sm:$0xf]
        %v1656 = vld [vmem:[%s27] sm:$0x1]
        %v1658 = vlaneseq
        %v1659 = vshrl.u32 %v1658, 7
        %v1660 = vsub.s32 0, %v1659
        %v1661 = vrot.slane %v1656, %v1660
        %v1667 = vunpack.c.l.b16 %v1652
        %v1668 = vunpack.c.l.b16 %v1653
        %v1669 = vunpack.c.l.b16 %v1654
        %v1670 = vunpack.c.l.b16 %v1655
        %v1671 = vpack.c.b16 %v1668, %v1667
        %v1672 = vpack.c.b16 %v1670, %v1669
        %v1676 = vsel %vm1122, %v1651, 0
        %1678 = vmatprep.subr.bf16.mxu0 0
        %1679 = vmatpush1.bf16.msra.mxu0 0
        %1680 = vmatprep.subr.bf16.mxu0 0
        %1681 = vmatpush1.bf16.msra.mxu0 0
        %1682 = vmatprep.subr.bf16.mxu0 0
        %1683 = vmatpush1.bf16.msra.mxu0 0
        %1684 = vmatprep.subr.bf16.mxu0 0
        %1685 = vmatpush1.bf16.msra.mxu0 0
        %1686 = vmatprep.subr.bf16.mxu0 0
        %1687 = vmatpush1.bf16.msra.mxu0 0
        %1688 = vmatprep.subr.bf16.mxu0 0
        %1689 = vmatpush1.bf16.msra.mxu0 0
        %1690 = vmatprep.subr.bf16.mxu0 0
        %1691 = vmatpush1.bf16.msra.mxu0 %v1672
        %1692 = vmatprep.subr.bf16.mxu0 0
        %1693 = vmatpush1.bf16.msra.mxu0 %v1671
        %1694 = vmatprep.subr.bf16.mxu0 0
        %1695 = vmatpush2.bf16.msra.mxu0 0
        %1696 = vmatprep.subr.bf16.mxu0 0
        %1697 = vmatpush2.bf16.msra.mxu0 0
        %1698 = vmatprep.subr.bf16.mxu0 0
        %1699 = vmatpush2.bf16.msra.mxu0 0
        %1700 = vmatprep.subr.bf16.mxu0 0
        %1701 = vmatpush2.bf16.msra.mxu0 0
        %1702 = vmatprep.subr.bf16.mxu0 0
        %1703 = vmatpush2.bf16.msra.mxu0 0
        %1704 = vmatprep.subr.bf16.mxu0 0
        %1705 = vmatpush2.bf16.msra.mxu0 0
        %1706 = vmatprep.subr.bf16.mxu0 0
        %1707 = vmatpush2.bf16.msra.mxu0 0
        %1708 = vmatprep.subr.bf16.mxu0 0
        %1709 = vmatpush2.bf16.msra.mxu0 0
        %1710 = vmatprep.mubr.bf16.mxu0 0
        %1711 = vmatmul.mubr.bf16.gmra.mxu0 %v1676
        %v1712 = vpop.f32.mrf.mxu0
        %v1713 = vadd.f32 %v1661, %v1712
        %v1714 = vpop.f32.mrf.mxu0
        %v1715 = vpop.f32.mrf.mxu0
        %v1716 = vadd.f32 %v1661, %v1715
        %v1717 = vpop.f32.mrf.mxu0
        %1718 = vdwg.mxu0
        %v1719 = vmul.f32 %v1713, 0.5
        %v1720 = vmul.f32 %v1716, 0.5
        %v1721 = vmul.f32 %v1713, 0.70710677
        %v1722 = vmul.f32 %v1716, 0.70710677
        %vm1723 = vcmp.ge.f32.partialorder %v1721, 0.0
        %vm1724 = vcmp.ge.f32.partialorder %v1722, 0.0
        %v1725 = vsel %vm1723, 1.0, -1.0
        %v1726 = vsel %vm1724, 1.0, -1.0
        %v1727 = vand.u32 2147483647, %v1721
        %v1728 = vand.u32 2147483647, %v1722
        %v1729 = vmul.f32 %v1727, 0.3275911
        %v1730 = vmul.f32 %v1728, 0.3275911
        %v1731 = vadd.f32 %v1729, 1.0
        %v1732 = vadd.f32 %v1730, 1.0
        %v1733 = vrcp.pop %v1731
        %v1734 = vrcp.pop %v1732
        %v1735 = vmul.f32 %v1733, 1.0614054
        %v1736 = vmul.f32 %v1734, 1.0614054
        %v1737 = vadd.f32 %v1735, -1.4531521
        %v1738 = vadd.f32 %v1736, -1.4531521
        %v1739 = vmul.f32 %v1733, %v1737
        %v1740 = vmul.f32 %v1734, %v1738
        %v1741 = vadd.f32 %v1739, 1.4214138
        %v1742 = vadd.f32 %v1740, 1.4214138
        %v1743 = vmul.f32 %v1733, %v1741
        %v1744 = vmul.f32 %v1734, %v1742
        %v1745 = vadd.f32 %v1743, -0.28449672
        %v1746 = vadd.f32 %v1744, -0.28449672
        %v1747 = vmul.f32 %v1733, %v1745
        %v1748 = vmul.f32 %v1734, %v1746
        %v1749 = vadd.f32 %v1747, 0.2548296
        %v1750 = vadd.f32 %v1748, 0.2548296
        %v1751 = vmul.f32 %v1733, %v1749
        %v1752 = vmul.f32 %v1734, %v1750
        %v1753 = vsub.f32 0.0, %v1727
        %v1754 = vsub.f32 0.0, %v1728
        %v1755 = vmul.f32 %v1753, %v1727
        %v1756 = vmul.f32 %v1754, %v1728
        %v1757 = vmul.f32 %v1755, 1.442695
        %v1758 = vpow.pop %v1757
        %v1759 = vmul.f32 %v1756, 1.442695
        %v1760 = vpow.pop %v1759
        %v1761 = vmul.f32 %v1751, %v1758
        %v1762 = vmul.f32 %v1752, %v1760
        %v1763 = vsub.f32 1.0, %v1761
        %v1764 = vsub.f32 1.0, %v1762
        %v1765 = vmul.f32 %v1725, %v1763
        %v1766 = vmul.f32 %v1726, %v1764
        %v1767 = vadd.f32 %v1765, 1.0
        %v1768 = vadd.f32 %v1766, 1.0
        %v1769 = vmul.f32 %v1719, %v1767
        %v1770 = vmul.f32 %v1720, %v1768
        %v1771 = vpack.c.bf16 %v1770, %v1769
        %v1772 = vld [vmem:[%s29] sm:$0xf]
        %v1773 = vld [vmem:[%s29 + $0x4] sm:$0xf]
        %v1774 = vld [vmem:[%s29 + $0x8] sm:$0xf]
        %v1775 = vld [vmem:[%s29 + $0xc] sm:$0xf]
        %v1776 = vld [vmem:[%s29 + $0x10] sm:$0xf]
        %v1777 = vld [vmem:[%s29 + $0x14] sm:$0xf]
        %v1778 = vld [vmem:[%s29 + $0x18] sm:$0xf]
        %v1779 = vld [vmem:[%s29 + $0x1c] sm:$0xf]
        %v1780 = vld [vmem:[%s29 + $0x20] sm:$0xf]
        %v1781 = vld [vmem:[%s29 + $0x24] sm:$0xf]
        %v1782 = vld [vmem:[%s29 + $0x28] sm:$0xf]
        %v1783 = vld [vmem:[%s29 + $0x2c] sm:$0xf]
        %v1784 = vld [vmem:[%s29 + $0x30] sm:$0xf]
        %v1785 = vld [vmem:[%s29 + $0x34] sm:$0xf]
        %v1786 = vld [vmem:[%s29 + $0x38] sm:$0xf]
        %v1787 = vld [vmem:[%s29 + $0x3c] sm:$0xf]
        %v1788 = vld [vmem:[%s31] sm:$0x1]
        %v1790 = vlaneseq
        %v1791 = vshrl.u32 %v1790, 7
        %v1792 = vsub.s32 0, %v1791
        %v1793 = vrot.slane %v1788, %v1792
        %v1811 = vunpack.c.l.b16 %v1772
        %v1812 = vunpack.c.l.b16 %v1773
        %v1813 = vunpack.c.l.b16 %v1774
        %v1814 = vunpack.c.l.b16 %v1775
        %v1815 = vunpack.c.l.b16 %v1776
        %v1816 = vunpack.c.l.b16 %v1777
        %v1817 = vunpack.c.l.b16 %v1778
        %v1818 = vunpack.c.l.b16 %v1779
        %v1819 = vunpack.c.l.b16 %v1780
        %v1820 = vunpack.c.l.b16 %v1781
        %v1821 = vunpack.c.l.b16 %v1782
        %v1822 = vunpack.c.l.b16 %v1783
        %v1823 = vunpack.c.l.b16 %v1784
        %v1824 = vunpack.c.l.b16 %v1785
        %v1825 = vunpack.c.l.b16 %v1786
        %v1826 = vunpack.c.l.b16 %v1787
        %v1827 = vpack.c.b16 %v1812, %v1811
        %v1828 = vpack.c.b16 %v1814, %v1813
        %v1829 = vpack.c.b16 %v1816, %v1815
        %v1830 = vpack.c.b16 %v1818, %v1817
        %v1831 = vpack.c.b16 %v1820, %v1819
        %v1832 = vpack.c.b16 %v1822, %v1821
        %v1833 = vpack.c.b16 %v1824, %v1823
        %v1834 = vpack.c.b16 %v1826, %v1825
        %1843 = vmatprep.subr.bf16.mxu0 0
        %1844 = vmatpush1.bf16.msra.mxu0 %v1834
        %1845 = vmatprep.subr.bf16.mxu0 0
        %1846 = vmatpush1.bf16.msra.mxu0 %v1833
        %1847 = vmatprep.subr.bf16.mxu0 0
        %1848 = vmatpush1.bf16.msra.mxu0 %v1832
        %1849 = vmatprep.subr.bf16.mxu0 0
        %1850 = vmatpush1.bf16.msra.mxu0 %v1831
        %1851 = vmatprep.subr.bf16.mxu0 0
        %1852 = vmatpush1.bf16.msra.mxu0 %v1830
        %1853 = vmatprep.subr.bf16.mxu0 0
        %1854 = vmatpush1.bf16.msra.mxu0 %v1829
        %1855 = vmatprep.subr.bf16.mxu0 0
        %1856 = vmatpush1.bf16.msra.mxu0 %v1828
        %1857 = vmatprep.subr.bf16.mxu0 0
        %1858 = vmatpush1.bf16.msra.mxu0 %v1827
        %1859 = vmatprep.subr.bf16.mxu0 0
        %1860 = vmatpush2.bf16.msra.mxu0 0
        %1861 = vmatprep.subr.bf16.mxu0 0
        %1862 = vmatpush2.bf16.msra.mxu0 0
        %1863 = vmatprep.subr.bf16.mxu0 0
        %1864 = vmatpush2.bf16.msra.mxu0 0
        %1865 = vmatprep.subr.bf16.mxu0 0
        %1866 = vmatpush2.bf16.msra.mxu0 0
        %1867 = vmatprep.subr.bf16.mxu0 0
        %1868 = vmatpush2.bf16.msra.mxu0 0
        %1869 = vmatprep.subr.bf16.mxu0 0
        %1870 = vmatpush2.bf16.msra.mxu0 0
        %1871 = vmatprep.subr.bf16.mxu0 0
        %1872 = vmatpush2.bf16.msra.mxu0 0
        %1873 = vmatprep.subr.bf16.mxu0 0
        %1874 = vmatpush2.bf16.msra.mxu0 0
        %1875 = vmatprep.mubr.bf16.mxu0 0
        %1876 = vmatmul.mubr.bf16.gmra.mxu0 %v1771
        %v1877 = vpop.f32.mrf.mxu0
        %v1878 = vadd.f32 %v1793, %v1877
        %v1879 = vpop.f32.mrf.mxu0
        %v1880 = vpop.f32.mrf.mxu0
        %v1881 = vadd.f32 %v1793, %v1880
        %v1882 = vpop.f32.mrf.mxu0
        %1883 = vdwg.mxu0
        %v1884 = vadd.f32 %v1603, %v1878
        %v1885 = vadd.f32 %v1604, %v1881
        %s1886 = scalar_lea.vmem %s11, 2
        %v1887 = vld [vmem:[%s1886] sm:$0x1]
        %s1888 = scalar_lea.vmem %s13, 2
        %v1889 = vld [vmem:[%s1888] sm:$0x1]
        %v1890 = vsel %vm1122, %v1884, 0.0
        %1891 = vadd.xlane.f32.xlu0 %v1890
        %v1892 = vpop.xlane.xlu0 %1891
        %v1893 = vsel %vm1122, %v1885, 0.0
        %1894 = vadd.xlane.f32.xlu0 %v1893
        %v1895 = vpop.xlane.xlu0 %1894
        %v1896 = vmul.f32 %v1892, %v1129
        %v1897 = vmul.f32 %v1895, %v1129
        %v1898 = vsub.f32 %v1884, %v1896
        %v1899 = vsub.f32 %v1885, %v1897
        %v1900 = vmul.f32 %v1898, %v1898
        %v1901 = vmul.f32 %v1899, %v1899
        %v1902 = vsel %vm1122, %v1900, 0.0
        %1903 = vadd.xlane.f32.xlu0 %v1902
        %v1904 = vpop.xlane.xlu0 %1903
        %v1905 = vsel %vm1122, %v1901, 0.0
        %1906 = vadd.xlane.f32.xlu0 %v1905
        %v1907 = vpop.xlane.xlu0 %1906
        %v1908 = vmul.f32 %v1904, %v1129
        %v1909 = vmul.f32 %v1907, %v1129
        %v1910 = vadd.f32 %v1908, 1e-05
        %v1911 = vadd.f32 %v1909, 1e-05
        %v1912 = vrsqrt.pop %v1910
        %v1913 = vrsqrt.pop %v1911
        %v1914 = vmul.f32 %v1898, %v1912
        %v1915 = vmul.f32 %v1899, %v1913
        %v1917 = vlaneseq
        %v1918 = vshrl.u32 %v1917, 7
        %v1919 = vsub.s32 0, %v1918
        %v1920 = vrot.slane %v1887, %v1919
        %v1922 = vmul.f32 %v1914, %v1920
        %v1923 = vmul.f32 %v1915, %v1920
        %v1925 = vlaneseq
        %v1926 = vshrl.u32 %v1925, 7
        %v1927 = vsub.s32 0, %v1926
        %v1928 = vrot.slane %v1889, %v1927
        %v1930 = vadd.f32 %v1922, %v1928
        %v1931 = vadd.f32 %v1923, %v1928
        %v1932 = vpack.c.bf16 %v1931, %v1930
        %s1933 = scalar_lea.vmem %s15, 16
        %v1934 = vld [vmem:[%s1933] sm:$0xf]
        %v1935 = vld [vmem:[%s1933 + $0x4] sm:$0xf]
        %v1936 = vld [vmem:[%s1933 + $0x8] sm:$0xf]
        %v1937 = vld [vmem:[%s1933 + $0xc] sm:$0xf]
        %s1938 = scalar_lea.vmem %s17, 1
        %v1939 = vld [vmem:[%s1938] sm:$0x1]
        %v1941 = vlaneseq
        %v1942 = vshrl.u32 %v1941, 7
        %v1943 = vsub.s32 0, %v1942
        %v1944 = vrot.slane %v1939, %v1943
        %v1950 = vunpack.c.l.b16 %v1934
        %v1951 = vunpack.c.l.b16 %v1935
        %v1952 = vunpack.c.l.b16 %v1936
        %v1953 = vunpack.c.l.b16 %v1937
        %v1954 = vpack.c.b16 %v1951, %v1950
        %v1955 = vpack.c.b16 %v1953, %v1952
        %v1959 = vsel %vm1122, %v1932, 0
        %1961 = vmatprep.subr.bf16.mxu0 0
        %1962 = vmatpush1.bf16.msra.mxu0 0
        %1963 = vmatprep.subr.bf16.mxu0 0
        %1964 = vmatpush1.bf16.msra.mxu0 0
        %1965 = vmatprep.subr.bf16.mxu0 0
        %1966 = vmatpush1.bf16.msra.mxu0 0
        %1967 = vmatprep.subr.bf16.mxu0 0
        %1968 = vmatpush1.bf16.msra.mxu0 0
        %1969 = vmatprep.subr.bf16.mxu0 0
        %1970 = vmatpush1.bf16.msra.mxu0 0
        %1971 = vmatprep.subr.bf16.mxu0 0
        %1972 = vmatpush1.bf16.msra.mxu0 0
        %1973 = vmatprep.subr.bf16.mxu0 0
        %1974 = vmatpush1.bf16.msra.mxu0 %v1955
        %1975 = vmatprep.subr.bf16.mxu0 0
        %1976 = vmatpush1.bf16.msra.mxu0 %v1954
        %1977 = vmatprep.subr.bf16.mxu0 0
        %1978 = vmatpush2.bf16.msra.mxu0 0
        %1979 = vmatprep.subr.bf16.mxu0 0
        %1980 = vmatpush2.bf16.msra.mxu0 0
        %1981 = vmatprep.subr.bf16.mxu0 0
        %1982 = vmatpush2.bf16.msra.mxu0 0
        %1983 = vmatprep.subr.bf16.mxu0 0
        %1984 = vmatpush2.bf16.msra.mxu0 0
        %1985 = vmatprep.subr.bf16.mxu0 0
        %1986 = vmatpush2.bf16.msra.mxu0 0
        %1987 = vmatprep.subr.bf16.mxu0 0
        %1988 = vmatpush2.bf16.msra.mxu0 0
        %1989 = vmatprep.subr.bf16.mxu0 0
        %1990 = vmatpush2.bf16.msra.mxu0 0
        %1991 = vmatprep.subr.bf16.mxu0 0
        %1992 = vmatpush2.bf16.msra.mxu0 0
        %1993 = vmatprep.mubr.bf16.mxu0 0
        %1994 = vmatmul.mubr.bf16.gmra.mxu0 %v1959
        %v1995 = vpop.f32.mrf.mxu0
        %v1996 = vadd.f32 %v1944, %v1995
        %v1997 = vpop.f32.mrf.mxu0
        %v1998 = vpop.f32.mrf.mxu0
        %v1999 = vadd.f32 %v1944, %v1998
        %v2000 = vpop.f32.mrf.mxu0
        %2001 = vdwg.mxu0
        %v2002 = vpack.c.bf16 %v1999, %v1996
        %2004 = vrot.lane.b32.xlu0 %v2002, 112
        %v2005 = vpop.permute.xlu0 %2004
        %s2006 = scalar_lea.vmem %s23, 32
        %v2007 = vld [vmem:[%s2006] sm:$0xff]
        %v2008 = vld [vmem:[%s2006 + $0x8] sm:$0xff]
        %v2009 = vld [vmem:[%s2006 + $0x10] sm:$0xff]
        %v2010 = vld [vmem:[%s2006 + $0x18] sm:$0xff]
        %2011 = vrot.lane.b32.xlu0 %v2002, 96
        %v2012 = vpop.permute.xlu0 %2011
        %v2014 = vsel %vm1288, %v2002, 0
        %v2017 = vsel %vm1288, %v2012, 0
        %2019 = vmatprep.subr.bf16.mxu0 0
        %2020 = vmatpush1.bf16.xpose.msra.mxu0 0
        %2021 = vmatprep.subr.bf16.mxu0 0
        %2022 = vmatpush1.bf16.xpose.msra.mxu0 0
        %2023 = vmatprep.subr.bf16.mxu0 0
        %2024 = vmatpush1.bf16.xpose.msra.mxu0 0
        %2025 = vmatprep.subr.bf16.mxu0 0
        %2026 = vmatpush1.bf16.xpose.msra.mxu0 0
        %2027 = vmatprep.subr.bf16.mxu0 0
        %2028 = vmatpush1.bf16.xpose.msra.mxu0 0
        %2029 = vmatprep.subr.bf16.mxu0 0
        %2030 = vmatpush1.bf16.xpose.msra.mxu0 0
        %2031 = vmatprep.subr.bf16.mxu0 0
        %2032 = vmatpush1.bf16.xpose.msra.mxu0 0
        %2033 = vmatprep.subr.bf16.mxu0 0
        %2034 = vmatpush1.bf16.xpose.msra.mxu0 %v2017
        %2035 = vmatprep.subr.bf16.mxu0 0
        %2036 = vmatpush2.bf16.xpose.msra.mxu0 0
        %2037 = vmatprep.subr.bf16.mxu0 0
        %2038 = vmatpush2.bf16.xpose.msra.mxu0 0
        %2039 = vmatprep.subr.bf16.mxu0 0
        %2040 = vmatpush2.bf16.xpose.msra.mxu0 0
        %2041 = vmatprep.subr.bf16.mxu0 0
        %2042 = vmatpush2.bf16.xpose.msra.mxu0 0
        %2043 = vmatprep.subr.bf16.mxu0 0
        %2044 = vmatpush2.bf16.xpose.msra.mxu0 0
        %2045 = vmatprep.subr.bf16.mxu0 0
        %2046 = vmatpush2.bf16.xpose.msra.mxu0 0
        %2047 = vmatprep.subr.bf16.mxu0 0
        %2048 = vmatpush2.bf16.xpose.msra.mxu0 0
        %2049 = vmatprep.subr.bf16.mxu0 0
        %2050 = vmatpush2.bf16.xpose.msra.mxu0 0
        %2051 = vmatprep.mubr.bf16.mxu0 0
        %2052 = vmatmul.mubr.bf16.gmra.mxu0 %v2014
        %v2053 = vpop.f32.mrf.mxu0
        %v2054 = vadd.f32 %v2007, %v2053
        %v2055 = vpop.f32.mrf.mxu0
        %v2056 = vpop.f32.mrf.mxu0
        %v2057 = vadd.f32 %v2008, %v2056
        %v2058 = vpop.f32.mrf.mxu0
        %2059 = vdwg.mxu0
        %2060 = vrot.lane.b32.xlu0 %v2005, 96
        %v2061 = vpop.permute.xlu0 %2060
        %v2063 = vsel %vm1288, %v2005, 0
        %v2066 = vsel %vm1288, %v2061, 0
        %2068 = vmatprep.subr.bf16.mxu0 0
        %2069 = vmatpush1.bf16.xpose.msra.mxu0 0
        %2070 = vmatprep.subr.bf16.mxu0 0
        %2071 = vmatpush1.bf16.xpose.msra.mxu0 0
        %2072 = vmatprep.subr.bf16.mxu0 0
        %2073 = vmatpush1.bf16.xpose.msra.mxu0 0
        %2074 = vmatprep.subr.bf16.mxu0 0
        %2075 = vmatpush1.bf16.xpose.msra.mxu0 0
        %2076 = vmatprep.subr.bf16.mxu0 0
        %2077 = vmatpush1.bf16.xpose.msra.mxu0 0
        %2078 = vmatprep.subr.bf16.mxu0 0
        %2079 = vmatpush1.bf16.xpose.msra.mxu0 0
        %2080 = vmatprep.subr.bf16.mxu0 0
        %2081 = vmatpush1.bf16.xpose.msra.mxu0 0
        %2082 = vmatprep.subr.bf16.mxu0 0
        %2083 = vmatpush1.bf16.xpose.msra.mxu0 %v2066
        %2084 = vmatprep.subr.bf16.mxu0 0
        %2085 = vmatpush2.bf16.xpose.msra.mxu0 0
        %2086 = vmatprep.subr.bf16.mxu0 0
        %2087 = vmatpush2.bf16.xpose.msra.mxu0 0
        %2088 = vmatprep.subr.bf16.mxu0 0
        %2089 = vmatpush2.bf16.xpose.msra.mxu0 0
        %2090 = vmatprep.subr.bf16.mxu0 0
        %2091 = vmatpush2.bf16.xpose.msra.mxu0 0
        %2092 = vmatprep.subr.bf16.mxu0 0
        %2093 = vmatpush2.bf16.xpose.msra.mxu0 0
        %2094 = vmatprep.subr.bf16.mxu0 0
        %2095 = vmatpush2.bf16.xpose.msra.mxu0 0
        %2096 = vmatprep.subr.bf16.mxu0 0
        %2097 = vmatpush2.bf16.xpose.msra.mxu0 0
        %2098 = vmatprep.subr.bf16.mxu0 0
        %2099 = vmatpush2.bf16.xpose.msra.mxu0 0
        %2100 = vmatprep.mubr.bf16.mxu0 0
        %2101 = vmatmul.mubr.bf16.gmra.mxu0 %v2063
        %v2102 = vpop.f32.mrf.mxu0
        %v2103 = vadd.f32 %v2009, %v2102
        %v2104 = vpop.f32.mrf.mxu0
        %v2105 = vpop.f32.mrf.mxu0
        %v2106 = vadd.f32 %v2010, %v2105
        %v2107 = vpop.f32.mrf.mxu0
        %2108 = vdwg.mxu0
        %v2109 = vsel %vm1288, %v2054, -inf
        %2110 = vmax.xlane.f32.xlu0 %v2109
        %v2111 = vpop.xlane.xlu0 %2110
        %v2112 = vsel %vm1288, %v2057, -inf
        %2113 = vmax.xlane.f32.xlu0 %v2112
        %v2114 = vpop.xlane.xlu0 %2113
        %v2115 = vsel %vm1288, %v2103, -inf
        %2116 = vmax.xlane.f32.xlu0 %v2115
        %v2117 = vpop.xlane.xlu0 %2116
        %v2118 = vsel %vm1288, %v2106, -inf
        %2119 = vmax.xlane.f32.xlu0 %v2118
        %v2120 = vpop.xlane.xlu0 %2119
        %v2121 = vsub.f32 %v2054, %v2111
        %v2122 = vsub.f32 %v2057, %v2114
        %v2123 = vsub.f32 %v2103, %v2117
        %v2124 = vsub.f32 %v2106, %v2120
        %v2125 = vmul.f32 %v2121, 1.442695
        %v2126 = vpow.pop %v2125
        %v2127 = vmul.f32 %v2122, 1.442695
        %v2128 = vpow.pop %v2127
        %v2129 = vmul.f32 %v2123, 1.442695
        %v2130 = vpow.pop %v2129
        %v2131 = vmul.f32 %v2124, 1.442695
        %v2132 = vpow.pop %v2131
        %v2133 = vsel %vm1288, %v2126, 0.0
        %2134 = vadd.xlane.f32.xlu0 %v2133
        %v2135 = vpop.xlane.xlu0 %2134
        %v2136 = vsel %vm1288, %v2128, 0.0
        %2137 = vadd.xlane.f32.xlu0 %v2136
        %v2138 = vpop.xlane.xlu0 %2137
        %v2139 = vsel %vm1288, %v2130, 0.0
        %2140 = vadd.xlane.f32.xlu0 %v2139
        %v2141 = vpop.xlane.xlu0 %2140
        %v2142 = vsel %vm1288, %v2132, 0.0
        %2143 = vadd.xlane.f32.xlu0 %v2142
        %v2144 = vpop.xlane.xlu0 %2143
        %v2145 = vrcp.pop %v2135
        %v2146 = vrcp.pop %v2138
        %v2147 = vrcp.pop %v2141
        %v2148 = vrcp.pop %v2144
        %v2149 = vmul.f32 %v2126, %v2145
        %v2150 = vmul.f32 %v2128, %v2146
        %v2151 = vmul.f32 %v2130, %v2147
        %v2152 = vmul.f32 %v2132, %v2148
        %v2153 = vpack.c.bf16 %v2150, %v2149
        %v2154 = vpack.c.bf16 %v2152, %v2151
        %2155 = vrot.lane.b32.xlu0 %v2002, 64
        %v2156 = vpop.permute.xlu0 %2155
        %v2159 = vsel %vm1288, %v2153, 0
        %2161 = vmatprep.subr.bf16.mxu0 0
        %2162 = vmatpush1.bf16.msra.mxu0 0
        %2163 = vmatprep.subr.bf16.mxu0 0
        %2164 = vmatpush1.bf16.msra.mxu0 0
        %2165 = vmatprep.subr.bf16.mxu0 0
        %2166 = vmatpush1.bf16.msra.mxu0 0
        %2167 = vmatprep.subr.bf16.mxu0 0
        %2168 = vmatpush1.bf16.msra.mxu0 0
        %2169 = vmatprep.subr.bf16.mxu0 0
        %2170 = vmatpush1.bf16.msra.mxu0 0
        %2171 = vmatprep.subr.bf16.mxu0 0
        %2172 = vmatpush1.bf16.msra.mxu0 0
        %2173 = vmatprep.subr.bf16.mxu0 0
        %2174 = vmatpush1.bf16.msra.mxu0 0
        %2175 = vmatprep.subr.bf16.mxu0 0
        %2176 = vmatpush1.bf16.msra.mxu0 %v2156
        %2177 = vmatprep.subr.bf16.mxu0 0
        %2178 = vmatpush2.bf16.msra.mxu0 0
        %2179 = vmatprep.subr.bf16.mxu0 0
        %2180 = vmatpush2.bf16.msra.mxu0 0
        %2181 = vmatprep.subr.bf16.mxu0 0
        %2182 = vmatpush2.bf16.msra.mxu0 0
        %2183 = vmatprep.subr.bf16.mxu0 0
        %2184 = vmatpush2.bf16.msra.mxu0 0
        %2185 = vmatprep.subr.bf16.mxu0 0
        %2186 = vmatpush2.bf16.msra.mxu0 0
        %2187 = vmatprep.subr.bf16.mxu0 0
        %2188 = vmatpush2.bf16.msra.mxu0 0
        %2189 = vmatprep.subr.bf16.mxu0 0
        %2190 = vmatpush2.bf16.msra.mxu0 0
        %2191 = vmatprep.subr.bf16.mxu0 0
        %2192 = vmatpush2.bf16.msra.mxu0 0
        %2193 = vmatprep.mubr.bf16.mxu0 0
        %2194 = vmatmul.mubr.bf16.gmra.mxu0 %v2159
        %v2195 = vpop.f32.mrf.mxu0
        %v2196 = vadd.f32 0.0, %v2195
        %v2197 = vpop.f32.mrf.mxu0
        %v2198 = vpop.f32.mrf.mxu0
        %v2199 = vadd.f32 0.0, %v2198
        %v2200 = vpop.f32.mrf.mxu0
        %2201 = vdwg.mxu0
        %2202 = vrot.lane.b32.xlu0 %v2005, 64
        %v2203 = vpop.permute.xlu0 %2202
        %v2206 = vsel %vm1288, %v2154, 0
        %2208 = vmatprep.subr.bf16.mxu0 0
        %2209 = vmatpush1.bf16.msra.mxu0 0
        %2210 = vmatprep.subr.bf16.mxu0 0
        %2211 = vmatpush1.bf16.msra.mxu0 0
        %2212 = vmatprep.subr.bf16.mxu0 0
        %2213 = vmatpush1.bf16.msra.mxu0 0
        %2214 = vmatprep.subr.bf16.mxu0 0
        %2215 = vmatpush1.bf16.msra.mxu0 0
        %2216 = vmatprep.subr.bf16.mxu0 0
        %2217 = vmatpush1.bf16.msra.mxu0 0
        %2218 = vmatprep.subr.bf16.mxu0 0
        %2219 = vmatpush1.bf16.msra.mxu0 0
        %2220 = vmatprep.subr.bf16.mxu0 0
        %2221 = vmatpush1.bf16.msra.mxu0 0
        %2222 = vmatprep.subr.bf16.mxu0 0
        %2223 = vmatpush1.bf16.msra.mxu0 %v2203
        %2224 = vmatprep.subr.bf16.mxu0 0
        %2225 = vmatpush2.bf16.msra.mxu0 0
        %2226 = vmatprep.subr.bf16.mxu0 0
        %2227 = vmatpush2.bf16.msra.mxu0 0
        %2228 = vmatprep.subr.bf16.mxu0 0
        %2229 = vmatpush2.bf16.msra.mxu0 0
        %2230 = vmatprep.subr.bf16.mxu0 0
        %2231 = vmatpush2.bf16.msra.mxu0 0
        %2232 = vmatprep.subr.bf16.mxu0 0
        %2233 = vmatpush2.bf16.msra.mxu0 0
        %2234 = vmatprep.subr.bf16.mxu0 0
        %2235 = vmatpush2.bf16.msra.mxu0 0
        %2236 = vmatprep.subr.bf16.mxu0 0
        %2237 = vmatpush2.bf16.msra.mxu0 0
        %2238 = vmatprep.subr.bf16.mxu0 0
        %2239 = vmatpush2.bf16.msra.mxu0 0
        %2240 = vmatprep.mubr.bf16.mxu0 0
        %2241 = vmatmul.mubr.bf16.gmra.mxu0 %v2206
        %v2242 = vpop.f32.mrf.mxu0
        %v2243 = vadd.f32 0.0, %v2242
        %v2244 = vpop.f32.mrf.mxu0
        %v2245 = vpop.f32.mrf.mxu0
        %v2246 = vadd.f32 0.0, %v2245
        %v2247 = vpop.f32.mrf.mxu0
        %2248 = vdwg.mxu0
        %2251 = vrot.lane.b32.xlu0 %v2243, 16
        %v2252 = vpop.permute.xlu0 %2251
        %2253 = vrot.lane.b32.xlu0 %v2246, 16
        %v2254 = vpop.permute.xlu0 %2253
        %v2257 = vsel %vm1288, %v2196, %v2252
        %v2258 = vsel %vm1288, %v2199, %v2254
        %v2259 = vpack.c.bf16 %v2258, %v2257
        %s2260 = scalar_lea.vmem %s19, 16
        %v2261 = vld [vmem:[%s2260] sm:$0xf]
        %v2262 = vld [vmem:[%s2260 + $0x4] sm:$0xf]
        %v2263 = vld [vmem:[%s2260 + $0x8] sm:$0xf]
        %v2264 = vld [vmem:[%s2260 + $0xc] sm:$0xf]
        %s2265 = scalar_lea.vmem %s21, 1
        %v2266 = vld [vmem:[%s2265] sm:$0x1]
        %v2268 = vlaneseq
        %v2269 = vshrl.u32 %v2268, 7
        %v2270 = vsub.s32 0, %v2269
        %v2271 = vrot.slane %v2266, %v2270
        %v2277 = vunpack.c.l.b16 %v2261
        %v2278 = vunpack.c.l.b16 %v2262
        %v2279 = vunpack.c.l.b16 %v2263
        %v2280 = vunpack.c.l.b16 %v2264
        %v2281 = vpack.c.b16 %v2278, %v2277
        %v2282 = vpack.c.b16 %v2280, %v2279
        %v2286 = vsel %vm1122, %v2259, 0
        %2288 = vmatprep.subr.bf16.mxu0 0
        %2289 = vmatpush1.bf16.msra.mxu0 0
        %2290 = vmatprep.subr.bf16.mxu0 0
        %2291 = vmatpush1.bf16.msra.mxu0 0
        %2292 = vmatprep.subr.bf16.mxu0 0
        %2293 = vmatpush1.bf16.msra.mxu0 0
        %2294 = vmatprep.subr.bf16.mxu0 0
        %2295 = vmatpush1.bf16.msra.mxu0 0
        %2296 = vmatprep.subr.bf16.mxu0 0
        %2297 = vmatpush1.bf16.msra.mxu0 0
        %2298 = vmatprep.subr.bf16.mxu0 0
        %2299 = vmatpush1.bf16.msra.mxu0 0
        %2300 = vmatprep.subr.bf16.mxu0 0
        %2301 = vmatpush1.bf16.msra.mxu0 %v2282
        %2302 = vmatprep.subr.bf16.mxu0 0
        %2303 = vmatpush1.bf16.msra.mxu0 %v2281
        %2304 = vmatprep.subr.bf16.mxu0 0
        %2305 = vmatpush2.bf16.msra.mxu0 0
        %2306 = vmatprep.subr.bf16.mxu0 0
        %2307 = vmatpush2.bf16.msra.mxu0 0
        %2308 = vmatprep.subr.bf16.mxu0 0
        %2309 = vmatpush2.bf16.msra.mxu0 0
        %2310 = vmatprep.subr.bf16.mxu0 0
        %2311 = vmatpush2.bf16.msra.mxu0 0
        %2312 = vmatprep.subr.bf16.mxu0 0
        %2313 = vmatpush2.bf16.msra.mxu0 0
        %2314 = vmatprep.subr.bf16.mxu0 0
        %2315 = vmatpush2.bf16.msra.mxu0 0
        %2316 = vmatprep.subr.bf16.mxu0 0
        %2317 = vmatpush2.bf16.msra.mxu0 0
        %2318 = vmatprep.subr.bf16.mxu0 0
        %2319 = vmatpush2.bf16.msra.mxu0 0
        %2320 = vmatprep.mubr.bf16.mxu0 0
        %2321 = vmatmul.mubr.bf16.gmra.mxu0 %v2286
        %v2322 = vpop.f32.mrf.mxu0
        %v2323 = vadd.f32 %v2271, %v2322
        %v2324 = vpop.f32.mrf.mxu0
        %v2325 = vpop.f32.mrf.mxu0
        %v2326 = vadd.f32 %v2271, %v2325
        %v2327 = vpop.f32.mrf.mxu0
        %2328 = vdwg.mxu0
        %v2329 = vadd.f32 %v1884, %v2323
        %v2330 = vadd.f32 %v1885, %v2326
        %s2331 = scalar_lea.vmem %s11, 3
        %v2332 = vld [vmem:[%s2331] sm:$0x1]
        %s2333 = scalar_lea.vmem %s13, 3
        %v2334 = vld [vmem:[%s2333] sm:$0x1]
        %v2335 = vsel %vm1122, %v2329, 0.0
        %2336 = vadd.xlane.f32.xlu0 %v2335
        %v2337 = vpop.xlane.xlu0 %2336
        %v2338 = vsel %vm1122, %v2330, 0.0
        %2339 = vadd.xlane.f32.xlu0 %v2338
        %v2340 = vpop.xlane.xlu0 %2339
        %v2341 = vmul.f32 %v2337, %v1129
        %v2342 = vmul.f32 %v2340, %v1129
        %v2343 = vsub.f32 %v2329, %v2341
        %v2344 = vsub.f32 %v2330, %v2342
        %v2345 = vmul.f32 %v2343, %v2343
        %v2346 = vmul.f32 %v2344, %v2344
        %v2347 = vsel %vm1122, %v2345, 0.0
        %2348 = vadd.xlane.f32.xlu0 %v2347
        %v2349 = vpop.xlane.xlu0 %2348
        %v2350 = vsel %vm1122, %v2346, 0.0
        %2351 = vadd.xlane.f32.xlu0 %v2350
        %v2352 = vpop.xlane.xlu0 %2351
        %v2353 = vmul.f32 %v2349, %v1129
        %v2354 = vmul.f32 %v2352, %v1129
        %v2355 = vadd.f32 %v2353, 1e-05
        %v2356 = vadd.f32 %v2354, 1e-05
        %v2357 = vrsqrt.pop %v2355
        %v2358 = vrsqrt.pop %v2356
        %v2359 = vmul.f32 %v2343, %v2357
        %v2360 = vmul.f32 %v2344, %v2358
        %v2362 = vlaneseq
        %v2363 = vshrl.u32 %v2362, 7
        %v2364 = vsub.s32 0, %v2363
        %v2365 = vrot.slane %v2332, %v2364
        %v2367 = vmul.f32 %v2359, %v2365
        %v2368 = vmul.f32 %v2360, %v2365
        %v2370 = vlaneseq
        %v2371 = vshrl.u32 %v2370, 7
        %v2372 = vsub.s32 0, %v2371
        %v2373 = vrot.slane %v2334, %v2372
        %v2375 = vadd.f32 %v2367, %v2373
        %v2376 = vadd.f32 %v2368, %v2373
        %v2377 = vpack.c.bf16 %v2376, %v2375
        %s2378 = scalar_lea.vmem %s25, 16
        %v2379 = vld [vmem:[%s2378] sm:$0xf]
        %v2380 = vld [vmem:[%s2378 + $0x4] sm:$0xf]
        %v2381 = vld [vmem:[%s2378 + $0x8] sm:$0xf]
        %v2382 = vld [vmem:[%s2378 + $0xc] sm:$0xf]
        %s2383 = scalar_lea.vmem %s27, 1
        %v2384 = vld [vmem:[%s2383] sm:$0x1]
        %v2386 = vlaneseq
        %v2387 = vshrl.u32 %v2386, 7
        %v2388 = vsub.s32 0, %v2387
        %v2389 = vrot.slane %v2384, %v2388
        %v2395 = vunpack.c.l.b16 %v2379
        %v2396 = vunpack.c.l.b16 %v2380
        %v2397 = vunpack.c.l.b16 %v2381
        %v2398 = vunpack.c.l.b16 %v2382
        %v2399 = vpack.c.b16 %v2396, %v2395
        %v2400 = vpack.c.b16 %v2398, %v2397
        %v2404 = vsel %vm1122, %v2377, 0
        %2406 = vmatprep.subr.bf16.mxu0 0
        %2407 = vmatpush1.bf16.msra.mxu0 0
        %2408 = vmatprep.subr.bf16.mxu0 0
        %2409 = vmatpush1.bf16.msra.mxu0 0
        %2410 = vmatprep.subr.bf16.mxu0 0
        %2411 = vmatpush1.bf16.msra.mxu0 0
        %2412 = vmatprep.subr.bf16.mxu0 0
        %2413 = vmatpush1.bf16.msra.mxu0 0
        %2414 = vmatprep.subr.bf16.mxu0 0
        %2415 = vmatpush1.bf16.msra.mxu0 0
        %2416 = vmatprep.subr.bf16.mxu0 0
        %2417 = vmatpush1.bf16.msra.mxu0 0
        %2418 = vmatprep.subr.bf16.mxu0 0
        %2419 = vmatpush1.bf16.msra.mxu0 %v2400
        %2420 = vmatprep.subr.bf16.mxu0 0
        %2421 = vmatpush1.bf16.msra.mxu0 %v2399
        %2422 = vmatprep.subr.bf16.mxu0 0
        %2423 = vmatpush2.bf16.msra.mxu0 0
        %2424 = vmatprep.subr.bf16.mxu0 0
        %2425 = vmatpush2.bf16.msra.mxu0 0
        %2426 = vmatprep.subr.bf16.mxu0 0
        %2427 = vmatpush2.bf16.msra.mxu0 0
        %2428 = vmatprep.subr.bf16.mxu0 0
        %2429 = vmatpush2.bf16.msra.mxu0 0
        %2430 = vmatprep.subr.bf16.mxu0 0
        %2431 = vmatpush2.bf16.msra.mxu0 0
        %2432 = vmatprep.subr.bf16.mxu0 0
        %2433 = vmatpush2.bf16.msra.mxu0 0
        %2434 = vmatprep.subr.bf16.mxu0 0
        %2435 = vmatpush2.bf16.msra.mxu0 0
        %2436 = vmatprep.subr.bf16.mxu0 0
        %2437 = vmatpush2.bf16.msra.mxu0 0
        %2438 = vmatprep.mubr.bf16.mxu0 0
        %2439 = vmatmul.mubr.bf16.gmra.mxu0 %v2404
        %v2440 = vpop.f32.mrf.mxu0
        %v2441 = vadd.f32 %v2389, %v2440
        %v2442 = vpop.f32.mrf.mxu0
        %v2443 = vpop.f32.mrf.mxu0
        %v2444 = vadd.f32 %v2389, %v2443
        %v2445 = vpop.f32.mrf.mxu0
        %2446 = vdwg.mxu0
        %v2447 = vmul.f32 %v2441, 0.5
        %v2448 = vmul.f32 %v2444, 0.5
        %v2449 = vmul.f32 %v2441, 0.70710677
        %v2450 = vmul.f32 %v2444, 0.70710677
        %vm2451 = vcmp.ge.f32.partialorder %v2449, 0.0
        %vm2452 = vcmp.ge.f32.partialorder %v2450, 0.0
        %v2453 = vsel %vm2451, 1.0, -1.0
        %v2454 = vsel %vm2452, 1.0, -1.0
        %v2455 = vand.u32 2147483647, %v2449
        %v2456 = vand.u32 2147483647, %v2450
        %v2457 = vmul.f32 %v2455, 0.3275911
        %v2458 = vmul.f32 %v2456, 0.3275911
        %v2459 = vadd.f32 %v2457, 1.0
        %v2460 = vadd.f32 %v2458, 1.0
        %v2461 = vrcp.pop %v2459
        %v2462 = vrcp.pop %v2460
        %v2463 = vmul.f32 %v2461, 1.0614054
        %v2464 = vmul.f32 %v2462, 1.0614054
        %v2465 = vadd.f32 %v2463, -1.4531521
        %v2466 = vadd.f32 %v2464, -1.4531521
        %v2467 = vmul.f32 %v2461, %v2465
        %v2468 = vmul.f32 %v2462, %v2466
        %v2469 = vadd.f32 %v2467, 1.4214138
        %v2470 = vadd.f32 %v2468, 1.4214138
        %v2471 = vmul.f32 %v2461, %v2469
        %v2472 = vmul.f32 %v2462, %v2470
        %v2473 = vadd.f32 %v2471, -0.28449672
        %v2474 = vadd.f32 %v2472, -0.28449672
        %v2475 = vmul.f32 %v2461, %v2473
        %v2476 = vmul.f32 %v2462, %v2474
        %v2477 = vadd.f32 %v2475, 0.2548296
        %v2478 = vadd.f32 %v2476, 0.2548296
        %v2479 = vmul.f32 %v2461, %v2477
        %v2480 = vmul.f32 %v2462, %v2478
        %v2481 = vsub.f32 0.0, %v2455
        %v2482 = vsub.f32 0.0, %v2456
        %v2483 = vmul.f32 %v2481, %v2455
        %v2484 = vmul.f32 %v2482, %v2456
        %v2485 = vmul.f32 %v2483, 1.442695
        %v2486 = vpow.pop %v2485
        %v2487 = vmul.f32 %v2484, 1.442695
        %v2488 = vpow.pop %v2487
        %v2489 = vmul.f32 %v2479, %v2486
        %v2490 = vmul.f32 %v2480, %v2488
        %v2491 = vsub.f32 1.0, %v2489
        %v2492 = vsub.f32 1.0, %v2490
        %v2493 = vmul.f32 %v2453, %v2491
        %v2494 = vmul.f32 %v2454, %v2492
        %v2495 = vadd.f32 %v2493, 1.0
        %v2496 = vadd.f32 %v2494, 1.0
        %v2497 = vmul.f32 %v2447, %v2495
        %v2498 = vmul.f32 %v2448, %v2496
        %v2499 = vpack.c.bf16 %v2498, %v2497
        %s2500 = scalar_lea.vmem %s29, 64
        %v2501 = vld [vmem:[%s2500] sm:$0xf]
        %v2502 = vld [vmem:[%s2500 + $0x4] sm:$0xf]
        %v2503 = vld [vmem:[%s2500 + $0x8] sm:$0xf]
        %v2504 = vld [vmem:[%s2500 + $0xc] sm:$0xf]
        %v2505 = vld [vmem:[%s2500 + $0x10] sm:$0xf]
        %v2506 = vld [vmem:[%s2500 + $0x14] sm:$0xf]
        %v2507 = vld [vmem:[%s2500 + $0x18] sm:$0xf]
        %v2508 = vld [vmem:[%s2500 + $0x1c] sm:$0xf]
        %v2509 = vld [vmem:[%s2500 + $0x20] sm:$0xf]
        %v2510 = vld [vmem:[%s2500 + $0x24] sm:$0xf]
        %v2511 = vld [vmem:[%s2500 + $0x28] sm:$0xf]
        %v2512 = vld [vmem:[%s2500 + $0x2c] sm:$0xf]
        %v2513 = vld [vmem:[%s2500 + $0x30] sm:$0xf]
        %v2514 = vld [vmem:[%s2500 + $0x34] sm:$0xf]
        %v2515 = vld [vmem:[%s2500 + $0x38] sm:$0xf]
        %v2516 = vld [vmem:[%s2500 + $0x3c] sm:$0xf]
        %s2517 = scalar_lea.vmem %s31, 1
        %v2518 = vld [vmem:[%s2517] sm:$0x1]
        %v2520 = vlaneseq
        %v2521 = vshrl.u32 %v2520, 7
        %v2522 = vsub.s32 0, %v2521
        %v2523 = vrot.slane %v2518, %v2522
        %v2541 = vunpack.c.l.b16 %v2501
        %v2542 = vunpack.c.l.b16 %v2502
        %v2543 = vunpack.c.l.b16 %v2503
        %v2544 = vunpack.c.l.b16 %v2504
        %v2545 = vunpack.c.l.b16 %v2505
        %v2546 = vunpack.c.l.b16 %v2506
        %v2547 = vunpack.c.l.b16 %v2507
        %v2548 = vunpack.c.l.b16 %v2508
        %v2549 = vunpack.c.l.b16 %v2509
        %v2550 = vunpack.c.l.b16 %v2510
        %v2551 = vunpack.c.l.b16 %v2511
        %v2552 = vunpack.c.l.b16 %v2512
        %v2553 = vunpack.c.l.b16 %v2513
        %v2554 = vunpack.c.l.b16 %v2514
        %v2555 = vunpack.c.l.b16 %v2515
        %v2556 = vunpack.c.l.b16 %v2516
        %v2557 = vpack.c.b16 %v2542, %v2541
        %v2558 = vpack.c.b16 %v2544, %v2543
        %v2559 = vpack.c.b16 %v2546, %v2545
        %v2560 = vpack.c.b16 %v2548, %v2547
        %v2561 = vpack.c.b16 %v2550, %v2549
        %v2562 = vpack.c.b16 %v2552, %v2551
        %v2563 = vpack.c.b16 %v2554, %v2553
        %v2564 = vpack.c.b16 %v2556, %v2555
        %2573 = vmatprep.subr.bf16.mxu0 0
        %2574 = vmatpush1.bf16.msra.mxu0 %v2564
        %2575 = vmatprep.subr.bf16.mxu0 0
        %2576 = vmatpush1.bf16.msra.mxu0 %v2563
        %2577 = vmatprep.subr.bf16.mxu0 0
        %2578 = vmatpush1.bf16.msra.mxu0 %v2562
        %2579 = vmatprep.subr.bf16.mxu0 0
        %2580 = vmatpush1.bf16.msra.mxu0 %v2561
        %2581 = vmatprep.subr.bf16.mxu0 0
        %2582 = vmatpush1.bf16.msra.mxu0 %v2560
        %2583 = vmatprep.subr.bf16.mxu0 0
        %2584 = vmatpush1.bf16.msra.mxu0 %v2559
        %2585 = vmatprep.subr.bf16.mxu0 0
        %2586 = vmatpush1.bf16.msra.mxu0 %v2558
        %2587 = vmatprep.subr.bf16.mxu0 0
        %2588 = vmatpush1.bf16.msra.mxu0 %v2557
        %2589 = vmatprep.subr.bf16.mxu0 0
        %2590 = vmatpush2.bf16.msra.mxu0 0
        %2591 = vmatprep.subr.bf16.mxu0 0
        %2592 = vmatpush2.bf16.msra.mxu0 0
        %2593 = vmatprep.subr.bf16.mxu0 0
        %2594 = vmatpush2.bf16.msra.mxu0 0
        %2595 = vmatprep.subr.bf16.mxu0 0
        %2596 = vmatpush2.bf16.msra.mxu0 0
        %2597 = vmatprep.subr.bf16.mxu0 0
        %2598 = vmatpush2.bf16.msra.mxu0 0
        %2599 = vmatprep.subr.bf16.mxu0 0
        %2600 = vmatpush2.bf16.msra.mxu0 0
        %2601 = vmatprep.subr.bf16.mxu0 0
        %2602 = vmatpush2.bf16.msra.mxu0 0
        %2603 = vmatprep.subr.bf16.mxu0 0
        %2604 = vmatpush2.bf16.msra.mxu0 0
        %2605 = vmatprep.mubr.bf16.mxu0 0
        %2606 = vmatmul.mubr.bf16.gmra.mxu0 %v2499
        %v2607 = vpop.f32.mrf.mxu0
        %v2608 = vadd.f32 %v2523, %v2607
        %v2609 = vpop.f32.mrf.mxu0
        %v2610 = vpop.f32.mrf.mxu0
        %v2611 = vadd.f32 %v2523, %v2610
        %v2612 = vpop.f32.mrf.mxu0
        %2613 = vdwg.mxu0
        %v2614 = vadd.f32 %v2329, %v2608
        %v2615 = vadd.f32 %v2330, %v2611
        %v2617 = vrot.slane %v2614, 4
        %2618 = vrot.lane.b32.xlu0 %v2617, 32
        %v2619 = vpop.permute.xlu0 %2618
        %v2621 = vrot.slane %v2614, 1
        %2622 = vrot.lane.b32.xlu0 %v2621, 64
        %v2623 = vpop.permute.xlu0 %2622
        %v2625 = vrot.slane %v2614, 5
        %2626 = vrot.lane.b32.xlu0 %v2625, 96
        %v2627 = vpop.permute.xlu0 %2626
        %v2629 = vsel %vm1122, %v2614, %v2619
        %vm2630 = vcmask 523264
        %v2631 = vsel %vm2630, %v2629, %v2623
        %vm2632 = vcmask 785408
        %v2633 = vsel %vm2632, %v2631, %v2627
        %v2635 = vrot.slane %v2615, 4
        %2636 = vrot.lane.b32.xlu0 %v2635, 32
        %v2637 = vpop.permute.xlu0 %2636
        %v2639 = vrot.slane %v2615, 1
        %2640 = vrot.lane.b32.xlu0 %v2639, 64
        %v2641 = vpop.permute.xlu0 %2640
        %v2643 = vrot.slane %v2615, 5
        %2644 = vrot.lane.b32.xlu0 %v2643, 96
        %v2645 = vpop.permute.xlu0 %2644
        %v2647 = vsel %vm1122, %v2615, %v2637
        %v2648 = vsel %vm2630, %v2647, %v2641
        %v2649 = vsel %vm2632, %v2648, %v2645
        %v2651 = vrot.slane %v2633, 1
        %v2654 = vrot.slane %v2649, 6
        %v2656 = vrot.slane %v2649, 7
        %vm2658 = vcmask 1040384
        %v2659 = vsel %vm2658, %v2633, %v2651
        %vm2660 = vcmask 1041408
        %v2661 = vsel %vm2660, %v2659, %v2654
        %vm2662 = vcmask 1042432
        %v2663 = vsel %vm2662, %v2661, %v2656
        %v2664 = vld [vmem:[%s33] sm:$0x1]
        %v2665 = vld [vmem:[%s35] sm:$0x1]
        %vm2666 = vcmask 1043456
        %v2667 = vsel %vm2666, %v2663, 0.0
        %2668 = vadd.xlane.f32.xlu0 %v2667
        %v2669 = vpop.xlane.xlu0 %2668
        %v2670 = vrcp.pop 128.0
        %v2671 = vmul.f32 %v2669, %v2670
        %v2672 = vsub.f32 %v2663, %v2671
        %v2673 = vmul.f32 %v2672, %v2672
        %v2674 = vsel %vm2666, %v2673, 0.0
        %2675 = vadd.xlane.f32.xlu0 %v2674
        %v2676 = vpop.xlane.xlu0 %2675
        %v2677 = vmul.f32 %v2676, %v2670
        %v2678 = vadd.f32 %v2677, 1e-05
        %v2679 = vrsqrt.pop %v2678
        %v2680 = vmul.f32 %v2672, %v2679
        %v2682 = vlaneseq
        %v2683 = vshrl.u32 %v2682, 7
        %v2684 = vsub.s32 0, %v2683
        %v2685 = vrot.slane %v2664, %v2684
        %v2687 = vmul.f32 %v2680, %v2685
        %v2689 = vlaneseq
        %v2690 = vshrl.u32 %v2689, 7
        %v2691 = vsub.s32 0, %v2690
        %v2692 = vrot.slane %v2665, %v2691
        %v2694 = vadd.f32 %v2687, %v2692
        %v2695 = vpack.c.bf16 %v2694, %v2694
        %v2696 = vld [vmem:[%s37] sm:$0xf]
        %v2697 = vld [vmem:[%s37 + $0x4] sm:$0xf]
        %v2698 = vld [vmem:[%s37 + $0x8] sm:$0xf]
        %v2699 = vld [vmem:[%s37 + $0xc] sm:$0xf]
        %v2700 = vld [vmem:[%s37 + $0x10] sm:$0xf]
        %v2701 = vld [vmem:[%s37 + $0x14] sm:$0xf]
        %v2702 = vld [vmem:[%s37 + $0x18] sm:$0xf]
        %v2703 = vld [vmem:[%s37 + $0x1c] sm:$0xf]
        %v2704 = vld [vmem:[%s37 + $0x20] sm:$0xf]
        %v2705 = vld [vmem:[%s37 + $0x24] sm:$0xf]
        %v2706 = vld [vmem:[%s37 + $0x28] sm:$0xf]
        %v2707 = vld [vmem:[%s37 + $0x2c] sm:$0xf]
        %v2708 = vld [vmem:[%s37 + $0x30] sm:$0xf]
        %v2709 = vld [vmem:[%s37 + $0x34] sm:$0xf]
        %v2710 = vld [vmem:[%s37 + $0x38] sm:$0xf]
        %v2711 = vld [vmem:[%s37 + $0x3c] sm:$0xf]
        %v2728 = vunpack.c.l.b16 %v2696
        %v2729 = vunpack.c.l.b16 %v2697
        %v2730 = vunpack.c.l.b16 %v2698
        %v2731 = vunpack.c.l.b16 %v2699
        %v2732 = vunpack.c.l.b16 %v2700
        %v2733 = vunpack.c.l.b16 %v2701
        %v2734 = vunpack.c.l.b16 %v2702
        %v2735 = vunpack.c.l.b16 %v2703
        %v2736 = vunpack.c.l.b16 %v2704
        %v2737 = vunpack.c.l.b16 %v2705
        %v2738 = vunpack.c.l.b16 %v2706
        %v2739 = vunpack.c.l.b16 %v2707
        %v2740 = vunpack.c.l.b16 %v2708
        %v2741 = vunpack.c.l.b16 %v2709
        %v2742 = vunpack.c.l.b16 %v2710
        %v2743 = vunpack.c.l.b16 %v2711
        %v2744 = vpack.c.b16 %v2729, %v2728
        %v2745 = vpack.c.b16 %v2731, %v2730
        %v2746 = vpack.c.b16 %v2733, %v2732
        %v2747 = vpack.c.b16 %v2735, %v2734
        %v2748 = vpack.c.b16 %v2737, %v2736
        %v2749 = vpack.c.b16 %v2739, %v2738
        %v2750 = vpack.c.b16 %v2741, %v2740
        %v2751 = vpack.c.b16 %v2743, %v2742
        %2760 = vmatprep.subr.bf16.mxu0 0
        %2761 = vmatpush1.bf16.msra.mxu0 %v2751
        %2762 = vmatprep.subr.bf16.mxu0 0
        %2763 = vmatpush1.bf16.msra.mxu0 %v2750
        %2764 = vmatprep.subr.bf16.mxu0 0
        %2765 = vmatpush1.bf16.msra.mxu0 %v2749
        %2766 = vmatprep.subr.bf16.mxu0 0
        %2767 = vmatpush1.bf16.msra.mxu0 %v2748
        %2768 = vmatprep.subr.bf16.mxu0 0
        %2769 = vmatpush1.bf16.msra.mxu0 %v2747
        %2770 = vmatprep.subr.bf16.mxu0 0
        %2771 = vmatpush1.bf16.msra.mxu0 %v2746
        %2772 = vmatprep.subr.bf16.mxu0 0
        %2773 = vmatpush1.bf16.msra.mxu0 %v2745
        %2774 = vmatprep.subr.bf16.mxu0 0
        %2775 = vmatpush1.bf16.msra.mxu0 %v2744
        %2776 = vmatprep.subr.bf16.mxu0 0
        %2777 = vmatpush2.bf16.msra.mxu0 0
        %2778 = vmatprep.subr.bf16.mxu0 0
        %2779 = vmatpush2.bf16.msra.mxu0 0
        %2780 = vmatprep.subr.bf16.mxu0 0
        %2781 = vmatpush2.bf16.msra.mxu0 0
        %2782 = vmatprep.subr.bf16.mxu0 0
        %2783 = vmatpush2.bf16.msra.mxu0 0
        %2784 = vmatprep.subr.bf16.mxu0 0
        %2785 = vmatpush2.bf16.msra.mxu0 0
        %2786 = vmatprep.subr.bf16.mxu0 0
        %2787 = vmatpush2.bf16.msra.mxu0 0
        %2788 = vmatprep.subr.bf16.mxu0 0
        %2789 = vmatpush2.bf16.msra.mxu0 0
        %2790 = vmatprep.subr.bf16.mxu0 0
        %2791 = vmatpush2.bf16.msra.mxu0 0
        %2792 = vmatprep.mubr.bf16.mxu0 0
        %2793 = vmatmul.mubr.bf16.gmra.mxu0 %v2695
        %v2794 = vpop.f32.mrf.mxu0
        %v2795 = vadd.f32 0.0, %v2794
        %v2796 = vpop.f32.mrf.mxu0
        %v2797 = vpop.f32.mrf.mxu0
        %v2798 = vpop.f32.mrf.mxu0
        %2799 = vdwg.mxu0
        %v2800 = vld [vmem:[%s39] sm:$0x1]
        %v2801 = vld [vmem:[%s41] sm:$0x1]
        %vm2802 = vcmask 519168
        %v2803 = vsel %vm2802, %v2795, 0.0
        %2804 = vadd.xlane.f32.xlu0 %v2803
        %v2805 = vpop.xlane.xlu0 %2804
        %v2806 = vrcp.pop 64.0
        %v2807 = vmul.f32 %v2805, %v2806
        %v2808 = vsub.f32 %v2795, %v2807
        %v2809 = vmul.f32 %v2808, %v2808
        %v2810 = vsel %vm2802, %v2809, 0.0
        %2811 = vadd.xlane.f32.xlu0 %v2810
        %v2812 = vpop.xlane.xlu0 %2811
        %v2813 = vmul.f32 %v2812, %v2806
        %v2814 = vadd.f32 %v2813, 1e-05
        %v2815 = vrsqrt.pop %v2814
        %v2816 = vmul.f32 %v2808, %v2815
        %v2818 = vlaneseq
        %v2819 = vshrl.u32 %v2818, 7
        %v2820 = vsub.s32 0, %v2819
        %v2821 = vrot.slane %v2800, %v2820
        %v2823 = vmul.f32 %v2816, %v2821
        %v2825 = vlaneseq
        %v2826 = vshrl.u32 %v2825, 7
        %v2827 = vsub.s32 0, %v2826
        %v2828 = vrot.slane %v2801, %v2827
        %v2830 = vadd.f32 %v2823, %v2828
        %v2831 = vpack.c.bf16 %v2830, %v2830
        %v2832 = vld [vmem:[%s43] sm:$0xff]
        %v2833 = vld [vmem:[%s43 + $0x8] sm:$0xff]
        %v2834 = vld [vmem:[%s43 + $0x10] sm:$0xff]
        %v2835 = vld [vmem:[%s43 + $0x18] sm:$0xff]
        %v2836 = vld [vmem:[%s43 + $0x20] sm:$0xff]
        %v2837 = vld [vmem:[%s43 + $0x28] sm:$0xff]
        %v2838 = vld [vmem:[%s43 + $0x30] sm:$0xff]
        %v2839 = vld [vmem:[%s43 + $0x38] sm:$0xff]
        %v2840 = vld [vmem:[%s45] sm:$0x3]
        %v2842 = vlaneseq
        %v2843 = vshrl.u32 %v2842, 7
        %v2844 = vsub.s32 0, %v2843
        %v2845 = vrot.slane %v2840, %v2844
        %v2846 = vlaneseq
        %v2847 = vshrl.u32 %v2846, 7
        %v2848 = vsub.s32 1, %v2847
        %v2849 = vrot.slane %v2840, %v2848
        %v2860 = vunpack.c.l.b16 %v2832
        %v2861 = vunpack.c.h.b16 %v2832
        %v2862 = vunpack.c.l.b16 %v2833
        %v2863 = vunpack.c.h.b16 %v2833
        %v2864 = vunpack.c.l.b16 %v2834
        %v2865 = vunpack.c.h.b16 %v2834
        %v2866 = vunpack.c.l.b16 %v2835
        %v2867 = vunpack.c.h.b16 %v2835
        %v2868 = vunpack.c.l.b16 %v2836
        %v2869 = vunpack.c.h.b16 %v2836
        %v2870 = vunpack.c.l.b16 %v2837
        %v2871 = vunpack.c.h.b16 %v2837
        %v2872 = vunpack.c.l.b16 %v2838
        %v2873 = vunpack.c.h.b16 %v2838
        %v2874 = vunpack.c.l.b16 %v2839
        %v2875 = vunpack.c.h.b16 %v2839
        %v2876 = vpack.c.b16 %v2862, %v2860
        %v2877 = vpack.c.b16 %v2863, %v2861
        %v2878 = vpack.c.b16 %v2866, %v2864
        %v2879 = vpack.c.b16 %v2867, %v2865
        %v2880 = vpack.c.b16 %v2870, %v2868
        %v2881 = vpack.c.b16 %v2871, %v2869
        %v2882 = vpack.c.b16 %v2874, %v2872
        %v2883 = vpack.c.b16 %v2875, %v2873
        %v2893 = vsel %vm2630, %v2831, 0
        %2895 = vmatprep.subr.bf16.mxu0 0
        %2896 = vmatpush1.bf16.msra.mxu0 0
        %2897 = vmatprep.subr.bf16.mxu0 0
        %2898 = vmatpush1.bf16.msra.mxu0 0
        %2899 = vmatprep.subr.bf16.mxu0 0
        %2900 = vmatpush1.bf16.msra.mxu0 0
        %2901 = vmatprep.subr.bf16.mxu0 0
        %2902 = vmatpush1.bf16.msra.mxu0 0
        %2903 = vmatprep.subr.bf16.mxu0 %v2883
        %2904 = vmatpush1.bf16.msra.mxu0 %v2882
        %2905 = vmatprep.subr.bf16.mxu0 %v2881
        %2906 = vmatpush1.bf16.msra.mxu0 %v2880
        %2907 = vmatprep.subr.bf16.mxu0 %v2879
        %2908 = vmatpush1.bf16.msra.mxu0 %v2878
        %2909 = vmatprep.subr.bf16.mxu0 %v2877
        %2910 = vmatpush1.bf16.msra.mxu0 %v2876
        %2911 = vmatprep.subr.bf16.mxu0 0
        %2912 = vmatpush2.bf16.msra.mxu0 0
        %2913 = vmatprep.subr.bf16.mxu0 0
        %2914 = vmatpush2.bf16.msra.mxu0 0
        %2915 = vmatprep.subr.bf16.mxu0 0
        %2916 = vmatpush2.bf16.msra.mxu0 0
        %2917 = vmatprep.subr.bf16.mxu0 0
        %2918 = vmatpush2.bf16.msra.mxu0 0
        %2919 = vmatprep.subr.bf16.mxu0 0
        %2920 = vmatpush2.bf16.msra.mxu0 0
        %2921 = vmatprep.subr.bf16.mxu0 0
        %2922 = vmatpush2.bf16.msra.mxu0 0
        %2923 = vmatprep.subr.bf16.mxu0 0
        %2924 = vmatpush2.bf16.msra.mxu0 0
        %2925 = vmatprep.subr.bf16.mxu0 0
        %2926 = vmatpush2.bf16.msra.mxu0 0
        %2927 = vmatprep.mubr.bf16.mxu0 0
        %2928 = vmatmul.mubr.bf16.gmra.mxu0 %v2893
        %v2929 = vpop.f32.mrf.mxu0
        %v2930 = vadd.f32 %v2845, %v2929
        %v2931 = vpop.f32.mrf.mxu0
        %v2932 = vadd.f32 %v2849, %v2931
        %v2933 = vpop.f32.mrf.mxu0
        %v2934 = vpop.f32.mrf.mxu0
        %2935 = vdwg.mxu0
        %v2936 = vpack.c.bf16 %v2930, %v2930
        %v2937 = vpack.c.bf16 %v2932, %v2932
        %2939 = vrot.lane.b32.xlu0 %v2936, 112
        %v2940 = vpop.permute.xlu0 %2939
        %2941 = vrot.lane.b32.xlu0 %v2936, 96
        %v2942 = vpop.permute.xlu0 %2941
        %2943 = vrot.lane.b32.xlu0 %v2936, 80
        %v2944 = vpop.permute.xlu0 %2943
        %2946 = vrot.lane.b32.xlu0 %v2937, 112
        %v2947 = vpop.permute.xlu0 %2946
        %2948 = vrot.lane.b32.xlu0 %v2937, 96
        %v2949 = vpop.permute.xlu0 %2948
        %2950 = vrot.lane.b32.xlu0 %v2937, 80
        %v2951 = vpop.permute.xlu0 %2950
        %v2952 = vld [vmem:[%s51] sm:$0xf]
        %v2953 = vld [vmem:[%s51 + $0x4] sm:$0xf]
        %v2954 = vld [vmem:[%s51 + $0x8] sm:$0xf]
        %v2955 = vld [vmem:[%s51 + $0xc] sm:$0xf]
        %2956 = vrot.lane.b32.xlu0 %v2936, 64
        %v2957 = vpop.permute.xlu0 %2956
        %v2959 = vsel %vm1288, %v2936, 0
        %v2962 = vsel %vm1288, %v2957, 0
        %2964 = vmatprep.subr.bf16.mxu0 0
        %2965 = vmatpush1.bf16.xpose.msra.mxu0 0
        %2966 = vmatprep.subr.bf16.mxu0 0
        %2967 = vmatpush1.bf16.xpose.msra.mxu0 0
        %2968 = vmatprep.subr.bf16.mxu0 0
        %2969 = vmatpush1.bf16.xpose.msra.mxu0 0
        %2970 = vmatprep.subr.bf16.mxu0 0
        %2971 = vmatpush1.bf16.xpose.msra.mxu0 0
        %2972 = vmatprep.subr.bf16.mxu0 0
        %2973 = vmatpush1.bf16.xpose.msra.mxu0 0
        %2974 = vmatprep.subr.bf16.mxu0 0
        %2975 = vmatpush1.bf16.xpose.msra.mxu0 0
        %2976 = vmatprep.subr.bf16.mxu0 0
        %2977 = vmatpush1.bf16.xpose.msra.mxu0 0
        %2978 = vmatprep.subr.bf16.mxu0 0
        %2979 = vmatpush1.bf16.xpose.msra.mxu0 %v2962
        %2980 = vmatprep.subr.bf16.mxu0 0
        %2981 = vmatpush2.bf16.xpose.msra.mxu0 0
        %2982 = vmatprep.subr.bf16.mxu0 0
        %2983 = vmatpush2.bf16.xpose.msra.mxu0 0
        %2984 = vmatprep.subr.bf16.mxu0 0
        %2985 = vmatpush2.bf16.xpose.msra.mxu0 0
        %2986 = vmatprep.subr.bf16.mxu0 0
        %2987 = vmatpush2.bf16.xpose.msra.mxu0 0
        %2988 = vmatprep.subr.bf16.mxu0 0
        %2989 = vmatpush2.bf16.xpose.msra.mxu0 0
        %2990 = vmatprep.subr.bf16.mxu0 0
        %2991 = vmatpush2.bf16.xpose.msra.mxu0 0
        %2992 = vmatprep.subr.bf16.mxu0 0
        %2993 = vmatpush2.bf16.xpose.msra.mxu0 0
        %2994 = vmatprep.subr.bf16.mxu0 0
        %2995 = vmatpush2.bf16.xpose.msra.mxu0 0
        %2996 = vmatprep.mubr.bf16.mxu0 0
        %2997 = vmatmul.mubr.bf16.gmra.mxu0 %v2959
        %v2998 = vpop.f32.mrf.mxu0
        %v2999 = vadd.f32 %v2952, %v2998
        %v3000 = vpop.f32.mrf.mxu0
        %v3001 = vpop.f32.mrf.mxu0
        %v3002 = vpop.f32.mrf.mxu0
        %3003 = vdwg.mxu0
        %3004 = vrot.lane.b32.xlu0 %v2940, 64
        %v3005 = vpop.permute.xlu0 %3004
        %v3007 = vsel %vm1288, %v2940, 0
        %v3010 = vsel %vm1288, %v3005, 0
        %3012 = vmatprep.subr.bf16.mxu0 0
        %3013 = vmatpush1.bf16.xpose.msra.mxu0 0
        %3014 = vmatprep.subr.bf16.mxu0 0
        %3015 = vmatpush1.bf16.xpose.msra.mxu0 0
        %3016 = vmatprep.subr.bf16.mxu0 0
        %3017 = vmatpush1.bf16.xpose.msra.mxu0 0
        %3018 = vmatprep.subr.bf16.mxu0 0
        %3019 = vmatpush1.bf16.xpose.msra.mxu0 0
        %3020 = vmatprep.subr.bf16.mxu0 0
        %3021 = vmatpush1.bf16.xpose.msra.mxu0 0
        %3022 = vmatprep.subr.bf16.mxu0 0
        %3023 = vmatpush1.bf16.xpose.msra.mxu0 0
        %3024 = vmatprep.subr.bf16.mxu0 0
        %3025 = vmatpush1.bf16.xpose.msra.mxu0 0
        %3026 = vmatprep.subr.bf16.mxu0 0
        %3027 = vmatpush1.bf16.xpose.msra.mxu0 %v3010
        %3028 = vmatprep.subr.bf16.mxu0 0
        %3029 = vmatpush2.bf16.xpose.msra.mxu0 0
        %3030 = vmatprep.subr.bf16.mxu0 0
        %3031 = vmatpush2.bf16.xpose.msra.mxu0 0
        %3032 = vmatprep.subr.bf16.mxu0 0
        %3033 = vmatpush2.bf16.xpose.msra.mxu0 0
        %3034 = vmatprep.subr.bf16.mxu0 0
        %3035 = vmatpush2.bf16.xpose.msra.mxu0 0
        %3036 = vmatprep.subr.bf16.mxu0 0
        %3037 = vmatpush2.bf16.xpose.msra.mxu0 0
        %3038 = vmatprep.subr.bf16.mxu0 0
        %3039 = vmatpush2.bf16.xpose.msra.mxu0 0
        %3040 = vmatprep.subr.bf16.mxu0 0
        %3041 = vmatpush2.bf16.xpose.msra.mxu0 0
        %3042 = vmatprep.subr.bf16.mxu0 0
        %3043 = vmatpush2.bf16.xpose.msra.mxu0 0
        %3044 = vmatprep.mubr.bf16.mxu0 0
        %3045 = vmatmul.mubr.bf16.gmra.mxu0 %v3007
        %v3046 = vpop.f32.mrf.mxu0
        %v3047 = vadd.f32 %v2953, %v3046
        %v3048 = vpop.f32.mrf.mxu0
        %v3049 = vpop.f32.mrf.mxu0
        %v3050 = vpop.f32.mrf.mxu0
        %3051 = vdwg.mxu0
        %3052 = vrot.lane.b32.xlu0 %v2942, 64
        %v3053 = vpop.permute.xlu0 %3052
        %v3055 = vsel %vm1288, %v2942, 0
        %v3058 = vsel %vm1288, %v3053, 0
        %3060 = vmatprep.subr.bf16.mxu0 0
        %3061 = vmatpush1.bf16.xpose.msra.mxu0 0
        %3062 = vmatprep.subr.bf16.mxu0 0
        %3063 = vmatpush1.bf16.xpose.msra.mxu0 0
        %3064 = vmatprep.subr.bf16.mxu0 0
        %3065 = vmatpush1.bf16.xpose.msra.mxu0 0
        %3066 = vmatprep.subr.bf16.mxu0 0
        %3067 = vmatpush1.bf16.xpose.msra.mxu0 0
        %3068 = vmatprep.subr.bf16.mxu0 0
        %3069 = vmatpush1.bf16.xpose.msra.mxu0 0
        %3070 = vmatprep.subr.bf16.mxu0 0
        %3071 = vmatpush1.bf16.xpose.msra.mxu0 0
        %3072 = vmatprep.subr.bf16.mxu0 0
        %3073 = vmatpush1.bf16.xpose.msra.mxu0 0
        %3074 = vmatprep.subr.bf16.mxu0 0
        %3075 = vmatpush1.bf16.xpose.msra.mxu0 %v3058
        %3076 = vmatprep.subr.bf16.mxu0 0
        %3077 = vmatpush2.bf16.xpose.msra.mxu0 0
        %3078 = vmatprep.subr.bf16.mxu0 0
        %3079 = vmatpush2.bf16.xpose.msra.mxu0 0
        %3080 = vmatprep.subr.bf16.mxu0 0
        %3081 = vmatpush2.bf16.xpose.msra.mxu0 0
        %3082 = vmatprep.subr.bf16.mxu0 0
        %3083 = vmatpush2.bf16.xpose.msra.mxu0 0
        %3084 = vmatprep.subr.bf16.mxu0 0
        %3085 = vmatpush2.bf16.xpose.msra.mxu0 0
        %3086 = vmatprep.subr.bf16.mxu0 0
        %3087 = vmatpush2.bf16.xpose.msra.mxu0 0
        %3088 = vmatprep.subr.bf16.mxu0 0
        %3089 = vmatpush2.bf16.xpose.msra.mxu0 0
        %3090 = vmatprep.subr.bf16.mxu0 0
        %3091 = vmatpush2.bf16.xpose.msra.mxu0 0
        %3092 = vmatprep.mubr.bf16.mxu0 0
        %3093 = vmatmul.mubr.bf16.gmra.mxu0 %v3055
        %v3094 = vpop.f32.mrf.mxu0
        %v3095 = vadd.f32 %v2954, %v3094
        %v3096 = vpop.f32.mrf.mxu0
        %v3097 = vpop.f32.mrf.mxu0
        %v3098 = vpop.f32.mrf.mxu0
        %3099 = vdwg.mxu0
        %3100 = vrot.lane.b32.xlu0 %v2944, 64
        %v3101 = vpop.permute.xlu0 %3100
        %v3103 = vsel %vm1288, %v2944, 0
        %v3106 = vsel %vm1288, %v3101, 0
        %3108 = vmatprep.subr.bf16.mxu0 0
        %3109 = vmatpush1.bf16.xpose.msra.mxu0 0
        %3110 = vmatprep.subr.bf16.mxu0 0
        %3111 = vmatpush1.bf16.xpose.msra.mxu0 0
        %3112 = vmatprep.subr.bf16.mxu0 0
        %3113 = vmatpush1.bf16.xpose.msra.mxu0 0
        %3114 = vmatprep.subr.bf16.mxu0 0
        %3115 = vmatpush1.bf16.xpose.msra.mxu0 0
        %3116 = vmatprep.subr.bf16.mxu0 0
        %3117 = vmatpush1.bf16.xpose.msra.mxu0 0
        %3118 = vmatprep.subr.bf16.mxu0 0
        %3119 = vmatpush1.bf16.xpose.msra.mxu0 0
        %3120 = vmatprep.subr.bf16.mxu0 0
        %3121 = vmatpush1.bf16.xpose.msra.mxu0 0
        %3122 = vmatprep.subr.bf16.mxu0 0
        %3123 = vmatpush1.bf16.xpose.msra.mxu0 %v3106
        %3124 = vmatprep.subr.bf16.mxu0 0
        %3125 = vmatpush2.bf16.xpose.msra.mxu0 0
        %3126 = vmatprep.subr.bf16.mxu0 0
        %3127 = vmatpush2.bf16.xpose.msra.mxu0 0
        %3128 = vmatprep.subr.bf16.mxu0 0
        %3129 = vmatpush2.bf16.xpose.msra.mxu0 0
        %3130 = vmatprep.subr.bf16.mxu0 0
        %3131 = vmatpush2.bf16.xpose.msra.mxu0 0
        %3132 = vmatprep.subr.bf16.mxu0 0
        %3133 = vmatpush2.bf16.xpose.msra.mxu0 0
        %3134 = vmatprep.subr.bf16.mxu0 0
        %3135 = vmatpush2.bf16.xpose.msra.mxu0 0
        %3136 = vmatprep.subr.bf16.mxu0 0
        %3137 = vmatpush2.bf16.xpose.msra.mxu0 0
        %3138 = vmatprep.subr.bf16.mxu0 0
        %3139 = vmatpush2.bf16.xpose.msra.mxu0 0
        %3140 = vmatprep.mubr.bf16.mxu0 0
        %3141 = vmatmul.mubr.bf16.gmra.mxu0 %v3103
        %v3142 = vpop.f32.mrf.mxu0
        %v3143 = vadd.f32 %v2955, %v3142
        %v3144 = vpop.f32.mrf.mxu0
        %v3145 = vpop.f32.mrf.mxu0
        %v3146 = vpop.f32.mrf.mxu0
        %3147 = vdwg.mxu0
        %vm3148 = vcmask 27648
        %v3149 = vsel %vm3148, %v2999, -inf
        %3150 = vmax.xlane.f32.xlu0 %v3149
        %v3151 = vpop.xlane.xlu0 %3150
        %v3152 = vsel %vm3148, %v3047, -inf
        %3153 = vmax.xlane.f32.xlu0 %v3152
        %v3154 = vpop.xlane.xlu0 %3153
        %v3155 = vsel %vm3148, %v3095, -inf
        %3156 = vmax.xlane.f32.xlu0 %v3155
        %v3157 = vpop.xlane.xlu0 %3156
        %v3158 = vsel %vm3148, %v3143, -inf
        %3159 = vmax.xlane.f32.xlu0 %v3158
        %v3160 = vpop.xlane.xlu0 %3159
        %v3161 = vsub.f32 %v2999, %v3151
        %v3162 = vsub.f32 %v3047, %v3154
        %v3163 = vsub.f32 %v3095, %v3157
        %v3164 = vsub.f32 %v3143, %v3160
        %v3165 = vmul.f32 %v3161, 1.442695
        %v3166 = vpow.pop %v3165
        %v3167 = vmul.f32 %v3162, 1.442695
        %v3168 = vpow.pop %v3167
        %v3169 = vmul.f32 %v3163, 1.442695
        %v3170 = vpow.pop %v3169
        %v3171 = vmul.f32 %v3164, 1.442695
        %v3172 = vpow.pop %v3171
        %v3173 = vsel %vm3148, %v3166, 0.0
        %3174 = vadd.xlane.f32.xlu0 %v3173
        %v3175 = vpop.xlane.xlu0 %3174
        %v3176 = vsel %vm3148, %v3168, 0.0
        %3177 = vadd.xlane.f32.xlu0 %v3176
        %v3178 = vpop.xlane.xlu0 %3177
        %v3179 = vsel %vm3148, %v3170, 0.0
        %3180 = vadd.xlane.f32.xlu0 %v3179
        %v3181 = vpop.xlane.xlu0 %3180
        %v3182 = vsel %vm3148, %v3172, 0.0
        %3183 = vadd.xlane.f32.xlu0 %v3182
        %v3184 = vpop.xlane.xlu0 %3183
        %v3185 = vrcp.pop %v3175
        %v3186 = vrcp.pop %v3178
        %v3187 = vrcp.pop %v3181
        %v3188 = vrcp.pop %v3184
        %v3189 = vmul.f32 %v3166, %v3185
        %v3190 = vmul.f32 %v3168, %v3186
        %v3191 = vmul.f32 %v3170, %v3187
        %v3192 = vmul.f32 %v3172, %v3188
        %v3193 = vpack.c.bf16 %v3189, %v3189
        %v3194 = vpack.c.bf16 %v3190, %v3190
        %v3195 = vpack.c.bf16 %v3191, %v3191
        %v3196 = vpack.c.bf16 %v3192, %v3192
        %vm3197 = vcmask 31744
        %v3199 = vsel %vm3197, %v3193, 0
        %v3202 = vsel %vm2660, %v2937, 0
        %3204 = vmatprep.subr.bf16.mxu0 0
        %3205 = vmatpush1.bf16.msra.mxu0 0
        %3206 = vmatprep.subr.bf16.mxu0 0
        %3207 = vmatpush1.bf16.msra.mxu0 0
        %3208 = vmatprep.subr.bf16.mxu0 0
        %3209 = vmatpush1.bf16.msra.mxu0 0
        %3210 = vmatprep.subr.bf16.mxu0 0
        %3211 = vmatpush1.bf16.msra.mxu0 0
        %3212 = vmatprep.subr.bf16.mxu0 0
        %3213 = vmatpush1.bf16.msra.mxu0 0
        %3214 = vmatprep.subr.bf16.mxu0 0
        %3215 = vmatpush1.bf16.msra.mxu0 0
        %3216 = vmatprep.subr.bf16.mxu0 0
        %3217 = vmatpush1.bf16.msra.mxu0 0
        %3218 = vmatprep.subr.bf16.mxu0 0
        %3219 = vmatpush1.bf16.msra.mxu0 %v3202
        %3220 = vmatprep.subr.bf16.mxu0 0
        %3221 = vmatpush2.bf16.msra.mxu0 0
        %3222 = vmatprep.subr.bf16.mxu0 0
        %3223 = vmatpush2.bf16.msra.mxu0 0
        %3224 = vmatprep.subr.bf16.mxu0 0
        %3225 = vmatpush2.bf16.msra.mxu0 0
        %3226 = vmatprep.subr.bf16.mxu0 0
        %3227 = vmatpush2.bf16.msra.mxu0 0
        %3228 = vmatprep.subr.bf16.mxu0 0
        %3229 = vmatpush2.bf16.msra.mxu0 0
        %3230 = vmatprep.subr.bf16.mxu0 0
        %3231 = vmatpush2.bf16.msra.mxu0 0
        %3232 = vmatprep.subr.bf16.mxu0 0
        %3233 = vmatpush2.bf16.msra.mxu0 0
        %3234 = vmatprep.subr.bf16.mxu0 0
        %3235 = vmatpush2.bf16.msra.mxu0 0
        %3236 = vmatprep.mubr.bf16.mxu0 0
        %3237 = vmatmul.mubr.bf16.gmra.mxu0 %v3199
        %v3238 = vpop.f32.mrf.mxu0
        %v3239 = vadd.f32 0.0, %v3238
        %v3240 = vpop.f32.mrf.mxu0
        %v3241 = vpop.f32.mrf.mxu0
        %v3242 = vpop.f32.mrf.mxu0
        %3243 = vdwg.mxu0
        %v3245 = vsel %vm3197, %v3194, 0
        %v3248 = vsel %vm2660, %v2947, 0
        %3250 = vmatprep.subr.bf16.mxu0 0
        %3251 = vmatpush1.bf16.msra.mxu0 0
        %3252 = vmatprep.subr.bf16.mxu0 0
        %3253 = vmatpush1.bf16.msra.mxu0 0
        %3254 = vmatprep.subr.bf16.mxu0 0
        %3255 = vmatpush1.bf16.msra.mxu0 0
        %3256 = vmatprep.subr.bf16.mxu0 0
        %3257 = vmatpush1.bf16.msra.mxu0 0
        %3258 = vmatprep.subr.bf16.mxu0 0
        %3259 = vmatpush1.bf16.msra.mxu0 0
        %3260 = vmatprep.subr.bf16.mxu0 0
        %3261 = vmatpush1.bf16.msra.mxu0 0
        %3262 = vmatprep.subr.bf16.mxu0 0
        %3263 = vmatpush1.bf16.msra.mxu0 0
        %3264 = vmatprep.subr.bf16.mxu0 0
        %3265 = vmatpush1.bf16.msra.mxu0 %v3248
        %3266 = vmatprep.subr.bf16.mxu0 0
        %3267 = vmatpush2.bf16.msra.mxu0 0
        %3268 = vmatprep.subr.bf16.mxu0 0
        %3269 = vmatpush2.bf16.msra.mxu0 0
        %3270 = vmatprep.subr.bf16.mxu0 0
        %3271 = vmatpush2.bf16.msra.mxu0 0
        %3272 = vmatprep.subr.bf16.mxu0 0
        %3273 = vmatpush2.bf16.msra.mxu0 0
        %3274 = vmatprep.subr.bf16.mxu0 0
        %3275 = vmatpush2.bf16.msra.mxu0 0
        %3276 = vmatprep.subr.bf16.mxu0 0
        %3277 = vmatpush2.bf16.msra.mxu0 0
        %3278 = vmatprep.subr.bf16.mxu0 0
        %3279 = vmatpush2.bf16.msra.mxu0 0
        %3280 = vmatprep.subr.bf16.mxu0 0
        %3281 = vmatpush2.bf16.msra.mxu0 0
        %3282 = vmatprep.mubr.bf16.mxu0 0
        %3283 = vmatmul.mubr.bf16.gmra.mxu0 %v3245
        %v3284 = vpop.f32.mrf.mxu0
        %v3285 = vadd.f32 0.0, %v3284
        %v3286 = vpop.f32.mrf.mxu0
        %v3287 = vpop.f32.mrf.mxu0
        %v3288 = vpop.f32.mrf.mxu0
        %3289 = vdwg.mxu0
        %v3291 = vsel %vm3197, %v3195, 0
        %v3294 = vsel %vm2660, %v2949, 0
        %3296 = vmatprep.subr.bf16.mxu0 0
        %3297 = vmatpush1.bf16.msra.mxu0 0
        %3298 = vmatprep.subr.bf16.mxu0 0
        %3299 = vmatpush1.bf16.msra.mxu0 0
        %3300 = vmatprep.subr.bf16.mxu0 0
        %3301 = vmatpush1.bf16.msra.mxu0 0
        %3302 = vmatprep.subr.bf16.mxu0 0
        %3303 = vmatpush1.bf16.msra.mxu0 0
        %3304 = vmatprep.subr.bf16.mxu0 0
        %3305 = vmatpush1.bf16.msra.mxu0 0
        %3306 = vmatprep.subr.bf16.mxu0 0
        %3307 = vmatpush1.bf16.msra.mxu0 0
        %3308 = vmatprep.subr.bf16.mxu0 0
        %3309 = vmatpush1.bf16.msra.mxu0 0
        %3310 = vmatprep.subr.bf16.mxu0 0
        %3311 = vmatpush1.bf16.msra.mxu0 %v3294
        %3312 = vmatprep.subr.bf16.mxu0 0
        %3313 = vmatpush2.bf16.msra.mxu0 0
        %3314 = vmatprep.subr.bf16.mxu0 0
        %3315 = vmatpush2.bf16.msra.mxu0 0
        %3316 = vmatprep.subr.bf16.mxu0 0
        %3317 = vmatpush2.bf16.msra.mxu0 0
        %3318 = vmatprep.subr.bf16.mxu0 0
        %3319 = vmatpush2.bf16.msra.mxu0 0
        %3320 = vmatprep.subr.bf16.mxu0 0
        %3321 = vmatpush2.bf16.msra.mxu0 0
        %3322 = vmatprep.subr.bf16.mxu0 0
        %3323 = vmatpush2.bf16.msra.mxu0 0
        %3324 = vmatprep.subr.bf16.mxu0 0
        %3325 = vmatpush2.bf16.msra.mxu0 0
        %3326 = vmatprep.subr.bf16.mxu0 0
        %3327 = vmatpush2.bf16.msra.mxu0 0
        %3328 = vmatprep.mubr.bf16.mxu0 0
        %3329 = vmatmul.mubr.bf16.gmra.mxu0 %v3291
        %v3330 = vpop.f32.mrf.mxu0
        %v3331 = vadd.f32 0.0, %v3330
        %v3332 = vpop.f32.mrf.mxu0
        %v3333 = vpop.f32.mrf.mxu0
        %v3334 = vpop.f32.mrf.mxu0
        %3335 = vdwg.mxu0
        %v3337 = vsel %vm3197, %v3196, 0
        %v3340 = vsel %vm2660, %v2951, 0
        %3342 = vmatprep.subr.bf16.mxu0 0
        %3343 = vmatpush1.bf16.msra.mxu0 0
        %3344 = vmatprep.subr.bf16.mxu0 0
        %3345 = vmatpush1.bf16.msra.mxu0 0
        %3346 = vmatprep.subr.bf16.mxu0 0
        %3347 = vmatpush1.bf16.msra.mxu0 0
        %3348 = vmatprep.subr.bf16.mxu0 0
        %3349 = vmatpush1.bf16.msra.mxu0 0
        %3350 = vmatprep.subr.bf16.mxu0 0
        %3351 = vmatpush1.bf16.msra.mxu0 0
        %3352 = vmatprep.subr.bf16.mxu0 0
        %3353 = vmatpush1.bf16.msra.mxu0 0
        %3354 = vmatprep.subr.bf16.mxu0 0
        %3355 = vmatpush1.bf16.msra.mxu0 0
        %3356 = vmatprep.subr.bf16.mxu0 0
        %3357 = vmatpush1.bf16.msra.mxu0 %v3340
        %3358 = vmatprep.subr.bf16.mxu0 0
        %3359 = vmatpush2.bf16.msra.mxu0 0
        %3360 = vmatprep.subr.bf16.mxu0 0
        %3361 = vmatpush2.bf16.msra.mxu0 0
        %3362 = vmatprep.subr.bf16.mxu0 0
        %3363 = vmatpush2.bf16.msra.mxu0 0
        %3364 = vmatprep.subr.bf16.mxu0 0
        %3365 = vmatpush2.bf16.msra.mxu0 0
        %3366 = vmatprep.subr.bf16.mxu0 0
        %3367 = vmatpush2.bf16.msra.mxu0 0
        %3368 = vmatprep.subr.bf16.mxu0 0
        %3369 = vmatpush2.bf16.msra.mxu0 0
        %3370 = vmatprep.subr.bf16.mxu0 0
        %3371 = vmatpush2.bf16.msra.mxu0 0
        %3372 = vmatprep.subr.bf16.mxu0 0
        %3373 = vmatpush2.bf16.msra.mxu0 0
        %3374 = vmatprep.mubr.bf16.mxu0 0
        %3375 = vmatmul.mubr.bf16.gmra.mxu0 %v3337
        %v3376 = vpop.f32.mrf.mxu0
        %v3377 = vadd.f32 0.0, %v3376
        %v3378 = vpop.f32.mrf.mxu0
        %v3379 = vpop.f32.mrf.mxu0
        %v3380 = vpop.f32.mrf.mxu0
        %3381 = vdwg.mxu0
        %3383 = vrot.lane.b32.xlu0 %v3285, 16
        %v3384 = vpop.permute.xlu0 %3383
        %3387 = vrot.lane.b32.xlu0 %v3331, 32
        %v3388 = vpop.permute.xlu0 %3387
        %3391 = vrot.lane.b32.xlu0 %v3377, 48
        %v3392 = vpop.permute.xlu0 %3391
        %v3394 = vsel %vm1288, %v3239, %v3384
        %v3395 = vsel %vm1122, %v3394, %v3388
        %v3396 = vsel %vm1075, %v3395, %v3392
        %v3397 = vpack.c.bf16 %v3396, %v3396
        %v3398 = vld [vmem:[%s47] sm:$0xf]
        %v3399 = vld [vmem:[%s47 + $0x4] sm:$0xf]
        %v3400 = vld [vmem:[%s47 + $0x8] sm:$0xf]
        %v3401 = vld [vmem:[%s47 + $0xc] sm:$0xf]
        %v3402 = vld [vmem:[%s47 + $0x10] sm:$0xf]
        %v3403 = vld [vmem:[%s47 + $0x14] sm:$0xf]
        %v3404 = vld [vmem:[%s47 + $0x18] sm:$0xf]
        %v3405 = vld [vmem:[%s47 + $0x1c] sm:$0xf]
        %v3406 = vld [vmem:[%s49] sm:$0x1]
        %v3408 = vlaneseq
        %v3409 = vshrl.u32 %v3408, 7
        %v3410 = vsub.s32 0, %v3409
        %v3411 = vrot.slane %v3406, %v3410
        %v3421 = vunpack.c.l.b16 %v3398
        %v3422 = vunpack.c.l.b16 %v3399
        %v3423 = vunpack.c.l.b16 %v3400
        %v3424 = vunpack.c.l.b16 %v3401
        %v3425 = vunpack.c.l.b16 %v3402
        %v3426 = vunpack.c.l.b16 %v3403
        %v3427 = vunpack.c.l.b16 %v3404
        %v3428 = vunpack.c.l.b16 %v3405
        %v3429 = vpack.c.b16 %v3422, %v3421
        %v3430 = vpack.c.b16 %v3424, %v3423
        %v3431 = vpack.c.b16 %v3426, %v3425
        %v3432 = vpack.c.b16 %v3428, %v3427
        %v3438 = vsel %vm2630, %v3397, 0
        %3440 = vmatprep.subr.bf16.mxu0 0
        %3441 = vmatpush1.bf16.msra.mxu0 0
        %3442 = vmatprep.subr.bf16.mxu0 0
        %3443 = vmatpush1.bf16.msra.mxu0 0
        %3444 = vmatprep.subr.bf16.mxu0 0
        %3445 = vmatpush1.bf16.msra.mxu0 0
        %3446 = vmatprep.subr.bf16.mxu0 0
        %3447 = vmatpush1.bf16.msra.mxu0 0
        %3448 = vmatprep.subr.bf16.mxu0 0
        %3449 = vmatpush1.bf16.msra.mxu0 %v3432
        %3450 = vmatprep.subr.bf16.mxu0 0
        %3451 = vmatpush1.bf16.msra.mxu0 %v3431
        %3452 = vmatprep.subr.bf16.mxu0 0
        %3453 = vmatpush1.bf16.msra.mxu0 %v3430
        %3454 = vmatprep.subr.bf16.mxu0 0
        %3455 = vmatpush1.bf16.msra.mxu0 %v3429
        %3456 = vmatprep.subr.bf16.mxu0 0
        %3457 = vmatpush2.bf16.msra.mxu0 0
        %3458 = vmatprep.subr.bf16.mxu0 0
        %3459 = vmatpush2.bf16.msra.mxu0 0
        %3460 = vmatprep.subr.bf16.mxu0 0
        %3461 = vmatpush2.bf16.msra.mxu0 0
        %3462 = vmatprep.subr.bf16.mxu0 0
        %3463 = vmatpush2.bf16.msra.mxu0 0
        %3464 = vmatprep.subr.bf16.mxu0 0
        %3465 = vmatpush2.bf16.msra.mxu0 0
        %3466 = vmatprep.subr.bf16.mxu0 0
        %3467 = vmatpush2.bf16.msra.mxu0 0
        %3468 = vmatprep.subr.bf16.mxu0 0
        %3469 = vmatpush2.bf16.msra.mxu0 0
        %3470 = vmatprep.subr.bf16.mxu0 0
        %3471 = vmatpush2.bf16.msra.mxu0 0
        %3472 = vmatprep.mubr.bf16.mxu0 0
        %3473 = vmatmul.mubr.bf16.gmra.mxu0 %v3438
        %v3474 = vpop.f32.mrf.mxu0
        %v3475 = vadd.f32 %v3411, %v3474
        %v3476 = vpop.f32.mrf.mxu0
        %v3477 = vpop.f32.mrf.mxu0
        %v3478 = vpop.f32.mrf.mxu0
        %3479 = vdwg.mxu0
        %v3480 = vadd.f32 %v2795, %v3475
        %s3481 = scalar_lea.vmem %s39, 1
        %v3482 = vld [vmem:[%s3481] sm:$0x1]
        %s3483 = scalar_lea.vmem %s41, 1
        %v3484 = vld [vmem:[%s3483] sm:$0x1]
        %v3485 = vsel %vm2802, %v3480, 0.0
        %3486 = vadd.xlane.f32.xlu0 %v3485
        %v3487 = vpop.xlane.xlu0 %3486
        %v3488 = vmul.f32 %v3487, %v2806
        %v3489 = vsub.f32 %v3480, %v3488
        %v3490 = vmul.f32 %v3489, %v3489
        %v3491 = vsel %vm2802, %v3490, 0.0
        %3492 = vadd.xlane.f32.xlu0 %v3491
        %v3493 = vpop.xlane.xlu0 %3492
        %v3494 = vmul.f32 %v3493, %v2806
        %v3495 = vadd.f32 %v3494, 1e-05
        %v3496 = vrsqrt.pop %v3495
        %v3497 = vmul.f32 %v3489, %v3496
        %v3499 = vlaneseq
        %v3500 = vshrl.u32 %v3499, 7
        %v3501 = vsub.s32 0, %v3500
        %v3502 = vrot.slane %v3482, %v3501
        %v3504 = vmul.f32 %v3497, %v3502
        %v3506 = vlaneseq
        %v3507 = vshrl.u32 %v3506, 7
        %v3508 = vsub.s32 0, %v3507
        %v3509 = vrot.slane %v3484, %v3508
        %v3511 = vadd.f32 %v3504, %v3509
        %v3512 = vpack.c.bf16 %v3511, %v3511
        %v3513 = vld [vmem:[%s53] sm:$0xff]
        %v3514 = vld [vmem:[%s53 + $0x8] sm:$0xff]
        %v3515 = vld [vmem:[%s53 + $0x10] sm:$0xff]
        %v3516 = vld [vmem:[%s53 + $0x18] sm:$0xff]
        %v3517 = vld [vmem:[%s53 + $0x20] sm:$0xff]
        %v3518 = vld [vmem:[%s53 + $0x28] sm:$0xff]
        %v3519 = vld [vmem:[%s53 + $0x30] sm:$0xff]
        %v3520 = vld [vmem:[%s53 + $0x38] sm:$0xff]
        %v3521 = vld [vmem:[%s55] sm:$0x3]
        %v3523 = vlaneseq
        %v3524 = vshrl.u32 %v3523, 7
        %v3525 = vsub.s32 0, %v3524
        %v3526 = vrot.slane %v3521, %v3525
        %v3527 = vlaneseq
        %v3528 = vshrl.u32 %v3527, 7
        %v3529 = vsub.s32 1, %v3528
        %v3530 = vrot.slane %v3521, %v3529
        %v3541 = vunpack.c.l.b16 %v3513
        %v3542 = vunpack.c.h.b16 %v3513
        %v3543 = vunpack.c.l.b16 %v3514
        %v3544 = vunpack.c.h.b16 %v3514
        %v3545 = vunpack.c.l.b16 %v3515
        %v3546 = vunpack.c.h.b16 %v3515
        %v3547 = vunpack.c.l.b16 %v3516
        %v3548 = vunpack.c.h.b16 %v3516
        %v3549 = vunpack.c.l.b16 %v3517
        %v3550 = vunpack.c.h.b16 %v3517
        %v3551 = vunpack.c.l.b16 %v3518
        %v3552 = vunpack.c.h.b16 %v3518
        %v3553 = vunpack.c.l.b16 %v3519
        %v3554 = vunpack.c.h.b16 %v3519
        %v3555 = vunpack.c.l.b16 %v3520
        %v3556 = vunpack.c.h.b16 %v3520
        %v3557 = vpack.c.b16 %v3543, %v3541
        %v3558 = vpack.c.b16 %v3544, %v3542
        %v3559 = vpack.c.b16 %v3547, %v3545
        %v3560 = vpack.c.b16 %v3548, %v3546
        %v3561 = vpack.c.b16 %v3551, %v3549
        %v3562 = vpack.c.b16 %v3552, %v3550
        %v3563 = vpack.c.b16 %v3555, %v3553
        %v3564 = vpack.c.b16 %v3556, %v3554
        %v3574 = vsel %vm2630, %v3512, 0
        %3576 = vmatprep.subr.bf16.mxu0 0
        %3577 = vmatpush1.bf16.msra.mxu0 0
        %3578 = vmatprep.subr.bf16.mxu0 0
        %3579 = vmatpush1.bf16.msra.mxu0 0
        %3580 = vmatprep.subr.bf16.mxu0 0
        %3581 = vmatpush1.bf16.msra.mxu0 0
        %3582 = vmatprep.subr.bf16.mxu0 0
        %3583 = vmatpush1.bf16.msra.mxu0 0
        %3584 = vmatprep.subr.bf16.mxu0 %v3564
        %3585 = vmatpush1.bf16.msra.mxu0 %v3563
        %3586 = vmatprep.subr.bf16.mxu0 %v3562
        %3587 = vmatpush1.bf16.msra.mxu0 %v3561
        %3588 = vmatprep.subr.bf16.mxu0 %v3560
        %3589 = vmatpush1.bf16.msra.mxu0 %v3559
        %3590 = vmatprep.subr.bf16.mxu0 %v3558
        %3591 = vmatpush1.bf16.msra.mxu0 %v3557
        %3592 = vmatprep.subr.bf16.mxu0 0
        %3593 = vmatpush2.bf16.msra.mxu0 0
        %3594 = vmatprep.subr.bf16.mxu0 0
        %3595 = vmatpush2.bf16.msra.mxu0 0
        %3596 = vmatprep.subr.bf16.mxu0 0
        %3597 = vmatpush2.bf16.msra.mxu0 0
        %3598 = vmatprep.subr.bf16.mxu0 0
        %3599 = vmatpush2.bf16.msra.mxu0 0
        %3600 = vmatprep.subr.bf16.mxu0 0
        %3601 = vmatpush2.bf16.msra.mxu0 0
        %3602 = vmatprep.subr.bf16.mxu0 0
        %3603 = vmatpush2.bf16.msra.mxu0 0
        %3604 = vmatprep.subr.bf16.mxu0 0
        %3605 = vmatpush2.bf16.msra.mxu0 0
        %3606 = vmatprep.subr.bf16.mxu0 0
        %3607 = vmatpush2.bf16.msra.mxu0 0
        %3608 = vmatprep.mubr.bf16.mxu0 0
        %3609 = vmatmul.mubr.bf16.gmra.mxu0 %v3574
        %v3610 = vpop.f32.mrf.mxu0
        %v3611 = vadd.f32 %v3526, %v3610
        %v3612 = vpop.f32.mrf.mxu0
        %v3613 = vadd.f32 %v3530, %v3612
        %v3614 = vpop.f32.mrf.mxu0
        %v3615 = vpop.f32.mrf.mxu0
        %3616 = vdwg.mxu0
        %v3617 = vmul.f32 %v3611, 0.5
        %v3618 = vmul.f32 %v3613, 0.5
        %v3619 = vmul.f32 %v3611, 0.70710677
        %v3620 = vmul.f32 %v3613, 0.70710677
        %vm3621 = vcmp.ge.f32.partialorder %v3619, 0.0
        %vm3622 = vcmp.ge.f32.partialorder %v3620, 0.0
        %v3623 = vsel %vm3621, 1.0, -1.0
        %v3624 = vsel %vm3622, 1.0, -1.0
        %v3625 = vand.u32 2147483647, %v3619
        %v3626 = vand.u32 2147483647, %v3620
        %v3627 = vmul.f32 %v3625, 0.3275911
        %v3628 = vmul.f32 %v3626, 0.3275911
        %v3629 = vadd.f32 %v3627, 1.0
        %v3630 = vadd.f32 %v3628, 1.0
        %v3631 = vrcp.pop %v3629
        %v3632 = vrcp.pop %v3630
        %v3633 = vmul.f32 %v3631, 1.0614054
        %v3634 = vmul.f32 %v3632, 1.0614054
        %v3635 = vadd.f32 %v3633, -1.4531521
        %v3636 = vadd.f32 %v3634, -1.4531521
        %v3637 = vmul.f32 %v3631, %v3635
        %v3638 = vmul.f32 %v3632, %v3636
        %v3639 = vadd.f32 %v3637, 1.4214138
        %v3640 = vadd.f32 %v3638, 1.4214138
        %v3641 = vmul.f32 %v3631, %v3639
        %v3642 = vmul.f32 %v3632, %v3640
        %v3643 = vadd.f32 %v3641, -0.28449672
        %v3644 = vadd.f32 %v3642, -0.28449672
        %v3645 = vmul.f32 %v3631, %v3643
        %v3646 = vmul.f32 %v3632, %v3644
        %v3647 = vadd.f32 %v3645, 0.2548296
        %v3648 = vadd.f32 %v3646, 0.2548296
        %v3649 = vmul.f32 %v3631, %v3647
        %v3650 = vmul.f32 %v3632, %v3648
        %v3651 = vsub.f32 0.0, %v3625
        %v3652 = vsub.f32 0.0, %v3626
        %v3653 = vmul.f32 %v3651, %v3625
        %v3654 = vmul.f32 %v3652, %v3626
        %v3655 = vmul.f32 %v3653, 1.442695
        %v3656 = vpow.pop %v3655
        %v3657 = vmul.f32 %v3654, 1.442695
        %v3658 = vpow.pop %v3657
        %v3659 = vmul.f32 %v3649, %v3656
        %v3660 = vmul.f32 %v3650, %v3658
        %v3661 = vsub.f32 1.0, %v3659
        %v3662 = vsub.f32 1.0, %v3660
        %v3663 = vmul.f32 %v3623, %v3661
        %v3664 = vmul.f32 %v3624, %v3662
        %v3665 = vadd.f32 %v3663, 1.0
        %v3666 = vadd.f32 %v3664, 1.0
        %v3667 = vmul.f32 %v3617, %v3665
        %v3668 = vmul.f32 %v3618, %v3666
        %v3669 = vpack.c.bf16 %v3667, %v3667
        %v3670 = vpack.c.bf16 %v3668, %v3668
        %v3671 = vld [vmem:[%s57] sm:$0xf]
        %v3672 = vld [vmem:[%s57 + $0x4] sm:$0xf]
        %v3673 = vld [vmem:[%s57 + $0x8] sm:$0xf]
        %v3674 = vld [vmem:[%s57 + $0xc] sm:$0xf]
        %v3675 = vld [vmem:[%s57 + $0x10] sm:$0xf]
        %v3676 = vld [vmem:[%s57 + $0x14] sm:$0xf]
        %v3677 = vld [vmem:[%s57 + $0x18] sm:$0xf]
        %v3678 = vld [vmem:[%s57 + $0x1c] sm:$0xf]
        %v3679 = vld [vmem:[%s57 + $0x20] sm:$0xf]
        %v3680 = vld [vmem:[%s57 + $0x24] sm:$0xf]
        %v3681 = vld [vmem:[%s57 + $0x28] sm:$0xf]
        %v3682 = vld [vmem:[%s57 + $0x2c] sm:$0xf]
        %v3683 = vld [vmem:[%s57 + $0x30] sm:$0xf]
        %v3684 = vld [vmem:[%s57 + $0x34] sm:$0xf]
        %v3685 = vld [vmem:[%s57 + $0x38] sm:$0xf]
        %v3686 = vld [vmem:[%s57 + $0x3c] sm:$0xf]
        %v3687 = vld [vmem:[%s57 + $0x40] sm:$0xf]
        %v3688 = vld [vmem:[%s57 + $0x44] sm:$0xf]
        %v3689 = vld [vmem:[%s57 + $0x48] sm:$0xf]
        %v3690 = vld [vmem:[%s57 + $0x4c] sm:$0xf]
        %v3691 = vld [vmem:[%s57 + $0x50] sm:$0xf]
        %v3692 = vld [vmem:[%s57 + $0x54] sm:$0xf]
        %v3693 = vld [vmem:[%s57 + $0x58] sm:$0xf]
        %v3694 = vld [vmem:[%s57 + $0x5c] sm:$0xf]
        %v3695 = vld [vmem:[%s57 + $0x60] sm:$0xf]
        %v3696 = vld [vmem:[%s57 + $0x64] sm:$0xf]
        %v3697 = vld [vmem:[%s57 + $0x68] sm:$0xf]
        %v3698 = vld [vmem:[%s57 + $0x6c] sm:$0xf]
        %v3699 = vld [vmem:[%s57 + $0x70] sm:$0xf]
        %v3700 = vld [vmem:[%s57 + $0x74] sm:$0xf]
        %v3701 = vld [vmem:[%s57 + $0x78] sm:$0xf]
        %v3702 = vld [vmem:[%s57 + $0x7c] sm:$0xf]
        %v3703 = vld [vmem:[%s59] sm:$0x1]
        %v3705 = vlaneseq
        %v3706 = vshrl.u32 %v3705, 7
        %v3707 = vsub.s32 0, %v3706
        %v3708 = vrot.slane %v3703, %v3707
        %v3742 = vunpack.c.l.b16 %v3671
        %v3743 = vunpack.c.l.b16 %v3672
        %v3744 = vunpack.c.l.b16 %v3673
        %v3745 = vunpack.c.l.b16 %v3674
        %v3746 = vunpack.c.l.b16 %v3675
        %v3747 = vunpack.c.l.b16 %v3676
        %v3748 = vunpack.c.l.b16 %v3677
        %v3749 = vunpack.c.l.b16 %v3678
        %v3750 = vunpack.c.l.b16 %v3679
        %v3751 = vunpack.c.l.b16 %v3680
        %v3752 = vunpack.c.l.b16 %v3681
        %v3753 = vunpack.c.l.b16 %v3682
        %v3754 = vunpack.c.l.b16 %v3683
        %v3755 = vunpack.c.l.b16 %v3684
        %v3756 = vunpack.c.l.b16 %v3685
        %v3757 = vunpack.c.l.b16 %v3686
        %v3758 = vunpack.c.l.b16 %v3687
        %v3759 = vunpack.c.l.b16 %v3688
        %v3760 = vunpack.c.l.b16 %v3689
        %v3761 = vunpack.c.l.b16 %v3690
        %v3762 = vunpack.c.l.b16 %v3691
        %v3763 = vunpack.c.l.b16 %v3692
        %v3764 = vunpack.c.l.b16 %v3693
        %v3765 = vunpack.c.l.b16 %v3694
        %v3766 = vunpack.c.l.b16 %v3695
        %v3767 = vunpack.c.l.b16 %v3696
        %v3768 = vunpack.c.l.b16 %v3697
        %v3769 = vunpack.c.l.b16 %v3698
        %v3770 = vunpack.c.l.b16 %v3699
        %v3771 = vunpack.c.l.b16 %v3700
        %v3772 = vunpack.c.l.b16 %v3701
        %v3773 = vunpack.c.l.b16 %v3702
        %v3774 = vpack.c.b16 %v3743, %v3742
        %v3775 = vpack.c.b16 %v3745, %v3744
        %v3776 = vpack.c.b16 %v3747, %v3746
        %v3777 = vpack.c.b16 %v3749, %v3748
        %v3778 = vpack.c.b16 %v3751, %v3750
        %v3779 = vpack.c.b16 %v3753, %v3752
        %v3780 = vpack.c.b16 %v3755, %v3754
        %v3781 = vpack.c.b16 %v3757, %v3756
        %v3782 = vpack.c.b16 %v3759, %v3758
        %v3783 = vpack.c.b16 %v3761, %v3760
        %v3784 = vpack.c.b16 %v3763, %v3762
        %v3785 = vpack.c.b16 %v3765, %v3764
        %v3786 = vpack.c.b16 %v3767, %v3766
        %v3787 = vpack.c.b16 %v3769, %v3768
        %v3788 = vpack.c.b16 %v3771, %v3770
        %v3789 = vpack.c.b16 %v3773, %v3772
        %3806 = vmatprep.subr.bf16.mxu0 0
        %3807 = vmatpush1.bf16.msra.mxu0 %v3781
        %3808 = vmatprep.subr.bf16.mxu0 0
        %3809 = vmatpush1.bf16.msra.mxu0 %v3780
        %3810 = vmatprep.subr.bf16.mxu0 0
        %3811 = vmatpush1.bf16.msra.mxu0 %v3779
        %3812 = vmatprep.subr.bf16.mxu0 0
        %3813 = vmatpush1.bf16.msra.mxu0 %v3778
        %3814 = vmatprep.subr.bf16.mxu0 0
        %3815 = vmatpush1.bf16.msra.mxu0 %v3777
        %3816 = vmatprep.subr.bf16.mxu0 0
        %3817 = vmatpush1.bf16.msra.mxu0 %v3776
        %3818 = vmatprep.subr.bf16.mxu0 0
        %3819 = vmatpush1.bf16.msra.mxu0 %v3775
        %3820 = vmatprep.subr.bf16.mxu0 0
        %3821 = vmatpush1.bf16.msra.mxu0 %v3774
        %3822 = vmatprep.subr.bf16.mxu0 0
        %3823 = vmatpush2.bf16.msra.mxu0 %v3789
        %3824 = vmatprep.subr.bf16.mxu0 0
        %3825 = vmatpush2.bf16.msra.mxu0 %v3788
        %3826 = vmatprep.subr.bf16.mxu0 0
        %3827 = vmatpush2.bf16.msra.mxu0 %v3787
        %3828 = vmatprep.subr.bf16.mxu0 0
        %3829 = vmatpush2.bf16.msra.mxu0 %v3786
        %3830 = vmatprep.subr.bf16.mxu0 0
        %3831 = vmatpush2.bf16.msra.mxu0 %v3785
        %3832 = vmatprep.subr.bf16.mxu0 0
        %3833 = vmatpush2.bf16.msra.mxu0 %v3784
        %3834 = vmatprep.subr.bf16.mxu0 0
        %3835 = vmatpush2.bf16.msra.mxu0 %v3783
        %3836 = vmatprep.subr.bf16.mxu0 0
        %3837 = vmatpush2.bf16.msra.mxu0 %v3782
        %3838 = vmatprep.mubr.bf16.mxu0 %v3670
        %3839 = vmatmul.mubr.bf16.gmra.mxu0 %v3669
        %v3840 = vpop.f32.mrf.mxu0
        %v3841 = vadd.f32 %v3708, %v3840
        %v3842 = vpop.f32.mrf.mxu0
        %v3843 = vpop.f32.mrf.mxu0
        %v3844 = vpop.f32.mrf.mxu0
        %3845 = vdwg.mxu0
        %v3846 = vadd.f32 %v3480, %v3841
        %s3847 = scalar_lea.vmem %s39, 2
        %v3848 = vld [vmem:[%s3847] sm:$0x1]
        %s3849 = scalar_lea.vmem %s41, 2
        %v3850 = vld [vmem:[%s3849] sm:$0x1]
        %v3851 = vsel %vm2802, %v3846, 0.0
        %3852 = vadd.xlane.f32.xlu0 %v3851
        %v3853 = vpop.xlane.xlu0 %3852
        %v3854 = vmul.f32 %v3853, %v2806
        %v3855 = vsub.f32 %v3846, %v3854
        %v3856 = vmul.f32 %v3855, %v3855
        %v3857 = vsel %vm2802, %v3856, 0.0
        %3858 = vadd.xlane.f32.xlu0 %v3857
        %v3859 = vpop.xlane.xlu0 %3858
        %v3860 = vmul.f32 %v3859, %v2806
        %v3861 = vadd.f32 %v3860, 1e-05
        %v3862 = vrsqrt.pop %v3861
        %v3863 = vmul.f32 %v3855, %v3862
        %v3865 = vlaneseq
        %v3866 = vshrl.u32 %v3865, 7
        %v3867 = vsub.s32 0, %v3866
        %v3868 = vrot.slane %v3848, %v3867
        %v3870 = vmul.f32 %v3863, %v3868
        %v3872 = vlaneseq
        %v3873 = vshrl.u32 %v3872, 7
        %v3874 = vsub.s32 0, %v3873
        %v3875 = vrot.slane %v3850, %v3874
        %v3877 = vadd.f32 %v3870, %v3875
        %v3878 = vpack.c.bf16 %v3877, %v3877
        %s3879 = scalar_lea.vmem %s43, 64
        %v3880 = vld [vmem:[%s3879] sm:$0xff]
        %v3881 = vld [vmem:[%s3879 + $0x8] sm:$0xff]
        %v3882 = vld [vmem:[%s3879 + $0x10] sm:$0xff]
        %v3883 = vld [vmem:[%s3879 + $0x18] sm:$0xff]
        %v3884 = vld [vmem:[%s3879 + $0x20] sm:$0xff]
        %v3885 = vld [vmem:[%s3879 + $0x28] sm:$0xff]
        %v3886 = vld [vmem:[%s3879 + $0x30] sm:$0xff]
        %v3887 = vld [vmem:[%s3879 + $0x38] sm:$0xff]
        %s3888 = scalar_lea.vmem %s45, 2
        %v3889 = vld [vmem:[%s3888] sm:$0x3]
        %v3891 = vlaneseq
        %v3892 = vshrl.u32 %v3891, 7
        %v3893 = vsub.s32 0, %v3892
        %v3894 = vrot.slane %v3889, %v3893
        %v3895 = vlaneseq
        %v3896 = vshrl.u32 %v3895, 7
        %v3897 = vsub.s32 1, %v3896
        %v3898 = vrot.slane %v3889, %v3897
        %v3909 = vunpack.c.l.b16 %v3880
        %v3910 = vunpack.c.h.b16 %v3880
        %v3911 = vunpack.c.l.b16 %v3881
        %v3912 = vunpack.c.h.b16 %v3881
        %v3913 = vunpack.c.l.b16 %v3882
        %v3914 = vunpack.c.h.b16 %v3882
        %v3915 = vunpack.c.l.b16 %v3883
        %v3916 = vunpack.c.h.b16 %v3883
        %v3917 = vunpack.c.l.b16 %v3884
        %v3918 = vunpack.c.h.b16 %v3884
        %v3919 = vunpack.c.l.b16 %v3885
        %v3920 = vunpack.c.h.b16 %v3885
        %v3921 = vunpack.c.l.b16 %v3886
        %v3922 = vunpack.c.h.b16 %v3886
        %v3923 = vunpack.c.l.b16 %v3887
        %v3924 = vunpack.c.h.b16 %v3887
        %v3925 = vpack.c.b16 %v3911, %v3909
        %v3926 = vpack.c.b16 %v3912, %v3910
        %v3927 = vpack.c.b16 %v3915, %v3913
        %v3928 = vpack.c.b16 %v3916, %v3914
        %v3929 = vpack.c.b16 %v3919, %v3917
        %v3930 = vpack.c.b16 %v3920, %v3918
        %v3931 = vpack.c.b16 %v3923, %v3921
        %v3932 = vpack.c.b16 %v3924, %v3922
        %v3942 = vsel %vm2630, %v3878, 0
        %3944 = vmatprep.subr.bf16.mxu0 0
        %3945 = vmatpush1.bf16.msra.mxu0 0
        %3946 = vmatprep.subr.bf16.mxu0 0
        %3947 = vmatpush1.bf16.msra.mxu0 0
        %3948 = vmatprep.subr.bf16.mxu0 0
        %3949 = vmatpush1.bf16.msra.mxu0 0
        %3950 = vmatprep.subr.bf16.mxu0 0
        %3951 = vmatpush1.bf16.msra.mxu0 0
        %3952 = vmatprep.subr.bf16.mxu0 %v3932
        %3953 = vmatpush1.bf16.msra.mxu0 %v3931
        %3954 = vmatprep.subr.bf16.mxu0 %v3930
        %3955 = vmatpush1.bf16.msra.mxu0 %v3929
        %3956 = vmatprep.subr.bf16.mxu0 %v3928
        %3957 = vmatpush1.bf16.msra.mxu0 %v3927
        %3958 = vmatprep.subr.bf16.mxu0 %v3926
        %3959 = vmatpush1.bf16.msra.mxu0 %v3925
        %3960 = vmatprep.subr.bf16.mxu0 0
        %3961 = vmatpush2.bf16.msra.mxu0 0
        %3962 = vmatprep.subr.bf16.mxu0 0
        %3963 = vmatpush2.bf16.msra.mxu0 0
        %3964 = vmatprep.subr.bf16.mxu0 0
        %3965 = vmatpush2.bf16.msra.mxu0 0
        %3966 = vmatprep.subr.bf16.mxu0 0
        %3967 = vmatpush2.bf16.msra.mxu0 0
        %3968 = vmatprep.subr.bf16.mxu0 0
        %3969 = vmatpush2.bf16.msra.mxu0 0
        %3970 = vmatprep.subr.bf16.mxu0 0
        %3971 = vmatpush2.bf16.msra.mxu0 0
        %3972 = vmatprep.subr.bf16.mxu0 0
        %3973 = vmatpush2.bf16.msra.mxu0 0
        %3974 = vmatprep.subr.bf16.mxu0 0
        %3975 = vmatpush2.bf16.msra.mxu0 0
        %3976 = vmatprep.mubr.bf16.mxu0 0
        %3977 = vmatmul.mubr.bf16.gmra.mxu0 %v3942
        %v3978 = vpop.f32.mrf.mxu0
        %v3979 = vadd.f32 %v3894, %v3978
        %v3980 = vpop.f32.mrf.mxu0
        %v3981 = vadd.f32 %v3898, %v3980
        %v3982 = vpop.f32.mrf.mxu0
        %v3983 = vpop.f32.mrf.mxu0
        %3984 = vdwg.mxu0
        %v3985 = vpack.c.bf16 %v3979, %v3979
        %v3986 = vpack.c.bf16 %v3981, %v3981
        %3988 = vrot.lane.b32.xlu0 %v3985, 112
        %v3989 = vpop.permute.xlu0 %3988
        %3990 = vrot.lane.b32.xlu0 %v3985, 96
        %v3991 = vpop.permute.xlu0 %3990
        %3992 = vrot.lane.b32.xlu0 %v3985, 80
        %v3993 = vpop.permute.xlu0 %3992
        %3995 = vrot.lane.b32.xlu0 %v3986, 112
        %v3996 = vpop.permute.xlu0 %3995
        %3997 = vrot.lane.b32.xlu0 %v3986, 96
        %v3998 = vpop.permute.xlu0 %3997
        %3999 = vrot.lane.b32.xlu0 %v3986, 80
        %v4000 = vpop.permute.xlu0 %3999
        %s4001 = scalar_lea.vmem %s51, 16
        %v4002 = vld [vmem:[%s4001] sm:$0xf]
        %v4003 = vld [vmem:[%s4001 + $0x4] sm:$0xf]
        %v4004 = vld [vmem:[%s4001 + $0x8] sm:$0xf]
        %v4005 = vld [vmem:[%s4001 + $0xc] sm:$0xf]
        %4006 = vrot.lane.b32.xlu0 %v3985, 64
        %v4007 = vpop.permute.xlu0 %4006
        %v4009 = vsel %vm1288, %v3985, 0
        %v4012 = vsel %vm1288, %v4007, 0
        %4014 = vmatprep.subr.bf16.mxu0 0
        %4015 = vmatpush1.bf16.xpose.msra.mxu0 0
        %4016 = vmatprep.subr.bf16.mxu0 0
        %4017 = vmatpush1.bf16.xpose.msra.mxu0 0
        %4018 = vmatprep.subr.bf16.mxu0 0
        %4019 = vmatpush1.bf16.xpose.msra.mxu0 0
        %4020 = vmatprep.subr.bf16.mxu0 0
        %4021 = vmatpush1.bf16.xpose.msra.mxu0 0
        %4022 = vmatprep.subr.bf16.mxu0 0
        %4023 = vmatpush1.bf16.xpose.msra.mxu0 0
        %4024 = vmatprep.subr.bf16.mxu0 0
        %4025 = vmatpush1.bf16.xpose.msra.mxu0 0
        %4026 = vmatprep.subr.bf16.mxu0 0
        %4027 = vmatpush1.bf16.xpose.msra.mxu0 0
        %4028 = vmatprep.subr.bf16.mxu0 0
        %4029 = vmatpush1.bf16.xpose.msra.mxu0 %v4012
        %4030 = vmatprep.subr.bf16.mxu0 0
        %4031 = vmatpush2.bf16.xpose.msra.mxu0 0
        %4032 = vmatprep.subr.bf16.mxu0 0
        %4033 = vmatpush2.bf16.xpose.msra.mxu0 0
        %4034 = vmatprep.subr.bf16.mxu0 0
        %4035 = vmatpush2.bf16.xpose.msra.mxu0 0
        %4036 = vmatprep.subr.bf16.mxu0 0
        %4037 = vmatpush2.bf16.xpose.msra.mxu0 0
        %4038 = vmatprep.subr.bf16.mxu0 0
        %4039 = vmatpush2.bf16.xpose.msra.mxu0 0
        %4040 = vmatprep.subr.bf16.mxu0 0
        %4041 = vmatpush2.bf16.xpose.msra.mxu0 0
        %4042 = vmatprep.subr.bf16.mxu0 0
        %4043 = vmatpush2.bf16.xpose.msra.mxu0 0
        %4044 = vmatprep.subr.bf16.mxu0 0
        %4045 = vmatpush2.bf16.xpose.msra.mxu0 0
        %4046 = vmatprep.mubr.bf16.mxu0 0
        %4047 = vmatmul.mubr.bf16.gmra.mxu0 %v4009
        %v4048 = vpop.f32.mrf.mxu0
        %v4049 = vadd.f32 %v4002, %v4048
        %v4050 = vpop.f32.mrf.mxu0
        %v4051 = vpop.f32.mrf.mxu0
        %v4052 = vpop.f32.mrf.mxu0
        %4053 = vdwg.mxu0
        %4054 = vrot.lane.b32.xlu0 %v3989, 64
        %v4055 = vpop.permute.xlu0 %4054
        %v4057 = vsel %vm1288, %v3989, 0
        %v4060 = vsel %vm1288, %v4055, 0
        %4062 = vmatprep.subr.bf16.mxu0 0
        %4063 = vmatpush1.bf16.xpose.msra.mxu0 0
        %4064 = vmatprep.subr.bf16.mxu0 0
        %4065 = vmatpush1.bf16.xpose.msra.mxu0 0
        %4066 = vmatprep.subr.bf16.mxu0 0
        %4067 = vmatpush1.bf16.xpose.msra.mxu0 0
        %4068 = vmatprep.subr.bf16.mxu0 0
        %4069 = vmatpush1.bf16.xpose.msra.mxu0 0
        %4070 = vmatprep.subr.bf16.mxu0 0
        %4071 = vmatpush1.bf16.xpose.msra.mxu0 0
        %4072 = vmatprep.subr.bf16.mxu0 0
        %4073 = vmatpush1.bf16.xpose.msra.mxu0 0
        %4074 = vmatprep.subr.bf16.mxu0 0
        %4075 = vmatpush1.bf16.xpose.msra.mxu0 0
        %4076 = vmatprep.subr.bf16.mxu0 0
        %4077 = vmatpush1.bf16.xpose.msra.mxu0 %v4060
        %4078 = vmatprep.subr.bf16.mxu0 0
        %4079 = vmatpush2.bf16.xpose.msra.mxu0 0
        %4080 = vmatprep.subr.bf16.mxu0 0
        %4081 = vmatpush2.bf16.xpose.msra.mxu0 0
        %4082 = vmatprep.subr.bf16.mxu0 0
        %4083 = vmatpush2.bf16.xpose.msra.mxu0 0
        %4084 = vmatprep.subr.bf16.mxu0 0
        %4085 = vmatpush2.bf16.xpose.msra.mxu0 0
        %4086 = vmatprep.subr.bf16.mxu0 0
        %4087 = vmatpush2.bf16.xpose.msra.mxu0 0
        %4088 = vmatprep.subr.bf16.mxu0 0
        %4089 = vmatpush2.bf16.xpose.msra.mxu0 0
        %4090 = vmatprep.subr.bf16.mxu0 0
        %4091 = vmatpush2.bf16.xpose.msra.mxu0 0
        %4092 = vmatprep.subr.bf16.mxu0 0
        %4093 = vmatpush2.bf16.xpose.msra.mxu0 0
        %4094 = vmatprep.mubr.bf16.mxu0 0
        %4095 = vmatmul.mubr.bf16.gmra.mxu0 %v4057
        %v4096 = vpop.f32.mrf.mxu0
        %v4097 = vadd.f32 %v4003, %v4096
        %v4098 = vpop.f32.mrf.mxu0
        %v4099 = vpop.f32.mrf.mxu0
        %v4100 = vpop.f32.mrf.mxu0
        %4101 = vdwg.mxu0
        %4102 = vrot.lane.b32.xlu0 %v3991, 64
        %v4103 = vpop.permute.xlu0 %4102
        %v4105 = vsel %vm1288, %v3991, 0
        %v4108 = vsel %vm1288, %v4103, 0
        %4110 = vmatprep.subr.bf16.mxu0 0
        %4111 = vmatpush1.bf16.xpose.msra.mxu0 0
        %4112 = vmatprep.subr.bf16.mxu0 0
        %4113 = vmatpush1.bf16.xpose.msra.mxu0 0
        %4114 = vmatprep.subr.bf16.mxu0 0
        %4115 = vmatpush1.bf16.xpose.msra.mxu0 0
        %4116 = vmatprep.subr.bf16.mxu0 0
        %4117 = vmatpush1.bf16.xpose.msra.mxu0 0
        %4118 = vmatprep.subr.bf16.mxu0 0
        %4119 = vmatpush1.bf16.xpose.msra.mxu0 0
        %4120 = vmatprep.subr.bf16.mxu0 0
        %4121 = vmatpush1.bf16.xpose.msra.mxu0 0
        %4122 = vmatprep.subr.bf16.mxu0 0
        %4123 = vmatpush1.bf16.xpose.msra.mxu0 0
        %4124 = vmatprep.subr.bf16.mxu0 0
        %4125 = vmatpush1.bf16.xpose.msra.mxu0 %v4108
        %4126 = vmatprep.subr.bf16.mxu0 0
        %4127 = vmatpush2.bf16.xpose.msra.mxu0 0
        %4128 = vmatprep.subr.bf16.mxu0 0
        %4129 = vmatpush2.bf16.xpose.msra.mxu0 0
        %4130 = vmatprep.subr.bf16.mxu0 0
        %4131 = vmatpush2.bf16.xpose.msra.mxu0 0
        %4132 = vmatprep.subr.bf16.mxu0 0
        %4133 = vmatpush2.bf16.xpose.msra.mxu0 0
        %4134 = vmatprep.subr.bf16.mxu0 0
        %4135 = vmatpush2.bf16.xpose.msra.mxu0 0
        %4136 = vmatprep.subr.bf16.mxu0 0
        %4137 = vmatpush2.bf16.xpose.msra.mxu0 0
        %4138 = vmatprep.subr.bf16.mxu0 0
        %4139 = vmatpush2.bf16.xpose.msra.mxu0 0
        %4140 = vmatprep.subr.bf16.mxu0 0
        %4141 = vmatpush2.bf16.xpose.msra.mxu0 0
        %4142 = vmatprep.mubr.bf16.mxu0 0
        %4143 = vmatmul.mubr.bf16.gmra.mxu0 %v4105
        %v4144 = vpop.f32.mrf.mxu0
        %v4145 = vadd.f32 %v4004, %v4144
        %v4146 = vpop.f32.mrf.mxu0
        %v4147 = vpop.f32.mrf.mxu0
        %v4148 = vpop.f32.mrf.mxu0
        %4149 = vdwg.mxu0
        %4150 = vrot.lane.b32.xlu0 %v3993, 64
        %v4151 = vpop.permute.xlu0 %4150
        %v4153 = vsel %vm1288, %v3993, 0
        %v4156 = vsel %vm1288, %v4151, 0
        %4158 = vmatprep.subr.bf16.mxu0 0
        %4159 = vmatpush1.bf16.xpose.msra.mxu0 0
        %4160 = vmatprep.subr.bf16.mxu0 0
        %4161 = vmatpush1.bf16.xpose.msra.mxu0 0
        %4162 = vmatprep.subr.bf16.mxu0 0
        %4163 = vmatpush1.bf16.xpose.msra.mxu0 0
        %4164 = vmatprep.subr.bf16.mxu0 0
        %4165 = vmatpush1.bf16.xpose.msra.mxu0 0
        %4166 = vmatprep.subr.bf16.mxu0 0
        %4167 = vmatpush1.bf16.xpose.msra.mxu0 0
        %4168 = vmatprep.subr.bf16.mxu0 0
        %4169 = vmatpush1.bf16.xpose.msra.mxu0 0
        %4170 = vmatprep.subr.bf16.mxu0 0
        %4171 = vmatpush1.bf16.xpose.msra.mxu0 0
        %4172 = vmatprep.subr.bf16.mxu0 0
        %4173 = vmatpush1.bf16.xpose.msra.mxu0 %v4156
        %4174 = vmatprep.subr.bf16.mxu0 0
        %4175 = vmatpush2.bf16.xpose.msra.mxu0 0
        %4176 = vmatprep.subr.bf16.mxu0 0
        %4177 = vmatpush2.bf16.xpose.msra.mxu0 0
        %4178 = vmatprep.subr.bf16.mxu0 0
        %4179 = vmatpush2.bf16.xpose.msra.mxu0 0
        %4180 = vmatprep.subr.bf16.mxu0 0
        %4181 = vmatpush2.bf16.xpose.msra.mxu0 0
        %4182 = vmatprep.subr.bf16.mxu0 0
        %4183 = vmatpush2.bf16.xpose.msra.mxu0 0
        %4184 = vmatprep.subr.bf16.mxu0 0
        %4185 = vmatpush2.bf16.xpose.msra.mxu0 0
        %4186 = vmatprep.subr.bf16.mxu0 0
        %4187 = vmatpush2.bf16.xpose.msra.mxu0 0
        %4188 = vmatprep.subr.bf16.mxu0 0
        %4189 = vmatpush2.bf16.xpose.msra.mxu0 0
        %4190 = vmatprep.mubr.bf16.mxu0 0
        %4191 = vmatmul.mubr.bf16.gmra.mxu0 %v4153
        %v4192 = vpop.f32.mrf.mxu0
        %v4193 = vadd.f32 %v4005, %v4192
        %v4194 = vpop.f32.mrf.mxu0
        %v4195 = vpop.f32.mrf.mxu0
        %v4196 = vpop.f32.mrf.mxu0
        %4197 = vdwg.mxu0
        %v4198 = vsel %vm3148, %v4049, -inf
        %4199 = vmax.xlane.f32.xlu0 %v4198
        %v4200 = vpop.xlane.xlu0 %4199
        %v4201 = vsel %vm3148, %v4097, -inf
        %4202 = vmax.xlane.f32.xlu0 %v4201
        %v4203 = vpop.xlane.xlu0 %4202
        %v4204 = vsel %vm3148, %v4145, -inf
        %4205 = vmax.xlane.f32.xlu0 %v4204
        %v4206 = vpop.xlane.xlu0 %4205
        %v4207 = vsel %vm3148, %v4193, -inf
        %4208 = vmax.xlane.f32.xlu0 %v4207
        %v4209 = vpop.xlane.xlu0 %4208
        %v4210 = vsub.f32 %v4049, %v4200
        %v4211 = vsub.f32 %v4097, %v4203
        %v4212 = vsub.f32 %v4145, %v4206
        %v4213 = vsub.f32 %v4193, %v4209
        %v4214 = vmul.f32 %v4210, 1.442695
        %v4215 = vpow.pop %v4214
        %v4216 = vmul.f32 %v4211, 1.442695
        %v4217 = vpow.pop %v4216
        %v4218 = vmul.f32 %v4212, 1.442695
        %v4219 = vpow.pop %v4218
        %v4220 = vmul.f32 %v4213, 1.442695
        %v4221 = vpow.pop %v4220
        %v4222 = vsel %vm3148, %v4215, 0.0
        %4223 = vadd.xlane.f32.xlu0 %v4222
        %v4224 = vpop.xlane.xlu0 %4223
        %v4225 = vsel %vm3148, %v4217, 0.0
        %4226 = vadd.xlane.f32.xlu0 %v4225
        %v4227 = vpop.xlane.xlu0 %4226
        %v4228 = vsel %vm3148, %v4219, 0.0
        %4229 = vadd.xlane.f32.xlu0 %v4228
        %v4230 = vpop.xlane.xlu0 %4229
        %v4231 = vsel %vm3148, %v4221, 0.0
        %4232 = vadd.xlane.f32.xlu0 %v4231
        %v4233 = vpop.xlane.xlu0 %4232
        %v4234 = vrcp.pop %v4224
        %v4235 = vrcp.pop %v4227
        %v4236 = vrcp.pop %v4230
        %v4237 = vrcp.pop %v4233
        %v4238 = vmul.f32 %v4215, %v4234
        %v4239 = vmul.f32 %v4217, %v4235
        %v4240 = vmul.f32 %v4219, %v4236
        %v4241 = vmul.f32 %v4221, %v4237
        %v4242 = vpack.c.bf16 %v4238, %v4238
        %v4243 = vpack.c.bf16 %v4239, %v4239
        %v4244 = vpack.c.bf16 %v4240, %v4240
        %v4245 = vpack.c.bf16 %v4241, %v4241
        %v4247 = vsel %vm3197, %v4242, 0
        %v4250 = vsel %vm2660, %v3986, 0
        %4252 = vmatprep.subr.bf16.mxu0 0
        %4253 = vmatpush1.bf16.msra.mxu0 0
        %4254 = vmatprep.subr.bf16.mxu0 0
        %4255 = vmatpush1.bf16.msra.mxu0 0
        %4256 = vmatprep.subr.bf16.mxu0 0
        %4257 = vmatpush1.bf16.msra.mxu0 0
        %4258 = vmatprep.subr.bf16.mxu0 0
        %4259 = vmatpush1.bf16.msra.mxu0 0
        %4260 = vmatprep.subr.bf16.mxu0 0
        %4261 = vmatpush1.bf16.msra.mxu0 0
        %4262 = vmatprep.subr.bf16.mxu0 0
        %4263 = vmatpush1.bf16.msra.mxu0 0
        %4264 = vmatprep.subr.bf16.mxu0 0
        %4265 = vmatpush1.bf16.msra.mxu0 0
        %4266 = vmatprep.subr.bf16.mxu0 0
        %4267 = vmatpush1.bf16.msra.mxu0 %v4250
        %4268 = vmatprep.subr.bf16.mxu0 0
        %4269 = vmatpush2.bf16.msra.mxu0 0
        %4270 = vmatprep.subr.bf16.mxu0 0
        %4271 = vmatpush2.bf16.msra.mxu0 0
        %4272 = vmatprep.subr.bf16.mxu0 0
        %4273 = vmatpush2.bf16.msra.mxu0 0
        %4274 = vmatprep.subr.bf16.mxu0 0
        %4275 = vmatpush2.bf16.msra.mxu0 0
        %4276 = vmatprep.subr.bf16.mxu0 0
        %4277 = vmatpush2.bf16.msra.mxu0 0
        %4278 = vmatprep.subr.bf16.mxu0 0
        %4279 = vmatpush2.bf16.msra.mxu0 0
        %4280 = vmatprep.subr.bf16.mxu0 0
        %4281 = vmatpush2.bf16.msra.mxu0 0
        %4282 = vmatprep.subr.bf16.mxu0 0
        %4283 = vmatpush2.bf16.msra.mxu0 0
        %4284 = vmatprep.mubr.bf16.mxu0 0
        %4285 = vmatmul.mubr.bf16.gmra.mxu0 %v4247
        %v4286 = vpop.f32.mrf.mxu0
        %v4287 = vadd.f32 0.0, %v4286
        %v4288 = vpop.f32.mrf.mxu0
        %v4289 = vpop.f32.mrf.mxu0
        %v4290 = vpop.f32.mrf.mxu0
        %4291 = vdwg.mxu0
        %v4293 = vsel %vm3197, %v4243, 0
        %v4296 = vsel %vm2660, %v3996, 0
        %4298 = vmatprep.subr.bf16.mxu0 0
        %4299 = vmatpush1.bf16.msra.mxu0 0
        %4300 = vmatprep.subr.bf16.mxu0 0
        %4301 = vmatpush1.bf16.msra.mxu0 0
        %4302 = vmatprep.subr.bf16.mxu0 0
        %4303 = vmatpush1.bf16.msra.mxu0 0
        %4304 = vmatprep.subr.bf16.mxu0 0
        %4305 = vmatpush1.bf16.msra.mxu0 0
        %4306 = vmatprep.subr.bf16.mxu0 0
        %4307 = vmatpush1.bf16.msra.mxu0 0
        %4308 = vmatprep.subr.bf16.mxu0 0
        %4309 = vmatpush1.bf16.msra.mxu0 0
        %4310 = vmatprep.subr.bf16.mxu0 0
        %4311 = vmatpush1.bf16.msra.mxu0 0
        %4312 = vmatprep.subr.bf16.mxu0 0
        %4313 = vmatpush1.bf16.msra.mxu0 %v4296
        %4314 = vmatprep.subr.bf16.mxu0 0
        %4315 = vmatpush2.bf16.msra.mxu0 0
        %4316 = vmatprep.subr.bf16.mxu0 0
        %4317 = vmatpush2.bf16.msra.mxu0 0
        %4318 = vmatprep.subr.bf16.mxu0 0
        %4319 = vmatpush2.bf16.msra.mxu0 0
        %4320 = vmatprep.subr.bf16.mxu0 0
        %4321 = vmatpush2.bf16.msra.mxu0 0
        %4322 = vmatprep.subr.bf16.mxu0 0
        %4323 = vmatpush2.bf16.msra.mxu0 0
        %4324 = vmatprep.subr.bf16.mxu0 0
        %4325 = vmatpush2.bf16.msra.mxu0 0
        %4326 = vmatprep.subr.bf16.mxu0 0
        %4327 = vmatpush2.bf16.msra.mxu0 0
        %4328 = vmatprep.subr.bf16.mxu0 0
        %4329 = vmatpush2.bf16.msra.mxu0 0
        %4330 = vmatprep.mubr.bf16.mxu0 0
        %4331 = vmatmul.mubr.bf16.gmra.mxu0 %v4293
        %v4332 = vpop.f32.mrf.mxu0
        %v4333 = vadd.f32 0.0, %v4332
        %v4334 = vpop.f32.mrf.mxu0
        %v4335 = vpop.f32.mrf.mxu0
        %v4336 = vpop.f32.mrf.mxu0
        %4337 = vdwg.mxu0
        %v4339 = vsel %vm3197, %v4244, 0
        %v4342 = vsel %vm2660, %v3998, 0
        %4344 = vmatprep.subr.bf16.mxu0 0
        %4345 = vmatpush1.bf16.msra.mxu0 0
        %4346 = vmatprep.subr.bf16.mxu0 0
        %4347 = vmatpush1.bf16.msra.mxu0 0
        %4348 = vmatprep.subr.bf16.mxu0 0
        %4349 = vmatpush1.bf16.msra.mxu0 0
        %4350 = vmatprep.subr.bf16.mxu0 0
        %4351 = vmatpush1.bf16.msra.mxu0 0
        %4352 = vmatprep.subr.bf16.mxu0 0
        %4353 = vmatpush1.bf16.msra.mxu0 0
        %4354 = vmatprep.subr.bf16.mxu0 0
        %4355 = vmatpush1.bf16.msra.mxu0 0
        %4356 = vmatprep.subr.bf16.mxu0 0
        %4357 = vmatpush1.bf16.msra.mxu0 0
        %4358 = vmatprep.subr.bf16.mxu0 0
        %4359 = vmatpush1.bf16.msra.mxu0 %v4342
        %4360 = vmatprep.subr.bf16.mxu0 0
        %4361 = vmatpush2.bf16.msra.mxu0 0
        %4362 = vmatprep.subr.bf16.mxu0 0
        %4363 = vmatpush2.bf16.msra.mxu0 0
        %4364 = vmatprep.subr.bf16.mxu0 0
        %4365 = vmatpush2.bf16.msra.mxu0 0
        %4366 = vmatprep.subr.bf16.mxu0 0
        %4367 = vmatpush2.bf16.msra.mxu0 0
        %4368 = vmatprep.subr.bf16.mxu0 0
        %4369 = vmatpush2.bf16.msra.mxu0 0
        %4370 = vmatprep.subr.bf16.mxu0 0
        %4371 = vmatpush2.bf16.msra.mxu0 0
        %4372 = vmatprep.subr.bf16.mxu0 0
        %4373 = vmatpush2.bf16.msra.mxu0 0
        %4374 = vmatprep.subr.bf16.mxu0 0
        %4375 = vmatpush2.bf16.msra.mxu0 0
        %4376 = vmatprep.mubr.bf16.mxu0 0
        %4377 = vmatmul.mubr.bf16.gmra.mxu0 %v4339
        %v4378 = vpop.f32.mrf.mxu0
        %v4379 = vadd.f32 0.0, %v4378
        %v4380 = vpop.f32.mrf.mxu0
        %v4381 = vpop.f32.mrf.mxu0
        %v4382 = vpop.f32.mrf.mxu0
        %4383 = vdwg.mxu0
        %v4385 = vsel %vm3197, %v4245, 0
        %v4388 = vsel %vm2660, %v4000, 0
        %4390 = vmatprep.subr.bf16.mxu0 0
        %4391 = vmatpush1.bf16.msra.mxu0 0
        %4392 = vmatprep.subr.bf16.mxu0 0
        %4393 = vmatpush1.bf16.msra.mxu0 0
        %4394 = vmatprep.subr.bf16.mxu0 0
        %4395 = vmatpush1.bf16.msra.mxu0 0
        %4396 = vmatprep.subr.bf16.mxu0 0
        %4397 = vmatpush1.bf16.msra.mxu0 0
        %4398 = vmatprep.subr.bf16.mxu0 0
        %4399 = vmatpush1.bf16.msra.mxu0 0
        %4400 = vmatprep.subr.bf16.mxu0 0
        %4401 = vmatpush1.bf16.msra.mxu0 0
        %4402 = vmatprep.subr.bf16.mxu0 0
        %4403 = vmatpush1.bf16.msra.mxu0 0
        %4404 = vmatprep.subr.bf16.mxu0 0
        %4405 = vmatpush1.bf16.msra.mxu0 %v4388
        %4406 = vmatprep.subr.bf16.mxu0 0
        %4407 = vmatpush2.bf16.msra.mxu0 0
        %4408 = vmatprep.subr.bf16.mxu0 0
        %4409 = vmatpush2.bf16.msra.mxu0 0
        %4410 = vmatprep.subr.bf16.mxu0 0
        %4411 = vmatpush2.bf16.msra.mxu0 0
        %4412 = vmatprep.subr.bf16.mxu0 0
        %4413 = vmatpush2.bf16.msra.mxu0 0
        %4414 = vmatprep.subr.bf16.mxu0 0
        %4415 = vmatpush2.bf16.msra.mxu0 0
        %4416 = vmatprep.subr.bf16.mxu0 0
        %4417 = vmatpush2.bf16.msra.mxu0 0
        %4418 = vmatprep.subr.bf16.mxu0 0
        %4419 = vmatpush2.bf16.msra.mxu0 0
        %4420 = vmatprep.subr.bf16.mxu0 0
        %4421 = vmatpush2.bf16.msra.mxu0 0
        %4422 = vmatprep.mubr.bf16.mxu0 0
        %4423 = vmatmul.mubr.bf16.gmra.mxu0 %v4385
        %v4424 = vpop.f32.mrf.mxu0
        %v4425 = vadd.f32 0.0, %v4424
        %v4426 = vpop.f32.mrf.mxu0
        %v4427 = vpop.f32.mrf.mxu0
        %v4428 = vpop.f32.mrf.mxu0
        %4429 = vdwg.mxu0
        %4431 = vrot.lane.b32.xlu0 %v4333, 16
        %v4432 = vpop.permute.xlu0 %4431
        %4435 = vrot.lane.b32.xlu0 %v4379, 32
        %v4436 = vpop.permute.xlu0 %4435
        %4439 = vrot.lane.b32.xlu0 %v4425, 48
        %v4440 = vpop.permute.xlu0 %4439
        %v4442 = vsel %vm1288, %v4287, %v4432
        %v4443 = vsel %vm1122, %v4442, %v4436
        %v4444 = vsel %vm1075, %v4443, %v4440
        %v4445 = vpack.c.bf16 %v4444, %v4444
        %s4446 = scalar_lea.vmem %s47, 32
        %v4447 = vld [vmem:[%s4446] sm:$0xf]
        %v4448 = vld [vmem:[%s4446 + $0x4] sm:$0xf]
        %v4449 = vld [vmem:[%s4446 + $0x8] sm:$0xf]
        %v4450 = vld [vmem:[%s4446 + $0xc] sm:$0xf]
        %v4451 = vld [vmem:[%s4446 + $0x10] sm:$0xf]
        %v4452 = vld [vmem:[%s4446 + $0x14] sm:$0xf]
        %v4453 = vld [vmem:[%s4446 + $0x18] sm:$0xf]
        %v4454 = vld [vmem:[%s4446 + $0x1c] sm:$0xf]
        %s4455 = scalar_lea.vmem %s49, 1
        %v4456 = vld [vmem:[%s4455] sm:$0x1]
        %v4458 = vlaneseq
        %v4459 = vshrl.u32 %v4458, 7
        %v4460 = vsub.s32 0, %v4459
        %v4461 = vrot.slane %v4456, %v4460
        %v4471 = vunpack.c.l.b16 %v4447
        %v4472 = vunpack.c.l.b16 %v4448
        %v4473 = vunpack.c.l.b16 %v4449
        %v4474 = vunpack.c.l.b16 %v4450
        %v4475 = vunpack.c.l.b16 %v4451
        %v4476 = vunpack.c.l.b16 %v4452
        %v4477 = vunpack.c.l.b16 %v4453
        %v4478 = vunpack.c.l.b16 %v4454
        %v4479 = vpack.c.b16 %v4472, %v4471
        %v4480 = vpack.c.b16 %v4474, %v4473
        %v4481 = vpack.c.b16 %v4476, %v4475
        %v4482 = vpack.c.b16 %v4478, %v4477
        %v4488 = vsel %vm2630, %v4445, 0
        %4490 = vmatprep.subr.bf16.mxu0 0
        %4491 = vmatpush1.bf16.msra.mxu0 0
        %4492 = vmatprep.subr.bf16.mxu0 0
        %4493 = vmatpush1.bf16.msra.mxu0 0
        %4494 = vmatprep.subr.bf16.mxu0 0
        %4495 = vmatpush1.bf16.msra.mxu0 0
        %4496 = vmatprep.subr.bf16.mxu0 0
        %4497 = vmatpush1.bf16.msra.mxu0 0
        %4498 = vmatprep.subr.bf16.mxu0 0
        %4499 = vmatpush1.bf16.msra.mxu0 %v4482
        %4500 = vmatprep.subr.bf16.mxu0 0
        %4501 = vmatpush1.bf16.msra.mxu0 %v4481
        %4502 = vmatprep.subr.bf16.mxu0 0
        %4503 = vmatpush1.bf16.msra.mxu0 %v4480
        %4504 = vmatprep.subr.bf16.mxu0 0
        %4505 = vmatpush1.bf16.msra.mxu0 %v4479
        %4506 = vmatprep.subr.bf16.mxu0 0
        %4507 = vmatpush2.bf16.msra.mxu0 0
        %4508 = vmatprep.subr.bf16.mxu0 0
        %4509 = vmatpush2.bf16.msra.mxu0 0
        %4510 = vmatprep.subr.bf16.mxu0 0
        %4511 = vmatpush2.bf16.msra.mxu0 0
        %4512 = vmatprep.subr.bf16.mxu0 0
        %4513 = vmatpush2.bf16.msra.mxu0 0
        %4514 = vmatprep.subr.bf16.mxu0 0
        %4515 = vmatpush2.bf16.msra.mxu0 0
        %4516 = vmatprep.subr.bf16.mxu0 0
        %4517 = vmatpush2.bf16.msra.mxu0 0
        %4518 = vmatprep.subr.bf16.mxu0 0
        %4519 = vmatpush2.bf16.msra.mxu0 0
        %4520 = vmatprep.subr.bf16.mxu0 0
        %4521 = vmatpush2.bf16.msra.mxu0 0
        %4522 = vmatprep.mubr.bf16.mxu0 0
        %4523 = vmatmul.mubr.bf16.gmra.mxu0 %v4488
        %v4524 = vpop.f32.mrf.mxu0
        %v4525 = vadd.f32 %v4461, %v4524
        %v4526 = vpop.f32.mrf.mxu0
        %v4527 = vpop.f32.mrf.mxu0
        %v4528 = vpop.f32.mrf.mxu0
        %4529 = vdwg.mxu0
        %v4530 = vadd.f32 %v3846, %v4525
        %s4531 = scalar_lea.vmem %s39, 3
        %v4532 = vld [vmem:[%s4531] sm:$0x1]
        %s4533 = scalar_lea.vmem %s41, 3
        %v4534 = vld [vmem:[%s4533] sm:$0x1]
        %v4535 = vsel %vm2802, %v4530, 0.0
        %4536 = vadd.xlane.f32.xlu0 %v4535
        %v4537 = vpop.xlane.xlu0 %4536
        %v4538 = vmul.f32 %v4537, %v2806
        %v4539 = vsub.f32 %v4530, %v4538
        %v4540 = vmul.f32 %v4539, %v4539
        %v4541 = vsel %vm2802, %v4540, 0.0
        %4542 = vadd.xlane.f32.xlu0 %v4541
        %v4543 = vpop.xlane.xlu0 %4542
        %v4544 = vmul.f32 %v4543, %v2806
        %v4545 = vadd.f32 %v4544, 1e-05
        %v4546 = vrsqrt.pop %v4545
        %v4547 = vmul.f32 %v4539, %v4546
        %v4549 = vlaneseq
        %v4550 = vshrl.u32 %v4549, 7
        %v4551 = vsub.s32 0, %v4550
        %v4552 = vrot.slane %v4532, %v4551
        %v4554 = vmul.f32 %v4547, %v4552
        %v4556 = vlaneseq
        %v4557 = vshrl.u32 %v4556, 7
        %v4558 = vsub.s32 0, %v4557
        %v4559 = vrot.slane %v4534, %v4558
        %v4561 = vadd.f32 %v4554, %v4559
        %v4562 = vpack.c.bf16 %v4561, %v4561
        %s4563 = scalar_lea.vmem %s53, 64
        %v4564 = vld [vmem:[%s4563] sm:$0xff]
        %v4565 = vld [vmem:[%s4563 + $0x8] sm:$0xff]
        %v4566 = vld [vmem:[%s4563 + $0x10] sm:$0xff]
        %v4567 = vld [vmem:[%s4563 + $0x18] sm:$0xff]
        %v4568 = vld [vmem:[%s4563 + $0x20] sm:$0xff]
        %v4569 = vld [vmem:[%s4563 + $0x28] sm:$0xff]
        %v4570 = vld [vmem:[%s4563 + $0x30] sm:$0xff]
        %v4571 = vld [vmem:[%s4563 + $0x38] sm:$0xff]
        %s4572 = scalar_lea.vmem %s55, 2
        %v4573 = vld [vmem:[%s4572] sm:$0x3]
        %v4575 = vlaneseq
        %v4576 = vshrl.u32 %v4575, 7
        %v4577 = vsub.s32 0, %v4576
        %v4578 = vrot.slane %v4573, %v4577
        %v4579 = vlaneseq
        %v4580 = vshrl.u32 %v4579, 7
        %v4581 = vsub.s32 1, %v4580
        %v4582 = vrot.slane %v4573, %v4581
        %v4593 = vunpack.c.l.b16 %v4564
        %v4594 = vunpack.c.h.b16 %v4564
        %v4595 = vunpack.c.l.b16 %v4565
        %v4596 = vunpack.c.h.b16 %v4565
        %v4597 = vunpack.c.l.b16 %v4566
        %v4598 = vunpack.c.h.b16 %v4566
        %v4599 = vunpack.c.l.b16 %v4567
        %v4600 = vunpack.c.h.b16 %v4567
        %v4601 = vunpack.c.l.b16 %v4568
        %v4602 = vunpack.c.h.b16 %v4568
        %v4603 = vunpack.c.l.b16 %v4569
        %v4604 = vunpack.c.h.b16 %v4569
        %v4605 = vunpack.c.l.b16 %v4570
        %v4606 = vunpack.c.h.b16 %v4570
        %v4607 = vunpack.c.l.b16 %v4571
        %v4608 = vunpack.c.h.b16 %v4571
        %v4609 = vpack.c.b16 %v4595, %v4593
        %v4610 = vpack.c.b16 %v4596, %v4594
        %v4611 = vpack.c.b16 %v4599, %v4597
        %v4612 = vpack.c.b16 %v4600, %v4598
        %v4613 = vpack.c.b16 %v4603, %v4601
        %v4614 = vpack.c.b16 %v4604, %v4602
        %v4615 = vpack.c.b16 %v4607, %v4605
        %v4616 = vpack.c.b16 %v4608, %v4606
        %v4626 = vsel %vm2630, %v4562, 0
        %4628 = vmatprep.subr.bf16.mxu0 0
        %4629 = vmatpush1.bf16.msra.mxu0 0
        %4630 = vmatprep.subr.bf16.mxu0 0
        %4631 = vmatpush1.bf16.msra.mxu0 0
        %4632 = vmatprep.subr.bf16.mxu0 0
        %4633 = vmatpush1.bf16.msra.mxu0 0
        %4634 = vmatprep.subr.bf16.mxu0 0
        %4635 = vmatpush1.bf16.msra.mxu0 0
        %4636 = vmatprep.subr.bf16.mxu0 %v4616
        %4637 = vmatpush1.bf16.msra.mxu0 %v4615
        %4638 = vmatprep.subr.bf16.mxu0 %v4614
        %4639 = vmatpush1.bf16.msra.mxu0 %v4613
        %4640 = vmatprep.subr.bf16.mxu0 %v4612
        %4641 = vmatpush1.bf16.msra.mxu0 %v4611
        %4642 = vmatprep.subr.bf16.mxu0 %v4610
        %4643 = vmatpush1.bf16.msra.mxu0 %v4609
        %4644 = vmatprep.subr.bf16.mxu0 0
        %4645 = vmatpush2.bf16.msra.mxu0 0
        %4646 = vmatprep.subr.bf16.mxu0 0
        %4647 = vmatpush2.bf16.msra.mxu0 0
        %4648 = vmatprep.subr.bf16.mxu0 0
        %4649 = vmatpush2.bf16.msra.mxu0 0
        %4650 = vmatprep.subr.bf16.mxu0 0
        %4651 = vmatpush2.bf16.msra.mxu0 0
        %4652 = vmatprep.subr.bf16.mxu0 0
        %4653 = vmatpush2.bf16.msra.mxu0 0
        %4654 = vmatprep.subr.bf16.mxu0 0
        %4655 = vmatpush2.bf16.msra.mxu0 0
        %4656 = vmatprep.subr.bf16.mxu0 0
        %4657 = vmatpush2.bf16.msra.mxu0 0
        %4658 = vmatprep.subr.bf16.mxu0 0
        %4659 = vmatpush2.bf16.msra.mxu0 0
        %4660 = vmatprep.mubr.bf16.mxu0 0
        %4661 = vmatmul.mubr.bf16.gmra.mxu0 %v4626
        %v4662 = vpop.f32.mrf.mxu0
        %v4663 = vadd.f32 %v4578, %v4662
        %v4664 = vpop.f32.mrf.mxu0
        %v4665 = vadd.f32 %v4582, %v4664
        %v4666 = vpop.f32.mrf.mxu0
        %v4667 = vpop.f32.mrf.mxu0
        %4668 = vdwg.mxu0
        %v4669 = vmul.f32 %v4663, 0.5
        %v4670 = vmul.f32 %v4665, 0.5
        %v4671 = vmul.f32 %v4663, 0.70710677
        %v4672 = vmul.f32 %v4665, 0.70710677
        %vm4673 = vcmp.ge.f32.partialorder %v4671, 0.0
        %vm4674 = vcmp.ge.f32.partialorder %v4672, 0.0
        %v4675 = vsel %vm4673, 1.0, -1.0
        %v4676 = vsel %vm4674, 1.0, -1.0
        %v4677 = vand.u32 2147483647, %v4671
        %v4678 = vand.u32 2147483647, %v4672
        %v4679 = vmul.f32 %v4677, 0.3275911
        %v4680 = vmul.f32 %v4678, 0.3275911
        %v4681 = vadd.f32 %v4679, 1.0
        %v4682 = vadd.f32 %v4680, 1.0
        %v4683 = vrcp.pop %v4681
        %v4684 = vrcp.pop %v4682
        %v4685 = vmul.f32 %v4683, 1.0614054
        %v4686 = vmul.f32 %v4684, 1.0614054
        %v4687 = vadd.f32 %v4685, -1.4531521
        %v4688 = vadd.f32 %v4686, -1.4531521
        %v4689 = vmul.f32 %v4683, %v4687
        %v4690 = vmul.f32 %v4684, %v4688
        %v4691 = vadd.f32 %v4689, 1.4214138
        %v4692 = vadd.f32 %v4690, 1.4214138
        %v4693 = vmul.f32 %v4683, %v4691
        %v4694 = vmul.f32 %v4684, %v4692
        %v4695 = vadd.f32 %v4693, -0.28449672
        %v4696 = vadd.f32 %v4694, -0.28449672
        %v4697 = vmul.f32 %v4683, %v4695
        %v4698 = vmul.f32 %v4684, %v4696
        %v4699 = vadd.f32 %v4697, 0.2548296
        %v4700 = vadd.f32 %v4698, 0.2548296
        %v4701 = vmul.f32 %v4683, %v4699
        %v4702 = vmul.f32 %v4684, %v4700
        %v4703 = vsub.f32 0.0, %v4677
        %v4704 = vsub.f32 0.0, %v4678
        %v4705 = vmul.f32 %v4703, %v4677
        %v4706 = vmul.f32 %v4704, %v4678
        %v4707 = vmul.f32 %v4705, 1.442695
        %v4708 = vpow.pop %v4707
        %v4709 = vmul.f32 %v4706, 1.442695
        %v4710 = vpow.pop %v4709
        %v4711 = vmul.f32 %v4701, %v4708
        %v4712 = vmul.f32 %v4702, %v4710
        %v4713 = vsub.f32 1.0, %v4711
        %v4714 = vsub.f32 1.0, %v4712
        %v4715 = vmul.f32 %v4675, %v4713
        %v4716 = vmul.f32 %v4676, %v4714
        %v4717 = vadd.f32 %v4715, 1.0
        %v4718 = vadd.f32 %v4716, 1.0
        %v4719 = vmul.f32 %v4669, %v4717
        %v4720 = vmul.f32 %v4670, %v4718
        %v4721 = vpack.c.bf16 %v4719, %v4719
        %v4722 = vpack.c.bf16 %v4720, %v4720
        %s4723 = scalar_lea.vmem %s57, 128
        %v4724 = vld [vmem:[%s4723] sm:$0xf]
        %v4725 = vld [vmem:[%s4723 + $0x4] sm:$0xf]
        %v4726 = vld [vmem:[%s4723 + $0x8] sm:$0xf]
        %v4727 = vld [vmem:[%s4723 + $0xc] sm:$0xf]
        %v4728 = vld [vmem:[%s4723 + $0x10] sm:$0xf]
        %v4729 = vld [vmem:[%s4723 + $0x14] sm:$0xf]
        %v4730 = vld [vmem:[%s4723 + $0x18] sm:$0xf]
        %v4731 = vld [vmem:[%s4723 + $0x1c] sm:$0xf]
        %v4732 = vld [vmem:[%s4723 + $0x20] sm:$0xf]
        %v4733 = vld [vmem:[%s4723 + $0x24] sm:$0xf]
        %v4734 = vld [vmem:[%s4723 + $0x28] sm:$0xf]
        %v4735 = vld [vmem:[%s4723 + $0x2c] sm:$0xf]
        %v4736 = vld [vmem:[%s4723 + $0x30] sm:$0xf]
        %v4737 = vld [vmem:[%s4723 + $0x34] sm:$0xf]
        %v4738 = vld [vmem:[%s4723 + $0x38] sm:$0xf]
        %v4739 = vld [vmem:[%s4723 + $0x3c] sm:$0xf]
        %v4740 = vld [vmem:[%s4723 + $0x40] sm:$0xf]
        %v4741 = vld [vmem:[%s4723 + $0x44] sm:$0xf]
        %v4742 = vld [vmem:[%s4723 + $0x48] sm:$0xf]
        %v4743 = vld [vmem:[%s4723 + $0x4c] sm:$0xf]
        %v4744 = vld [vmem:[%s4723 + $0x50] sm:$0xf]
        %v4745 = vld [vmem:[%s4723 + $0x54] sm:$0xf]
        %v4746 = vld [vmem:[%s4723 + $0x58] sm:$0xf]
        %v4747 = vld [vmem:[%s4723 + $0x5c] sm:$0xf]
        %v4748 = vld [vmem:[%s4723 + $0x60] sm:$0xf]
        %v4749 = vld [vmem:[%s4723 + $0x64] sm:$0xf]
        %v4750 = vld [vmem:[%s4723 + $0x68] sm:$0xf]
        %v4751 = vld [vmem:[%s4723 + $0x6c] sm:$0xf]
        %v4752 = vld [vmem:[%s4723 + $0x70] sm:$0xf]
        %v4753 = vld [vmem:[%s4723 + $0x74] sm:$0xf]
        %v4754 = vld [vmem:[%s4723 + $0x78] sm:$0xf]
        %v4755 = vld [vmem:[%s4723 + $0x7c] sm:$0xf]
        %s4756 = scalar_lea.vmem %s59, 1
        %v4757 = vld [vmem:[%s4756] sm:$0x1]
        %v4759 = vlaneseq
        %v4760 = vshrl.u32 %v4759, 7
        %v4761 = vsub.s32 0, %v4760
        %v4762 = vrot.slane %v4757, %v4761
        %v4796 = vunpack.c.l.b16 %v4724
        %v4797 = vunpack.c.l.b16 %v4725
        %v4798 = vunpack.c.l.b16 %v4726
        %v4799 = vunpack.c.l.b16 %v4727
        %v4800 = vunpack.c.l.b16 %v4728
        %v4801 = vunpack.c.l.b16 %v4729
        %v4802 = vunpack.c.l.b16 %v4730
        %v4803 = vunpack.c.l.b16 %v4731
        %v4804 = vunpack.c.l.b16 %v4732
        %v4805 = vunpack.c.l.b16 %v4733
        %v4806 = vunpack.c.l.b16 %v4734
        %v4807 = vunpack.c.l.b16 %v4735
        %v4808 = vunpack.c.l.b16 %v4736
        %v4809 = vunpack.c.l.b16 %v4737
        %v4810 = vunpack.c.l.b16 %v4738
        %v4811 = vunpack.c.l.b16 %v4739
        %v4812 = vunpack.c.l.b16 %v4740
        %v4813 = vunpack.c.l.b16 %v4741
        %v4814 = vunpack.c.l.b16 %v4742
        %v4815 = vunpack.c.l.b16 %v4743
        %v4816 = vunpack.c.l.b16 %v4744
        %v4817 = vunpack.c.l.b16 %v4745
        %v4818 = vunpack.c.l.b16 %v4746
        %v4819 = vunpack.c.l.b16 %v4747
        %v4820 = vunpack.c.l.b16 %v4748
        %v4821 = vunpack.c.l.b16 %v4749
        %v4822 = vunpack.c.l.b16 %v4750
        %v4823 = vunpack.c.l.b16 %v4751
        %v4824 = vunpack.c.l.b16 %v4752
        %v4825 = vunpack.c.l.b16 %v4753
        %v4826 = vunpack.c.l.b16 %v4754
        %v4827 = vunpack.c.l.b16 %v4755
        %v4828 = vpack.c.b16 %v4797, %v4796
        %v4829 = vpack.c.b16 %v4799, %v4798
        %v4830 = vpack.c.b16 %v4801, %v4800
        %v4831 = vpack.c.b16 %v4803, %v4802
        %v4832 = vpack.c.b16 %v4805, %v4804
        %v4833 = vpack.c.b16 %v4807, %v4806
        %v4834 = vpack.c.b16 %v4809, %v4808
        %v4835 = vpack.c.b16 %v4811, %v4810
        %v4836 = vpack.c.b16 %v4813, %v4812
        %v4837 = vpack.c.b16 %v4815, %v4814
        %v4838 = vpack.c.b16 %v4817, %v4816
        %v4839 = vpack.c.b16 %v4819, %v4818
        %v4840 = vpack.c.b16 %v4821, %v4820
        %v4841 = vpack.c.b16 %v4823, %v4822
        %v4842 = vpack.c.b16 %v4825, %v4824
        %v4843 = vpack.c.b16 %v4827, %v4826
        %4860 = vmatprep.subr.bf16.mxu0 0
        %4861 = vmatpush1.bf16.msra.mxu0 %v4835
        %4862 = vmatprep.subr.bf16.mxu0 0
        %4863 = vmatpush1.bf16.msra.mxu0 %v4834
        %4864 = vmatprep.subr.bf16.mxu0 0
        %4865 = vmatpush1.bf16.msra.mxu0 %v4833
        %4866 = vmatprep.subr.bf16.mxu0 0
        %4867 = vmatpush1.bf16.msra.mxu0 %v4832
        %4868 = vmatprep.subr.bf16.mxu0 0
        %4869 = vmatpush1.bf16.msra.mxu0 %v4831
        %4870 = vmatprep.subr.bf16.mxu0 0
        %4871 = vmatpush1.bf16.msra.mxu0 %v4830
        %4872 = vmatprep.subr.bf16.mxu0 0
        %4873 = vmatpush1.bf16.msra.mxu0 %v4829
        %4874 = vmatprep.subr.bf16.mxu0 0
        %4875 = vmatpush1.bf16.msra.mxu0 %v4828
        %4876 = vmatprep.subr.bf16.mxu0 0
        %4877 = vmatpush2.bf16.msra.mxu0 %v4843
        %4878 = vmatprep.subr.bf16.mxu0 0
        %4879 = vmatpush2.bf16.msra.mxu0 %v4842
        %4880 = vmatprep.subr.bf16.mxu0 0
        %4881 = vmatpush2.bf16.msra.mxu0 %v4841
        %4882 = vmatprep.subr.bf16.mxu0 0
        %4883 = vmatpush2.bf16.msra.mxu0 %v4840
        %4884 = vmatprep.subr.bf16.mxu0 0
        %4885 = vmatpush2.bf16.msra.mxu0 %v4839
        %4886 = vmatprep.subr.bf16.mxu0 0
        %4887 = vmatpush2.bf16.msra.mxu0 %v4838
        %4888 = vmatprep.subr.bf16.mxu0 0
        %4889 = vmatpush2.bf16.msra.mxu0 %v4837
        %4890 = vmatprep.subr.bf16.mxu0 0
        %4891 = vmatpush2.bf16.msra.mxu0 %v4836
        %4892 = vmatprep.mubr.bf16.mxu0 %v4722
        %4893 = vmatmul.mubr.bf16.gmra.mxu0 %v4721
        %v4894 = vpop.f32.mrf.mxu0
        %v4895 = vadd.f32 %v4762, %v4894
        %v4896 = vpop.f32.mrf.mxu0
        %v4897 = vpop.f32.mrf.mxu0
        %v4898 = vpop.f32.mrf.mxu0
        %4899 = vdwg.mxu0
        %v4900 = vadd.f32 %v4530, %v4895
        %v4901 = vld [vmem:[%s61] sm:$0x1]
        %v4902 = vld [vmem:[%s63] sm:$0x1]
        %v4903 = vsel %vm2802, %v4900, 0.0
        %4904 = vadd.xlane.f32.xlu0 %v4903
        %v4905 = vpop.xlane.xlu0 %4904
        %v4906 = vmul.f32 %v4905, %v2806
        %v4907 = vsub.f32 %v4900, %v4906
        %v4908 = vmul.f32 %v4907, %v4907
        %v4909 = vsel %vm2802, %v4908, 0.0
        %4910 = vadd.xlane.f32.xlu0 %v4909
        %v4911 = vpop.xlane.xlu0 %4910
        %v4912 = vmul.f32 %v4911, %v2806
        %v4913 = vadd.f32 %v4912, 1e-05
        %v4914 = vrsqrt.pop %v4913
        %v4915 = vmul.f32 %v4907, %v4914
        %v4917 = vlaneseq
        %v4918 = vshrl.u32 %v4917, 7
        %v4919 = vsub.s32 0, %v4918
        %v4920 = vrot.slane %v4901, %v4919
        %v4922 = vmul.f32 %v4915, %v4920
        %v4924 = vlaneseq
        %v4925 = vshrl.u32 %v4924, 7
        %v4926 = vsub.s32 0, %v4925
        %v4927 = vrot.slane %v4902, %v4926
        %v4929 = vadd.f32 %v4922, %v4927
        %v4930 = vsel %vm2802, %v4929, 0.0
        %v4931 = vrot.slane %v4930, 4
        %v4932 = vadd.f32 %v4930, %v4931
        %v4933 = vrot.slane %v4932, 2
        %v4934 = vadd.f32 %v4932, %v4933
        %v4935 = vrot.slane %v4934, 1
        %v4936 = vadd.f32 %v4934, %v4935
        %v4937 = vrcp.pop 4.0
        %v4938 = vmul.f32 %v4936, %v4937
        %v4939 = vpack.c.bf16 %v4938, %v4938
        %v4940 = vld [vmem:[%s65] sm:$0xf]
        %v4941 = vld [vmem:[%s65 + $0x4] sm:$0xf]
        %v4942 = vld [vmem:[%s65 + $0x8] sm:$0xf]
        %v4943 = vld [vmem:[%s65 + $0xc] sm:$0xf]
        %v4944 = vld [vmem:[%s65 + $0x10] sm:$0xf]
        %v4945 = vld [vmem:[%s65 + $0x14] sm:$0xf]
        %v4946 = vld [vmem:[%s65 + $0x18] sm:$0xf]
        %v4947 = vld [vmem:[%s65 + $0x1c] sm:$0xf]
        %v4948 = vld [vmem:[%s67] sm:$0x1]
        %v4957 = vunpack.c.l.b16 %v4940
        %v4958 = vunpack.c.l.b16 %v4941
        %v4959 = vunpack.c.l.b16 %v4942
        %v4960 = vunpack.c.l.b16 %v4943
        %v4961 = vunpack.c.l.b16 %v4944
        %v4962 = vunpack.c.l.b16 %v4945
        %v4963 = vunpack.c.l.b16 %v4946
        %v4964 = vunpack.c.l.b16 %v4947
        %v4965 = vpack.c.b16 %v4958, %v4957
        %v4966 = vpack.c.b16 %v4960, %v4959
        %v4967 = vpack.c.b16 %v4962, %v4961
        %v4968 = vpack.c.b16 %v4964, %v4963
        %v4974 = vsel %vm2630, %v4939, 0
        %4976 = vmatprep.subr.bf16.mxu0 0
        %4977 = vmatpush1.bf16.msra.mxu0 0
        %4978 = vmatprep.subr.bf16.mxu0 0
        %4979 = vmatpush1.bf16.msra.mxu0 0
        %4980 = vmatprep.subr.bf16.mxu0 0
        %4981 = vmatpush1.bf16.msra.mxu0 0
        %4982 = vmatprep.subr.bf16.mxu0 0
        %4983 = vmatpush1.bf16.msra.mxu0 0
        %4984 = vmatprep.subr.bf16.mxu0 0
        %4985 = vmatpush1.bf16.msra.mxu0 %v4968
        %4986 = vmatprep.subr.bf16.mxu0 0
        %4987 = vmatpush1.bf16.msra.mxu0 %v4967
        %4988 = vmatprep.subr.bf16.mxu0 0
        %4989 = vmatpush1.bf16.msra.mxu0 %v4966
        %4990 = vmatprep.subr.bf16.mxu0 0
        %4991 = vmatpush1.bf16.msra.mxu0 %v4965
        %4992 = vmatprep.subr.bf16.mxu0 0
        %4993 = vmatpush2.bf16.msra.mxu0 0
        %4994 = vmatprep.subr.bf16.mxu0 0
        %4995 = vmatpush2.bf16.msra.mxu0 0
        %4996 = vmatprep.subr.bf16.mxu0 0
        %4997 = vmatpush2.bf16.msra.mxu0 0
        %4998 = vmatprep.subr.bf16.mxu0 0
        %4999 = vmatpush2.bf16.msra.mxu0 0
        %5000 = vmatprep.subr.bf16.mxu0 0
        %5001 = vmatpush2.bf16.msra.mxu0 0
        %5002 = vmatprep.subr.bf16.mxu0 0
        %5003 = vmatpush2.bf16.msra.mxu0 0
        %5004 = vmatprep.subr.bf16.mxu0 0
        %5005 = vmatpush2.bf16.msra.mxu0 0
        %5006 = vmatprep.subr.bf16.mxu0 0
        %5007 = vmatpush2.bf16.msra.mxu0 0
        %5008 = vmatprep.mubr.bf16.mxu0 0
        %5009 = vmatmul.mubr.bf16.gmra.mxu0 %v4974
        %v5010 = vpop.f32.mrf.mxu0
        %v5011 = vadd.f32 %v4948, %v5010
        %v5012 = vpop.f32.mrf.mxu0
        %v5013 = vpop.f32.mrf.mxu0
        %v5014 = vpop.f32.mrf.mxu0
        %5015 = vdwg.mxu0
        %vm5016 = vcmask 73728
        %5017 = vst.msk [vmem:[%s1034] sm:$0x1] %vm5016, %v5011
        %s5018 = sand.u32 %s810, 1
        %s5019 = scalar_lea.sflag [#allocation3], %s5018
        %s5020 = sand.u32 %s810, 1
        %s5021 = scalar_lea.vmem [#allocation2], %s5020
        // Predicated region
        $region157: #{hst_forward.1} parent=155 // pred_check
          %p5022 = pneg %p820
        $region158: #{hst_forward.1} parent=155 // pred_check_branch
          %5024 = sbr.rel (%p5022) target = $region160
        $region159: #{hst_forward.1} parent=155 // pred_region
          %s5026 = ssub.s32 16, 16
          %5027 = vsyncadd %s5019, %s5026
          %s5028 = smul.addr %s83, 16
          %s5029 = scalar_lea.hbm %s69, %s5028
          %s5031 = sshll.u32 %s5021, 4
          %s5032 = int_to_ptr.vmem [resolvable:$true] %s5031
          %5034 = dma.vmem_to_hbm [thread:$0]  %s5032, 16, %s5029, %s5019
        $region160: #{hst_forward.1} parent=155 // pred_fallthru
          _
      $region156: #{hst_forward.1} parent=5 // pred_fallthru
        _
      %p5035 = scmp.le.s32.totalorder 2, %s78
      // Predicated region
      $region161: #{hst_forward.1} parent=5 // pred_check
        %p5036 = pneg %p5035
      $region162: #{hst_forward.1} parent=5 // pred_check_branch
        %5038 = sbr.rel (%p5036) target = $region164
      $region163: #{hst_forward.1} parent=5 // pred_region
        %s5039 = ssub.s32 %s78, 2
        // Predicated region
        $region165: #{hst_forward.1} parent=163 // pred_check
          %p5040 = pneg %p826
        $region166: #{hst_forward.1} parent=163 // pred_check_branch
          %5042 = sbr.rel (%p5040) target = $region168
        $region167: #{hst_forward.1} parent=163 // pred_region
          %s5043 = sand.u32 %s811, 1
          %s5044 = scalar_lea.sflag [#allocation3], %s5043
          %s5045 = sand.u32 %s811, 1
          %s5046 = scalar_lea.vmem [#allocation2], %s5045
          %5047 = dma.done %s5044, 16
        $region168: #{hst_forward.1} parent=163 // pred_fallthru
          _
      $region164: #{hst_forward.1} parent=5 // pred_fallthru
        _
    $region6: #{hst_forward.1} parent=1 // loop_footer
      %s82 = sadd.s32 1, %s78
    $region7: #{hst_forward.1} parent=1 // loop_footer_branch
      %77 = sbr.rel target = $region3
    $region8: #{hst_forward.1} parent=1 // loop_exit
      _
    %5048 = vsyncpa [#allocation3], 1
    %s5049 = scalar_lea.sflag [#allocation3], 1
    %5050 = vsyncpa %s5049, 1

</llo_original>
